<compile_context>
chip_gen: v5e
topology: v5e:2x2
jax: 0.10.0
libtpu: 0.0.40
codegen_flags: <defaults>
</compile_context>

<pallas_src>
import functools

import jax
import jax.numpy as jnp
from jax import lax
from jax.experimental import pallas as pl
from jax.experimental.pallas import tpu as pltpu

LEAKY_SLOPE = 0.01
BN_EPS = 1e-5

TM_MAX = 2048                    # max output rows per conv grid step
VMEM_LIMIT = 48 * 1024 * 1024    # fits v7x's 64 MiB physical VMEM


def _round_up(x, m):
    return (x + m - 1) // m * m


def _cdiv(a, b):
    return -(-a // b)


# ----------------------------------------------------------------------------
# Capability probe: unaligned lane-offset stores (for the im2col patch).
# ----------------------------------------------------------------------------
@functools.lru_cache(maxsize=None)
def _lane_offset_store_ok():
    """True if Mosaic lowers a store to a lane slice at an unaligned offset.

    Selects between the fast per-kh im2col patch assembly (one matmul per
    kernel row, K = KW*Cin) and the per-tap fallback (K = Cin per matmul).
    """
    def k(x_ref, o_ref):
        o_ref[...] = jnp.zeros_like(o_ref)
        o_ref[:, 96:192] = x_ref[...]

    try:
        out = pl.pallas_call(
            k, out_shape=jax.ShapeDtypeStruct((16, 384), jnp.bfloat16),
        )(jnp.ones((16, 96), jnp.bfloat16))
        jax.block_until_ready(out)
        return True
    except Exception:                      # any lowering failure -> fallback
        return False


# ----------------------------------------------------------------------------
# Pallas kernels
# ----------------------------------------------------------------------------
def _conv_kernel(x_ref, w_ref, b_ref, s_ref, t_ref, *rest, kh_taps, kw_taps,
                 cin, row_stride, tm, act, bn_first, resident, two_outs,
                 use_patch):
    """Fused conv step: per-kh im2col + matmul + bias/BN/activation epilogue.

    x_ref : (rows, Cin) resident flat padded input (resident=True)   [bf16]
            (tm,  K)    streamed, pre-im2col'ed block otherwise      [bf16]
    w_ref : (KH, KW*Cin, Cout) packed weights                        [bf16]
    b/s/t : (1, Cout) bias / BN scale / BN shift                     [f32]
    rest  : o_ref [, o2_ref], acc_ref [, patch_ref]
    """
    n_out = 2 if two_outs else 1
    outs = rest[:n_out]
    acc_ref = rest[n_out]
    patch_ref = rest[n_out + 1] if use_patch else None

    if resident:
        base = pl.multiple_of(pl.program_id(0) * tm, 256)
    else:
        base = 0

    acc_ref[...] = jnp.zeros_like(acc_ref)
    for kh in range(kh_taps):                              # fully unrolled
        r0 = base + kh * row_stride
        if kw_taps == 1:
            lhs = x_ref[pl.ds(r0, tm), :] if resident else x_ref[...]
            acc_ref[...] += jnp.dot(lhs, w_ref[kh],
                                    preferred_element_type=jnp.float32)
        elif use_patch:
            # per-kh im2col: KW row-shifted windows side by side -> ONE matmul
            # with K = KW*Cin (raises MXU depth utilisation ~KWx).
            for kw in range(kw_taps):
                patch_ref[:, kw * cin:(kw + 1) * cin] = (
                    x_ref[pl.ds(r0 + kw, tm), :])
            acc_ref[...] += jnp.dot(patch_ref[...], w_ref[kh],
                                    preferred_element_type=jnp.float32)
        else:
            # fallback: one (tm, Cin) x (Cin, Cout) matmul per kernel tap.
            wk = w_ref[kh]
            for kw in range(kw_taps):
                acc_ref[...] += jnp.dot(
                    x_ref[pl.ds(r0 + kw, tm), :],
                    wk[kw * cin:(kw + 1) * cin, :],
                    preferred_element_type=jnp.float32)

    def _activate(v):
        if act == "relu":
            return jnp.maximum(v, 0.0)
        if act == "leaky":
            return jnp.where(v > 0, v, LEAKY_SLOPE * v)
        return v

    y = acc_ref[...] + b_ref[...]
    if bn_first:        # Conv -> BN -> act (conv bias pre-folded into t_ref)
        y = _activate(y * s_ref[...] + t_ref[...])
    else:               # Conv -> act -> BN  (pyramid branches)
        y = _activate(y) * s_ref[...] + t_ref[...]
    outs[0][...] = y.astype(outs[0].dtype)
    if two_outs:        # fused extra LeakyReLU output (leaky(hidden_2))
        outs[1][...] = jnp.where(y > 0, y, LEAKY_SLOPE * y).astype(outs[1].dtype)


def _h7_kernel(x1_ref, x2_ref, w1_ref, w2_ref, o_ref):
    """ConvTranspose(192,1,5,5) as Y = [leaky(x1)|x2] @ W, N = 25 taps."""
    a = x1_ref[...]
    a = jnp.where(a > 0, a, LEAKY_SLOPE * a)   # activ_6's LeakyReLU on the
    o_ref[...] = (                             # activ4 half (x2 already has it)
        jnp.dot(a, w1_ref[...], preferred_element_type=jnp.float32)
        + jnp.dot(x2_ref[...], w2_ref[...], preferred_element_type=jnp.float32))


# ----------------------------------------------------------------------------
# Kernel wrappers
# ----------------------------------------------------------------------------
def _conv_call(xf, w_packed, bias, scale, shift, *, kh_taps, kw_taps, cin,
               row_stride, m_valid, act, bn_first, resident, two_outs=False):
    kdim = w_packed.shape[1]                 # kw_taps * cin
    cout = w_packed.shape[2]

    nblk = _cdiv(m_valid, TM_MAX)
    if nblk > 1 and nblk % 2:
        nblk += 1                            # even grid -> balanced v7x 2-core split
    tm = _round_up(_cdiv(m_valid, nblk), 256)
    mp = tm * nblk

    use_patch = kw_taps > 1 and _lane_offset_store_ok()

    if resident:
        halo = (kh_taps - 1) * row_stride + (kw_taps - 1)
        need = _round_up(mp + halo, 8)
        if need > xf.shape[0]:
            xf = jnp.pad(xf, ((0, need - xf.shape[0]), (0, 0)))
        x_spec = pl.BlockSpec((xf.shape[0], cin), lambda i: (0, 0))
    else:
        if mp > xf.shape[0]:
            xf = jnp.pad(xf, ((0, mp - xf.shape[0]), (0, 0)))
        x_spec = pl.BlockSpec((tm, kdim), lambda i: (i, 0))

    if bn_first:                             # fold the conv bias into the BN shift
        shift = shift + scale * bias
        bias = jnp.zeros_like(bias)

    o_sds = jax.ShapeDtypeStruct((mp, cout), jnp.bfloat16)
    if two_outs:
        out_shape = (o_sds, o_sds)
        out_specs = (pl.BlockSpec((tm, cout), lambda i: (i, 0)),
                     pl.BlockSpec((tm, cout), lambda i: (i, 0)))
    else:
        out_shape = o_sds
        out_specs = pl.BlockSpec((tm, cout), lambda i: (i, 0))

    scratch = [pltpu.VMEM((tm, cout), jnp.float32)]
    if use_patch:
        scratch.append(pltpu.VMEM((tm, kdim), jnp.bfloat16))

    kernel = functools.partial(
        _conv_kernel, kh_taps=kh_taps, kw_taps=kw_taps, cin=cin,
        row_stride=row_stride, tm=tm, act=act, bn_first=bn_first,
        resident=resident, two_outs=two_outs, use_patch=use_patch)

    out = pl.pallas_call(
        kernel,
        out_shape=out_shape,
        grid=(nblk,),
        in_specs=[
            x_spec,
            pl.BlockSpec(w_packed.shape, lambda i: (0, 0, 0)),
            pl.BlockSpec((1, cout), lambda i: (0, 0)),
            pl.BlockSpec((1, cout), lambda i: (0, 0)),
            pl.BlockSpec((1, cout), lambda i: (0, 0)),
        ],
        out_specs=out_specs,
        scratch_shapes=scratch,
        compiler_params=pltpu.CompilerParams(
            dimension_semantics=("parallel",),
            vmem_limit_bytes=VMEM_LIMIT),
    )(xf, w_packed,
      bias.reshape(1, cout).astype(jnp.float32),
      scale.reshape(1, cout).astype(jnp.float32),
      shift.reshape(1, cout).astype(jnp.float32))

    if two_outs:
        return out[0][:m_valid], out[1][:m_valid]
    return out[:m_valid]


def conv2d(x, w_packed, bias, scale, shift, *, ksize, padding=(0, 0),
           act="none", bn_first=True, two_outs=False):
    """Stride-1 Conv2d (NHWC, batch 1) with fused bias + BN affine + activation."""
    assert x.shape[0] == 1
    kh_, kw_ = ksize
    kh_w, kdim, cout = w_packed.shape
    cin = x.shape[-1]
    assert kh_w == kh_ and kdim == kw_ * cin
    ph, pw = padding
    _, h, w, _ = x.shape
    ho = h + 2 * ph - kh_ + 1
    wo = w + 2 * pw - kw_ + 1

    if cin * kh_ * kw_ <= 192:
        # small-K conv (pyramid branches Cin=1, space-to-depth hidden_1):
        # explicit im2col in JAX, single streamed matmul with K = KH*KW*Cin.
        xp = jnp.pad(x[0], ((ph, ph), (pw, pw), (0, 0))).astype(jnp.bfloat16)
        cols = [xp[i:i + ho, j:j + wo, :]
                for i in range(kh_) for j in range(kw_)]
        xf = jnp.concatenate(cols, axis=-1).reshape(ho * wo, kh_ * kw_ * cin)
        out = _conv_call(xf, w_packed.reshape(1, kh_ * kw_ * cin, cout),
                         bias, scale, shift, kh_taps=1, kw_taps=1,
                         cin=kh_ * kw_ * cin, row_stride=0, m_valid=ho * wo,
                         act=act, bn_first=bn_first, resident=False,
                         two_outs=two_outs)
        if two_outs:
            return tuple(o.reshape(1, ho, wo, cout) for o in out)
        return out.reshape(1, ho, wo, cout)

    # implicit im2col on a resident, spatially padded, row-flattened input.
    wpad = _round_up(w + 2 * pw, 8)            # 8-aligned rows -> aligned kh loads
    hpad = h + 2 * ph
    xp = jnp.pad(x[0], ((ph, ph), (pw, wpad - w - pw), (0, 0))
                 ).astype(jnp.bfloat16)
    xf = xp.reshape(hpad * wpad, cin)
    out = _conv_call(xf, w_packed, bias, scale, shift, kh_taps=kh_,
                     kw_taps=kw_, cin=cin, row_stride=wpad,
                     m_valid=ho * wpad, act=act, bn_first=bn_first,
                     resident=True, two_outs=two_outs)

    def _crop(o):
        return o.reshape(ho, wpad, cout)[:, :wo, :][None]

    if two_outs:
        return tuple(_crop(o) for o in out)
    return _crop(out)


def conv_transpose_h7(x1, x2, w1, w2, bias):
    """ConvTranspose2d(192,1,5,5,s1,p2) applied to cat(x1, x2) along channels.

    Restructured as one matmul Y = [leaky(x1)|x2] @ W with N = 25 taps,
    followed by a col2im shifted column-sum (tiny, plain JAX).
    """
    _, h, w, c1 = x1.shape
    c2 = x2.shape[-1]
    kh = kw = 5
    ph = pw = 2
    wpad = _round_up(w + 2 * pw, 8)
    hpad = h + 2 * ph

    def _flat(x):
        xp = jnp.pad(x[0], ((ph, ph), (pw, wpad - w - pw), (0, 0))
                     ).astype(jnp.bfloat16)
        return xp.reshape(hpad * wpad, x.shape[-1])

    x1f, x2f = _flat(x1), _flat(x2)
    rows = hpad * wpad
    m_target = rows + 8                        # halo rows for the col2im shifts
    nblk = _cdiv(m_target, TM_MAX)
    if nblk > 1 and nblk % 2:
        nblk += 1
    tm = _round_up(_cdiv(m_target, nblk), 256)
    mp = tm * nblk
    x1f = jnp.pad(x1f, ((0, mp - rows), (0, 0)))
    x2f = jnp.pad(x2f, ((0, mp - rows), (0, 0)))

    y = pl.pallas_call(
        _h7_kernel,
        out_shape=jax.ShapeDtypeStruct((mp, kh * kw), jnp.float32),
        grid=(nblk,),
        in_specs=[
            pl.BlockSpec((tm, c1), lambda i: (i, 0)),
            pl.BlockSpec((tm, c2), lambda i: (i, 0)),
            pl.BlockSpec((c1, kh * kw), lambda i: (0, 0)),
            pl.BlockSpec((c2, kh * kw), lambda i: (0, 0)),
        ],
        out_specs=pl.BlockSpec((tm, kh * kw), lambda i: (i, 0)),
        compiler_params=pltpu.CompilerParams(
            dimension_semantics=("parallel",),
            vmem_limit_bytes=VMEM_LIMIT),
    )(x1f, x2f, w1, w2)

    # col2im: out[m] = bias + sum_t Y[m + dy*wpad + dx, t]  (data movement only)
    m_valid = h * wpad
    out = jnp.full((m_valid,), bias[0], jnp.float32)
    for dy in range(kh):
        for dx in range(kw):
            off = dy * wpad + dx
            out = out + y[off:off + m_valid, dy * kw + dx]
    return out.reshape(h, wpad)[:, :w][None, :, :, None]


# ----------------------------------------------------------------------------
# Plain-JAX glue (pure data movement at tiny sizes)
# TODO(synk): bilinear align_corners resize, AvgPool2d, nearest x2 upsample and
# the h7 col2im shift-sum stay as plain-JAX data movement — no Pallas kernel is
# worth it at these sizes.
# ----------------------------------------------------------------------------
def avg_pool2d(x, k):
    s = lax.reduce_window(x.astype(jnp.float32), 0.0, lax.add,
                          (1, k, k, 1), (1, 1, 1, 1), "VALID")
    return s * (1.0 / (k * k))


def bilinear_align_corners(x, out_h, out_w):
    xf = x.astype(jnp.float32)
    _, h, w, _ = xf.shape
    ys = jnp.linspace(0.0, float(h - 1), out_h)
    xs = jnp.linspace(0.0, float(w - 1), out_w)
    y0 = jnp.floor(ys).astype(jnp.int32)
    x0 = jnp.floor(xs).astype(jnp.int32)
    y1 = jnp.minimum(y0 + 1, h - 1)
    x1 = jnp.minimum(x0 + 1, w - 1)
    wy = ys - y0.astype(jnp.float32)
    wx = xs - x0.astype(jnp.float32)
    top, bot = xf[:, y0, :, :], xf[:, y1, :, :]
    v = top * (1.0 - wy)[None, :, None, None] + bot * wy[None, :, None, None]
    left, right = v[:, :, x0, :], v[:, :, x1, :]
    out = (left * (1.0 - wx)[None, None, :, None]
           + right * wx[None, None, :, None])
    return out.astype(x.dtype)


def nearest_up2(x):
    n, h, w, c = x.shape
    return jnp.broadcast_to(x[:, :, None, :, None, :],
                            (n, h, 2, w, 2, c)).reshape(n, 2 * h, 2 * w, c)


def space_to_depth2(x):
    h, w, c = x.shape
    return x.reshape(h // 2, 2, w // 2, 2, c).transpose(
        0, 2, 1, 3, 4).reshape(h // 2, w // 2, 4 * c)


# ----------------------------------------------------------------------------
# Parameters (deterministic, in-script)
# ----------------------------------------------------------------------------
def _conv_params(key, cout, cin, kh, kw):
    k1, k2 = jax.random.split(key)
    fan_in = cin * kh * kw
    w = jax.random.normal(k1, (cout, cin, kh, kw), jnp.float32) / jnp.sqrt(fan_in)
    b = 0.01 * jax.random.normal(k2, (cout,), jnp.float32)
    return w, b


def _bn_affine(key, c):
    k1, k2 = jax.random.split(key)
    gamma = 1.0 + 0.1 * jax.random.normal(k1, (c,), jnp.float32)
    beta = 0.1 * jax.random.normal(k2, (c,), jnp.float32)
    mean = jnp.zeros((c,), jnp.float32)
    var = jnp.ones((c,), jnp.float32)
    scale = gamma / jnp.sqrt(var + BN_EPS)
    shift = beta - mean * scale
    return scale, shift


def _pack_conv(w):
    """PyTorch (Cout,Cin,KH,KW) -> (KH, KW*Cin, Cout) bf16 (kh-major, kw|cin)."""
    cout, cin, kh, kw = w.shape
    return jnp.transpose(w, (2, 3, 1, 0)).reshape(kh, kw * cin, cout
                                                  ).astype(jnp.bfloat16)


def _pack_conv_s2d(w):
    """7x7 / stride-2 conv weight -> equivalent 4x4 / stride-1 conv over a 2x2
    space-to-depth input: (4, 4*(4*Cin), Cout) bf16."""
    cout, cin, _, _ = w.shape
    wp = jnp.pad(w, ((0, 0), (0, 0), (0, 1), (0, 1)))     # (cout,cin,8,8)
    wr = wp.reshape(cout, cin, 4, 2, 4, 2)                 # co,ci,u,a,v,b
    wr = jnp.transpose(wr, (2, 4, 3, 5, 1, 0))             # u,v,a,b,ci,co
    return wr.reshape(4, 4 * 4 * cin, cout).astype(jnp.bfloat16)


def init_params(key):
    keys = iter(jax.random.split(key, 32))
    p = {}
    # PyramydPool: 4 branches of Conv2d(1,32,3,3,pad1) + ReLU + BN(32)
    for i in range(1, 5):
        w, b = _conv_params(next(keys), 32, 1, 3, 3)
        s, t = _bn_affine(next(keys), 32)
        p[f"br{i}"] = (_pack_conv(w), b, s, t)
    w, b = _conv_params(next(keys), 4, 128, 3, 3)
    p["lastconv"] = (_pack_conv(w), b)
    # SubNet2 trunk
    w, b = _conv_params(next(keys), 60, 3, 7, 7)
    s, t = _bn_affine(next(keys), 60)
    p["h1"] = (_pack_conv_s2d(w), b, s, t)                # 7x7/s2 -> 4x4/s1
    w, b = _conv_params(next(keys), 64, 64, 9, 9)
    s, t = _bn_affine(next(keys), 64)
    p["h2"] = (_pack_conv(w), b, s, t)
    w, b = _conv_params(next(keys), 96, 64, 7, 7)
    s, t = _bn_affine(next(keys), 96)
    p["h3"] = (_pack_conv(w), b, s, t)
    w, b = _conv_params(next(keys), 64, 96, 5, 5)
    s, t = _bn_affine(next(keys), 64)
    p["c4"] = (_pack_conv(w), b, s, t)
    w, b = _conv_params(next(keys), 96, 128, 5, 5)
    s, t = _bn_affine(next(keys), 96)
    p["h5"] = (_pack_conv(w), b, s, t)
    w, b = _conv_params(next(keys), 64, 96, 3, 3)
    s, t = _bn_affine(next(keys), 64)
    p["c6"] = (_pack_conv(w), b, s, t)
    # ConvTranspose2d(192,1,5,5,s1,p2) == Conv2d(pad 2) with the kernel flipped
    # spatially; packed as a (Cin, 25-tap) matrix for the N=25 matmul + col2im,
    # split along Cin (128 | 64) so the 192-ch concat is never materialized.
    k1, k2 = jax.random.split(next(keys))
    wt = jax.random.normal(k1, (192, 1, 5, 5), jnp.float32) / jnp.sqrt(192 * 25)
    bt = 0.01 * jax.random.normal(k2, (1,), jnp.float32)
    w_mat = jnp.flip(wt[:, 0, :, :], axis=(1, 2)).reshape(192, 25
                                                          ).astype(jnp.bfloat16)
    p["h7"] = (w_mat[:128], w_mat[128:], bt)
    p["id4"] = (jnp.ones((4,), jnp.float32), jnp.zeros((4,), jnp.float32))
    return p


# ----------------------------------------------------------------------------
# Forward passes
# ----------------------------------------------------------------------------
def pyramyd_pool(p, x):
    """x: (1, H, W, 1) mask (NHWC).  Returns (1, 128, 256, 4)."""
    _, h, w, _ = x.shape
    branches = []
    for i, ps in enumerate((64, 32, 16, 8), start=1):
        wgt, b, s, t = p[f"br{i}"]
        pooled = avg_pool2d(x, ps)
        # PyTorch branch is Conv -> ReLU -> BatchNorm (BN after the act).
        conv = conv2d(pooled, wgt, b, s, t, ksize=(3, 3), padding=(1, 1),
                      act="relu", bn_first=False)
        branches.append(bilinear_align_corners(conv, h, w))
    cat = jnp.concatenate(branches, axis=-1)                  # (1, h, w, 128)
    wgt, b = p["lastconv"]
    s4, t4 = p["id4"]
    out = conv2d(cat, wgt, b, s4, t4, ksize=(3, 3), padding=(1, 1), act="relu")
    return bilinear_align_corners(out, 128, 256)   # module hard-codes (128,256)


def subnet2_forward(p, right_nchw, mask_nchw):
    right = jnp.transpose(right_nchw, (0, 2, 3, 1))           # NCHW -> NHWC
    mask = jnp.transpose(mask_nchw, (0, 2, 3, 1))

    # hidden_1: 7x7/stride-2 conv as a 4x4/stride-1 conv over space-to-depth,
    # via the explicit-im2col K=192 matmul path.
    wgt, b, s, t = p["h1"]
    r_s2d = space_to_depth2(jnp.pad(right[0], ((3, 3), (3, 3), (0, 0))))[None]
    hidden_1 = conv2d(r_s2d, wgt, b, s, t, ksize=(4, 4), act="leaky")

    mask_up = pyramyd_pool(p, mask)                           # (1,128,256,4)
    cat_mask_right = jnp.concatenate([hidden_1, mask_up], axis=-1)     # 64 ch

    # hidden_2 (+ fused extra LeakyReLU output used by the activ4 concat)
    wgt, b, s, t = p["h2"]
    hidden_2, hidden_2_l = conv2d(cat_mask_right, wgt, b, s, t, ksize=(9, 9),
                                  padding=(4, 4), act="leaky", two_outs=True)
    wgt, b, s, t = p["h3"]
    hidden_3 = conv2d(hidden_2, wgt, b, s, t, ksize=(7, 7), padding=(3, 3),
                      act="leaky")

    # activ4 = leaky(cat(hidden_2, batch4)) == cat(leaky(hidden_2), leaky(batch4))
    wgt, b, s, t = p["c4"]
    batch4_l = conv2d(hidden_3, wgt, b, s, t, ksize=(5, 5), padding=(2, 2),
                      act="leaky")                            # BN + leaky fused
    activ4 = jnp.concatenate([hidden_2_l, batch4_l], axis=-1)          # 128 ch

    wgt, b, s, t = p["h5"]
    hidden_5 = conv2d(activ4, wgt, b, s, t, ksize=(5, 5), padding=(2, 2),
                      act="leaky")
    wgt, b, s, t = p["c6"]
    batch6_l = conv2d(hidden_5, wgt, b, s, t, ksize=(3, 3), padding=(1, 1),
                      act="leaky")                            # BN + leaky fused

    # hidden_7: ConvTranspose2d(192,1,5,5,s1,p2) on cat(leaky(activ4), batch6_l);
    # the LeakyReLU on the activ4 half is fused into the matmul prologue.
    w7a, w7b, b7 = p["h7"]
    h7 = conv_transpose_h7(activ4, batch6_l, w7a, w7b, b7)    # (1,128,256,1)
    h7 = nearest_up2(h7)                                      # Upsample(x2, nearest)
    return jnp.transpose(h7, (0, 3, 1, 2)).astype(jnp.float32)   # -> NCHW


if __name__ == "__main__":
    key = jax.random.PRNGKey(0)
    kp, kr, km = jax.random.split(key, 3)
    params = init_params(kp)

    # Smallest shapes consistent with the module: PyramydPool hard-codes its
    # final resize to (128, 256), which must match hidden_1 (7x7 stride-2 conv)
    # -> right is (1, 3, 256, 512); the 64x64 AvgPool needs a >=64x64 mask.
    right = jax.random.normal(kr, (1, 3, 256, 512), jnp.float32)
    mask = jax.random.normal(km, (1, 1, 64, 64), jnp.float32)

    out = subnet2_forward(params, right, mask)
    jax.block_until_ready(out)
    assert out.shape == (1, 1, 256, 512), out.shape
    assert bool(jnp.all(jnp.isfinite(out)))
    print("KERNEL_OK")
</pallas_src>

<mosaic_0001>
module attributes {stable_mosaic.version = 11 : i64} {
  func.func @_conv_kernel(%arg0: i32, %arg1: memref<2048x192xbf16, #tpu.memory_space<vmem>>, %arg2: memref<1x192x60xbf16, #tpu.memory_space<vmem>>, %arg3: memref<1x60xf32, #tpu.memory_space<vmem>>, %arg4: memref<1x60xf32, #tpu.memory_space<vmem>>, %arg5: memref<1x60xf32, #tpu.memory_space<vmem>>, %arg6: memref<2048x60xbf16, #tpu.memory_space<vmem>>, %arg7: memref<2048x60xf32, #tpu.memory_space<vmem>>) attributes {dimension_semantics = [#tpu.dimension_semantics<parallel>], iteration_bounds = array<i64: 16>, scalar_prefetch = 0 : i64, scratch_operands = 1 : i64, tpu.core_type = #tpu.core_type<tc>, window_params = [{transform_indices = @transform_0, window_bounds = array<i64: 2048, 192>}, {pipeline_mode = #tpu.pipeline_mode<synchronous>, transform_indices = @transform_1, window_bounds = array<i64: 1, 192, 60>}, {pipeline_mode = #tpu.pipeline_mode<synchronous>, transform_indices = @transform_2, window_bounds = array<i64: 1, 60>}, {pipeline_mode = #tpu.pipeline_mode<synchronous>, transform_indices = @transform_3, window_bounds = array<i64: 1, 60>}, {pipeline_mode = #tpu.pipeline_mode<synchronous>, transform_indices = @transform_4, window_bounds = array<i64: 1, 60>}, {transform_indices = @transform_5, window_bounds = array<i64: 2048, 60>}]} {
    %cst = arith.constant 0.000000e+00 : f32
    %0 = vector.broadcast %cst : f32 to vector<2048x60xf32>
    %c0 = arith.constant 0 : index
    %c0_0 = arith.constant 0 : index
    %1 = vector.load %arg7[%c0, %c0_0] : memref<2048x60xf32, #tpu.memory_space<vmem>>, vector<2048x60xf32>
    tpu.vector_store %arg7[%c0, %c0_0], %0 {strides = array<i32>} : memref<2048x60xf32, #tpu.memory_space<vmem>>, vector<2048x60xf32>,
    %c0_1 = arith.constant 0 : index
    %c0_2 = arith.constant 0 : index
    %2 = vector.load %arg1[%c0_1, %c0_2] : memref<2048x192xbf16, #tpu.memory_space<vmem>>, vector<2048x192xbf16>
    %c0_3 = arith.constant 0 : index
    %c0_4 = arith.constant 0 : index
    %3 = vector.load %arg7[%c0_3, %c0_4] : memref<2048x60xf32, #tpu.memory_space<vmem>>, vector<2048x60xf32>
    %c0_5 = arith.constant 0 : index
    %c0_6 = arith.constant 0 : index
    %c0_7 = arith.constant 0 : index
    %4 = vector.load %arg2[%c0_5, %c0_6, %c0_7] : memref<1x192x60xbf16, #tpu.memory_space<vmem>>, vector<1x192x60xbf16>
    %5 = vector.shape_cast %4 : vector<1x192x60xbf16> to vector<192x60xbf16>
    %cst_8 = arith.constant dense<0.000000e+00> : vector<2048x60xf32>
    %6 = tpu.matmul %2, %5, %cst_8 {dimension_numbers = #tpu.dot_dimension_numbers<[1], [0], [0], [1], [0, 0, 1, 1], [], []>} : vector<2048x192xbf16>, vector<192x60xbf16>, vector<2048x60xf32> -> vector<2048x60xf32>
    %7 = arith.addf %3, %6 : vector<2048x60xf32>
    %c0_9 = arith.constant 0 : index
    %c0_10 = arith.constant 0 : index
    %8 = vector.load %arg7[%c0_9, %c0_10] : memref<2048x60xf32, #tpu.memory_space<vmem>>, vector<2048x60xf32>
    tpu.vector_store %arg7[%c0_9, %c0_10], %7 {strides = array<i32>} : memref<2048x60xf32, #tpu.memory_space<vmem>>, vector<2048x60xf32>,
    %c0_11 = arith.constant 0 : index
    %c0_12 = arith.constant 0 : index
    %9 = vector.load %arg7[%c0_11, %c0_12] : memref<2048x60xf32, #tpu.memory_space<vmem>>, vector<2048x60xf32>
    %c0_13 = arith.constant 0 : index
    %c0_14 = arith.constant 0 : index
    %10 = vector.load %arg3[%c0_13, %c0_14] : memref<1x60xf32, #tpu.memory_space<vmem>>, vector<1x60xf32>
    %11 = vector.broadcast %10 : vector<1x60xf32> to vector<2048x60xf32>
    %12 = arith.addf %9, %11 : vector<2048x60xf32>
    %c0_15 = arith.constant 0 : index
    %c0_16 = arith.constant 0 : index
    %13 = vector.load %arg4[%c0_15, %c0_16] : memref<1x60xf32, #tpu.memory_space<vmem>>, vector<1x60xf32>
    %14 = vector.broadcast %13 : vector<1x60xf32> to vector<2048x60xf32>
    %15 = arith.mulf %12, %14 : vector<2048x60xf32>
    %c0_17 = arith.constant 0 : index
    %c0_18 = arith.constant 0 : index
    %16 = vector.load %arg5[%c0_17, %c0_18] : memref<1x60xf32, #tpu.memory_space<vmem>>, vector<1x60xf32>
    %17 = vector.broadcast %16 : vector<1x60xf32> to vector<2048x60xf32>
    %18 = arith.addf %15, %17 : vector<2048x60xf32>
    %cst_19 = arith.constant 0.000000e+00 : f32
    %19 = vector.broadcast %cst_19 : f32 to vector<2048x60xf32>
    %20 = arith.cmpf ogt, %18, %19 : vector<2048x60xf32>
    %cst_20 = arith.constant 0.00999999977 : f32
    %21 = vector.broadcast %cst_20 : f32 to vector<2048x60xf32>
    %22 = arith.mulf %21, %18 : vector<2048x60xf32>
    %23 = arith.select %20, %18, %22 : vector<2048x60xi1>, vector<2048x60xf32>
    %24 = arith.truncf %23 : vector<2048x60xf32> to vector<2048x60xbf16>
    %c0_21 = arith.constant 0 : index
    %c0_22 = arith.constant 0 : index
    %25 = vector.load %arg6[%c0_21, %c0_22] : memref<2048x60xbf16, #tpu.memory_space<vmem>>, vector<2048x60xbf16>
    tpu.vector_store %arg6[%c0_21, %c0_22], %24 {strides = array<i32>} : memref<2048x60xbf16, #tpu.memory_space<vmem>>, vector<2048x60xbf16>,
    return
  }
  func.func @transform_0(%arg0: i32) -> (i32, i32) {
    %c0_i32 = arith.constant 0 : i32
    %c0_i32_0 = arith.constant 0 : i32
    return %arg0, %c0_i32 : i32, i32
  }
  func.func @transform_1(%arg0: i32) -> (i32, i32, i32) {
    %c0_i32 = arith.constant 0 : i32
    %c0_i32_0 = arith.constant 0 : i32
    %c0_i32_1 = arith.constant 0 : i32
    %c0_i32_2 = arith.constant 0 : i32
    return %c0_i32, %c0_i32_0, %c0_i32_1 : i32, i32, i32
  }
  func.func @transform_2(%arg0: i32) -> (i32, i32) {
    %c0_i32 = arith.constant 0 : i32
    %c0_i32_0 = arith.constant 0 : i32
    %c0_i32_1 = arith.constant 0 : i32
    return %c0_i32, %c0_i32_0 : i32, i32
  }
  func.func @transform_3(%arg0: i32) -> (i32, i32) {
    %c0_i32 = arith.constant 0 : i32
    %c0_i32_0 = arith.constant 0 : i32
    %c0_i32_1 = arith.constant 0 : i32
    return %c0_i32, %c0_i32_0 : i32, i32
  }
  func.func @transform_4(%arg0: i32) -> (i32, i32) {
    %c0_i32 = arith.constant 0 : i32
    %c0_i32_0 = arith.constant 0 : i32
    %c0_i32_1 = arith.constant 0 : i32
    return %c0_i32, %c0_i32_0 : i32, i32
  }
  func.func @transform_5(%arg0: i32) -> (i32, i32) {
    %c0_i32 = arith.constant 0 : i32
    %c0_i32_0 = arith.constant 0 : i32
    return %arg0, %c0_i32 : i32, i32
  }
}

</mosaic_0001>

<llo_original>
// kernel: tpu_custom_call.1
$region0: #{tpu_custom_call.1}
  #allocation0 [shape = 'u32[]', space=smem, size = 0x4, offset = 0x4, fixed_abs, tag = 'smem constant byte address 0x4 - core index']
  #allocation1 [shape = 'u32[72,128]{1,0:T(1,128)}', space=vmem, size = 0x9000, scoped, tag = 'internal scratch']
  #allocation2 [shape = 'f32[2048,60]{1,0:T(8,128)}', space=vmem, size = 0x100000, scoped, tag = 'scratch operand']
  %s0 = inlined_call_operand.vmem [shape: bf16[32768,192], index: 0, kind: input, shape index: {}]
  %s1 = inlined_call_operand.vmem [shape: bf16[1,192,60], index: 1, kind: input, shape index: {}]
  %s2 = inlined_call_operand.vmem [shape: f32[1,60], index: 2, kind: input, shape index: {}]
  %s3 = inlined_call_operand.vmem [shape: f32[1,60], index: 3, kind: input, shape index: {}]
  %s4 = inlined_call_operand.vmem [shape: f32[1,60], index: 4, kind: input, shape index: {}]
  %s5 = inlined_call_operand.vmem [shape: bf16[32768,60], index: 5, kind: output, shape index: {}]
  %s6 = sld [smem:[#allocation0]]
  $region53: #{tpu_custom_call.1} parent=0
    _
  %s8 = ssub.s32 1, %s6
  %s9 = scalar_select 0, %s8, %s6
  loop: start=0, step=1, limit=18
  $region2: #{tpu_custom_call.1} parent=0 // loop_pre_header
    _
  $region3: #{tpu_custom_call.1} parent=0 // loop_header
    %s11 = sphi 0, %s15
    %p12 = scmp.ge.s32.totalorder %s11, 18
    %s21 = sphi 0, %s23
    %s24 = sphi 0, %s21
    %s25 = sphi 0, %s24
    %s41 = sphi 0, %s25
    %s45 = sphi 0, %s45
    %s47 = sphi 0, %s45
    %s48 = sphi 0, %s47
    %s62 = sphi 0, %s48
    %s66 = sphi 0, %s66
    %s68 = sphi 0, %s66
    %s69 = sphi 0, %s68
    %s83 = sphi 0, %s69
    %s87 = sphi 0, %s87
    %s89 = sphi 0, %s87
    %s90 = sphi 0, %s89
    %s104 = sphi 0, %s90
    %s108 = sphi 0, %s108
    %s110 = sphi 0, %s108
    %s111 = sphi 0, %s110
    %s125 = sphi 0, %s111
    %s131 = sphi 0, %s133
    %s134 = sphi 0, %s131
    %s135 = sphi 0, %s134
    %s151 = sphi 0, %s135
  $region4: #{tpu_custom_call.1} parent=0 // loop_header_branch
    %14 = sbr.rel (%p12) target = $region8
  $region5: #{tpu_custom_call.1} parent=0 // loop_body
    %s16 = ssub.s32 %s11, 1
    %s17 = ssub.s32 %s11, 2
    %s18 = sadd.s32 %s11, 1
    %s19 = ssub.s32 %s11, %s18
    %p20 = scmp.eq.s32.totalorder %s19, 0
    %s22 = sadd.s32 %s21, 1
    %s23 = scalar_select %p20, %s21, %s22
    %p26 = pneg %p20
    %p27 = scmp.eq.s32.totalorder %s11, 15
    %p28 = por %p26, %p27
    %p29 = scmp.ne.s32.totalorder %s21, %s24
    %p30 = scmp.eq.s32.totalorder %s11, 0
    %p31 = por %p29, %p30
    %p32 = scmp.ne.s32.totalorder %s21, %s24
    %p33 = scmp.eq.s32.totalorder %s16, 15
    %p34 = por %p32, %p33
    %p35 = scmp.ne.s32.totalorder %s24, %s25
    %p36 = scmp.eq.s32.totalorder %s16, 0
    %p37 = por %p35, %p36
    %p38 = scmp.ne.s32.totalorder %s24, %s25
    %p39 = scmp.eq.s32.totalorder %s17, 15
    %p40 = por %p38, %p39
    %p42 = scmp.ne.s32.totalorder %s25, %s41
    %p43 = scmp.eq.s32.totalorder %s17, 0
    %p44 = por %p42, %p43
    %s46 = sadd.s32 %s45, 1
    %p49 = scmp.eq.s32.totalorder %s11, 15
    %p50 = scmp.ne.s32.totalorder %s45, %s47
    %p51 = scmp.eq.s32.totalorder %s11, 0
    %p52 = por %p50, %p51
    %p53 = scmp.ne.s32.totalorder %s45, %s47
    %p54 = scmp.eq.s32.totalorder %s16, 15
    %p55 = por %p53, %p54
    %p56 = scmp.ne.s32.totalorder %s47, %s48
    %p57 = scmp.eq.s32.totalorder %s16, 0
    %p58 = por %p56, %p57
    %p59 = scmp.ne.s32.totalorder %s47, %s48
    %p60 = scmp.eq.s32.totalorder %s17, 15
    %p61 = por %p59, %p60
    %p63 = scmp.ne.s32.totalorder %s48, %s62
    %p64 = scmp.eq.s32.totalorder %s17, 0
    %p65 = por %p63, %p64
    %s67 = sadd.s32 %s66, 1
    %p70 = scmp.eq.s32.totalorder %s11, 15
    %p71 = scmp.ne.s32.totalorder %s66, %s68
    %p72 = scmp.eq.s32.totalorder %s11, 0
    %p73 = por %p71, %p72
    %p74 = scmp.ne.s32.totalorder %s66, %s68
    %p75 = scmp.eq.s32.totalorder %s16, 15
    %p76 = por %p74, %p75
    %p77 = scmp.ne.s32.totalorder %s68, %s69
    %p78 = scmp.eq.s32.totalorder %s16, 0
    %p79 = por %p77, %p78
    %p80 = scmp.ne.s32.totalorder %s68, %s69
    %p81 = scmp.eq.s32.totalorder %s17, 15
    %p82 = por %p80, %p81
    %p84 = scmp.ne.s32.totalorder %s69, %s83
    %p85 = scmp.eq.s32.totalorder %s17, 0
    %p86 = por %p84, %p85
    %s88 = sadd.s32 %s87, 1
    %p91 = scmp.eq.s32.totalorder %s11, 15
    %p92 = scmp.ne.s32.totalorder %s87, %s89
    %p93 = scmp.eq.s32.totalorder %s11, 0
    %p94 = por %p92, %p93
    %p95 = scmp.ne.s32.totalorder %s87, %s89
    %p96 = scmp.eq.s32.totalorder %s16, 15
    %p97 = por %p95, %p96
    %p98 = scmp.ne.s32.totalorder %s89, %s90
    %p99 = scmp.eq.s32.totalorder %s16, 0
    %p100 = por %p98, %p99
    %p101 = scmp.ne.s32.totalorder %s89, %s90
    %p102 = scmp.eq.s32.totalorder %s17, 15
    %p103 = por %p101, %p102
    %p105 = scmp.ne.s32.totalorder %s90, %s104
    %p106 = scmp.eq.s32.totalorder %s17, 0
    %p107 = por %p105, %p106
    %s109 = sadd.s32 %s108, 1
    %p112 = scmp.eq.s32.totalorder %s11, 15
    %p113 = scmp.ne.s32.totalorder %s108, %s110
    %p114 = scmp.eq.s32.totalorder %s11, 0
    %p115 = por %p113, %p114
    %p116 = scmp.ne.s32.totalorder %s108, %s110
    %p117 = scmp.eq.s32.totalorder %s16, 15
    %p118 = por %p116, %p117
    %p119 = scmp.ne.s32.totalorder %s110, %s111
    %p120 = scmp.eq.s32.totalorder %s16, 0
    %p121 = por %p119, %p120
    %p122 = scmp.ne.s32.totalorder %s110, %s111
    %p123 = scmp.eq.s32.totalorder %s17, 15
    %p124 = por %p122, %p123
    %p126 = scmp.ne.s32.totalorder %s111, %s125
    %p127 = scmp.eq.s32.totalorder %s17, 0
    %p128 = por %p126, %p127
    %s129 = ssub.s32 %s11, %s18
    %p130 = scmp.eq.s32.totalorder %s129, 0
    %s132 = sadd.s32 %s131, 1
    %s133 = scalar_select %p130, %s131, %s132
    %p136 = pneg %p130
    %p137 = scmp.eq.s32.totalorder %s11, 15
    %p138 = por %p136, %p137
    %p139 = scmp.ne.s32.totalorder %s131, %s134
    %p140 = scmp.eq.s32.totalorder %s11, 0
    %p141 = por %p139, %p140
    %p142 = scmp.ne.s32.totalorder %s131, %s134
    %p143 = scmp.eq.s32.totalorder %s16, 15
    %p144 = por %p142, %p143
    %p145 = scmp.ne.s32.totalorder %s134, %s135
    %p146 = scmp.eq.s32.totalorder %s16, 0
    %p147 = por %p145, %p146
    %p148 = scmp.ne.s32.totalorder %s134, %s135
    %p149 = scmp.eq.s32.totalorder %s17, 15
    %p150 = por %p148, %p149
    %p152 = scmp.ne.s32.totalorder %s135, %s151
    %p153 = scmp.eq.s32.totalorder %s17, 0
    %p154 = por %p152, %p153
    %p155 = scmp.le.s32.totalorder 1, %s11
    %p156 = scmp.lt.s32.totalorder %s11, 17
    %p157 = pnand %p155, %p156
    %p158 = pneg %p157
    // Predicated region
    $region9: #{tpu_custom_call.1} parent=5 // pred_check
      _
    $region10: #{tpu_custom_call.1} parent=5 // pred_check_branch
      %160 = sbr.rel (%p157) target = $region12
    $region11: #{tpu_custom_call.1} parent=5 // pred_region
      %s161 = ssub.s32 %s11, 1
      // Predicated region
      $region13: #{tpu_custom_call.1} parent=11 // pred_check
        %p162 = pneg %p58
      $region14: #{tpu_custom_call.1} parent=11 // pred_check_branch
        %164 = sbr.rel (%p162) target = $region16
      $region15: #{tpu_custom_call.1} parent=11 // pred_region
        _
      $region16: #{tpu_custom_call.1} parent=11 // pred_fallthru
        _
      // Predicated region
      $region17: #{tpu_custom_call.1} parent=11 // pred_check
        %p165 = pneg %p79
      $region18: #{tpu_custom_call.1} parent=11 // pred_check_branch
        %167 = sbr.rel (%p165) target = $region20
      $region19: #{tpu_custom_call.1} parent=11 // pred_region
        _
      $region20: #{tpu_custom_call.1} parent=11 // pred_fallthru
        _
      // Predicated region
      $region21: #{tpu_custom_call.1} parent=11 // pred_check
        %p168 = pneg %p100
      $region22: #{tpu_custom_call.1} parent=11 // pred_check_branch
        %170 = sbr.rel (%p168) target = $region24
      $region23: #{tpu_custom_call.1} parent=11 // pred_region
        _
      $region24: #{tpu_custom_call.1} parent=11 // pred_fallthru
        _
      // Predicated region
      $region25: #{tpu_custom_call.1} parent=11 // pred_check
        %p171 = pneg %p121
      $region26: #{tpu_custom_call.1} parent=11 // pred_check_branch
        %173 = sbr.rel (%p171) target = $region28
      $region27: #{tpu_custom_call.1} parent=11 // pred_region
        _
      $region28: #{tpu_custom_call.1} parent=11 // pred_fallthru
        _
    $region12: #{tpu_custom_call.1} parent=5 // pred_fallthru
      _
    %p174 = scmp.lt.s32.totalorder %s11, 16
    // Predicated region
    $region29: #{tpu_custom_call.1} parent=5 // pred_check
      %p175 = pneg %p174
    $region30: #{tpu_custom_call.1} parent=5 // pred_check_branch
      %177 = sbr.rel (%p175) target = $region32
    $region31: #{tpu_custom_call.1} parent=5 // pred_region
      // Predicated region
      $region33: #{tpu_custom_call.1} parent=31 // pred_check
        %p178 = pneg %p31
      $region34: #{tpu_custom_call.1} parent=31 // pred_check_branch
        %180 = sbr.rel (%p178) target = $region36
      $region35: #{tpu_custom_call.1} parent=31 // pred_region
        %s181 = smul.u32 256, %s11
        %p182 = scmp.lt.s32.totalorder %s181, 4095
        %s183 = scalar_select %p182, %s181, 4095
        %s184 = smul.addr %s183, 2
        %s185 = smul.addr %s184, 4
        %s186 = scalar_lea.vmem %s0, %s185
        %s187 = smul.u32 256, %s11
      $region36: #{tpu_custom_call.1} parent=31 // pred_fallthru
        _
    $region32: #{tpu_custom_call.1} parent=5 // pred_fallthru
      _
    %p188 = scmp.le.s32.totalorder 1, %s11
    %p189 = scmp.lt.s32.totalorder %s11, 17
    %p190 = pnand %p188, %p189
    %p191 = pneg %p190
    // Predicated region
    $region37: #{tpu_custom_call.1} parent=5 // pred_check
      _
    $region38: #{tpu_custom_call.1} parent=5 // pred_check_branch
      %193 = sbr.rel (%p190) target = $region40
    $region39: #{tpu_custom_call.1} parent=5 // pred_region
      %s194 = ssub.s32 %s11, 1
      %s195 = smul.u32 256, %s16
      %p196 = scmp.lt.s32.totalorder %s195, 4095
      %s197 = scalar_select %p196, %s195, 4095
      %s198 = smul.addr %s197, 2
      %s199 = smul.addr %s198, 4
      %s200 = scalar_lea.vmem %s0, %s199
      %p201 = pneg %p37
      %p202 = pneg %p34
      %p203 = pneg %p58
      %p204 = pneg %p55
      %p205 = pneg %p79
      %p206 = pneg %p76
      %p207 = pneg %p100
      %p208 = pneg %p97
      %p209 = pneg %p121
      %p210 = pneg %p118
      %p211 = pneg %p147
      %p212 = pneg %p144
      %s213 = smul.u32 256, %s16
      %p214 = scmp.lt.s32.totalorder %s213, 4095
      %s215 = scalar_select %p214, %s213, 4095
      %s216 = smul.addr %s215, 4
      %s217 = scalar_lea.vmem %s5, %s216
      %s218 = smul.u32 256, %s16
      %p219 = scmp.lt.s32.totalorder %s218, 4095
      %s220 = scalar_select %p219, %s218, 4095
      %s221 = smul.addr %s220, 2
      %s222 = smul.addr %s221, 4
      %s223 = scalar_lea.vmem %s0, %s222
      %s224 = smul.u32 256, %s16
      %s225 = smul.u32 256, %s16
      %p226 = scmp.lt.s32.totalorder %s225, 4095
      %s227 = scalar_select %p226, %s225, 4095
      %s228 = smul.addr %s227, 4
      %s229 = scalar_lea.vmem %s5, %s228
      %s230 = smul.u32 256, %s16
      %vm232 = vcmask 490496
      %233 = vst.msk [vmem:[#allocation2] sm:$0xff] %vm232, 0.0
      %234 = vst.msk [vmem:[#allocation2 + $0x8] sm:$0xff] %vm232, 0.0
      %235 = vst.msk [vmem:[#allocation2 + $0x10] sm:$0xff] %vm232, 0.0
      %236 = vst.msk [vmem:[#allocation2 + $0x18] sm:$0xff] %vm232, 0.0
      %237 = vst.msk [vmem:[#allocation2 + $0x20] sm:$0xff] %vm232, 0.0
      %238 = vst.msk [vmem:[#allocation2 + $0x28] sm:$0xff] %vm232, 0.0
      %239 = vst.msk [vmem:[#allocation2 + $0x30] sm:$0xff] %vm232, 0.0
      %240 = vst.msk [vmem:[#allocation2 + $0x38] sm:$0xff] %vm232, 0.0
      %241 = vst.msk [vmem:[#allocation2 + $0x40] sm:$0xff] %vm232, 0.0
      %242 = vst.msk [vmem:[#allocation2 + $0x48] sm:$0xff] %vm232, 0.0
      %243 = vst.msk [vmem:[#allocation2 + $0x50] sm:$0xff] %vm232, 0.0
      %244 = vst.msk [vmem:[#allocation2 + $0x58] sm:$0xff] %vm232, 0.0
      %245 = vst.msk [vmem:[#allocation2 + $0x60] sm:$0xff] %vm232, 0.0
      %246 = vst.msk [vmem:[#allocation2 + $0x68] sm:$0xff] %vm232, 0.0
      %247 = vst.msk [vmem:[#allocation2 + $0x70] sm:$0xff] %vm232, 0.0
      %248 = vst.msk [vmem:[#allocation2 + $0x78] sm:$0xff] %vm232, 0.0
      %249 = vst.msk [vmem:[#allocation2 + $0x80] sm:$0xff] %vm232, 0.0
      %250 = vst.msk [vmem:[#allocation2 + $0x88] sm:$0xff] %vm232, 0.0
      %251 = vst.msk [vmem:[#allocation2 + $0x90] sm:$0xff] %vm232, 0.0
      %252 = vst.msk [vmem:[#allocation2 + $0x98] sm:$0xff] %vm232, 0.0
      %253 = vst.msk [vmem:[#allocation2 + $0xa0] sm:$0xff] %vm232, 0.0
      %254 = vst.msk [vmem:[#allocation2 + $0xa8] sm:$0xff] %vm232, 0.0
      %255 = vst.msk [vmem:[#allocation2 + $0xb0] sm:$0xff] %vm232, 0.0
      %256 = vst.msk [vmem:[#allocation2 + $0xb8] sm:$0xff] %vm232, 0.0
      %257 = vst.msk [vmem:[#allocation2 + $0xc0] sm:$0xff] %vm232, 0.0
      %258 = vst.msk [vmem:[#allocation2 + $0xc8] sm:$0xff] %vm232, 0.0
      %259 = vst.msk [vmem:[#allocation2 + $0xd0] sm:$0xff] %vm232, 0.0
      %260 = vst.msk [vmem:[#allocation2 + $0xd8] sm:$0xff] %vm232, 0.0
      %261 = vst.msk [vmem:[#allocation2 + $0xe0] sm:$0xff] %vm232, 0.0
      %262 = vst.msk [vmem:[#allocation2 + $0xe8] sm:$0xff] %vm232, 0.0
      %263 = vst.msk [vmem:[#allocation2 + $0xf0] sm:$0xff] %vm232, 0.0
      %264 = vst.msk [vmem:[#allocation2 + $0xf8] sm:$0xff] %vm232, 0.0
      %265 = vst.msk [vmem:[#allocation2 + $0x100] sm:$0xff] %vm232, 0.0
      %266 = vst.msk [vmem:[#allocation2 + $0x108] sm:$0xff] %vm232, 0.0
      %267 = vst.msk [vmem:[#allocation2 + $0x110] sm:$0xff] %vm232, 0.0
      %268 = vst.msk [vmem:[#allocation2 + $0x118] sm:$0xff] %vm232, 0.0
      %269 = vst.msk [vmem:[#allocation2 + $0x120] sm:$0xff] %vm232, 0.0
      %270 = vst.msk [vmem:[#allocation2 + $0x128] sm:$0xff] %vm232, 0.0
      %271 = vst.msk [vmem:[#allocation2 + $0x130] sm:$0xff] %vm232, 0.0
      %272 = vst.msk [vmem:[#allocation2 + $0x138] sm:$0xff] %vm232, 0.0
      %273 = vst.msk [vmem:[#allocation2 + $0x140] sm:$0xff] %vm232, 0.0
      %274 = vst.msk [vmem:[#allocation2 + $0x148] sm:$0xff] %vm232, 0.0
      %275 = vst.msk [vmem:[#allocation2 + $0x150] sm:$0xff] %vm232, 0.0
      %276 = vst.msk [vmem:[#allocation2 + $0x158] sm:$0xff] %vm232, 0.0
      %277 = vst.msk [vmem:[#allocation2 + $0x160] sm:$0xff] %vm232, 0.0
      %278 = vst.msk [vmem:[#allocation2 + $0x168] sm:$0xff] %vm232, 0.0
      %279 = vst.msk [vmem:[#allocation2 + $0x170] sm:$0xff] %vm232, 0.0
      %280 = vst.msk [vmem:[#allocation2 + $0x178] sm:$0xff] %vm232, 0.0
      %281 = vst.msk [vmem:[#allocation2 + $0x180] sm:$0xff] %vm232, 0.0
      %282 = vst.msk [vmem:[#allocation2 + $0x188] sm:$0xff] %vm232, 0.0
      %283 = vst.msk [vmem:[#allocation2 + $0x190] sm:$0xff] %vm232, 0.0
      %284 = vst.msk [vmem:[#allocation2 + $0x198] sm:$0xff] %vm232, 0.0
      %285 = vst.msk [vmem:[#allocation2 + $0x1a0] sm:$0xff] %vm232, 0.0
      %286 = vst.msk [vmem:[#allocation2 + $0x1a8] sm:$0xff] %vm232, 0.0
      %287 = vst.msk [vmem:[#allocation2 + $0x1b0] sm:$0xff] %vm232, 0.0
      %288 = vst.msk [vmem:[#allocation2 + $0x1b8] sm:$0xff] %vm232, 0.0
      %289 = vst.msk [vmem:[#allocation2 + $0x1c0] sm:$0xff] %vm232, 0.0
      %290 = vst.msk [vmem:[#allocation2 + $0x1c8] sm:$0xff] %vm232, 0.0
      %291 = vst.msk [vmem:[#allocation2 + $0x1d0] sm:$0xff] %vm232, 0.0
      %292 = vst.msk [vmem:[#allocation2 + $0x1d8] sm:$0xff] %vm232, 0.0
      %293 = vst.msk [vmem:[#allocation2 + $0x1e0] sm:$0xff] %vm232, 0.0
      %294 = vst.msk [vmem:[#allocation2 + $0x1e8] sm:$0xff] %vm232, 0.0
      %295 = vst.msk [vmem:[#allocation2 + $0x1f0] sm:$0xff] %vm232, 0.0
      %296 = vst.msk [vmem:[#allocation2 + $0x1f8] sm:$0xff] %vm232, 0.0
      %297 = vst.msk [vmem:[#allocation2 + $0x200] sm:$0xff] %vm232, 0.0
      %298 = vst.msk [vmem:[#allocation2 + $0x208] sm:$0xff] %vm232, 0.0
      %299 = vst.msk [vmem:[#allocation2 + $0x210] sm:$0xff] %vm232, 0.0
      %300 = vst.msk [vmem:[#allocation2 + $0x218] sm:$0xff] %vm232, 0.0
      %301 = vst.msk [vmem:[#allocation2 + $0x220] sm:$0xff] %vm232, 0.0
      %302 = vst.msk [vmem:[#allocation2 + $0x228] sm:$0xff] %vm232, 0.0
      %303 = vst.msk [vmem:[#allocation2 + $0x230] sm:$0xff] %vm232, 0.0
      %304 = vst.msk [vmem:[#allocation2 + $0x238] sm:$0xff] %vm232, 0.0
      %305 = vst.msk [vmem:[#allocation2 + $0x240] sm:$0xff] %vm232, 0.0
      %306 = vst.msk [vmem:[#allocation2 + $0x248] sm:$0xff] %vm232, 0.0
      %307 = vst.msk [vmem:[#allocation2 + $0x250] sm:$0xff] %vm232, 0.0
      %308 = vst.msk [vmem:[#allocation2 + $0x258] sm:$0xff] %vm232, 0.0
      %309 = vst.msk [vmem:[#allocation2 + $0x260] sm:$0xff] %vm232, 0.0
      %310 = vst.msk [vmem:[#allocation2 + $0x268] sm:$0xff] %vm232, 0.0
      %311 = vst.msk [vmem:[#allocation2 + $0x270] sm:$0xff] %vm232, 0.0
      %312 = vst.msk [vmem:[#allocation2 + $0x278] sm:$0xff] %vm232, 0.0
      %313 = vst.msk [vmem:[#allocation2 + $0x280] sm:$0xff] %vm232, 0.0
      %314 = vst.msk [vmem:[#allocation2 + $0x288] sm:$0xff] %vm232, 0.0
      %315 = vst.msk [vmem:[#allocation2 + $0x290] sm:$0xff] %vm232, 0.0
      %316 = vst.msk [vmem:[#allocation2 + $0x298] sm:$0xff] %vm232, 0.0
      %317 = vst.msk [vmem:[#allocation2 + $0x2a0] sm:$0xff] %vm232, 0.0
      %318 = vst.msk [vmem:[#allocation2 + $0x2a8] sm:$0xff] %vm232, 0.0
      %319 = vst.msk [vmem:[#allocation2 + $0x2b0] sm:$0xff] %vm232, 0.0
      %320 = vst.msk [vmem:[#allocation2 + $0x2b8] sm:$0xff] %vm232, 0.0
      %321 = vst.msk [vmem:[#allocation2 + $0x2c0] sm:$0xff] %vm232, 0.0
      %322 = vst.msk [vmem:[#allocation2 + $0x2c8] sm:$0xff] %vm232, 0.0
      %323 = vst.msk [vmem:[#allocation2 + $0x2d0] sm:$0xff] %vm232, 0.0
      %324 = vst.msk [vmem:[#allocation2 + $0x2d8] sm:$0xff] %vm232, 0.0
      %325 = vst.msk [vmem:[#allocation2 + $0x2e0] sm:$0xff] %vm232, 0.0
      %326 = vst.msk [vmem:[#allocation2 + $0x2e8] sm:$0xff] %vm232, 0.0
      %327 = vst.msk [vmem:[#allocation2 + $0x2f0] sm:$0xff] %vm232, 0.0
      %328 = vst.msk [vmem:[#allocation2 + $0x2f8] sm:$0xff] %vm232, 0.0
      %329 = vst.msk [vmem:[#allocation2 + $0x300] sm:$0xff] %vm232, 0.0
      %330 = vst.msk [vmem:[#allocation2 + $0x308] sm:$0xff] %vm232, 0.0
      %331 = vst.msk [vmem:[#allocation2 + $0x310] sm:$0xff] %vm232, 0.0
      %332 = vst.msk [vmem:[#allocation2 + $0x318] sm:$0xff] %vm232, 0.0
      %333 = vst.msk [vmem:[#allocation2 + $0x320] sm:$0xff] %vm232, 0.0
      %334 = vst.msk [vmem:[#allocation2 + $0x328] sm:$0xff] %vm232, 0.0
      %335 = vst.msk [vmem:[#allocation2 + $0x330] sm:$0xff] %vm232, 0.0
      %336 = vst.msk [vmem:[#allocation2 + $0x338] sm:$0xff] %vm232, 0.0
      %337 = vst.msk [vmem:[#allocation2 + $0x340] sm:$0xff] %vm232, 0.0
      %338 = vst.msk [vmem:[#allocation2 + $0x348] sm:$0xff] %vm232, 0.0
      %339 = vst.msk [vmem:[#allocation2 + $0x350] sm:$0xff] %vm232, 0.0
      %340 = vst.msk [vmem:[#allocation2 + $0x358] sm:$0xff] %vm232, 0.0
      %341 = vst.msk [vmem:[#allocation2 + $0x360] sm:$0xff] %vm232, 0.0
      %342 = vst.msk [vmem:[#allocation2 + $0x368] sm:$0xff] %vm232, 0.0
      %343 = vst.msk [vmem:[#allocation2 + $0x370] sm:$0xff] %vm232, 0.0
      %344 = vst.msk [vmem:[#allocation2 + $0x378] sm:$0xff] %vm232, 0.0
      %345 = vst.msk [vmem:[#allocation2 + $0x380] sm:$0xff] %vm232, 0.0
      %346 = vst.msk [vmem:[#allocation2 + $0x388] sm:$0xff] %vm232, 0.0
      %347 = vst.msk [vmem:[#allocation2 + $0x390] sm:$0xff] %vm232, 0.0
      %348 = vst.msk [vmem:[#allocation2 + $0x398] sm:$0xff] %vm232, 0.0
      %349 = vst.msk [vmem:[#allocation2 + $0x3a0] sm:$0xff] %vm232, 0.0
      %350 = vst.msk [vmem:[#allocation2 + $0x3a8] sm:$0xff] %vm232, 0.0
      %351 = vst.msk [vmem:[#allocation2 + $0x3b0] sm:$0xff] %vm232, 0.0
      %352 = vst.msk [vmem:[#allocation2 + $0x3b8] sm:$0xff] %vm232, 0.0
      %353 = vst.msk [vmem:[#allocation2 + $0x3c0] sm:$0xff] %vm232, 0.0
      %354 = vst.msk [vmem:[#allocation2 + $0x3c8] sm:$0xff] %vm232, 0.0
      %355 = vst.msk [vmem:[#allocation2 + $0x3d0] sm:$0xff] %vm232, 0.0
      %356 = vst.msk [vmem:[#allocation2 + $0x3d8] sm:$0xff] %vm232, 0.0
      %357 = vst.msk [vmem:[#allocation2 + $0x3e0] sm:$0xff] %vm232, 0.0
      %358 = vst.msk [vmem:[#allocation2 + $0x3e8] sm:$0xff] %vm232, 0.0
      %359 = vst.msk [vmem:[#allocation2 + $0x3f0] sm:$0xff] %vm232, 0.0
      %360 = vst.msk [vmem:[#allocation2 + $0x3f8] sm:$0xff] %vm232, 0.0
      %361 = vst.msk [vmem:[#allocation2 + $0x400] sm:$0xff] %vm232, 0.0
      %362 = vst.msk [vmem:[#allocation2 + $0x408] sm:$0xff] %vm232, 0.0
      %363 = vst.msk [vmem:[#allocation2 + $0x410] sm:$0xff] %vm232, 0.0
      %364 = vst.msk [vmem:[#allocation2 + $0x418] sm:$0xff] %vm232, 0.0
      %365 = vst.msk [vmem:[#allocation2 + $0x420] sm:$0xff] %vm232, 0.0
      %366 = vst.msk [vmem:[#allocation2 + $0x428] sm:$0xff] %vm232, 0.0
      %367 = vst.msk [vmem:[#allocation2 + $0x430] sm:$0xff] %vm232, 0.0
      %368 = vst.msk [vmem:[#allocation2 + $0x438] sm:$0xff] %vm232, 0.0
      %369 = vst.msk [vmem:[#allocation2 + $0x440] sm:$0xff] %vm232, 0.0
      %370 = vst.msk [vmem:[#allocation2 + $0x448] sm:$0xff] %vm232, 0.0
      %371 = vst.msk [vmem:[#allocation2 + $0x450] sm:$0xff] %vm232, 0.0
      %372 = vst.msk [vmem:[#allocation2 + $0x458] sm:$0xff] %vm232, 0.0
      %373 = vst.msk [vmem:[#allocation2 + $0x460] sm:$0xff] %vm232, 0.0
      %374 = vst.msk [vmem:[#allocation2 + $0x468] sm:$0xff] %vm232, 0.0
      %375 = vst.msk [vmem:[#allocation2 + $0x470] sm:$0xff] %vm232, 0.0
      %376 = vst.msk [vmem:[#allocation2 + $0x478] sm:$0xff] %vm232, 0.0
      %377 = vst.msk [vmem:[#allocation2 + $0x480] sm:$0xff] %vm232, 0.0
      %378 = vst.msk [vmem:[#allocation2 + $0x488] sm:$0xff] %vm232, 0.0
      %379 = vst.msk [vmem:[#allocation2 + $0x490] sm:$0xff] %vm232, 0.0
      %380 = vst.msk [vmem:[#allocation2 + $0x498] sm:$0xff] %vm232, 0.0
      %381 = vst.msk [vmem:[#allocation2 + $0x4a0] sm:$0xff] %vm232, 0.0
      %382 = vst.msk [vmem:[#allocation2 + $0x4a8] sm:$0xff] %vm232, 0.0
      %383 = vst.msk [vmem:[#allocation2 + $0x4b0] sm:$0xff] %vm232, 0.0
      %384 = vst.msk [vmem:[#allocation2 + $0x4b8] sm:$0xff] %vm232, 0.0
      %385 = vst.msk [vmem:[#allocation2 + $0x4c0] sm:$0xff] %vm232, 0.0
      %386 = vst.msk [vmem:[#allocation2 + $0x4c8] sm:$0xff] %vm232, 0.0
      %387 = vst.msk [vmem:[#allocation2 + $0x4d0] sm:$0xff] %vm232, 0.0
      %388 = vst.msk [vmem:[#allocation2 + $0x4d8] sm:$0xff] %vm232, 0.0
      %389 = vst.msk [vmem:[#allocation2 + $0x4e0] sm:$0xff] %vm232, 0.0
      %390 = vst.msk [vmem:[#allocation2 + $0x4e8] sm:$0xff] %vm232, 0.0
      %391 = vst.msk [vmem:[#allocation2 + $0x4f0] sm:$0xff] %vm232, 0.0
      %392 = vst.msk [vmem:[#allocation2 + $0x4f8] sm:$0xff] %vm232, 0.0
      %393 = vst.msk [vmem:[#allocation2 + $0x500] sm:$0xff] %vm232, 0.0
      %394 = vst.msk [vmem:[#allocation2 + $0x508] sm:$0xff] %vm232, 0.0
      %395 = vst.msk [vmem:[#allocation2 + $0x510] sm:$0xff] %vm232, 0.0
      %396 = vst.msk [vmem:[#allocation2 + $0x518] sm:$0xff] %vm232, 0.0
      %397 = vst.msk [vmem:[#allocation2 + $0x520] sm:$0xff] %vm232, 0.0
      %398 = vst.msk [vmem:[#allocation2 + $0x528] sm:$0xff] %vm232, 0.0
      %399 = vst.msk [vmem:[#allocation2 + $0x530] sm:$0xff] %vm232, 0.0
      %400 = vst.msk [vmem:[#allocation2 + $0x538] sm:$0xff] %vm232, 0.0
      %401 = vst.msk [vmem:[#allocation2 + $0x540] sm:$0xff] %vm232, 0.0
      %402 = vst.msk [vmem:[#allocation2 + $0x548] sm:$0xff] %vm232, 0.0
      %403 = vst.msk [vmem:[#allocation2 + $0x550] sm:$0xff] %vm232, 0.0
      %404 = vst.msk [vmem:[#allocation2 + $0x558] sm:$0xff] %vm232, 0.0
      %405 = vst.msk [vmem:[#allocation2 + $0x560] sm:$0xff] %vm232, 0.0
      %406 = vst.msk [vmem:[#allocation2 + $0x568] sm:$0xff] %vm232, 0.0
      %407 = vst.msk [vmem:[#allocation2 + $0x570] sm:$0xff] %vm232, 0.0
      %408 = vst.msk [vmem:[#allocation2 + $0x578] sm:$0xff] %vm232, 0.0
      %409 = vst.msk [vmem:[#allocation2 + $0x580] sm:$0xff] %vm232, 0.0
      %410 = vst.msk [vmem:[#allocation2 + $0x588] sm:$0xff] %vm232, 0.0
      %411 = vst.msk [vmem:[#allocation2 + $0x590] sm:$0xff] %vm232, 0.0
      %412 = vst.msk [vmem:[#allocation2 + $0x598] sm:$0xff] %vm232, 0.0
      %413 = vst.msk [vmem:[#allocation2 + $0x5a0] sm:$0xff] %vm232, 0.0
      %414 = vst.msk [vmem:[#allocation2 + $0x5a8] sm:$0xff] %vm232, 0.0
      %415 = vst.msk [vmem:[#allocation2 + $0x5b0] sm:$0xff] %vm232, 0.0
      %416 = vst.msk [vmem:[#allocation2 + $0x5b8] sm:$0xff] %vm232, 0.0
      %417 = vst.msk [vmem:[#allocation2 + $0x5c0] sm:$0xff] %vm232, 0.0
      %418 = vst.msk [vmem:[#allocation2 + $0x5c8] sm:$0xff] %vm232, 0.0
      %419 = vst.msk [vmem:[#allocation2 + $0x5d0] sm:$0xff] %vm232, 0.0
      %420 = vst.msk [vmem:[#allocation2 + $0x5d8] sm:$0xff] %vm232, 0.0
      %421 = vst.msk [vmem:[#allocation2 + $0x5e0] sm:$0xff] %vm232, 0.0
      %422 = vst.msk [vmem:[#allocation2 + $0x5e8] sm:$0xff] %vm232, 0.0
      %423 = vst.msk [vmem:[#allocation2 + $0x5f0] sm:$0xff] %vm232, 0.0
      %424 = vst.msk [vmem:[#allocation2 + $0x5f8] sm:$0xff] %vm232, 0.0
      %425 = vst.msk [vmem:[#allocation2 + $0x600] sm:$0xff] %vm232, 0.0
      %426 = vst.msk [vmem:[#allocation2 + $0x608] sm:$0xff] %vm232, 0.0
      %427 = vst.msk [vmem:[#allocation2 + $0x610] sm:$0xff] %vm232, 0.0
      %428 = vst.msk [vmem:[#allocation2 + $0x618] sm:$0xff] %vm232, 0.0
      %429 = vst.msk [vmem:[#allocation2 + $0x620] sm:$0xff] %vm232, 0.0
      %430 = vst.msk [vmem:[#allocation2 + $0x628] sm:$0xff] %vm232, 0.0
      %431 = vst.msk [vmem:[#allocation2 + $0x630] sm:$0xff] %vm232, 0.0
      %432 = vst.msk [vmem:[#allocation2 + $0x638] sm:$0xff] %vm232, 0.0
      %433 = vst.msk [vmem:[#allocation2 + $0x640] sm:$0xff] %vm232, 0.0
      %434 = vst.msk [vmem:[#allocation2 + $0x648] sm:$0xff] %vm232, 0.0
      %435 = vst.msk [vmem:[#allocation2 + $0x650] sm:$0xff] %vm232, 0.0
      %436 = vst.msk [vmem:[#allocation2 + $0x658] sm:$0xff] %vm232, 0.0
      %437 = vst.msk [vmem:[#allocation2 + $0x660] sm:$0xff] %vm232, 0.0
      %438 = vst.msk [vmem:[#allocation2 + $0x668] sm:$0xff] %vm232, 0.0
      %439 = vst.msk [vmem:[#allocation2 + $0x670] sm:$0xff] %vm232, 0.0
      %440 = vst.msk [vmem:[#allocation2 + $0x678] sm:$0xff] %vm232, 0.0
      %441 = vst.msk [vmem:[#allocation2 + $0x680] sm:$0xff] %vm232, 0.0
      %442 = vst.msk [vmem:[#allocation2 + $0x688] sm:$0xff] %vm232, 0.0
      %443 = vst.msk [vmem:[#allocation2 + $0x690] sm:$0xff] %vm232, 0.0
      %444 = vst.msk [vmem:[#allocation2 + $0x698] sm:$0xff] %vm232, 0.0
      %445 = vst.msk [vmem:[#allocation2 + $0x6a0] sm:$0xff] %vm232, 0.0
      %446 = vst.msk [vmem:[#allocation2 + $0x6a8] sm:$0xff] %vm232, 0.0
      %447 = vst.msk [vmem:[#allocation2 + $0x6b0] sm:$0xff] %vm232, 0.0
      %448 = vst.msk [vmem:[#allocation2 + $0x6b8] sm:$0xff] %vm232, 0.0
      %449 = vst.msk [vmem:[#allocation2 + $0x6c0] sm:$0xff] %vm232, 0.0
      %450 = vst.msk [vmem:[#allocation2 + $0x6c8] sm:$0xff] %vm232, 0.0
      %451 = vst.msk [vmem:[#allocation2 + $0x6d0] sm:$0xff] %vm232, 0.0
      %452 = vst.msk [vmem:[#allocation2 + $0x6d8] sm:$0xff] %vm232, 0.0
      %453 = vst.msk [vmem:[#allocation2 + $0x6e0] sm:$0xff] %vm232, 0.0
      %454 = vst.msk [vmem:[#allocation2 + $0x6e8] sm:$0xff] %vm232, 0.0
      %455 = vst.msk [vmem:[#allocation2 + $0x6f0] sm:$0xff] %vm232, 0.0
      %456 = vst.msk [vmem:[#allocation2 + $0x6f8] sm:$0xff] %vm232, 0.0
      %457 = vst.msk [vmem:[#allocation2 + $0x700] sm:$0xff] %vm232, 0.0
      %458 = vst.msk [vmem:[#allocation2 + $0x708] sm:$0xff] %vm232, 0.0
      %459 = vst.msk [vmem:[#allocation2 + $0x710] sm:$0xff] %vm232, 0.0
      %460 = vst.msk [vmem:[#allocation2 + $0x718] sm:$0xff] %vm232, 0.0
      %461 = vst.msk [vmem:[#allocation2 + $0x720] sm:$0xff] %vm232, 0.0
      %462 = vst.msk [vmem:[#allocation2 + $0x728] sm:$0xff] %vm232, 0.0
      %463 = vst.msk [vmem:[#allocation2 + $0x730] sm:$0xff] %vm232, 0.0
      %464 = vst.msk [vmem:[#allocation2 + $0x738] sm:$0xff] %vm232, 0.0
      %465 = vst.msk [vmem:[#allocation2 + $0x740] sm:$0xff] %vm232, 0.0
      %466 = vst.msk [vmem:[#allocation2 + $0x748] sm:$0xff] %vm232, 0.0
      %467 = vst.msk [vmem:[#allocation2 + $0x750] sm:$0xff] %vm232, 0.0
      %468 = vst.msk [vmem:[#allocation2 + $0x758] sm:$0xff] %vm232, 0.0
      %469 = vst.msk [vmem:[#allocation2 + $0x760] sm:$0xff] %vm232, 0.0
      %470 = vst.msk [vmem:[#allocation2 + $0x768] sm:$0xff] %vm232, 0.0
      %471 = vst.msk [vmem:[#allocation2 + $0x770] sm:$0xff] %vm232, 0.0
      %472 = vst.msk [vmem:[#allocation2 + $0x778] sm:$0xff] %vm232, 0.0
      %473 = vst.msk [vmem:[#allocation2 + $0x780] sm:$0xff] %vm232, 0.0
      %474 = vst.msk [vmem:[#allocation2 + $0x788] sm:$0xff] %vm232, 0.0
      %475 = vst.msk [vmem:[#allocation2 + $0x790] sm:$0xff] %vm232, 0.0
      %476 = vst.msk [vmem:[#allocation2 + $0x798] sm:$0xff] %vm232, 0.0
      %477 = vst.msk [vmem:[#allocation2 + $0x7a0] sm:$0xff] %vm232, 0.0
      %478 = vst.msk [vmem:[#allocation2 + $0x7a8] sm:$0xff] %vm232, 0.0
      %479 = vst.msk [vmem:[#allocation2 + $0x7b0] sm:$0xff] %vm232, 0.0
      %480 = vst.msk [vmem:[#allocation2 + $0x7b8] sm:$0xff] %vm232, 0.0
      %481 = vst.msk [vmem:[#allocation2 + $0x7c0] sm:$0xff] %vm232, 0.0
      %482 = vst.msk [vmem:[#allocation2 + $0x7c8] sm:$0xff] %vm232, 0.0
      %483 = vst.msk [vmem:[#allocation2 + $0x7d0] sm:$0xff] %vm232, 0.0
      %484 = vst.msk [vmem:[#allocation2 + $0x7d8] sm:$0xff] %vm232, 0.0
      %485 = vst.msk [vmem:[#allocation2 + $0x7e0] sm:$0xff] %vm232, 0.0
      %486 = vst.msk [vmem:[#allocation2 + $0x7e8] sm:$0xff] %vm232, 0.0
      %487 = vst.msk [vmem:[#allocation2 + $0x7f0] sm:$0xff] %vm232, 0.0
      %488 = vst.msk [vmem:[#allocation2 + $0x7f8] sm:$0xff] %vm232, 0.0
      %v489 = vld [vmem:[%s223] sm:$0xff]
      %v490 = vld [vmem:[%s223 + $0x8] sm:$0xff]
      %v491 = vld [vmem:[%s223 + $0x10] sm:$0xff]
      %v492 = vld [vmem:[%s223 + $0x18] sm:$0xff]
      %v493 = vld [vmem:[%s223 + $0x20] sm:$0xff]
      %v494 = vld [vmem:[%s223 + $0x28] sm:$0xff]
      %v495 = vld [vmem:[%s223 + $0x30] sm:$0xff]
      %v496 = vld [vmem:[%s223 + $0x38] sm:$0xff]
      %v497 = vld [vmem:[%s223 + $0x40] sm:$0xff]
      %v498 = vld [vmem:[%s223 + $0x48] sm:$0xff]
      %v499 = vld [vmem:[%s223 + $0x50] sm:$0xff]
      %v500 = vld [vmem:[%s223 + $0x58] sm:$0xff]
      %v501 = vld [vmem:[%s223 + $0x60] sm:$0xff]
      %v502 = vld [vmem:[%s223 + $0x68] sm:$0xff]
      %v503 = vld [vmem:[%s223 + $0x70] sm:$0xff]
      %v504 = vld [vmem:[%s223 + $0x78] sm:$0xff]
      %v505 = vld [vmem:[%s223 + $0x80] sm:$0xff]
      %v506 = vld [vmem:[%s223 + $0x88] sm:$0xff]
      %v507 = vld [vmem:[%s223 + $0x90] sm:$0xff]
      %v508 = vld [vmem:[%s223 + $0x98] sm:$0xff]
      %v509 = vld [vmem:[%s223 + $0xa0] sm:$0xff]
      %v510 = vld [vmem:[%s223 + $0xa8] sm:$0xff]
      %v511 = vld [vmem:[%s223 + $0xb0] sm:$0xff]
      %v512 = vld [vmem:[%s223 + $0xb8] sm:$0xff]
      %v513 = vld [vmem:[%s223 + $0xc0] sm:$0xff]
      %v514 = vld [vmem:[%s223 + $0xc8] sm:$0xff]
      %v515 = vld [vmem:[%s223 + $0xd0] sm:$0xff]
      %v516 = vld [vmem:[%s223 + $0xd8] sm:$0xff]
      %v517 = vld [vmem:[%s223 + $0xe0] sm:$0xff]
      %v518 = vld [vmem:[%s223 + $0xe8] sm:$0xff]
      %v519 = vld [vmem:[%s223 + $0xf0] sm:$0xff]
      %v520 = vld [vmem:[%s223 + $0xf8] sm:$0xff]
      %v521 = vld [vmem:[%s223 + $0x100] sm:$0xff]
      %v522 = vld [vmem:[%s223 + $0x108] sm:$0xff]
      %v523 = vld [vmem:[%s223 + $0x110] sm:$0xff]
      %v524 = vld [vmem:[%s223 + $0x118] sm:$0xff]
      %v525 = vld [vmem:[%s223 + $0x120] sm:$0xff]
      %v526 = vld [vmem:[%s223 + $0x128] sm:$0xff]
      %v527 = vld [vmem:[%s223 + $0x130] sm:$0xff]
      %v528 = vld [vmem:[%s223 + $0x138] sm:$0xff]
      %v529 = vld [vmem:[%s223 + $0x140] sm:$0xff]
      %v530 = vld [vmem:[%s223 + $0x148] sm:$0xff]
      %v531 = vld [vmem:[%s223 + $0x150] sm:$0xff]
      %v532 = vld [vmem:[%s223 + $0x158] sm:$0xff]
      %v533 = vld [vmem:[%s223 + $0x160] sm:$0xff]
      %v534 = vld [vmem:[%s223 + $0x168] sm:$0xff]
      %v535 = vld [vmem:[%s223 + $0x170] sm:$0xff]
      %v536 = vld [vmem:[%s223 + $0x178] sm:$0xff]
      %v537 = vld [vmem:[%s223 + $0x180] sm:$0xff]
      %v538 = vld [vmem:[%s223 + $0x188] sm:$0xff]
      %v539 = vld [vmem:[%s223 + $0x190] sm:$0xff]
      %v540 = vld [vmem:[%s223 + $0x198] sm:$0xff]
      %v541 = vld [vmem:[%s223 + $0x1a0] sm:$0xff]
      %v542 = vld [vmem:[%s223 + $0x1a8] sm:$0xff]
      %v543 = vld [vmem:[%s223 + $0x1b0] sm:$0xff]
      %v544 = vld [vmem:[%s223 + $0x1b8] sm:$0xff]
      %v545 = vld [vmem:[%s223 + $0x1c0] sm:$0xff]
      %v546 = vld [vmem:[%s223 + $0x1c8] sm:$0xff]
      %v547 = vld [vmem:[%s223 + $0x1d0] sm:$0xff]
      %v548 = vld [vmem:[%s223 + $0x1d8] sm:$0xff]
      %v549 = vld [vmem:[%s223 + $0x1e0] sm:$0xff]
      %v550 = vld [vmem:[%s223 + $0x1e8] sm:$0xff]
      %v551 = vld [vmem:[%s223 + $0x1f0] sm:$0xff]
      %v552 = vld [vmem:[%s223 + $0x1f8] sm:$0xff]
      %v553 = vld [vmem:[%s223 + $0x200] sm:$0xff]
      %v554 = vld [vmem:[%s223 + $0x208] sm:$0xff]
      %v555 = vld [vmem:[%s223 + $0x210] sm:$0xff]
      %v556 = vld [vmem:[%s223 + $0x218] sm:$0xff]
      %v557 = vld [vmem:[%s223 + $0x220] sm:$0xff]
      %v558 = vld [vmem:[%s223 + $0x228] sm:$0xff]
      %v559 = vld [vmem:[%s223 + $0x230] sm:$0xff]
      %v560 = vld [vmem:[%s223 + $0x238] sm:$0xff]
      %v561 = vld [vmem:[%s223 + $0x240] sm:$0xff]
      %v562 = vld [vmem:[%s223 + $0x248] sm:$0xff]
      %v563 = vld [vmem:[%s223 + $0x250] sm:$0xff]
      %v564 = vld [vmem:[%s223 + $0x258] sm:$0xff]
      %v565 = vld [vmem:[%s223 + $0x260] sm:$0xff]
      %v566 = vld [vmem:[%s223 + $0x268] sm:$0xff]
      %v567 = vld [vmem:[%s223 + $0x270] sm:$0xff]
      %v568 = vld [vmem:[%s223 + $0x278] sm:$0xff]
      %v569 = vld [vmem:[%s223 + $0x280] sm:$0xff]
      %v570 = vld [vmem:[%s223 + $0x288] sm:$0xff]
      %v571 = vld [vmem:[%s223 + $0x290] sm:$0xff]
      %v572 = vld [vmem:[%s223 + $0x298] sm:$0xff]
      %v573 = vld [vmem:[%s223 + $0x2a0] sm:$0xff]
      %v574 = vld [vmem:[%s223 + $0x2a8] sm:$0xff]
      %v575 = vld [vmem:[%s223 + $0x2b0] sm:$0xff]
      %v576 = vld [vmem:[%s223 + $0x2b8] sm:$0xff]
      %v577 = vld [vmem:[%s223 + $0x2c0] sm:$0xff]
      %v578 = vld [vmem:[%s223 + $0x2c8] sm:$0xff]
      %v579 = vld [vmem:[%s223 + $0x2d0] sm:$0xff]
      %v580 = vld [vmem:[%s223 + $0x2d8] sm:$0xff]
      %v581 = vld [vmem:[%s223 + $0x2e0] sm:$0xff]
      %v582 = vld [vmem:[%s223 + $0x2e8] sm:$0xff]
      %v583 = vld [vmem:[%s223 + $0x2f0] sm:$0xff]
      %v584 = vld [vmem:[%s223 + $0x2f8] sm:$0xff]
      %v585 = vld [vmem:[%s223 + $0x300] sm:$0xff]
      %v586 = vld [vmem:[%s223 + $0x308] sm:$0xff]
      %v587 = vld [vmem:[%s223 + $0x310] sm:$0xff]
      %v588 = vld [vmem:[%s223 + $0x318] sm:$0xff]
      %v589 = vld [vmem:[%s223 + $0x320] sm:$0xff]
      %v590 = vld [vmem:[%s223 + $0x328] sm:$0xff]
      %v591 = vld [vmem:[%s223 + $0x330] sm:$0xff]
      %v592 = vld [vmem:[%s223 + $0x338] sm:$0xff]
      %v593 = vld [vmem:[%s223 + $0x340] sm:$0xff]
      %v594 = vld [vmem:[%s223 + $0x348] sm:$0xff]
      %v595 = vld [vmem:[%s223 + $0x350] sm:$0xff]
      %v596 = vld [vmem:[%s223 + $0x358] sm:$0xff]
      %v597 = vld [vmem:[%s223 + $0x360] sm:$0xff]
      %v598 = vld [vmem:[%s223 + $0x368] sm:$0xff]
      %v599 = vld [vmem:[%s223 + $0x370] sm:$0xff]
      %v600 = vld [vmem:[%s223 + $0x378] sm:$0xff]
      %v601 = vld [vmem:[%s223 + $0x380] sm:$0xff]
      %v602 = vld [vmem:[%s223 + $0x388] sm:$0xff]
      %v603 = vld [vmem:[%s223 + $0x390] sm:$0xff]
      %v604 = vld [vmem:[%s223 + $0x398] sm:$0xff]
      %v605 = vld [vmem:[%s223 + $0x3a0] sm:$0xff]
      %v606 = vld [vmem:[%s223 + $0x3a8] sm:$0xff]
      %v607 = vld [vmem:[%s223 + $0x3b0] sm:$0xff]
      %v608 = vld [vmem:[%s223 + $0x3b8] sm:$0xff]
      %v609 = vld [vmem:[%s223 + $0x3c0] sm:$0xff]
      %v610 = vld [vmem:[%s223 + $0x3c8] sm:$0xff]
      %v611 = vld [vmem:[%s223 + $0x3d0] sm:$0xff]
      %v612 = vld [vmem:[%s223 + $0x3d8] sm:$0xff]
      %v613 = vld [vmem:[%s223 + $0x3e0] sm:$0xff]
      %v614 = vld [vmem:[%s223 + $0x3e8] sm:$0xff]
      %v615 = vld [vmem:[%s223 + $0x3f0] sm:$0xff]
      %v616 = vld [vmem:[%s223 + $0x3f8] sm:$0xff]
      %v617 = vld [vmem:[%s223 + $0x400] sm:$0xff]
      %v618 = vld [vmem:[%s223 + $0x408] sm:$0xff]
      %v619 = vld [vmem:[%s223 + $0x410] sm:$0xff]
      %v620 = vld [vmem:[%s223 + $0x418] sm:$0xff]
      %v621 = vld [vmem:[%s223 + $0x420] sm:$0xff]
      %v622 = vld [vmem:[%s223 + $0x428] sm:$0xff]
      %v623 = vld [vmem:[%s223 + $0x430] sm:$0xff]
      %v624 = vld [vmem:[%s223 + $0x438] sm:$0xff]
      %v625 = vld [vmem:[%s223 + $0x440] sm:$0xff]
      %v626 = vld [vmem:[%s223 + $0x448] sm:$0xff]
      %v627 = vld [vmem:[%s223 + $0x450] sm:$0xff]
      %v628 = vld [vmem:[%s223 + $0x458] sm:$0xff]
      %v629 = vld [vmem:[%s223 + $0x460] sm:$0xff]
      %v630 = vld [vmem:[%s223 + $0x468] sm:$0xff]
      %v631 = vld [vmem:[%s223 + $0x470] sm:$0xff]
      %v632 = vld [vmem:[%s223 + $0x478] sm:$0xff]
      %v633 = vld [vmem:[%s223 + $0x480] sm:$0xff]
      %v634 = vld [vmem:[%s223 + $0x488] sm:$0xff]
      %v635 = vld [vmem:[%s223 + $0x490] sm:$0xff]
      %v636 = vld [vmem:[%s223 + $0x498] sm:$0xff]
      %v637 = vld [vmem:[%s223 + $0x4a0] sm:$0xff]
      %v638 = vld [vmem:[%s223 + $0x4a8] sm:$0xff]
      %v639 = vld [vmem:[%s223 + $0x4b0] sm:$0xff]
      %v640 = vld [vmem:[%s223 + $0x4b8] sm:$0xff]
      %v641 = vld [vmem:[%s223 + $0x4c0] sm:$0xff]
      %v642 = vld [vmem:[%s223 + $0x4c8] sm:$0xff]
      %v643 = vld [vmem:[%s223 + $0x4d0] sm:$0xff]
      %v644 = vld [vmem:[%s223 + $0x4d8] sm:$0xff]
      %v645 = vld [vmem:[%s223 + $0x4e0] sm:$0xff]
      %v646 = vld [vmem:[%s223 + $0x4e8] sm:$0xff]
      %v647 = vld [vmem:[%s223 + $0x4f0] sm:$0xff]
      %v648 = vld [vmem:[%s223 + $0x4f8] sm:$0xff]
      %v649 = vld [vmem:[%s223 + $0x500] sm:$0xff]
      %v650 = vld [vmem:[%s223 + $0x508] sm:$0xff]
      %v651 = vld [vmem:[%s223 + $0x510] sm:$0xff]
      %v652 = vld [vmem:[%s223 + $0x518] sm:$0xff]
      %v653 = vld [vmem:[%s223 + $0x520] sm:$0xff]
      %v654 = vld [vmem:[%s223 + $0x528] sm:$0xff]
      %v655 = vld [vmem:[%s223 + $0x530] sm:$0xff]
      %v656 = vld [vmem:[%s223 + $0x538] sm:$0xff]
      %v657 = vld [vmem:[%s223 + $0x540] sm:$0xff]
      %v658 = vld [vmem:[%s223 + $0x548] sm:$0xff]
      %v659 = vld [vmem:[%s223 + $0x550] sm:$0xff]
      %v660 = vld [vmem:[%s223 + $0x558] sm:$0xff]
      %v661 = vld [vmem:[%s223 + $0x560] sm:$0xff]
      %v662 = vld [vmem:[%s223 + $0x568] sm:$0xff]
      %v663 = vld [vmem:[%s223 + $0x570] sm:$0xff]
      %v664 = vld [vmem:[%s223 + $0x578] sm:$0xff]
      %v665 = vld [vmem:[%s223 + $0x580] sm:$0xff]
      %v666 = vld [vmem:[%s223 + $0x588] sm:$0xff]
      %v667 = vld [vmem:[%s223 + $0x590] sm:$0xff]
      %v668 = vld [vmem:[%s223 + $0x598] sm:$0xff]
      %v669 = vld [vmem:[%s223 + $0x5a0] sm:$0xff]
      %v670 = vld [vmem:[%s223 + $0x5a8] sm:$0xff]
      %v671 = vld [vmem:[%s223 + $0x5b0] sm:$0xff]
      %v672 = vld [vmem:[%s223 + $0x5b8] sm:$0xff]
      %v673 = vld [vmem:[%s223 + $0x5c0] sm:$0xff]
      %v674 = vld [vmem:[%s223 + $0x5c8] sm:$0xff]
      %v675 = vld [vmem:[%s223 + $0x5d0] sm:$0xff]
      %v676 = vld [vmem:[%s223 + $0x5d8] sm:$0xff]
      %v677 = vld [vmem:[%s223 + $0x5e0] sm:$0xff]
      %v678 = vld [vmem:[%s223 + $0x5e8] sm:$0xff]
      %v679 = vld [vmem:[%s223 + $0x5f0] sm:$0xff]
      %v680 = vld [vmem:[%s223 + $0x5f8] sm:$0xff]
      %v681 = vld [vmem:[%s223 + $0x600] sm:$0xff]
      %v682 = vld [vmem:[%s223 + $0x608] sm:$0xff]
      %v683 = vld [vmem:[%s223 + $0x610] sm:$0xff]
      %v684 = vld [vmem:[%s223 + $0x618] sm:$0xff]
      %v685 = vld [vmem:[%s223 + $0x620] sm:$0xff]
      %v686 = vld [vmem:[%s223 + $0x628] sm:$0xff]
      %v687 = vld [vmem:[%s223 + $0x630] sm:$0xff]
      %v688 = vld [vmem:[%s223 + $0x638] sm:$0xff]
      %v689 = vld [vmem:[%s223 + $0x640] sm:$0xff]
      %v690 = vld [vmem:[%s223 + $0x648] sm:$0xff]
      %v691 = vld [vmem:[%s223 + $0x650] sm:$0xff]
      %v692 = vld [vmem:[%s223 + $0x658] sm:$0xff]
      %v693 = vld [vmem:[%s223 + $0x660] sm:$0xff]
      %v694 = vld [vmem:[%s223 + $0x668] sm:$0xff]
      %v695 = vld [vmem:[%s223 + $0x670] sm:$0xff]
      %v696 = vld [vmem:[%s223 + $0x678] sm:$0xff]
      %v697 = vld [vmem:[%s223 + $0x680] sm:$0xff]
      %v698 = vld [vmem:[%s223 + $0x688] sm:$0xff]
      %v699 = vld [vmem:[%s223 + $0x690] sm:$0xff]
      %v700 = vld [vmem:[%s223 + $0x698] sm:$0xff]
      %v701 = vld [vmem:[%s223 + $0x6a0] sm:$0xff]
      %v702 = vld [vmem:[%s223 + $0x6a8] sm:$0xff]
      %v703 = vld [vmem:[%s223 + $0x6b0] sm:$0xff]
      %v704 = vld [vmem:[%s223 + $0x6b8] sm:$0xff]
      %v705 = vld [vmem:[%s223 + $0x6c0] sm:$0xff]
      %v706 = vld [vmem:[%s223 + $0x6c8] sm:$0xff]
      %v707 = vld [vmem:[%s223 + $0x6d0] sm:$0xff]
      %v708 = vld [vmem:[%s223 + $0x6d8] sm:$0xff]
      %v709 = vld [vmem:[%s223 + $0x6e0] sm:$0xff]
      %v710 = vld [vmem:[%s223 + $0x6e8] sm:$0xff]
      %v711 = vld [vmem:[%s223 + $0x6f0] sm:$0xff]
      %v712 = vld [vmem:[%s223 + $0x6f8] sm:$0xff]
      %v713 = vld [vmem:[%s223 + $0x700] sm:$0xff]
      %v714 = vld [vmem:[%s223 + $0x708] sm:$0xff]
      %v715 = vld [vmem:[%s223 + $0x710] sm:$0xff]
      %v716 = vld [vmem:[%s223 + $0x718] sm:$0xff]
      %v717 = vld [vmem:[%s223 + $0x720] sm:$0xff]
      %v718 = vld [vmem:[%s223 + $0x728] sm:$0xff]
      %v719 = vld [vmem:[%s223 + $0x730] sm:$0xff]
      %v720 = vld [vmem:[%s223 + $0x738] sm:$0xff]
      %v721 = vld [vmem:[%s223 + $0x740] sm:$0xff]
      %v722 = vld [vmem:[%s223 + $0x748] sm:$0xff]
      %v723 = vld [vmem:[%s223 + $0x750] sm:$0xff]
      %v724 = vld [vmem:[%s223 + $0x758] sm:$0xff]
      %v725 = vld [vmem:[%s223 + $0x760] sm:$0xff]
      %v726 = vld [vmem:[%s223 + $0x768] sm:$0xff]
      %v727 = vld [vmem:[%s223 + $0x770] sm:$0xff]
      %v728 = vld [vmem:[%s223 + $0x778] sm:$0xff]
      %v729 = vld [vmem:[%s223 + $0x780] sm:$0xff]
      %v730 = vld [vmem:[%s223 + $0x788] sm:$0xff]
      %v731 = vld [vmem:[%s223 + $0x790] sm:$0xff]
      %v732 = vld [vmem:[%s223 + $0x798] sm:$0xff]
      %v733 = vld [vmem:[%s223 + $0x7a0] sm:$0xff]
      %v734 = vld [vmem:[%s223 + $0x7a8] sm:$0xff]
      %v735 = vld [vmem:[%s223 + $0x7b0] sm:$0xff]
      %v736 = vld [vmem:[%s223 + $0x7b8] sm:$0xff]
      %v737 = vld [vmem:[%s223 + $0x7c0] sm:$0xff]
      %v738 = vld [vmem:[%s223 + $0x7c8] sm:$0xff]
      %v739 = vld [vmem:[%s223 + $0x7d0] sm:$0xff]
      %v740 = vld [vmem:[%s223 + $0x7d8] sm:$0xff]
      %v741 = vld [vmem:[%s223 + $0x7e0] sm:$0xff]
      %v742 = vld [vmem:[%s223 + $0x7e8] sm:$0xff]
      %v743 = vld [vmem:[%s223 + $0x7f0] sm:$0xff]
      %v744 = vld [vmem:[%s223 + $0x7f8] sm:$0xff]
      %v745 = vld [vmem:[#allocation2] sm:$0xff]
      %v746 = vld [vmem:[#allocation2 + $0x8] sm:$0xff]
      %v747 = vld [vmem:[#allocation2 + $0x10] sm:$0xff]
      %v748 = vld [vmem:[#allocation2 + $0x18] sm:$0xff]
      %v749 = vld [vmem:[#allocation2 + $0x20] sm:$0xff]
      %v750 = vld [vmem:[#allocation2 + $0x28] sm:$0xff]
      %v751 = vld [vmem:[#allocation2 + $0x30] sm:$0xff]
      %v752 = vld [vmem:[#allocation2 + $0x38] sm:$0xff]
      %v753 = vld [vmem:[#allocation2 + $0x40] sm:$0xff]
      %v754 = vld [vmem:[#allocation2 + $0x48] sm:$0xff]
      %v755 = vld [vmem:[#allocation2 + $0x50] sm:$0xff]
      %v756 = vld [vmem:[#allocation2 + $0x58] sm:$0xff]
      %v757 = vld [vmem:[#allocation2 + $0x60] sm:$0xff]
      %v758 = vld [vmem:[#allocation2 + $0x68] sm:$0xff]
      %v759 = vld [vmem:[#allocation2 + $0x70] sm:$0xff]
      %v760 = vld [vmem:[#allocation2 + $0x78] sm:$0xff]
      %v761 = vld [vmem:[#allocation2 + $0x80] sm:$0xff]
      %v762 = vld [vmem:[#allocation2 + $0x88] sm:$0xff]
      %v763 = vld [vmem:[#allocation2 + $0x90] sm:$0xff]
      %v764 = vld [vmem:[#allocation2 + $0x98] sm:$0xff]
      %v765 = vld [vmem:[#allocation2 + $0xa0] sm:$0xff]
      %v766 = vld [vmem:[#allocation2 + $0xa8] sm:$0xff]
      %v767 = vld [vmem:[#allocation2 + $0xb0] sm:$0xff]
      %v768 = vld [vmem:[#allocation2 + $0xb8] sm:$0xff]
      %v769 = vld [vmem:[#allocation2 + $0xc0] sm:$0xff]
      %v770 = vld [vmem:[#allocation2 + $0xc8] sm:$0xff]
      %v771 = vld [vmem:[#allocation2 + $0xd0] sm:$0xff]
      %v772 = vld [vmem:[#allocation2 + $0xd8] sm:$0xff]
      %v773 = vld [vmem:[#allocation2 + $0xe0] sm:$0xff]
      %v774 = vld [vmem:[#allocation2 + $0xe8] sm:$0xff]
      %v775 = vld [vmem:[#allocation2 + $0xf0] sm:$0xff]
      %v776 = vld [vmem:[#allocation2 + $0xf8] sm:$0xff]
      %v777 = vld [vmem:[#allocation2 + $0x100] sm:$0xff]
      %v778 = vld [vmem:[#allocation2 + $0x108] sm:$0xff]
      %v779 = vld [vmem:[#allocation2 + $0x110] sm:$0xff]
      %v780 = vld [vmem:[#allocation2 + $0x118] sm:$0xff]
      %v781 = vld [vmem:[#allocation2 + $0x120] sm:$0xff]
      %v782 = vld [vmem:[#allocation2 + $0x128] sm:$0xff]
      %v783 = vld [vmem:[#allocation2 + $0x130] sm:$0xff]
      %v784 = vld [vmem:[#allocation2 + $0x138] sm:$0xff]
      %v785 = vld [vmem:[#allocation2 + $0x140] sm:$0xff]
      %v786 = vld [vmem:[#allocation2 + $0x148] sm:$0xff]
      %v787 = vld [vmem:[#allocation2 + $0x150] sm:$0xff]
      %v788 = vld [vmem:[#allocation2 + $0x158] sm:$0xff]
      %v789 = vld [vmem:[#allocation2 + $0x160] sm:$0xff]
      %v790 = vld [vmem:[#allocation2 + $0x168] sm:$0xff]
      %v791 = vld [vmem:[#allocation2 + $0x170] sm:$0xff]
      %v792 = vld [vmem:[#allocation2 + $0x178] sm:$0xff]
      %v793 = vld [vmem:[#allocation2 + $0x180] sm:$0xff]
      %v794 = vld [vmem:[#allocation2 + $0x188] sm:$0xff]
      %v795 = vld [vmem:[#allocation2 + $0x190] sm:$0xff]
      %v796 = vld [vmem:[#allocation2 + $0x198] sm:$0xff]
      %v797 = vld [vmem:[#allocation2 + $0x1a0] sm:$0xff]
      %v798 = vld [vmem:[#allocation2 + $0x1a8] sm:$0xff]
      %v799 = vld [vmem:[#allocation2 + $0x1b0] sm:$0xff]
      %v800 = vld [vmem:[#allocation2 + $0x1b8] sm:$0xff]
      %v801 = vld [vmem:[#allocation2 + $0x1c0] sm:$0xff]
      %v802 = vld [vmem:[#allocation2 + $0x1c8] sm:$0xff]
      %v803 = vld [vmem:[#allocation2 + $0x1d0] sm:$0xff]
      %v804 = vld [vmem:[#allocation2 + $0x1d8] sm:$0xff]
      %v805 = vld [vmem:[#allocation2 + $0x1e0] sm:$0xff]
      %v806 = vld [vmem:[#allocation2 + $0x1e8] sm:$0xff]
      %v807 = vld [vmem:[#allocation2 + $0x1f0] sm:$0xff]
      %v808 = vld [vmem:[#allocation2 + $0x1f8] sm:$0xff]
      %v809 = vld [vmem:[#allocation2 + $0x200] sm:$0xff]
      %v810 = vld [vmem:[#allocation2 + $0x208] sm:$0xff]
      %v811 = vld [vmem:[#allocation2 + $0x210] sm:$0xff]
      %v812 = vld [vmem:[#allocation2 + $0x218] sm:$0xff]
      %v813 = vld [vmem:[#allocation2 + $0x220] sm:$0xff]
      %v814 = vld [vmem:[#allocation2 + $0x228] sm:$0xff]
      %v815 = vld [vmem:[#allocation2 + $0x230] sm:$0xff]
      %v816 = vld [vmem:[#allocation2 + $0x238] sm:$0xff]
      %v817 = vld [vmem:[#allocation2 + $0x240] sm:$0xff]
      %v818 = vld [vmem:[#allocation2 + $0x248] sm:$0xff]
      %v819 = vld [vmem:[#allocation2 + $0x250] sm:$0xff]
      %v820 = vld [vmem:[#allocation2 + $0x258] sm:$0xff]
      %v821 = vld [vmem:[#allocation2 + $0x260] sm:$0xff]
      %v822 = vld [vmem:[#allocation2 + $0x268] sm:$0xff]
      %v823 = vld [vmem:[#allocation2 + $0x270] sm:$0xff]
      %v824 = vld [vmem:[#allocation2 + $0x278] sm:$0xff]
      %v825 = vld [vmem:[#allocation2 + $0x280] sm:$0xff]
      %v826 = vld [vmem:[#allocation2 + $0x288] sm:$0xff]
      %v827 = vld [vmem:[#allocation2 + $0x290] sm:$0xff]
      %v828 = vld [vmem:[#allocation2 + $0x298] sm:$0xff]
      %v829 = vld [vmem:[#allocation2 + $0x2a0] sm:$0xff]
      %v830 = vld [vmem:[#allocation2 + $0x2a8] sm:$0xff]
      %v831 = vld [vmem:[#allocation2 + $0x2b0] sm:$0xff]
      %v832 = vld [vmem:[#allocation2 + $0x2b8] sm:$0xff]
      %v833 = vld [vmem:[#allocation2 + $0x2c0] sm:$0xff]
      %v834 = vld [vmem:[#allocation2 + $0x2c8] sm:$0xff]
      %v835 = vld [vmem:[#allocation2 + $0x2d0] sm:$0xff]
      %v836 = vld [vmem:[#allocation2 + $0x2d8] sm:$0xff]
      %v837 = vld [vmem:[#allocation2 + $0x2e0] sm:$0xff]
      %v838 = vld [vmem:[#allocation2 + $0x2e8] sm:$0xff]
      %v839 = vld [vmem:[#allocation2 + $0x2f0] sm:$0xff]
      %v840 = vld [vmem:[#allocation2 + $0x2f8] sm:$0xff]
      %v841 = vld [vmem:[#allocation2 + $0x300] sm:$0xff]
      %v842 = vld [vmem:[#allocation2 + $0x308] sm:$0xff]
      %v843 = vld [vmem:[#allocation2 + $0x310] sm:$0xff]
      %v844 = vld [vmem:[#allocation2 + $0x318] sm:$0xff]
      %v845 = vld [vmem:[#allocation2 + $0x320] sm:$0xff]
      %v846 = vld [vmem:[#allocation2 + $0x328] sm:$0xff]
      %v847 = vld [vmem:[#allocation2 + $0x330] sm:$0xff]
      %v848 = vld [vmem:[#allocation2 + $0x338] sm:$0xff]
      %v849 = vld [vmem:[#allocation2 + $0x340] sm:$0xff]
      %v850 = vld [vmem:[#allocation2 + $0x348] sm:$0xff]
      %v851 = vld [vmem:[#allocation2 + $0x350] sm:$0xff]
      %v852 = vld [vmem:[#allocation2 + $0x358] sm:$0xff]
      %v853 = vld [vmem:[#allocation2 + $0x360] sm:$0xff]
      %v854 = vld [vmem:[#allocation2 + $0x368] sm:$0xff]
      %v855 = vld [vmem:[#allocation2 + $0x370] sm:$0xff]
      %v856 = vld [vmem:[#allocation2 + $0x378] sm:$0xff]
      %v857 = vld [vmem:[#allocation2 + $0x380] sm:$0xff]
      %v858 = vld [vmem:[#allocation2 + $0x388] sm:$0xff]
      %v859 = vld [vmem:[#allocation2 + $0x390] sm:$0xff]
      %v860 = vld [vmem:[#allocation2 + $0x398] sm:$0xff]
      %v861 = vld [vmem:[#allocation2 + $0x3a0] sm:$0xff]
      %v862 = vld [vmem:[#allocation2 + $0x3a8] sm:$0xff]
      %v863 = vld [vmem:[#allocation2 + $0x3b0] sm:$0xff]
      %v864 = vld [vmem:[#allocation2 + $0x3b8] sm:$0xff]
      %v865 = vld [vmem:[#allocation2 + $0x3c0] sm:$0xff]
      %v866 = vld [vmem:[#allocation2 + $0x3c8] sm:$0xff]
      %v867 = vld [vmem:[#allocation2 + $0x3d0] sm:$0xff]
      %v868 = vld [vmem:[#allocation2 + $0x3d8] sm:$0xff]
      %v869 = vld [vmem:[#allocation2 + $0x3e0] sm:$0xff]
      %v870 = vld [vmem:[#allocation2 + $0x3e8] sm:$0xff]
      %v871 = vld [vmem:[#allocation2 + $0x3f0] sm:$0xff]
      %v872 = vld [vmem:[#allocation2 + $0x3f8] sm:$0xff]
      %v873 = vld [vmem:[#allocation2 + $0x400] sm:$0xff]
      %v874 = vld [vmem:[#allocation2 + $0x408] sm:$0xff]
      %v875 = vld [vmem:[#allocation2 + $0x410] sm:$0xff]
      %v876 = vld [vmem:[#allocation2 + $0x418] sm:$0xff]
      %v877 = vld [vmem:[#allocation2 + $0x420] sm:$0xff]
      %v878 = vld [vmem:[#allocation2 + $0x428] sm:$0xff]
      %v879 = vld [vmem:[#allocation2 + $0x430] sm:$0xff]
      %v880 = vld [vmem:[#allocation2 + $0x438] sm:$0xff]
      %v881 = vld [vmem:[#allocation2 + $0x440] sm:$0xff]
      %v882 = vld [vmem:[#allocation2 + $0x448] sm:$0xff]
      %v883 = vld [vmem:[#allocation2 + $0x450] sm:$0xff]
      %v884 = vld [vmem:[#allocation2 + $0x458] sm:$0xff]
      %v885 = vld [vmem:[#allocation2 + $0x460] sm:$0xff]
      %v886 = vld [vmem:[#allocation2 + $0x468] sm:$0xff]
      %v887 = vld [vmem:[#allocation2 + $0x470] sm:$0xff]
      %v888 = vld [vmem:[#allocation2 + $0x478] sm:$0xff]
      %v889 = vld [vmem:[#allocation2 + $0x480] sm:$0xff]
      %v890 = vld [vmem:[#allocation2 + $0x488] sm:$0xff]
      %v891 = vld [vmem:[#allocation2 + $0x490] sm:$0xff]
      %v892 = vld [vmem:[#allocation2 + $0x498] sm:$0xff]
      %v893 = vld [vmem:[#allocation2 + $0x4a0] sm:$0xff]
      %v894 = vld [vmem:[#allocation2 + $0x4a8] sm:$0xff]
      %v895 = vld [vmem:[#allocation2 + $0x4b0] sm:$0xff]
      %v896 = vld [vmem:[#allocation2 + $0x4b8] sm:$0xff]
      %v897 = vld [vmem:[#allocation2 + $0x4c0] sm:$0xff]
      %v898 = vld [vmem:[#allocation2 + $0x4c8] sm:$0xff]
      %v899 = vld [vmem:[#allocation2 + $0x4d0] sm:$0xff]
      %v900 = vld [vmem:[#allocation2 + $0x4d8] sm:$0xff]
      %v901 = vld [vmem:[#allocation2 + $0x4e0] sm:$0xff]
      %v902 = vld [vmem:[#allocation2 + $0x4e8] sm:$0xff]
      %v903 = vld [vmem:[#allocation2 + $0x4f0] sm:$0xff]
      %v904 = vld [vmem:[#allocation2 + $0x4f8] sm:$0xff]
      %v905 = vld [vmem:[#allocation2 + $0x500] sm:$0xff]
      %v906 = vld [vmem:[#allocation2 + $0x508] sm:$0xff]
      %v907 = vld [vmem:[#allocation2 + $0x510] sm:$0xff]
      %v908 = vld [vmem:[#allocation2 + $0x518] sm:$0xff]
      %v909 = vld [vmem:[#allocation2 + $0x520] sm:$0xff]
      %v910 = vld [vmem:[#allocation2 + $0x528] sm:$0xff]
      %v911 = vld [vmem:[#allocation2 + $0x530] sm:$0xff]
      %v912 = vld [vmem:[#allocation2 + $0x538] sm:$0xff]
      %v913 = vld [vmem:[#allocation2 + $0x540] sm:$0xff]
      %v914 = vld [vmem:[#allocation2 + $0x548] sm:$0xff]
      %v915 = vld [vmem:[#allocation2 + $0x550] sm:$0xff]
      %v916 = vld [vmem:[#allocation2 + $0x558] sm:$0xff]
      %v917 = vld [vmem:[#allocation2 + $0x560] sm:$0xff]
      %v918 = vld [vmem:[#allocation2 + $0x568] sm:$0xff]
      %v919 = vld [vmem:[#allocation2 + $0x570] sm:$0xff]
      %v920 = vld [vmem:[#allocation2 + $0x578] sm:$0xff]
      %v921 = vld [vmem:[#allocation2 + $0x580] sm:$0xff]
      %v922 = vld [vmem:[#allocation2 + $0x588] sm:$0xff]
      %v923 = vld [vmem:[#allocation2 + $0x590] sm:$0xff]
      %v924 = vld [vmem:[#allocation2 + $0x598] sm:$0xff]
      %v925 = vld [vmem:[#allocation2 + $0x5a0] sm:$0xff]
      %v926 = vld [vmem:[#allocation2 + $0x5a8] sm:$0xff]
      %v927 = vld [vmem:[#allocation2 + $0x5b0] sm:$0xff]
      %v928 = vld [vmem:[#allocation2 + $0x5b8] sm:$0xff]
      %v929 = vld [vmem:[#allocation2 + $0x5c0] sm:$0xff]
      %v930 = vld [vmem:[#allocation2 + $0x5c8] sm:$0xff]
      %v931 = vld [vmem:[#allocation2 + $0x5d0] sm:$0xff]
      %v932 = vld [vmem:[#allocation2 + $0x5d8] sm:$0xff]
      %v933 = vld [vmem:[#allocation2 + $0x5e0] sm:$0xff]
      %v934 = vld [vmem:[#allocation2 + $0x5e8] sm:$0xff]
      %v935 = vld [vmem:[#allocation2 + $0x5f0] sm:$0xff]
      %v936 = vld [vmem:[#allocation2 + $0x5f8] sm:$0xff]
      %v937 = vld [vmem:[#allocation2 + $0x600] sm:$0xff]
      %v938 = vld [vmem:[#allocation2 + $0x608] sm:$0xff]
      %v939 = vld [vmem:[#allocation2 + $0x610] sm:$0xff]
      %v940 = vld [vmem:[#allocation2 + $0x618] sm:$0xff]
      %v941 = vld [vmem:[#allocation2 + $0x620] sm:$0xff]
      %v942 = vld [vmem:[#allocation2 + $0x628] sm:$0xff]
      %v943 = vld [vmem:[#allocation2 + $0x630] sm:$0xff]
      %v944 = vld [vmem:[#allocation2 + $0x638] sm:$0xff]
      %v945 = vld [vmem:[#allocation2 + $0x640] sm:$0xff]
      %v946 = vld [vmem:[#allocation2 + $0x648] sm:$0xff]
      %v947 = vld [vmem:[#allocation2 + $0x650] sm:$0xff]
      %v948 = vld [vmem:[#allocation2 + $0x658] sm:$0xff]
      %v949 = vld [vmem:[#allocation2 + $0x660] sm:$0xff]
      %v950 = vld [vmem:[#allocation2 + $0x668] sm:$0xff]
      %v951 = vld [vmem:[#allocation2 + $0x670] sm:$0xff]
      %v952 = vld [vmem:[#allocation2 + $0x678] sm:$0xff]
      %v953 = vld [vmem:[#allocation2 + $0x680] sm:$0xff]
      %v954 = vld [vmem:[#allocation2 + $0x688] sm:$0xff]
      %v955 = vld [vmem:[#allocation2 + $0x690] sm:$0xff]
      %v956 = vld [vmem:[#allocation2 + $0x698] sm:$0xff]
      %v957 = vld [vmem:[#allocation2 + $0x6a0] sm:$0xff]
      %v958 = vld [vmem:[#allocation2 + $0x6a8] sm:$0xff]
      %v959 = vld [vmem:[#allocation2 + $0x6b0] sm:$0xff]
      %v960 = vld [vmem:[#allocation2 + $0x6b8] sm:$0xff]
      %v961 = vld [vmem:[#allocation2 + $0x6c0] sm:$0xff]
      %v962 = vld [vmem:[#allocation2 + $0x6c8] sm:$0xff]
      %v963 = vld [vmem:[#allocation2 + $0x6d0] sm:$0xff]
      %v964 = vld [vmem:[#allocation2 + $0x6d8] sm:$0xff]
      %v965 = vld [vmem:[#allocation2 + $0x6e0] sm:$0xff]
      %v966 = vld [vmem:[#allocation2 + $0x6e8] sm:$0xff]
      %v967 = vld [vmem:[#allocation2 + $0x6f0] sm:$0xff]
      %v968 = vld [vmem:[#allocation2 + $0x6f8] sm:$0xff]
      %v969 = vld [vmem:[#allocation2 + $0x700] sm:$0xff]
      %v970 = vld [vmem:[#allocation2 + $0x708] sm:$0xff]
      %v971 = vld [vmem:[#allocation2 + $0x710] sm:$0xff]
      %v972 = vld [vmem:[#allocation2 + $0x718] sm:$0xff]
      %v973 = vld [vmem:[#allocation2 + $0x720] sm:$0xff]
      %v974 = vld [vmem:[#allocation2 + $0x728] sm:$0xff]
      %v975 = vld [vmem:[#allocation2 + $0x730] sm:$0xff]
      %v976 = vld [vmem:[#allocation2 + $0x738] sm:$0xff]
      %v977 = vld [vmem:[#allocation2 + $0x740] sm:$0xff]
      %v978 = vld [vmem:[#allocation2 + $0x748] sm:$0xff]
      %v979 = vld [vmem:[#allocation2 + $0x750] sm:$0xff]
      %v980 = vld [vmem:[#allocation2 + $0x758] sm:$0xff]
      %v981 = vld [vmem:[#allocation2 + $0x760] sm:$0xff]
      %v982 = vld [vmem:[#allocation2 + $0x768] sm:$0xff]
      %v983 = vld [vmem:[#allocation2 + $0x770] sm:$0xff]
      %v984 = vld [vmem:[#allocation2 + $0x778] sm:$0xff]
      %v985 = vld [vmem:[#allocation2 + $0x780] sm:$0xff]
      %v986 = vld [vmem:[#allocation2 + $0x788] sm:$0xff]
      %v987 = vld [vmem:[#allocation2 + $0x790] sm:$0xff]
      %v988 = vld [vmem:[#allocation2 + $0x798] sm:$0xff]
      %v989 = vld [vmem:[#allocation2 + $0x7a0] sm:$0xff]
      %v990 = vld [vmem:[#allocation2 + $0x7a8] sm:$0xff]
      %v991 = vld [vmem:[#allocation2 + $0x7b0] sm:$0xff]
      %v992 = vld [vmem:[#allocation2 + $0x7b8] sm:$0xff]
      %v993 = vld [vmem:[#allocation2 + $0x7c0] sm:$0xff]
      %v994 = vld [vmem:[#allocation2 + $0x7c8] sm:$0xff]
      %v995 = vld [vmem:[#allocation2 + $0x7d0] sm:$0xff]
      %v996 = vld [vmem:[#allocation2 + $0x7d8] sm:$0xff]
      %v997 = vld [vmem:[#allocation2 + $0x7e0] sm:$0xff]
      %v998 = vld [vmem:[#allocation2 + $0x7e8] sm:$0xff]
      %v999 = vld [vmem:[#allocation2 + $0x7f0] sm:$0xff]
      %v1000 = vld [vmem:[#allocation2 + $0x7f8] sm:$0xff]
      %v1001 = vld [vmem:[%s1] sm:$0xf]
      %v1002 = vld [vmem:[%s1 + $0x4] sm:$0xf]
      %v1003 = vld [vmem:[%s1 + $0x8] sm:$0xf]
      %v1004 = vld [vmem:[%s1 + $0xc] sm:$0xf]
      %v1005 = vld [vmem:[%s1 + $0x10] sm:$0xf]
      %v1006 = vld [vmem:[%s1 + $0x14] sm:$0xf]
      %v1007 = vld [vmem:[%s1 + $0x18] sm:$0xf]
      %v1008 = vld [vmem:[%s1 + $0x1c] sm:$0xf]
      %v1009 = vld [vmem:[%s1 + $0x20] sm:$0xf]
      %v1010 = vld [vmem:[%s1 + $0x24] sm:$0xf]
      %v1011 = vld [vmem:[%s1 + $0x28] sm:$0xf]
      %v1012 = vld [vmem:[%s1 + $0x2c] sm:$0xf]
      %v1013 = vld [vmem:[%s1 + $0x30] sm:$0xf]
      %v1014 = vld [vmem:[%s1 + $0x34] sm:$0xf]
      %v1015 = vld [vmem:[%s1 + $0x38] sm:$0xf]
      %v1016 = vld [vmem:[%s1 + $0x3c] sm:$0xf]
      %v1017 = vld [vmem:[%s1 + $0x40] sm:$0xf]
      %v1018 = vld [vmem:[%s1 + $0x44] sm:$0xf]
      %v1019 = vld [vmem:[%s1 + $0x48] sm:$0xf]
      %v1020 = vld [vmem:[%s1 + $0x4c] sm:$0xf]
      %v1021 = vld [vmem:[%s1 + $0x50] sm:$0xf]
      %v1022 = vld [vmem:[%s1 + $0x54] sm:$0xf]
      %v1023 = vld [vmem:[%s1 + $0x58] sm:$0xf]
      %v1024 = vld [vmem:[%s1 + $0x5c] sm:$0xf]
      %v1281 = vunpack.c.l.b16 %v489
      %v1282 = vunpack.c.h.b16 %v489
      %v1283 = vunpack.c.l.b16 %v490
      %v1284 = vunpack.c.h.b16 %v490
      %v1285 = vunpack.c.l.b16 %v491
      %v1286 = vunpack.c.h.b16 %v491
      %v1287 = vunpack.c.l.b16 %v492
      %v1288 = vunpack.c.h.b16 %v492
      %v1289 = vunpack.c.l.b16 %v493
      %v1290 = vunpack.c.h.b16 %v493
      %v1291 = vunpack.c.l.b16 %v494
      %v1292 = vunpack.c.h.b16 %v494
      %v1293 = vunpack.c.l.b16 %v495
      %v1294 = vunpack.c.h.b16 %v495
      %v1295 = vunpack.c.l.b16 %v496
      %v1296 = vunpack.c.h.b16 %v496
      %v1297 = vunpack.c.l.b16 %v497
      %v1298 = vunpack.c.h.b16 %v497
      %v1299 = vunpack.c.l.b16 %v498
      %v1300 = vunpack.c.h.b16 %v498
      %v1301 = vunpack.c.l.b16 %v499
      %v1302 = vunpack.c.h.b16 %v499
      %v1303 = vunpack.c.l.b16 %v500
      %v1304 = vunpack.c.h.b16 %v500
      %v1305 = vunpack.c.l.b16 %v501
      %v1306 = vunpack.c.h.b16 %v501
      %v1307 = vunpack.c.l.b16 %v502
      %v1308 = vunpack.c.h.b16 %v502
      %v1309 = vunpack.c.l.b16 %v503
      %v1310 = vunpack.c.h.b16 %v503
      %v1311 = vunpack.c.l.b16 %v504
      %v1312 = vunpack.c.h.b16 %v504
      %v1313 = vunpack.c.l.b16 %v505
      %v1314 = vunpack.c.h.b16 %v505
      %v1315 = vunpack.c.l.b16 %v506
      %v1316 = vunpack.c.h.b16 %v506
      %v1317 = vunpack.c.l.b16 %v507
      %v1318 = vunpack.c.h.b16 %v507
      %v1319 = vunpack.c.l.b16 %v508
      %v1320 = vunpack.c.h.b16 %v508
      %v1321 = vunpack.c.l.b16 %v509
      %v1322 = vunpack.c.h.b16 %v509
      %v1323 = vunpack.c.l.b16 %v510
      %v1324 = vunpack.c.h.b16 %v510
      %v1325 = vunpack.c.l.b16 %v511
      %v1326 = vunpack.c.h.b16 %v511
      %v1327 = vunpack.c.l.b16 %v512
      %v1328 = vunpack.c.h.b16 %v512
      %v1329 = vunpack.c.l.b16 %v513
      %v1330 = vunpack.c.h.b16 %v513
      %v1331 = vunpack.c.l.b16 %v514
      %v1332 = vunpack.c.h.b16 %v514
      %v1333 = vunpack.c.l.b16 %v515
      %v1334 = vunpack.c.h.b16 %v515
      %v1335 = vunpack.c.l.b16 %v516
      %v1336 = vunpack.c.h.b16 %v516
      %v1337 = vunpack.c.l.b16 %v517
      %v1338 = vunpack.c.h.b16 %v517
      %v1339 = vunpack.c.l.b16 %v518
      %v1340 = vunpack.c.h.b16 %v518
      %v1341 = vunpack.c.l.b16 %v519
      %v1342 = vunpack.c.h.b16 %v519
      %v1343 = vunpack.c.l.b16 %v520
      %v1344 = vunpack.c.h.b16 %v520
      %v1345 = vunpack.c.l.b16 %v521
      %v1346 = vunpack.c.h.b16 %v521
      %v1347 = vunpack.c.l.b16 %v522
      %v1348 = vunpack.c.h.b16 %v522
      %v1349 = vunpack.c.l.b16 %v523
      %v1350 = vunpack.c.h.b16 %v523
      %v1351 = vunpack.c.l.b16 %v524
      %v1352 = vunpack.c.h.b16 %v524
      %v1353 = vunpack.c.l.b16 %v525
      %v1354 = vunpack.c.h.b16 %v525
      %v1355 = vunpack.c.l.b16 %v526
      %v1356 = vunpack.c.h.b16 %v526
      %v1357 = vunpack.c.l.b16 %v527
      %v1358 = vunpack.c.h.b16 %v527
      %v1359 = vunpack.c.l.b16 %v528
      %v1360 = vunpack.c.h.b16 %v528
      %v1361 = vunpack.c.l.b16 %v529
      %v1362 = vunpack.c.h.b16 %v529
      %v1363 = vunpack.c.l.b16 %v530
      %v1364 = vunpack.c.h.b16 %v530
      %v1365 = vunpack.c.l.b16 %v531
      %v1366 = vunpack.c.h.b16 %v531
      %v1367 = vunpack.c.l.b16 %v532
      %v1368 = vunpack.c.h.b16 %v532
      %v1369 = vunpack.c.l.b16 %v533
      %v1370 = vunpack.c.h.b16 %v533
      %v1371 = vunpack.c.l.b16 %v534
      %v1372 = vunpack.c.h.b16 %v534
      %v1373 = vunpack.c.l.b16 %v535
      %v1374 = vunpack.c.h.b16 %v535
      %v1375 = vunpack.c.l.b16 %v536
      %v1376 = vunpack.c.h.b16 %v536
      %v1377 = vunpack.c.l.b16 %v537
      %v1378 = vunpack.c.h.b16 %v537
      %v1379 = vunpack.c.l.b16 %v538
      %v1380 = vunpack.c.h.b16 %v538
      %v1381 = vunpack.c.l.b16 %v539
      %v1382 = vunpack.c.h.b16 %v539
      %v1383 = vunpack.c.l.b16 %v540
      %v1384 = vunpack.c.h.b16 %v540
      %v1385 = vunpack.c.l.b16 %v541
      %v1386 = vunpack.c.h.b16 %v541
      %v1387 = vunpack.c.l.b16 %v542
      %v1388 = vunpack.c.h.b16 %v542
      %v1389 = vunpack.c.l.b16 %v543
      %v1390 = vunpack.c.h.b16 %v543
      %v1391 = vunpack.c.l.b16 %v544
      %v1392 = vunpack.c.h.b16 %v544
      %v1393 = vunpack.c.l.b16 %v545
      %v1394 = vunpack.c.h.b16 %v545
      %v1395 = vunpack.c.l.b16 %v546
      %v1396 = vunpack.c.h.b16 %v546
      %v1397 = vunpack.c.l.b16 %v547
      %v1398 = vunpack.c.h.b16 %v547
      %v1399 = vunpack.c.l.b16 %v548
      %v1400 = vunpack.c.h.b16 %v548
      %v1401 = vunpack.c.l.b16 %v549
      %v1402 = vunpack.c.h.b16 %v549
      %v1403 = vunpack.c.l.b16 %v550
      %v1404 = vunpack.c.h.b16 %v550
      %v1405 = vunpack.c.l.b16 %v551
      %v1406 = vunpack.c.h.b16 %v551
      %v1407 = vunpack.c.l.b16 %v552
      %v1408 = vunpack.c.h.b16 %v552
      %v1409 = vunpack.c.l.b16 %v553
      %v1410 = vunpack.c.h.b16 %v553
      %v1411 = vunpack.c.l.b16 %v554
      %v1412 = vunpack.c.h.b16 %v554
      %v1413 = vunpack.c.l.b16 %v555
      %v1414 = vunpack.c.h.b16 %v555
      %v1415 = vunpack.c.l.b16 %v556
      %v1416 = vunpack.c.h.b16 %v556
      %v1417 = vunpack.c.l.b16 %v557
      %v1418 = vunpack.c.h.b16 %v557
      %v1419 = vunpack.c.l.b16 %v558
      %v1420 = vunpack.c.h.b16 %v558
      %v1421 = vunpack.c.l.b16 %v559
      %v1422 = vunpack.c.h.b16 %v559
      %v1423 = vunpack.c.l.b16 %v560
      %v1424 = vunpack.c.h.b16 %v560
      %v1425 = vunpack.c.l.b16 %v561
      %v1426 = vunpack.c.h.b16 %v561
      %v1427 = vunpack.c.l.b16 %v562
      %v1428 = vunpack.c.h.b16 %v562
      %v1429 = vunpack.c.l.b16 %v563
      %v1430 = vunpack.c.h.b16 %v563
      %v1431 = vunpack.c.l.b16 %v564
      %v1432 = vunpack.c.h.b16 %v564
      %v1433 = vunpack.c.l.b16 %v565
      %v1434 = vunpack.c.h.b16 %v565
      %v1435 = vunpack.c.l.b16 %v566
      %v1436 = vunpack.c.h.b16 %v566
      %v1437 = vunpack.c.l.b16 %v567
      %v1438 = vunpack.c.h.b16 %v567
      %v1439 = vunpack.c.l.b16 %v568
      %v1440 = vunpack.c.h.b16 %v568
      %v1441 = vunpack.c.l.b16 %v569
      %v1442 = vunpack.c.h.b16 %v569
      %v1443 = vunpack.c.l.b16 %v570
      %v1444 = vunpack.c.h.b16 %v570
      %v1445 = vunpack.c.l.b16 %v571
      %v1446 = vunpack.c.h.b16 %v571
      %v1447 = vunpack.c.l.b16 %v572
      %v1448 = vunpack.c.h.b16 %v572
      %v1449 = vunpack.c.l.b16 %v573
      %v1450 = vunpack.c.h.b16 %v573
      %v1451 = vunpack.c.l.b16 %v574
      %v1452 = vunpack.c.h.b16 %v574
      %v1453 = vunpack.c.l.b16 %v575
      %v1454 = vunpack.c.h.b16 %v575
      %v1455 = vunpack.c.l.b16 %v576
      %v1456 = vunpack.c.h.b16 %v576
      %v1457 = vunpack.c.l.b16 %v577
      %v1458 = vunpack.c.h.b16 %v577
      %v1459 = vunpack.c.l.b16 %v578
      %v1460 = vunpack.c.h.b16 %v578
      %v1461 = vunpack.c.l.b16 %v579
      %v1462 = vunpack.c.h.b16 %v579
      %v1463 = vunpack.c.l.b16 %v580
      %v1464 = vunpack.c.h.b16 %v580
      %v1465 = vunpack.c.l.b16 %v581
      %v1466 = vunpack.c.h.b16 %v581
      %v1467 = vunpack.c.l.b16 %v582
      %v1468 = vunpack.c.h.b16 %v582
      %v1469 = vunpack.c.l.b16 %v583
      %v1470 = vunpack.c.h.b16 %v583
      %v1471 = vunpack.c.l.b16 %v584
      %v1472 = vunpack.c.h.b16 %v584
      %v1473 = vunpack.c.l.b16 %v585
      %v1474 = vunpack.c.h.b16 %v585
      %v1475 = vunpack.c.l.b16 %v586
      %v1476 = vunpack.c.h.b16 %v586
      %v1477 = vunpack.c.l.b16 %v587
      %v1478 = vunpack.c.h.b16 %v587
      %v1479 = vunpack.c.l.b16 %v588
      %v1480 = vunpack.c.h.b16 %v588
      %v1481 = vunpack.c.l.b16 %v589
      %v1482 = vunpack.c.h.b16 %v589
      %v1483 = vunpack.c.l.b16 %v590
      %v1484 = vunpack.c.h.b16 %v590
      %v1485 = vunpack.c.l.b16 %v591
      %v1486 = vunpack.c.h.b16 %v591
      %v1487 = vunpack.c.l.b16 %v592
      %v1488 = vunpack.c.h.b16 %v592
      %v1489 = vunpack.c.l.b16 %v593
      %v1490 = vunpack.c.h.b16 %v593
      %v1491 = vunpack.c.l.b16 %v594
      %v1492 = vunpack.c.h.b16 %v594
      %v1493 = vunpack.c.l.b16 %v595
      %v1494 = vunpack.c.h.b16 %v595
      %v1495 = vunpack.c.l.b16 %v596
      %v1496 = vunpack.c.h.b16 %v596
      %v1497 = vunpack.c.l.b16 %v597
      %v1498 = vunpack.c.h.b16 %v597
      %v1499 = vunpack.c.l.b16 %v598
      %v1500 = vunpack.c.h.b16 %v598
      %v1501 = vunpack.c.l.b16 %v599
      %v1502 = vunpack.c.h.b16 %v599
      %v1503 = vunpack.c.l.b16 %v600
      %v1504 = vunpack.c.h.b16 %v600
      %v1505 = vunpack.c.l.b16 %v601
      %v1506 = vunpack.c.h.b16 %v601
      %v1507 = vunpack.c.l.b16 %v602
      %v1508 = vunpack.c.h.b16 %v602
      %v1509 = vunpack.c.l.b16 %v603
      %v1510 = vunpack.c.h.b16 %v603
      %v1511 = vunpack.c.l.b16 %v604
      %v1512 = vunpack.c.h.b16 %v604
      %v1513 = vunpack.c.l.b16 %v605
      %v1514 = vunpack.c.h.b16 %v605
      %v1515 = vunpack.c.l.b16 %v606
      %v1516 = vunpack.c.h.b16 %v606
      %v1517 = vunpack.c.l.b16 %v607
      %v1518 = vunpack.c.h.b16 %v607
      %v1519 = vunpack.c.l.b16 %v608
      %v1520 = vunpack.c.h.b16 %v608
      %v1521 = vunpack.c.l.b16 %v609
      %v1522 = vunpack.c.h.b16 %v609
      %v1523 = vunpack.c.l.b16 %v610
      %v1524 = vunpack.c.h.b16 %v610
      %v1525 = vunpack.c.l.b16 %v611
      %v1526 = vunpack.c.h.b16 %v611
      %v1527 = vunpack.c.l.b16 %v612
      %v1528 = vunpack.c.h.b16 %v612
      %v1529 = vunpack.c.l.b16 %v613
      %v1530 = vunpack.c.h.b16 %v613
      %v1531 = vunpack.c.l.b16 %v614
      %v1532 = vunpack.c.h.b16 %v614
      %v1533 = vunpack.c.l.b16 %v615
      %v1534 = vunpack.c.h.b16 %v615
      %v1535 = vunpack.c.l.b16 %v616
      %v1536 = vunpack.c.h.b16 %v616
      %v1537 = vunpack.c.l.b16 %v617
      %v1538 = vunpack.c.h.b16 %v617
      %v1539 = vunpack.c.l.b16 %v618
      %v1540 = vunpack.c.h.b16 %v618
      %v1541 = vunpack.c.l.b16 %v619
      %v1542 = vunpack.c.h.b16 %v619
      %v1543 = vunpack.c.l.b16 %v620
      %v1544 = vunpack.c.h.b16 %v620
      %v1545 = vunpack.c.l.b16 %v621
      %v1546 = vunpack.c.h.b16 %v621
      %v1547 = vunpack.c.l.b16 %v622
      %v1548 = vunpack.c.h.b16 %v622
      %v1549 = vunpack.c.l.b16 %v623
      %v1550 = vunpack.c.h.b16 %v623
      %v1551 = vunpack.c.l.b16 %v624
      %v1552 = vunpack.c.h.b16 %v624
      %v1553 = vunpack.c.l.b16 %v625
      %v1554 = vunpack.c.h.b16 %v625
      %v1555 = vunpack.c.l.b16 %v626
      %v1556 = vunpack.c.h.b16 %v626
      %v1557 = vunpack.c.l.b16 %v627
      %v1558 = vunpack.c.h.b16 %v627
      %v1559 = vunpack.c.l.b16 %v628
      %v1560 = vunpack.c.h.b16 %v628
      %v1561 = vunpack.c.l.b16 %v629
      %v1562 = vunpack.c.h.b16 %v629
      %v1563 = vunpack.c.l.b16 %v630
      %v1564 = vunpack.c.h.b16 %v630
      %v1565 = vunpack.c.l.b16 %v631
      %v1566 = vunpack.c.h.b16 %v631
      %v1567 = vunpack.c.l.b16 %v632
      %v1568 = vunpack.c.h.b16 %v632
      %v1569 = vunpack.c.l.b16 %v633
      %v1570 = vunpack.c.h.b16 %v633
      %v1571 = vunpack.c.l.b16 %v634
      %v1572 = vunpack.c.h.b16 %v634
      %v1573 = vunpack.c.l.b16 %v635
      %v1574 = vunpack.c.h.b16 %v635
      %v1575 = vunpack.c.l.b16 %v636
      %v1576 = vunpack.c.h.b16 %v636
      %v1577 = vunpack.c.l.b16 %v637
      %v1578 = vunpack.c.h.b16 %v637
      %v1579 = vunpack.c.l.b16 %v638
      %v1580 = vunpack.c.h.b16 %v638
      %v1581 = vunpack.c.l.b16 %v639
      %v1582 = vunpack.c.h.b16 %v639
      %v1583 = vunpack.c.l.b16 %v640
      %v1584 = vunpack.c.h.b16 %v640
      %v1585 = vunpack.c.l.b16 %v641
      %v1586 = vunpack.c.h.b16 %v641
      %v1587 = vunpack.c.l.b16 %v642
      %v1588 = vunpack.c.h.b16 %v642
      %v1589 = vunpack.c.l.b16 %v643
      %v1590 = vunpack.c.h.b16 %v643
      %v1591 = vunpack.c.l.b16 %v644
      %v1592 = vunpack.c.h.b16 %v644
      %v1593 = vunpack.c.l.b16 %v645
      %v1594 = vunpack.c.h.b16 %v645
      %v1595 = vunpack.c.l.b16 %v646
      %v1596 = vunpack.c.h.b16 %v646
      %v1597 = vunpack.c.l.b16 %v647
      %v1598 = vunpack.c.h.b16 %v647
      %v1599 = vunpack.c.l.b16 %v648
      %v1600 = vunpack.c.h.b16 %v648
      %v1601 = vunpack.c.l.b16 %v649
      %v1602 = vunpack.c.h.b16 %v649
      %v1603 = vunpack.c.l.b16 %v650
      %v1604 = vunpack.c.h.b16 %v650
      %v1605 = vunpack.c.l.b16 %v651
      %v1606 = vunpack.c.h.b16 %v651
      %v1607 = vunpack.c.l.b16 %v652
      %v1608 = vunpack.c.h.b16 %v652
      %v1609 = vunpack.c.l.b16 %v653
      %v1610 = vunpack.c.h.b16 %v653
      %v1611 = vunpack.c.l.b16 %v654
      %v1612 = vunpack.c.h.b16 %v654
      %v1613 = vunpack.c.l.b16 %v655
      %v1614 = vunpack.c.h.b16 %v655
      %v1615 = vunpack.c.l.b16 %v656
      %v1616 = vunpack.c.h.b16 %v656
      %v1617 = vunpack.c.l.b16 %v657
      %v1618 = vunpack.c.h.b16 %v657
      %v1619 = vunpack.c.l.b16 %v658
      %v1620 = vunpack.c.h.b16 %v658
      %v1621 = vunpack.c.l.b16 %v659
      %v1622 = vunpack.c.h.b16 %v659
      %v1623 = vunpack.c.l.b16 %v660
      %v1624 = vunpack.c.h.b16 %v660
      %v1625 = vunpack.c.l.b16 %v661
      %v1626 = vunpack.c.h.b16 %v661
      %v1627 = vunpack.c.l.b16 %v662
      %v1628 = vunpack.c.h.b16 %v662
      %v1629 = vunpack.c.l.b16 %v663
      %v1630 = vunpack.c.h.b16 %v663
      %v1631 = vunpack.c.l.b16 %v664
      %v1632 = vunpack.c.h.b16 %v664
      %v1633 = vunpack.c.l.b16 %v665
      %v1634 = vunpack.c.h.b16 %v665
      %v1635 = vunpack.c.l.b16 %v666
      %v1636 = vunpack.c.h.b16 %v666
      %v1637 = vunpack.c.l.b16 %v667
      %v1638 = vunpack.c.h.b16 %v667
      %v1639 = vunpack.c.l.b16 %v668
      %v1640 = vunpack.c.h.b16 %v668
      %v1641 = vunpack.c.l.b16 %v669
      %v1642 = vunpack.c.h.b16 %v669
      %v1643 = vunpack.c.l.b16 %v670
      %v1644 = vunpack.c.h.b16 %v670
      %v1645 = vunpack.c.l.b16 %v671
      %v1646 = vunpack.c.h.b16 %v671
      %v1647 = vunpack.c.l.b16 %v672
      %v1648 = vunpack.c.h.b16 %v672
      %v1649 = vunpack.c.l.b16 %v673
      %v1650 = vunpack.c.h.b16 %v673
      %v1651 = vunpack.c.l.b16 %v674
      %v1652 = vunpack.c.h.b16 %v674
      %v1653 = vunpack.c.l.b16 %v675
      %v1654 = vunpack.c.h.b16 %v675
      %v1655 = vunpack.c.l.b16 %v676
      %v1656 = vunpack.c.h.b16 %v676
      %v1657 = vunpack.c.l.b16 %v677
      %v1658 = vunpack.c.h.b16 %v677
      %v1659 = vunpack.c.l.b16 %v678
      %v1660 = vunpack.c.h.b16 %v678
      %v1661 = vunpack.c.l.b16 %v679
      %v1662 = vunpack.c.h.b16 %v679
      %v1663 = vunpack.c.l.b16 %v680
      %v1664 = vunpack.c.h.b16 %v680
      %v1665 = vunpack.c.l.b16 %v681
      %v1666 = vunpack.c.h.b16 %v681
      %v1667 = vunpack.c.l.b16 %v682
      %v1668 = vunpack.c.h.b16 %v682
      %v1669 = vunpack.c.l.b16 %v683
      %v1670 = vunpack.c.h.b16 %v683
      %v1671 = vunpack.c.l.b16 %v684
      %v1672 = vunpack.c.h.b16 %v684
      %v1673 = vunpack.c.l.b16 %v685
      %v1674 = vunpack.c.h.b16 %v685
      %v1675 = vunpack.c.l.b16 %v686
      %v1676 = vunpack.c.h.b16 %v686
      %v1677 = vunpack.c.l.b16 %v687
      %v1678 = vunpack.c.h.b16 %v687
      %v1679 = vunpack.c.l.b16 %v688
      %v1680 = vunpack.c.h.b16 %v688
      %v1681 = vunpack.c.l.b16 %v689
      %v1682 = vunpack.c.h.b16 %v689
      %v1683 = vunpack.c.l.b16 %v690
      %v1684 = vunpack.c.h.b16 %v690
      %v1685 = vunpack.c.l.b16 %v691
      %v1686 = vunpack.c.h.b16 %v691
      %v1687 = vunpack.c.l.b16 %v692
      %v1688 = vunpack.c.h.b16 %v692
      %v1689 = vunpack.c.l.b16 %v693
      %v1690 = vunpack.c.h.b16 %v693
      %v1691 = vunpack.c.l.b16 %v694
      %v1692 = vunpack.c.h.b16 %v694
      %v1693 = vunpack.c.l.b16 %v695
      %v1694 = vunpack.c.h.b16 %v695
      %v1695 = vunpack.c.l.b16 %v696
      %v1696 = vunpack.c.h.b16 %v696
      %v1697 = vunpack.c.l.b16 %v697
      %v1698 = vunpack.c.h.b16 %v697
      %v1699 = vunpack.c.l.b16 %v698
      %v1700 = vunpack.c.h.b16 %v698
      %v1701 = vunpack.c.l.b16 %v699
      %v1702 = vunpack.c.h.b16 %v699
      %v1703 = vunpack.c.l.b16 %v700
      %v1704 = vunpack.c.h.b16 %v700
      %v1705 = vunpack.c.l.b16 %v701
      %v1706 = vunpack.c.h.b16 %v701
      %v1707 = vunpack.c.l.b16 %v702
      %v1708 = vunpack.c.h.b16 %v702
      %v1709 = vunpack.c.l.b16 %v703
      %v1710 = vunpack.c.h.b16 %v703
      %v1711 = vunpack.c.l.b16 %v704
      %v1712 = vunpack.c.h.b16 %v704
      %v1713 = vunpack.c.l.b16 %v705
      %v1714 = vunpack.c.h.b16 %v705
      %v1715 = vunpack.c.l.b16 %v706
      %v1716 = vunpack.c.h.b16 %v706
      %v1717 = vunpack.c.l.b16 %v707
      %v1718 = vunpack.c.h.b16 %v707
      %v1719 = vunpack.c.l.b16 %v708
      %v1720 = vunpack.c.h.b16 %v708
      %v1721 = vunpack.c.l.b16 %v709
      %v1722 = vunpack.c.h.b16 %v709
      %v1723 = vunpack.c.l.b16 %v710
      %v1724 = vunpack.c.h.b16 %v710
      %v1725 = vunpack.c.l.b16 %v711
      %v1726 = vunpack.c.h.b16 %v711
      %v1727 = vunpack.c.l.b16 %v712
      %v1728 = vunpack.c.h.b16 %v712
      %v1729 = vunpack.c.l.b16 %v713
      %v1730 = vunpack.c.h.b16 %v713
      %v1731 = vunpack.c.l.b16 %v714
      %v1732 = vunpack.c.h.b16 %v714
      %v1733 = vunpack.c.l.b16 %v715
      %v1734 = vunpack.c.h.b16 %v715
      %v1735 = vunpack.c.l.b16 %v716
      %v1736 = vunpack.c.h.b16 %v716
      %v1737 = vunpack.c.l.b16 %v717
      %v1738 = vunpack.c.h.b16 %v717
      %v1739 = vunpack.c.l.b16 %v718
      %v1740 = vunpack.c.h.b16 %v718
      %v1741 = vunpack.c.l.b16 %v719
      %v1742 = vunpack.c.h.b16 %v719
      %v1743 = vunpack.c.l.b16 %v720
      %v1744 = vunpack.c.h.b16 %v720
      %v1745 = vunpack.c.l.b16 %v721
      %v1746 = vunpack.c.h.b16 %v721
      %v1747 = vunpack.c.l.b16 %v722
      %v1748 = vunpack.c.h.b16 %v722
      %v1749 = vunpack.c.l.b16 %v723
      %v1750 = vunpack.c.h.b16 %v723
      %v1751 = vunpack.c.l.b16 %v724
      %v1752 = vunpack.c.h.b16 %v724
      %v1753 = vunpack.c.l.b16 %v725
      %v1754 = vunpack.c.h.b16 %v725
      %v1755 = vunpack.c.l.b16 %v726
      %v1756 = vunpack.c.h.b16 %v726
      %v1757 = vunpack.c.l.b16 %v727
      %v1758 = vunpack.c.h.b16 %v727
      %v1759 = vunpack.c.l.b16 %v728
      %v1760 = vunpack.c.h.b16 %v728
      %v1761 = vunpack.c.l.b16 %v729
      %v1762 = vunpack.c.h.b16 %v729
      %v1763 = vunpack.c.l.b16 %v730
      %v1764 = vunpack.c.h.b16 %v730
      %v1765 = vunpack.c.l.b16 %v731
      %v1766 = vunpack.c.h.b16 %v731
      %v1767 = vunpack.c.l.b16 %v732
      %v1768 = vunpack.c.h.b16 %v732
      %v1769 = vunpack.c.l.b16 %v733
      %v1770 = vunpack.c.h.b16 %v733
      %v1771 = vunpack.c.l.b16 %v734
      %v1772 = vunpack.c.h.b16 %v734
      %v1773 = vunpack.c.l.b16 %v735
      %v1774 = vunpack.c.h.b16 %v735
      %v1775 = vunpack.c.l.b16 %v736
      %v1776 = vunpack.c.h.b16 %v736
      %v1777 = vunpack.c.l.b16 %v737
      %v1778 = vunpack.c.h.b16 %v737
      %v1779 = vunpack.c.l.b16 %v738
      %v1780 = vunpack.c.h.b16 %v738
      %v1781 = vunpack.c.l.b16 %v739
      %v1782 = vunpack.c.h.b16 %v739
      %v1783 = vunpack.c.l.b16 %v740
      %v1784 = vunpack.c.h.b16 %v740
      %v1785 = vunpack.c.l.b16 %v741
      %v1786 = vunpack.c.h.b16 %v741
      %v1787 = vunpack.c.l.b16 %v742
      %v1788 = vunpack.c.h.b16 %v742
      %v1789 = vunpack.c.l.b16 %v743
      %v1790 = vunpack.c.h.b16 %v743
      %v1791 = vunpack.c.l.b16 %v744
      %v1792 = vunpack.c.h.b16 %v744
      %v1793 = vpack.c.b16 %v1283, %v1281
      %v1794 = vpack.c.b16 %v1284, %v1282
      %v1795 = vpack.c.b16 %v1287, %v1285
      %v1796 = vpack.c.b16 %v1288, %v1286
      %v1797 = vpack.c.b16 %v1291, %v1289
      %v1798 = vpack.c.b16 %v1292, %v1290
      %v1799 = vpack.c.b16 %v1295, %v1293
      %v1800 = vpack.c.b16 %v1296, %v1294
      %v1801 = vpack.c.b16 %v1299, %v1297
      %v1802 = vpack.c.b16 %v1300, %v1298
      %v1803 = vpack.c.b16 %v1303, %v1301
      %v1804 = vpack.c.b16 %v1304, %v1302
      %v1805 = vpack.c.b16 %v1307, %v1305
      %v1806 = vpack.c.b16 %v1308, %v1306
      %v1807 = vpack.c.b16 %v1311, %v1309
      %v1808 = vpack.c.b16 %v1312, %v1310
      %v1809 = vpack.c.b16 %v1315, %v1313
      %v1810 = vpack.c.b16 %v1316, %v1314
      %v1811 = vpack.c.b16 %v1319, %v1317
      %v1812 = vpack.c.b16 %v1320, %v1318
      %v1813 = vpack.c.b16 %v1323, %v1321
      %v1814 = vpack.c.b16 %v1324, %v1322
      %v1815 = vpack.c.b16 %v1327, %v1325
      %v1816 = vpack.c.b16 %v1328, %v1326
      %v1817 = vpack.c.b16 %v1331, %v1329
      %v1818 = vpack.c.b16 %v1332, %v1330
      %v1819 = vpack.c.b16 %v1335, %v1333
      %v1820 = vpack.c.b16 %v1336, %v1334
      %v1821 = vpack.c.b16 %v1339, %v1337
      %v1822 = vpack.c.b16 %v1340, %v1338
      %v1823 = vpack.c.b16 %v1343, %v1341
      %v1824 = vpack.c.b16 %v1344, %v1342
      %v1825 = vpack.c.b16 %v1347, %v1345
      %v1826 = vpack.c.b16 %v1348, %v1346
      %v1827 = vpack.c.b16 %v1351, %v1349
      %v1828 = vpack.c.b16 %v1352, %v1350
      %v1829 = vpack.c.b16 %v1355, %v1353
      %v1830 = vpack.c.b16 %v1356, %v1354
      %v1831 = vpack.c.b16 %v1359, %v1357
      %v1832 = vpack.c.b16 %v1360, %v1358
      %v1833 = vpack.c.b16 %v1363, %v1361
      %v1834 = vpack.c.b16 %v1364, %v1362
      %v1835 = vpack.c.b16 %v1367, %v1365
      %v1836 = vpack.c.b16 %v1368, %v1366
      %v1837 = vpack.c.b16 %v1371, %v1369
      %v1838 = vpack.c.b16 %v1372, %v1370
      %v1839 = vpack.c.b16 %v1375, %v1373
      %v1840 = vpack.c.b16 %v1376, %v1374
      %v1841 = vpack.c.b16 %v1379, %v1377
      %v1842 = vpack.c.b16 %v1380, %v1378
      %v1843 = vpack.c.b16 %v1383, %v1381
      %v1844 = vpack.c.b16 %v1384, %v1382
      %v1845 = vpack.c.b16 %v1387, %v1385
      %v1846 = vpack.c.b16 %v1388, %v1386
      %v1847 = vpack.c.b16 %v1391, %v1389
      %v1848 = vpack.c.b16 %v1392, %v1390
      %v1849 = vpack.c.b16 %v1395, %v1393
      %v1850 = vpack.c.b16 %v1396, %v1394
      %v1851 = vpack.c.b16 %v1399, %v1397
      %v1852 = vpack.c.b16 %v1400, %v1398
      %v1853 = vpack.c.b16 %v1403, %v1401
      %v1854 = vpack.c.b16 %v1404, %v1402
      %v1855 = vpack.c.b16 %v1407, %v1405
      %v1856 = vpack.c.b16 %v1408, %v1406
      %v1857 = vpack.c.b16 %v1411, %v1409
      %v1858 = vpack.c.b16 %v1412, %v1410
      %v1859 = vpack.c.b16 %v1415, %v1413
      %v1860 = vpack.c.b16 %v1416, %v1414
      %v1861 = vpack.c.b16 %v1419, %v1417
      %v1862 = vpack.c.b16 %v1420, %v1418
      %v1863 = vpack.c.b16 %v1423, %v1421
      %v1864 = vpack.c.b16 %v1424, %v1422
      %v1865 = vpack.c.b16 %v1427, %v1425
      %v1866 = vpack.c.b16 %v1428, %v1426
      %v1867 = vpack.c.b16 %v1431, %v1429
      %v1868 = vpack.c.b16 %v1432, %v1430
      %v1869 = vpack.c.b16 %v1435, %v1433
      %v1870 = vpack.c.b16 %v1436, %v1434
      %v1871 = vpack.c.b16 %v1439, %v1437
      %v1872 = vpack.c.b16 %v1440, %v1438
      %v1873 = vpack.c.b16 %v1443, %v1441
      %v1874 = vpack.c.b16 %v1444, %v1442
      %v1875 = vpack.c.b16 %v1447, %v1445
      %v1876 = vpack.c.b16 %v1448, %v1446
      %v1877 = vpack.c.b16 %v1451, %v1449
      %v1878 = vpack.c.b16 %v1452, %v1450
      %v1879 = vpack.c.b16 %v1455, %v1453
      %v1880 = vpack.c.b16 %v1456, %v1454
      %v1881 = vpack.c.b16 %v1459, %v1457
      %v1882 = vpack.c.b16 %v1460, %v1458
      %v1883 = vpack.c.b16 %v1463, %v1461
      %v1884 = vpack.c.b16 %v1464, %v1462
      %v1885 = vpack.c.b16 %v1467, %v1465
      %v1886 = vpack.c.b16 %v1468, %v1466
      %v1887 = vpack.c.b16 %v1471, %v1469
      %v1888 = vpack.c.b16 %v1472, %v1470
      %v1889 = vpack.c.b16 %v1475, %v1473
      %v1890 = vpack.c.b16 %v1476, %v1474
      %v1891 = vpack.c.b16 %v1479, %v1477
      %v1892 = vpack.c.b16 %v1480, %v1478
      %v1893 = vpack.c.b16 %v1483, %v1481
      %v1894 = vpack.c.b16 %v1484, %v1482
      %v1895 = vpack.c.b16 %v1487, %v1485
      %v1896 = vpack.c.b16 %v1488, %v1486
      %v1897 = vpack.c.b16 %v1491, %v1489
      %v1898 = vpack.c.b16 %v1492, %v1490
      %v1899 = vpack.c.b16 %v1495, %v1493
      %v1900 = vpack.c.b16 %v1496, %v1494
      %v1901 = vpack.c.b16 %v1499, %v1497
      %v1902 = vpack.c.b16 %v1500, %v1498
      %v1903 = vpack.c.b16 %v1503, %v1501
      %v1904 = vpack.c.b16 %v1504, %v1502
      %v1905 = vpack.c.b16 %v1507, %v1505
      %v1906 = vpack.c.b16 %v1508, %v1506
      %v1907 = vpack.c.b16 %v1511, %v1509
      %v1908 = vpack.c.b16 %v1512, %v1510
      %v1909 = vpack.c.b16 %v1515, %v1513
      %v1910 = vpack.c.b16 %v1516, %v1514
      %v1911 = vpack.c.b16 %v1519, %v1517
      %v1912 = vpack.c.b16 %v1520, %v1518
      %v1913 = vpack.c.b16 %v1523, %v1521
      %v1914 = vpack.c.b16 %v1524, %v1522
      %v1915 = vpack.c.b16 %v1527, %v1525
      %v1916 = vpack.c.b16 %v1528, %v1526
      %v1917 = vpack.c.b16 %v1531, %v1529
      %v1918 = vpack.c.b16 %v1532, %v1530
      %v1919 = vpack.c.b16 %v1535, %v1533
      %v1920 = vpack.c.b16 %v1536, %v1534
      %v1921 = vpack.c.b16 %v1539, %v1537
      %v1922 = vpack.c.b16 %v1540, %v1538
      %v1923 = vpack.c.b16 %v1543, %v1541
      %v1924 = vpack.c.b16 %v1544, %v1542
      %v1925 = vpack.c.b16 %v1547, %v1545
      %v1926 = vpack.c.b16 %v1548, %v1546
      %v1927 = vpack.c.b16 %v1551, %v1549
      %v1928 = vpack.c.b16 %v1552, %v1550
      %v1929 = vpack.c.b16 %v1555, %v1553
      %v1930 = vpack.c.b16 %v1556, %v1554
      %v1931 = vpack.c.b16 %v1559, %v1557
      %v1932 = vpack.c.b16 %v1560, %v1558
      %v1933 = vpack.c.b16 %v1563, %v1561
      %v1934 = vpack.c.b16 %v1564, %v1562
      %v1935 = vpack.c.b16 %v1567, %v1565
      %v1936 = vpack.c.b16 %v1568, %v1566
      %v1937 = vpack.c.b16 %v1571, %v1569
      %v1938 = vpack.c.b16 %v1572, %v1570
      %v1939 = vpack.c.b16 %v1575, %v1573
      %v1940 = vpack.c.b16 %v1576, %v1574
      %v1941 = vpack.c.b16 %v1579, %v1577
      %v1942 = vpack.c.b16 %v1580, %v1578
      %v1943 = vpack.c.b16 %v1583, %v1581
      %v1944 = vpack.c.b16 %v1584, %v1582
      %v1945 = vpack.c.b16 %v1587, %v1585
      %v1946 = vpack.c.b16 %v1588, %v1586
      %v1947 = vpack.c.b16 %v1591, %v1589
      %v1948 = vpack.c.b16 %v1592, %v1590
      %v1949 = vpack.c.b16 %v1595, %v1593
      %v1950 = vpack.c.b16 %v1596, %v1594
      %v1951 = vpack.c.b16 %v1599, %v1597
      %v1952 = vpack.c.b16 %v1600, %v1598
      %v1953 = vpack.c.b16 %v1603, %v1601
      %v1954 = vpack.c.b16 %v1604, %v1602
      %v1955 = vpack.c.b16 %v1607, %v1605
      %v1956 = vpack.c.b16 %v1608, %v1606
      %v1957 = vpack.c.b16 %v1611, %v1609
      %v1958 = vpack.c.b16 %v1612, %v1610
      %v1959 = vpack.c.b16 %v1615, %v1613
      %v1960 = vpack.c.b16 %v1616, %v1614
      %v1961 = vpack.c.b16 %v1619, %v1617
      %v1962 = vpack.c.b16 %v1620, %v1618
      %v1963 = vpack.c.b16 %v1623, %v1621
      %v1964 = vpack.c.b16 %v1624, %v1622
      %v1965 = vpack.c.b16 %v1627, %v1625
      %v1966 = vpack.c.b16 %v1628, %v1626
      %v1967 = vpack.c.b16 %v1631, %v1629
      %v1968 = vpack.c.b16 %v1632, %v1630
      %v1969 = vpack.c.b16 %v1635, %v1633
      %v1970 = vpack.c.b16 %v1636, %v1634
      %v1971 = vpack.c.b16 %v1639, %v1637
      %v1972 = vpack.c.b16 %v1640, %v1638
      %v1973 = vpack.c.b16 %v1643, %v1641
      %v1974 = vpack.c.b16 %v1644, %v1642
      %v1975 = vpack.c.b16 %v1647, %v1645
      %v1976 = vpack.c.b16 %v1648, %v1646
      %v1977 = vpack.c.b16 %v1651, %v1649
      %v1978 = vpack.c.b16 %v1652, %v1650
      %v1979 = vpack.c.b16 %v1655, %v1653
      %v1980 = vpack.c.b16 %v1656, %v1654
      %v1981 = vpack.c.b16 %v1659, %v1657
      %v1982 = vpack.c.b16 %v1660, %v1658
      %v1983 = vpack.c.b16 %v1663, %v1661
      %v1984 = vpack.c.b16 %v1664, %v1662
      %v1985 = vpack.c.b16 %v1667, %v1665
      %v1986 = vpack.c.b16 %v1668, %v1666
      %v1987 = vpack.c.b16 %v1671, %v1669
      %v1988 = vpack.c.b16 %v1672, %v1670
      %v1989 = vpack.c.b16 %v1675, %v1673
      %v1990 = vpack.c.b16 %v1676, %v1674
      %v1991 = vpack.c.b16 %v1679, %v1677
      %v1992 = vpack.c.b16 %v1680, %v1678
      %v1993 = vpack.c.b16 %v1683, %v1681
      %v1994 = vpack.c.b16 %v1684, %v1682
      %v1995 = vpack.c.b16 %v1687, %v1685
      %v1996 = vpack.c.b16 %v1688, %v1686
      %v1997 = vpack.c.b16 %v1691, %v1689
      %v1998 = vpack.c.b16 %v1692, %v1690
      %v1999 = vpack.c.b16 %v1695, %v1693
      %v2000 = vpack.c.b16 %v1696, %v1694
      %v2001 = vpack.c.b16 %v1699, %v1697
      %v2002 = vpack.c.b16 %v1700, %v1698
      %v2003 = vpack.c.b16 %v1703, %v1701
      %v2004 = vpack.c.b16 %v1704, %v1702
      %v2005 = vpack.c.b16 %v1707, %v1705
      %v2006 = vpack.c.b16 %v1708, %v1706
      %v2007 = vpack.c.b16 %v1711, %v1709
      %v2008 = vpack.c.b16 %v1712, %v1710
      %v2009 = vpack.c.b16 %v1715, %v1713
      %v2010 = vpack.c.b16 %v1716, %v1714
      %v2011 = vpack.c.b16 %v1719, %v1717
      %v2012 = vpack.c.b16 %v1720, %v1718
      %v2013 = vpack.c.b16 %v1723, %v1721
      %v2014 = vpack.c.b16 %v1724, %v1722
      %v2015 = vpack.c.b16 %v1727, %v1725
      %v2016 = vpack.c.b16 %v1728, %v1726
      %v2017 = vpack.c.b16 %v1731, %v1729
      %v2018 = vpack.c.b16 %v1732, %v1730
      %v2019 = vpack.c.b16 %v1735, %v1733
      %v2020 = vpack.c.b16 %v1736, %v1734
      %v2021 = vpack.c.b16 %v1739, %v1737
      %v2022 = vpack.c.b16 %v1740, %v1738
      %v2023 = vpack.c.b16 %v1743, %v1741
      %v2024 = vpack.c.b16 %v1744, %v1742
      %v2025 = vpack.c.b16 %v1747, %v1745
      %v2026 = vpack.c.b16 %v1748, %v1746
      %v2027 = vpack.c.b16 %v1751, %v1749
      %v2028 = vpack.c.b16 %v1752, %v1750
      %v2029 = vpack.c.b16 %v1755, %v1753
      %v2030 = vpack.c.b16 %v1756, %v1754
      %v2031 = vpack.c.b16 %v1759, %v1757
      %v2032 = vpack.c.b16 %v1760, %v1758
      %v2033 = vpack.c.b16 %v1763, %v1761
      %v2034 = vpack.c.b16 %v1764, %v1762
      %v2035 = vpack.c.b16 %v1767, %v1765
      %v2036 = vpack.c.b16 %v1768, %v1766
      %v2037 = vpack.c.b16 %v1771, %v1769
      %v2038 = vpack.c.b16 %v1772, %v1770
      %v2039 = vpack.c.b16 %v1775, %v1773
      %v2040 = vpack.c.b16 %v1776, %v1774
      %v2041 = vpack.c.b16 %v1779, %v1777
      %v2042 = vpack.c.b16 %v1780, %v1778
      %v2043 = vpack.c.b16 %v1783, %v1781
      %v2044 = vpack.c.b16 %v1784, %v1782
      %v2045 = vpack.c.b16 %v1787, %v1785
      %v2046 = vpack.c.b16 %v1788, %v1786
      %v2047 = vpack.c.b16 %v1791, %v1789
      %v2048 = vpack.c.b16 %v1792, %v1790
      %v2201 = vunpack.c.l.b16 %v1001
      %v2202 = vunpack.c.l.b16 %v1002
      %v2203 = vunpack.c.l.b16 %v1003
      %v2204 = vunpack.c.l.b16 %v1004
      %v2205 = vunpack.c.l.b16 %v1005
      %v2206 = vunpack.c.l.b16 %v1006
      %v2207 = vunpack.c.l.b16 %v1007
      %v2208 = vunpack.c.l.b16 %v1008
      %v2209 = vunpack.c.l.b16 %v1009
      %v2210 = vunpack.c.l.b16 %v1010
      %v2211 = vunpack.c.l.b16 %v1011
      %v2212 = vunpack.c.l.b16 %v1012
      %v2213 = vunpack.c.l.b16 %v1013
      %v2214 = vunpack.c.l.b16 %v1014
      %v2215 = vunpack.c.l.b16 %v1015
      %v2216 = vunpack.c.l.b16 %v1016
      %v2217 = vunpack.c.l.b16 %v1017
      %v2218 = vunpack.c.l.b16 %v1018
      %v2219 = vunpack.c.l.b16 %v1019
      %v2220 = vunpack.c.l.b16 %v1020
      %v2221 = vunpack.c.l.b16 %v1021
      %v2222 = vunpack.c.l.b16 %v1022
      %v2223 = vunpack.c.l.b16 %v1023
      %v2224 = vunpack.c.l.b16 %v1024
      %v2225 = vpack.c.b16 %v2202, %v2201
      %v2226 = vpack.c.b16 %v2204, %v2203
      %v2227 = vpack.c.b16 %v2206, %v2205
      %v2228 = vpack.c.b16 %v2208, %v2207
      %v2229 = vpack.c.b16 %v2210, %v2209
      %v2230 = vpack.c.b16 %v2212, %v2211
      %v2231 = vpack.c.b16 %v2214, %v2213
      %v2232 = vpack.c.b16 %v2216, %v2215
      %v2233 = vpack.c.b16 %v2218, %v2217
      %v2234 = vpack.c.b16 %v2220, %v2219
      %v2235 = vpack.c.b16 %v2222, %v2221
      %v2236 = vpack.c.b16 %v2224, %v2223
      %vm2249 = vcmask 523264
      %v2251 = vsel %vm2249, %v1794, 0
      %v2254 = vsel %vm2249, %v1796, 0
      %v2257 = vsel %vm2249, %v1798, 0
      %v2260 = vsel %vm2249, %v1800, 0
      %v2263 = vsel %vm2249, %v1802, 0
      %v2266 = vsel %vm2249, %v1804, 0
      %v2269 = vsel %vm2249, %v1806, 0
      %v2272 = vsel %vm2249, %v1808, 0
      %v2275 = vsel %vm2249, %v1810, 0
      %v2278 = vsel %vm2249, %v1812, 0
      %v2281 = vsel %vm2249, %v1814, 0
      %v2284 = vsel %vm2249, %v1816, 0
      %v2287 = vsel %vm2249, %v1818, 0
      %v2290 = vsel %vm2249, %v1820, 0
      %v2293 = vsel %vm2249, %v1822, 0
      %v2296 = vsel %vm2249, %v1824, 0
      %v2299 = vsel %vm2249, %v1826, 0
      %v2302 = vsel %vm2249, %v1828, 0
      %v2305 = vsel %vm2249, %v1830, 0
      %v2308 = vsel %vm2249, %v1832, 0
      %v2311 = vsel %vm2249, %v1834, 0
      %v2314 = vsel %vm2249, %v1836, 0
      %v2317 = vsel %vm2249, %v1838, 0
      %v2320 = vsel %vm2249, %v1840, 0
      %v2323 = vsel %vm2249, %v1842, 0
      %v2326 = vsel %vm2249, %v1844, 0
      %v2329 = vsel %vm2249, %v1846, 0
      %v2332 = vsel %vm2249, %v1848, 0
      %v2335 = vsel %vm2249, %v1850, 0
      %v2338 = vsel %vm2249, %v1852, 0
      %v2341 = vsel %vm2249, %v1854, 0
      %v2344 = vsel %vm2249, %v1856, 0
      %v2347 = vsel %vm2249, %v1858, 0
      %v2350 = vsel %vm2249, %v1860, 0
      %v2353 = vsel %vm2249, %v1862, 0
      %v2356 = vsel %vm2249, %v1864, 0
      %v2359 = vsel %vm2249, %v1866, 0
      %v2362 = vsel %vm2249, %v1868, 0
      %v2365 = vsel %vm2249, %v1870, 0
      %v2368 = vsel %vm2249, %v1872, 0
      %v2371 = vsel %vm2249, %v1874, 0
      %v2374 = vsel %vm2249, %v1876, 0
      %v2377 = vsel %vm2249, %v1878, 0
      %v2380 = vsel %vm2249, %v1880, 0
      %v2383 = vsel %vm2249, %v1882, 0
      %v2386 = vsel %vm2249, %v1884, 0
      %v2389 = vsel %vm2249, %v1886, 0
      %v2392 = vsel %vm2249, %v1888, 0
      %v2395 = vsel %vm2249, %v1890, 0
      %v2398 = vsel %vm2249, %v1892, 0
      %v2401 = vsel %vm2249, %v1894, 0
      %v2404 = vsel %vm2249, %v1896, 0
      %v2407 = vsel %vm2249, %v1898, 0
      %v2410 = vsel %vm2249, %v1900, 0
      %v2413 = vsel %vm2249, %v1902, 0
      %v2416 = vsel %vm2249, %v1904, 0
      %v2419 = vsel %vm2249, %v1906, 0
      %v2422 = vsel %vm2249, %v1908, 0
      %v2425 = vsel %vm2249, %v1910, 0
      %v2428 = vsel %vm2249, %v1912, 0
      %v2431 = vsel %vm2249, %v1914, 0
      %v2434 = vsel %vm2249, %v1916, 0
      %v2437 = vsel %vm2249, %v1918, 0
      %v2440 = vsel %vm2249, %v1920, 0
      %v2443 = vsel %vm2249, %v1922, 0
      %v2446 = vsel %vm2249, %v1924, 0
      %v2449 = vsel %vm2249, %v1926, 0
      %v2452 = vsel %vm2249, %v1928, 0
      %v2455 = vsel %vm2249, %v1930, 0
      %v2458 = vsel %vm2249, %v1932, 0
      %v2461 = vsel %vm2249, %v1934, 0
      %v2464 = vsel %vm2249, %v1936, 0
      %v2467 = vsel %vm2249, %v1938, 0
      %v2470 = vsel %vm2249, %v1940, 0
      %v2473 = vsel %vm2249, %v1942, 0
      %v2476 = vsel %vm2249, %v1944, 0
      %v2479 = vsel %vm2249, %v1946, 0
      %v2482 = vsel %vm2249, %v1948, 0
      %v2485 = vsel %vm2249, %v1950, 0
      %v2488 = vsel %vm2249, %v1952, 0
      %v2491 = vsel %vm2249, %v1954, 0
      %v2494 = vsel %vm2249, %v1956, 0
      %v2497 = vsel %vm2249, %v1958, 0
      %v2500 = vsel %vm2249, %v1960, 0
      %v2503 = vsel %vm2249, %v1962, 0
      %v2506 = vsel %vm2249, %v1964, 0
      %v2509 = vsel %vm2249, %v1966, 0
      %v2512 = vsel %vm2249, %v1968, 0
      %v2515 = vsel %vm2249, %v1970, 0
      %v2518 = vsel %vm2249, %v1972, 0
      %v2521 = vsel %vm2249, %v1974, 0
      %v2524 = vsel %vm2249, %v1976, 0
      %v2527 = vsel %vm2249, %v1978, 0
      %v2530 = vsel %vm2249, %v1980, 0
      %v2533 = vsel %vm2249, %v1982, 0
      %v2536 = vsel %vm2249, %v1984, 0
      %v2539 = vsel %vm2249, %v1986, 0
      %v2542 = vsel %vm2249, %v1988, 0
      %v2545 = vsel %vm2249, %v1990, 0
      %v2548 = vsel %vm2249, %v1992, 0
      %v2551 = vsel %vm2249, %v1994, 0
      %v2554 = vsel %vm2249, %v1996, 0
      %v2557 = vsel %vm2249, %v1998, 0
      %v2560 = vsel %vm2249, %v2000, 0
      %v2563 = vsel %vm2249, %v2002, 0
      %v2566 = vsel %vm2249, %v2004, 0
      %v2569 = vsel %vm2249, %v2006, 0
      %v2572 = vsel %vm2249, %v2008, 0
      %v2575 = vsel %vm2249, %v2010, 0
      %v2578 = vsel %vm2249, %v2012, 0
      %v2581 = vsel %vm2249, %v2014, 0
      %v2584 = vsel %vm2249, %v2016, 0
      %v2587 = vsel %vm2249, %v2018, 0
      %v2590 = vsel %vm2249, %v2020, 0
      %v2593 = vsel %vm2249, %v2022, 0
      %v2596 = vsel %vm2249, %v2024, 0
      %v2599 = vsel %vm2249, %v2026, 0
      %v2602 = vsel %vm2249, %v2028, 0
      %v2605 = vsel %vm2249, %v2030, 0
      %v2608 = vsel %vm2249, %v2032, 0
      %v2611 = vsel %vm2249, %v2034, 0
      %v2614 = vsel %vm2249, %v2036, 0
      %v2617 = vsel %vm2249, %v2038, 0
      %v2620 = vsel %vm2249, %v2040, 0
      %v2623 = vsel %vm2249, %v2042, 0
      %v2626 = vsel %vm2249, %v2044, 0
      %v2629 = vsel %vm2249, %v2046, 0
      %v2632 = vsel %vm2249, %v2048, 0
      %2634 = vmatpush.bf16.msra.mxu0 %v2232
      %2635 = vmatpush.bf16.msra.mxu0 %v2231
      %2636 = vmatpush.bf16.msra.mxu0 %v2230
      %2637 = vmatpush.bf16.msra.mxu0 %v2229
      %2638 = vmatpush.bf16.msra.mxu0 %v2228
      %2639 = vmatpush.bf16.msra.mxu0 %v2227
      %2640 = vmatpush.bf16.msra.mxu0 %v2226
      %2641 = vmatpush.bf16.msra.mxu0 %v2225
      %2642 = vmatmul.bf16.gmra.mxu0 %v1793
      %v2643 = vpop.f32.mrf.mxu0
      %v2644 = vadd.f32 0.0, %v2643
      %v2645 = vpop.f32.mrf.mxu0
      %v2646 = vadd.f32 0.0, %v2645
      %2647 = vmatmul.bf16.gmra.mxu0 %v1795
      %v2648 = vpop.f32.mrf.mxu0
      %v2649 = vadd.f32 0.0, %v2648
      %v2650 = vpop.f32.mrf.mxu0
      %v2651 = vadd.f32 0.0, %v2650
      %2652 = vmatmul.bf16.gmra.mxu0 %v1797
      %v2653 = vpop.f32.mrf.mxu0
      %v2654 = vadd.f32 0.0, %v2653
      %v2655 = vpop.f32.mrf.mxu0
      %v2656 = vadd.f32 0.0, %v2655
      %2657 = vmatmul.bf16.gmra.mxu0 %v1799
      %v2658 = vpop.f32.mrf.mxu0
      %v2659 = vadd.f32 0.0, %v2658
      %v2660 = vpop.f32.mrf.mxu0
      %v2661 = vadd.f32 0.0, %v2660
      %2662 = vmatmul.bf16.gmra.mxu0 %v1801
      %v2663 = vpop.f32.mrf.mxu0
      %v2664 = vadd.f32 0.0, %v2663
      %v2665 = vpop.f32.mrf.mxu0
      %v2666 = vadd.f32 0.0, %v2665
      %2667 = vmatmul.bf16.gmra.mxu0 %v1803
      %v2668 = vpop.f32.mrf.mxu0
      %v2669 = vadd.f32 0.0, %v2668
      %v2670 = vpop.f32.mrf.mxu0
      %v2671 = vadd.f32 0.0, %v2670
      %2672 = vmatmul.bf16.gmra.mxu0 %v1805
      %v2673 = vpop.f32.mrf.mxu0
      %v2674 = vadd.f32 0.0, %v2673
      %v2675 = vpop.f32.mrf.mxu0
      %v2676 = vadd.f32 0.0, %v2675
      %2677 = vmatmul.bf16.gmra.mxu0 %v1807
      %v2678 = vpop.f32.mrf.mxu0
      %v2679 = vadd.f32 0.0, %v2678
      %v2680 = vpop.f32.mrf.mxu0
      %v2681 = vadd.f32 0.0, %v2680
      %2682 = vmatmul.bf16.gmra.mxu0 %v1809
      %v2683 = vpop.f32.mrf.mxu0
      %v2684 = vadd.f32 0.0, %v2683
      %v2685 = vpop.f32.mrf.mxu0
      %v2686 = vadd.f32 0.0, %v2685
      %2687 = vmatmul.bf16.gmra.mxu0 %v1811
      %v2688 = vpop.f32.mrf.mxu0
      %v2689 = vadd.f32 0.0, %v2688
      %v2690 = vpop.f32.mrf.mxu0
      %v2691 = vadd.f32 0.0, %v2690
      %2692 = vmatmul.bf16.gmra.mxu0 %v1813
      %v2693 = vpop.f32.mrf.mxu0
      %v2694 = vadd.f32 0.0, %v2693
      %v2695 = vpop.f32.mrf.mxu0
      %v2696 = vadd.f32 0.0, %v2695
      %2697 = vmatmul.bf16.gmra.mxu0 %v1815
      %v2698 = vpop.f32.mrf.mxu0
      %v2699 = vadd.f32 0.0, %v2698
      %v2700 = vpop.f32.mrf.mxu0
      %v2701 = vadd.f32 0.0, %v2700
      %2702 = vmatmul.bf16.gmra.mxu0 %v1817
      %v2703 = vpop.f32.mrf.mxu0
      %v2704 = vadd.f32 0.0, %v2703
      %v2705 = vpop.f32.mrf.mxu0
      %v2706 = vadd.f32 0.0, %v2705
      %2707 = vmatmul.bf16.gmra.mxu0 %v1819
      %v2708 = vpop.f32.mrf.mxu0
      %v2709 = vadd.f32 0.0, %v2708
      %v2710 = vpop.f32.mrf.mxu0
      %v2711 = vadd.f32 0.0, %v2710
      %2712 = vmatmul.bf16.gmra.mxu0 %v1821
      %v2713 = vpop.f32.mrf.mxu0
      %v2714 = vadd.f32 0.0, %v2713
      %v2715 = vpop.f32.mrf.mxu0
      %v2716 = vadd.f32 0.0, %v2715
      %2717 = vmatmul.bf16.gmra.mxu0 %v1823
      %v2718 = vpop.f32.mrf.mxu0
      %v2719 = vadd.f32 0.0, %v2718
      %v2720 = vpop.f32.mrf.mxu0
      %v2721 = vadd.f32 0.0, %v2720
      %2722 = vmatmul.bf16.gmra.mxu0 %v1825
      %v2723 = vpop.f32.mrf.mxu0
      %v2724 = vadd.f32 0.0, %v2723
      %v2725 = vpop.f32.mrf.mxu0
      %v2726 = vadd.f32 0.0, %v2725
      %2727 = vmatmul.bf16.gmra.mxu0 %v1827
      %v2728 = vpop.f32.mrf.mxu0
      %v2729 = vadd.f32 0.0, %v2728
      %v2730 = vpop.f32.mrf.mxu0
      %v2731 = vadd.f32 0.0, %v2730
      %2732 = vmatmul.bf16.gmra.mxu0 %v1829
      %v2733 = vpop.f32.mrf.mxu0
      %v2734 = vadd.f32 0.0, %v2733
      %v2735 = vpop.f32.mrf.mxu0
      %v2736 = vadd.f32 0.0, %v2735
      %2737 = vmatmul.bf16.gmra.mxu0 %v1831
      %v2738 = vpop.f32.mrf.mxu0
      %v2739 = vadd.f32 0.0, %v2738
      %v2740 = vpop.f32.mrf.mxu0
      %v2741 = vadd.f32 0.0, %v2740
      %2742 = vmatmul.bf16.gmra.mxu0 %v1833
      %v2743 = vpop.f32.mrf.mxu0
      %v2744 = vadd.f32 0.0, %v2743
      %v2745 = vpop.f32.mrf.mxu0
      %v2746 = vadd.f32 0.0, %v2745
      %2747 = vmatmul.bf16.gmra.mxu0 %v1835
      %v2748 = vpop.f32.mrf.mxu0
      %v2749 = vadd.f32 0.0, %v2748
      %v2750 = vpop.f32.mrf.mxu0
      %v2751 = vadd.f32 0.0, %v2750
      %2752 = vmatmul.bf16.gmra.mxu0 %v1837
      %v2753 = vpop.f32.mrf.mxu0
      %v2754 = vadd.f32 0.0, %v2753
      %v2755 = vpop.f32.mrf.mxu0
      %v2756 = vadd.f32 0.0, %v2755
      %2757 = vmatmul.bf16.gmra.mxu0 %v1839
      %v2758 = vpop.f32.mrf.mxu0
      %v2759 = vadd.f32 0.0, %v2758
      %v2760 = vpop.f32.mrf.mxu0
      %v2761 = vadd.f32 0.0, %v2760
      %2762 = vmatmul.bf16.gmra.mxu0 %v1841
      %v2763 = vpop.f32.mrf.mxu0
      %v2764 = vadd.f32 0.0, %v2763
      %v2765 = vpop.f32.mrf.mxu0
      %v2766 = vadd.f32 0.0, %v2765
      %2767 = vmatmul.bf16.gmra.mxu0 %v1843
      %v2768 = vpop.f32.mrf.mxu0
      %v2769 = vadd.f32 0.0, %v2768
      %v2770 = vpop.f32.mrf.mxu0
      %v2771 = vadd.f32 0.0, %v2770
      %2772 = vmatmul.bf16.gmra.mxu0 %v1845
      %v2773 = vpop.f32.mrf.mxu0
      %v2774 = vadd.f32 0.0, %v2773
      %v2775 = vpop.f32.mrf.mxu0
      %v2776 = vadd.f32 0.0, %v2775
      %2777 = vmatmul.bf16.gmra.mxu0 %v1847
      %v2778 = vpop.f32.mrf.mxu0
      %v2779 = vadd.f32 0.0, %v2778
      %v2780 = vpop.f32.mrf.mxu0
      %v2781 = vadd.f32 0.0, %v2780
      %2782 = vmatmul.bf16.gmra.mxu0 %v1849
      %v2783 = vpop.f32.mrf.mxu0
      %v2784 = vadd.f32 0.0, %v2783
      %v2785 = vpop.f32.mrf.mxu0
      %v2786 = vadd.f32 0.0, %v2785
      %2787 = vmatmul.bf16.gmra.mxu0 %v1851
      %v2788 = vpop.f32.mrf.mxu0
      %v2789 = vadd.f32 0.0, %v2788
      %v2790 = vpop.f32.mrf.mxu0
      %v2791 = vadd.f32 0.0, %v2790
      %2792 = vmatmul.bf16.gmra.mxu0 %v1853
      %v2793 = vpop.f32.mrf.mxu0
      %v2794 = vadd.f32 0.0, %v2793
      %v2795 = vpop.f32.mrf.mxu0
      %v2796 = vadd.f32 0.0, %v2795
      %2797 = vmatmul.bf16.gmra.mxu0 %v1855
      %v2798 = vpop.f32.mrf.mxu0
      %v2799 = vadd.f32 0.0, %v2798
      %v2800 = vpop.f32.mrf.mxu0
      %v2801 = vadd.f32 0.0, %v2800
      %2802 = vmatmul.bf16.gmra.mxu0 %v1857
      %v2803 = vpop.f32.mrf.mxu0
      %v2804 = vadd.f32 0.0, %v2803
      %v2805 = vpop.f32.mrf.mxu0
      %v2806 = vadd.f32 0.0, %v2805
      %2807 = vmatmul.bf16.gmra.mxu0 %v1859
      %v2808 = vpop.f32.mrf.mxu0
      %v2809 = vadd.f32 0.0, %v2808
      %v2810 = vpop.f32.mrf.mxu0
      %v2811 = vadd.f32 0.0, %v2810
      %2812 = vmatmul.bf16.gmra.mxu0 %v1861
      %v2813 = vpop.f32.mrf.mxu0
      %v2814 = vadd.f32 0.0, %v2813
      %v2815 = vpop.f32.mrf.mxu0
      %v2816 = vadd.f32 0.0, %v2815
      %2817 = vmatmul.bf16.gmra.mxu0 %v1863
      %v2818 = vpop.f32.mrf.mxu0
      %v2819 = vadd.f32 0.0, %v2818
      %v2820 = vpop.f32.mrf.mxu0
      %v2821 = vadd.f32 0.0, %v2820
      %2822 = vmatmul.bf16.gmra.mxu0 %v1865
      %v2823 = vpop.f32.mrf.mxu0
      %v2824 = vadd.f32 0.0, %v2823
      %v2825 = vpop.f32.mrf.mxu0
      %v2826 = vadd.f32 0.0, %v2825
      %2827 = vmatmul.bf16.gmra.mxu0 %v1867
      %v2828 = vpop.f32.mrf.mxu0
      %v2829 = vadd.f32 0.0, %v2828
      %v2830 = vpop.f32.mrf.mxu0
      %v2831 = vadd.f32 0.0, %v2830
      %2832 = vmatmul.bf16.gmra.mxu0 %v1869
      %v2833 = vpop.f32.mrf.mxu0
      %v2834 = vadd.f32 0.0, %v2833
      %v2835 = vpop.f32.mrf.mxu0
      %v2836 = vadd.f32 0.0, %v2835
      %2837 = vmatmul.bf16.gmra.mxu0 %v1871
      %v2838 = vpop.f32.mrf.mxu0
      %v2839 = vadd.f32 0.0, %v2838
      %v2840 = vpop.f32.mrf.mxu0
      %v2841 = vadd.f32 0.0, %v2840
      %2842 = vmatmul.bf16.gmra.mxu0 %v1873
      %v2843 = vpop.f32.mrf.mxu0
      %v2844 = vadd.f32 0.0, %v2843
      %v2845 = vpop.f32.mrf.mxu0
      %v2846 = vadd.f32 0.0, %v2845
      %2847 = vmatmul.bf16.gmra.mxu0 %v1875
      %v2848 = vpop.f32.mrf.mxu0
      %v2849 = vadd.f32 0.0, %v2848
      %v2850 = vpop.f32.mrf.mxu0
      %v2851 = vadd.f32 0.0, %v2850
      %2852 = vmatmul.bf16.gmra.mxu0 %v1877
      %v2853 = vpop.f32.mrf.mxu0
      %v2854 = vadd.f32 0.0, %v2853
      %v2855 = vpop.f32.mrf.mxu0
      %v2856 = vadd.f32 0.0, %v2855
      %2857 = vmatmul.bf16.gmra.mxu0 %v1879
      %v2858 = vpop.f32.mrf.mxu0
      %v2859 = vadd.f32 0.0, %v2858
      %v2860 = vpop.f32.mrf.mxu0
      %v2861 = vadd.f32 0.0, %v2860
      %2862 = vmatmul.bf16.gmra.mxu0 %v1881
      %v2863 = vpop.f32.mrf.mxu0
      %v2864 = vadd.f32 0.0, %v2863
      %v2865 = vpop.f32.mrf.mxu0
      %v2866 = vadd.f32 0.0, %v2865
      %2867 = vmatmul.bf16.gmra.mxu0 %v1883
      %v2868 = vpop.f32.mrf.mxu0
      %v2869 = vadd.f32 0.0, %v2868
      %v2870 = vpop.f32.mrf.mxu0
      %v2871 = vadd.f32 0.0, %v2870
      %2872 = vmatmul.bf16.gmra.mxu0 %v1885
      %v2873 = vpop.f32.mrf.mxu0
      %v2874 = vadd.f32 0.0, %v2873
      %v2875 = vpop.f32.mrf.mxu0
      %v2876 = vadd.f32 0.0, %v2875
      %2877 = vmatmul.bf16.gmra.mxu0 %v1887
      %v2878 = vpop.f32.mrf.mxu0
      %v2879 = vadd.f32 0.0, %v2878
      %v2880 = vpop.f32.mrf.mxu0
      %v2881 = vadd.f32 0.0, %v2880
      %2882 = vmatmul.bf16.gmra.mxu0 %v1889
      %v2883 = vpop.f32.mrf.mxu0
      %v2884 = vadd.f32 0.0, %v2883
      %v2885 = vpop.f32.mrf.mxu0
      %v2886 = vadd.f32 0.0, %v2885
      %2887 = vmatmul.bf16.gmra.mxu0 %v1891
      %v2888 = vpop.f32.mrf.mxu0
      %v2889 = vadd.f32 0.0, %v2888
      %v2890 = vpop.f32.mrf.mxu0
      %v2891 = vadd.f32 0.0, %v2890
      %2892 = vmatmul.bf16.gmra.mxu0 %v1893
      %v2893 = vpop.f32.mrf.mxu0
      %v2894 = vadd.f32 0.0, %v2893
      %v2895 = vpop.f32.mrf.mxu0
      %v2896 = vadd.f32 0.0, %v2895
      %2897 = vmatmul.bf16.gmra.mxu0 %v1895
      %v2898 = vpop.f32.mrf.mxu0
      %v2899 = vadd.f32 0.0, %v2898
      %v2900 = vpop.f32.mrf.mxu0
      %v2901 = vadd.f32 0.0, %v2900
      %2902 = vmatmul.bf16.gmra.mxu0 %v1897
      %v2903 = vpop.f32.mrf.mxu0
      %v2904 = vadd.f32 0.0, %v2903
      %v2905 = vpop.f32.mrf.mxu0
      %v2906 = vadd.f32 0.0, %v2905
      %2907 = vmatmul.bf16.gmra.mxu0 %v1899
      %v2908 = vpop.f32.mrf.mxu0
      %v2909 = vadd.f32 0.0, %v2908
      %v2910 = vpop.f32.mrf.mxu0
      %v2911 = vadd.f32 0.0, %v2910
      %2912 = vmatmul.bf16.gmra.mxu0 %v1901
      %v2913 = vpop.f32.mrf.mxu0
      %v2914 = vadd.f32 0.0, %v2913
      %v2915 = vpop.f32.mrf.mxu0
      %v2916 = vadd.f32 0.0, %v2915
      %2917 = vmatmul.bf16.gmra.mxu0 %v1903
      %v2918 = vpop.f32.mrf.mxu0
      %v2919 = vadd.f32 0.0, %v2918
      %v2920 = vpop.f32.mrf.mxu0
      %v2921 = vadd.f32 0.0, %v2920
      %2922 = vmatmul.bf16.gmra.mxu0 %v1905
      %v2923 = vpop.f32.mrf.mxu0
      %v2924 = vadd.f32 0.0, %v2923
      %v2925 = vpop.f32.mrf.mxu0
      %v2926 = vadd.f32 0.0, %v2925
      %2927 = vmatmul.bf16.gmra.mxu0 %v1907
      %v2928 = vpop.f32.mrf.mxu0
      %v2929 = vadd.f32 0.0, %v2928
      %v2930 = vpop.f32.mrf.mxu0
      %v2931 = vadd.f32 0.0, %v2930
      %2932 = vmatmul.bf16.gmra.mxu0 %v1909
      %v2933 = vpop.f32.mrf.mxu0
      %v2934 = vadd.f32 0.0, %v2933
      %v2935 = vpop.f32.mrf.mxu0
      %v2936 = vadd.f32 0.0, %v2935
      %2937 = vmatmul.bf16.gmra.mxu0 %v1911
      %v2938 = vpop.f32.mrf.mxu0
      %v2939 = vadd.f32 0.0, %v2938
      %v2940 = vpop.f32.mrf.mxu0
      %v2941 = vadd.f32 0.0, %v2940
      %2942 = vmatmul.bf16.gmra.mxu0 %v1913
      %v2943 = vpop.f32.mrf.mxu0
      %v2944 = vadd.f32 0.0, %v2943
      %v2945 = vpop.f32.mrf.mxu0
      %v2946 = vadd.f32 0.0, %v2945
      %2947 = vmatmul.bf16.gmra.mxu0 %v1915
      %v2948 = vpop.f32.mrf.mxu0
      %v2949 = vadd.f32 0.0, %v2948
      %v2950 = vpop.f32.mrf.mxu0
      %v2951 = vadd.f32 0.0, %v2950
      %2952 = vmatmul.bf16.gmra.mxu0 %v1917
      %v2953 = vpop.f32.mrf.mxu0
      %v2954 = vadd.f32 0.0, %v2953
      %v2955 = vpop.f32.mrf.mxu0
      %v2956 = vadd.f32 0.0, %v2955
      %2957 = vmatmul.bf16.gmra.mxu0 %v1919
      %v2958 = vpop.f32.mrf.mxu0
      %v2959 = vadd.f32 0.0, %v2958
      %v2960 = vpop.f32.mrf.mxu0
      %v2961 = vadd.f32 0.0, %v2960
      %2962 = vmatmul.bf16.gmra.mxu0 %v1921
      %v2963 = vpop.f32.mrf.mxu0
      %v2964 = vadd.f32 0.0, %v2963
      %v2965 = vpop.f32.mrf.mxu0
      %v2966 = vadd.f32 0.0, %v2965
      %2967 = vmatmul.bf16.gmra.mxu0 %v1923
      %v2968 = vpop.f32.mrf.mxu0
      %v2969 = vadd.f32 0.0, %v2968
      %v2970 = vpop.f32.mrf.mxu0
      %v2971 = vadd.f32 0.0, %v2970
      %2972 = vmatmul.bf16.gmra.mxu0 %v1925
      %v2973 = vpop.f32.mrf.mxu0
      %v2974 = vadd.f32 0.0, %v2973
      %v2975 = vpop.f32.mrf.mxu0
      %v2976 = vadd.f32 0.0, %v2975
      %2977 = vmatmul.bf16.gmra.mxu0 %v1927
      %v2978 = vpop.f32.mrf.mxu0
      %v2979 = vadd.f32 0.0, %v2978
      %v2980 = vpop.f32.mrf.mxu0
      %v2981 = vadd.f32 0.0, %v2980
      %2982 = vmatmul.bf16.gmra.mxu0 %v1929
      %v2983 = vpop.f32.mrf.mxu0
      %v2984 = vadd.f32 0.0, %v2983
      %v2985 = vpop.f32.mrf.mxu0
      %v2986 = vadd.f32 0.0, %v2985
      %2987 = vmatmul.bf16.gmra.mxu0 %v1931
      %v2988 = vpop.f32.mrf.mxu0
      %v2989 = vadd.f32 0.0, %v2988
      %v2990 = vpop.f32.mrf.mxu0
      %v2991 = vadd.f32 0.0, %v2990
      %2992 = vmatmul.bf16.gmra.mxu0 %v1933
      %v2993 = vpop.f32.mrf.mxu0
      %v2994 = vadd.f32 0.0, %v2993
      %v2995 = vpop.f32.mrf.mxu0
      %v2996 = vadd.f32 0.0, %v2995
      %2997 = vmatmul.bf16.gmra.mxu0 %v1935
      %v2998 = vpop.f32.mrf.mxu0
      %v2999 = vadd.f32 0.0, %v2998
      %v3000 = vpop.f32.mrf.mxu0
      %v3001 = vadd.f32 0.0, %v3000
      %3002 = vmatmul.bf16.gmra.mxu0 %v1937
      %v3003 = vpop.f32.mrf.mxu0
      %v3004 = vadd.f32 0.0, %v3003
      %v3005 = vpop.f32.mrf.mxu0
      %v3006 = vadd.f32 0.0, %v3005
      %3007 = vmatmul.bf16.gmra.mxu0 %v1939
      %v3008 = vpop.f32.mrf.mxu0
      %v3009 = vadd.f32 0.0, %v3008
      %v3010 = vpop.f32.mrf.mxu0
      %v3011 = vadd.f32 0.0, %v3010
      %3012 = vmatmul.bf16.gmra.mxu0 %v1941
      %v3013 = vpop.f32.mrf.mxu0
      %v3014 = vadd.f32 0.0, %v3013
      %v3015 = vpop.f32.mrf.mxu0
      %v3016 = vadd.f32 0.0, %v3015
      %3017 = vmatmul.bf16.gmra.mxu0 %v1943
      %v3018 = vpop.f32.mrf.mxu0
      %v3019 = vadd.f32 0.0, %v3018
      %v3020 = vpop.f32.mrf.mxu0
      %v3021 = vadd.f32 0.0, %v3020
      %3022 = vmatmul.bf16.gmra.mxu0 %v1945
      %v3023 = vpop.f32.mrf.mxu0
      %v3024 = vadd.f32 0.0, %v3023
      %v3025 = vpop.f32.mrf.mxu0
      %v3026 = vadd.f32 0.0, %v3025
      %3027 = vmatmul.bf16.gmra.mxu0 %v1947
      %v3028 = vpop.f32.mrf.mxu0
      %v3029 = vadd.f32 0.0, %v3028
      %v3030 = vpop.f32.mrf.mxu0
      %v3031 = vadd.f32 0.0, %v3030
      %3032 = vmatmul.bf16.gmra.mxu0 %v1949
      %v3033 = vpop.f32.mrf.mxu0
      %v3034 = vadd.f32 0.0, %v3033
      %v3035 = vpop.f32.mrf.mxu0
      %v3036 = vadd.f32 0.0, %v3035
      %3037 = vmatmul.bf16.gmra.mxu0 %v1951
      %v3038 = vpop.f32.mrf.mxu0
      %v3039 = vadd.f32 0.0, %v3038
      %v3040 = vpop.f32.mrf.mxu0
      %v3041 = vadd.f32 0.0, %v3040
      %3042 = vmatmul.bf16.gmra.mxu0 %v1953
      %v3043 = vpop.f32.mrf.mxu0
      %v3044 = vadd.f32 0.0, %v3043
      %v3045 = vpop.f32.mrf.mxu0
      %v3046 = vadd.f32 0.0, %v3045
      %3047 = vmatmul.bf16.gmra.mxu0 %v1955
      %v3048 = vpop.f32.mrf.mxu0
      %v3049 = vadd.f32 0.0, %v3048
      %v3050 = vpop.f32.mrf.mxu0
      %v3051 = vadd.f32 0.0, %v3050
      %3052 = vmatmul.bf16.gmra.mxu0 %v1957
      %v3053 = vpop.f32.mrf.mxu0
      %v3054 = vadd.f32 0.0, %v3053
      %v3055 = vpop.f32.mrf.mxu0
      %v3056 = vadd.f32 0.0, %v3055
      %3057 = vmatmul.bf16.gmra.mxu0 %v1959
      %v3058 = vpop.f32.mrf.mxu0
      %v3059 = vadd.f32 0.0, %v3058
      %v3060 = vpop.f32.mrf.mxu0
      %v3061 = vadd.f32 0.0, %v3060
      %3062 = vmatmul.bf16.gmra.mxu0 %v1961
      %v3063 = vpop.f32.mrf.mxu0
      %v3064 = vadd.f32 0.0, %v3063
      %v3065 = vpop.f32.mrf.mxu0
      %v3066 = vadd.f32 0.0, %v3065
      %3067 = vmatmul.bf16.gmra.mxu0 %v1963
      %v3068 = vpop.f32.mrf.mxu0
      %v3069 = vadd.f32 0.0, %v3068
      %v3070 = vpop.f32.mrf.mxu0
      %v3071 = vadd.f32 0.0, %v3070
      %3072 = vmatmul.bf16.gmra.mxu0 %v1965
      %v3073 = vpop.f32.mrf.mxu0
      %v3074 = vadd.f32 0.0, %v3073
      %v3075 = vpop.f32.mrf.mxu0
      %v3076 = vadd.f32 0.0, %v3075
      %3077 = vmatmul.bf16.gmra.mxu0 %v1967
      %v3078 = vpop.f32.mrf.mxu0
      %v3079 = vadd.f32 0.0, %v3078
      %v3080 = vpop.f32.mrf.mxu0
      %v3081 = vadd.f32 0.0, %v3080
      %3082 = vmatmul.bf16.gmra.mxu0 %v1969
      %v3083 = vpop.f32.mrf.mxu0
      %v3084 = vadd.f32 0.0, %v3083
      %v3085 = vpop.f32.mrf.mxu0
      %v3086 = vadd.f32 0.0, %v3085
      %3087 = vmatmul.bf16.gmra.mxu0 %v1971
      %v3088 = vpop.f32.mrf.mxu0
      %v3089 = vadd.f32 0.0, %v3088
      %v3090 = vpop.f32.mrf.mxu0
      %v3091 = vadd.f32 0.0, %v3090
      %3092 = vmatmul.bf16.gmra.mxu0 %v1973
      %v3093 = vpop.f32.mrf.mxu0
      %v3094 = vadd.f32 0.0, %v3093
      %v3095 = vpop.f32.mrf.mxu0
      %v3096 = vadd.f32 0.0, %v3095
      %3097 = vmatmul.bf16.gmra.mxu0 %v1975
      %v3098 = vpop.f32.mrf.mxu0
      %v3099 = vadd.f32 0.0, %v3098
      %v3100 = vpop.f32.mrf.mxu0
      %v3101 = vadd.f32 0.0, %v3100
      %3102 = vmatmul.bf16.gmra.mxu0 %v1977
      %v3103 = vpop.f32.mrf.mxu0
      %v3104 = vadd.f32 0.0, %v3103
      %v3105 = vpop.f32.mrf.mxu0
      %v3106 = vadd.f32 0.0, %v3105
      %3107 = vmatmul.bf16.gmra.mxu0 %v1979
      %v3108 = vpop.f32.mrf.mxu0
      %v3109 = vadd.f32 0.0, %v3108
      %v3110 = vpop.f32.mrf.mxu0
      %v3111 = vadd.f32 0.0, %v3110
      %3112 = vmatmul.bf16.gmra.mxu0 %v1981
      %v3113 = vpop.f32.mrf.mxu0
      %v3114 = vadd.f32 0.0, %v3113
      %v3115 = vpop.f32.mrf.mxu0
      %v3116 = vadd.f32 0.0, %v3115
      %3117 = vmatmul.bf16.gmra.mxu0 %v1983
      %v3118 = vpop.f32.mrf.mxu0
      %v3119 = vadd.f32 0.0, %v3118
      %v3120 = vpop.f32.mrf.mxu0
      %v3121 = vadd.f32 0.0, %v3120
      %3122 = vmatmul.bf16.gmra.mxu0 %v1985
      %v3123 = vpop.f32.mrf.mxu0
      %v3124 = vadd.f32 0.0, %v3123
      %v3125 = vpop.f32.mrf.mxu0
      %v3126 = vadd.f32 0.0, %v3125
      %3127 = vmatmul.bf16.gmra.mxu0 %v1987
      %v3128 = vpop.f32.mrf.mxu0
      %v3129 = vadd.f32 0.0, %v3128
      %v3130 = vpop.f32.mrf.mxu0
      %v3131 = vadd.f32 0.0, %v3130
      %3132 = vmatmul.bf16.gmra.mxu0 %v1989
      %v3133 = vpop.f32.mrf.mxu0
      %v3134 = vadd.f32 0.0, %v3133
      %v3135 = vpop.f32.mrf.mxu0
      %v3136 = vadd.f32 0.0, %v3135
      %3137 = vmatmul.bf16.gmra.mxu0 %v1991
      %v3138 = vpop.f32.mrf.mxu0
      %v3139 = vadd.f32 0.0, %v3138
      %v3140 = vpop.f32.mrf.mxu0
      %v3141 = vadd.f32 0.0, %v3140
      %3142 = vmatmul.bf16.gmra.mxu0 %v1993
      %v3143 = vpop.f32.mrf.mxu0
      %v3144 = vadd.f32 0.0, %v3143
      %v3145 = vpop.f32.mrf.mxu0
      %v3146 = vadd.f32 0.0, %v3145
      %3147 = vmatmul.bf16.gmra.mxu0 %v1995
      %v3148 = vpop.f32.mrf.mxu0
      %v3149 = vadd.f32 0.0, %v3148
      %v3150 = vpop.f32.mrf.mxu0
      %v3151 = vadd.f32 0.0, %v3150
      %3152 = vmatmul.bf16.gmra.mxu0 %v1997
      %v3153 = vpop.f32.mrf.mxu0
      %v3154 = vadd.f32 0.0, %v3153
      %v3155 = vpop.f32.mrf.mxu0
      %v3156 = vadd.f32 0.0, %v3155
      %3157 = vmatmul.bf16.gmra.mxu0 %v1999
      %v3158 = vpop.f32.mrf.mxu0
      %v3159 = vadd.f32 0.0, %v3158
      %v3160 = vpop.f32.mrf.mxu0
      %v3161 = vadd.f32 0.0, %v3160
      %3162 = vmatmul.bf16.gmra.mxu0 %v2001
      %v3163 = vpop.f32.mrf.mxu0
      %v3164 = vadd.f32 0.0, %v3163
      %v3165 = vpop.f32.mrf.mxu0
      %v3166 = vadd.f32 0.0, %v3165
      %3167 = vmatmul.bf16.gmra.mxu0 %v2003
      %v3168 = vpop.f32.mrf.mxu0
      %v3169 = vadd.f32 0.0, %v3168
      %v3170 = vpop.f32.mrf.mxu0
      %v3171 = vadd.f32 0.0, %v3170
      %3172 = vmatmul.bf16.gmra.mxu0 %v2005
      %v3173 = vpop.f32.mrf.mxu0
      %v3174 = vadd.f32 0.0, %v3173
      %v3175 = vpop.f32.mrf.mxu0
      %v3176 = vadd.f32 0.0, %v3175
      %3177 = vmatmul.bf16.gmra.mxu0 %v2007
      %v3178 = vpop.f32.mrf.mxu0
      %v3179 = vadd.f32 0.0, %v3178
      %v3180 = vpop.f32.mrf.mxu0
      %v3181 = vadd.f32 0.0, %v3180
      %3182 = vmatmul.bf16.gmra.mxu0 %v2009
      %v3183 = vpop.f32.mrf.mxu0
      %v3184 = vadd.f32 0.0, %v3183
      %v3185 = vpop.f32.mrf.mxu0
      %v3186 = vadd.f32 0.0, %v3185
      %3187 = vmatmul.bf16.gmra.mxu0 %v2011
      %v3188 = vpop.f32.mrf.mxu0
      %v3189 = vadd.f32 0.0, %v3188
      %v3190 = vpop.f32.mrf.mxu0
      %v3191 = vadd.f32 0.0, %v3190
      %3192 = vmatmul.bf16.gmra.mxu0 %v2013
      %v3193 = vpop.f32.mrf.mxu0
      %v3194 = vadd.f32 0.0, %v3193
      %v3195 = vpop.f32.mrf.mxu0
      %v3196 = vadd.f32 0.0, %v3195
      %3197 = vmatmul.bf16.gmra.mxu0 %v2015
      %v3198 = vpop.f32.mrf.mxu0
      %v3199 = vadd.f32 0.0, %v3198
      %v3200 = vpop.f32.mrf.mxu0
      %v3201 = vadd.f32 0.0, %v3200
      %3202 = vmatmul.bf16.gmra.mxu0 %v2017
      %v3203 = vpop.f32.mrf.mxu0
      %v3204 = vadd.f32 0.0, %v3203
      %v3205 = vpop.f32.mrf.mxu0
      %v3206 = vadd.f32 0.0, %v3205
      %3207 = vmatmul.bf16.gmra.mxu0 %v2019
      %v3208 = vpop.f32.mrf.mxu0
      %v3209 = vadd.f32 0.0, %v3208
      %v3210 = vpop.f32.mrf.mxu0
      %v3211 = vadd.f32 0.0, %v3210
      %3212 = vmatmul.bf16.gmra.mxu0 %v2021
      %v3213 = vpop.f32.mrf.mxu0
      %v3214 = vadd.f32 0.0, %v3213
      %v3215 = vpop.f32.mrf.mxu0
      %v3216 = vadd.f32 0.0, %v3215
      %3217 = vmatmul.bf16.gmra.mxu0 %v2023
      %v3218 = vpop.f32.mrf.mxu0
      %v3219 = vadd.f32 0.0, %v3218
      %v3220 = vpop.f32.mrf.mxu0
      %v3221 = vadd.f32 0.0, %v3220
      %3222 = vmatmul.bf16.gmra.mxu0 %v2025
      %v3223 = vpop.f32.mrf.mxu0
      %v3224 = vadd.f32 0.0, %v3223
      %v3225 = vpop.f32.mrf.mxu0
      %v3226 = vadd.f32 0.0, %v3225
      %3227 = vmatmul.bf16.gmra.mxu0 %v2027
      %v3228 = vpop.f32.mrf.mxu0
      %v3229 = vadd.f32 0.0, %v3228
      %v3230 = vpop.f32.mrf.mxu0
      %v3231 = vadd.f32 0.0, %v3230
      %3232 = vmatmul.bf16.gmra.mxu0 %v2029
      %v3233 = vpop.f32.mrf.mxu0
      %v3234 = vadd.f32 0.0, %v3233
      %v3235 = vpop.f32.mrf.mxu0
      %v3236 = vadd.f32 0.0, %v3235
      %3237 = vmatmul.bf16.gmra.mxu0 %v2031
      %v3238 = vpop.f32.mrf.mxu0
      %v3239 = vadd.f32 0.0, %v3238
      %v3240 = vpop.f32.mrf.mxu0
      %v3241 = vadd.f32 0.0, %v3240
      %3242 = vmatmul.bf16.gmra.mxu0 %v2033
      %v3243 = vpop.f32.mrf.mxu0
      %v3244 = vadd.f32 0.0, %v3243
      %v3245 = vpop.f32.mrf.mxu0
      %v3246 = vadd.f32 0.0, %v3245
      %3247 = vmatmul.bf16.gmra.mxu0 %v2035
      %v3248 = vpop.f32.mrf.mxu0
      %v3249 = vadd.f32 0.0, %v3248
      %v3250 = vpop.f32.mrf.mxu0
      %v3251 = vadd.f32 0.0, %v3250
      %3252 = vmatmul.bf16.gmra.mxu0 %v2037
      %v3253 = vpop.f32.mrf.mxu0
      %v3254 = vadd.f32 0.0, %v3253
      %v3255 = vpop.f32.mrf.mxu0
      %v3256 = vadd.f32 0.0, %v3255
      %3257 = vmatmul.bf16.gmra.mxu0 %v2039
      %v3258 = vpop.f32.mrf.mxu0
      %v3259 = vadd.f32 0.0, %v3258
      %v3260 = vpop.f32.mrf.mxu0
      %v3261 = vadd.f32 0.0, %v3260
      %3262 = vmatmul.bf16.gmra.mxu0 %v2041
      %v3263 = vpop.f32.mrf.mxu0
      %v3264 = vadd.f32 0.0, %v3263
      %v3265 = vpop.f32.mrf.mxu0
      %v3266 = vadd.f32 0.0, %v3265
      %3267 = vmatmul.bf16.gmra.mxu0 %v2043
      %v3268 = vpop.f32.mrf.mxu0
      %v3269 = vadd.f32 0.0, %v3268
      %v3270 = vpop.f32.mrf.mxu0
      %v3271 = vadd.f32 0.0, %v3270
      %3272 = vmatmul.bf16.gmra.mxu0 %v2045
      %v3273 = vpop.f32.mrf.mxu0
      %v3274 = vadd.f32 0.0, %v3273
      %v3275 = vpop.f32.mrf.mxu0
      %v3276 = vadd.f32 0.0, %v3275
      %3277 = vmatmul.bf16.gmra.mxu0 %v2047
      %v3278 = vpop.f32.mrf.mxu0
      %v3279 = vadd.f32 0.0, %v3278
      %v3280 = vpop.f32.mrf.mxu0
      %v3281 = vadd.f32 0.0, %v3280
      %3282 = vdwg.mxu0
      %3283 = vmatpush.bf16.msra.mxu0 0
      %3284 = vmatpush.bf16.msra.mxu0 0
      %3285 = vmatpush.bf16.msra.mxu0 0
      %3286 = vmatpush.bf16.msra.mxu0 0
      %3287 = vmatpush.bf16.msra.mxu0 %v2236
      %3288 = vmatpush.bf16.msra.mxu0 %v2235
      %3289 = vmatpush.bf16.msra.mxu0 %v2234
      %3290 = vmatpush.bf16.msra.mxu0 %v2233
      %3291 = vmatmul.bf16.gmra.mxu0 %v2251
      %v3292 = vpop.f32.mrf.mxu0
      %v3293 = vadd.f32 %v2644, %v3292
      %v3294 = vpop.f32.mrf.mxu0
      %v3295 = vadd.f32 %v2646, %v3294
      %3296 = vmatmul.bf16.gmra.mxu0 %v2254
      %v3297 = vpop.f32.mrf.mxu0
      %v3298 = vadd.f32 %v2649, %v3297
      %v3299 = vpop.f32.mrf.mxu0
      %v3300 = vadd.f32 %v2651, %v3299
      %3301 = vmatmul.bf16.gmra.mxu0 %v2257
      %v3302 = vpop.f32.mrf.mxu0
      %v3303 = vadd.f32 %v2654, %v3302
      %v3304 = vpop.f32.mrf.mxu0
      %v3305 = vadd.f32 %v2656, %v3304
      %3306 = vmatmul.bf16.gmra.mxu0 %v2260
      %v3307 = vpop.f32.mrf.mxu0
      %v3308 = vadd.f32 %v2659, %v3307
      %v3309 = vpop.f32.mrf.mxu0
      %v3310 = vadd.f32 %v2661, %v3309
      %3311 = vmatmul.bf16.gmra.mxu0 %v2263
      %v3312 = vpop.f32.mrf.mxu0
      %v3313 = vadd.f32 %v2664, %v3312
      %v3314 = vpop.f32.mrf.mxu0
      %v3315 = vadd.f32 %v2666, %v3314
      %3316 = vmatmul.bf16.gmra.mxu0 %v2266
      %v3317 = vpop.f32.mrf.mxu0
      %v3318 = vadd.f32 %v2669, %v3317
      %v3319 = vpop.f32.mrf.mxu0
      %v3320 = vadd.f32 %v2671, %v3319
      %3321 = vmatmul.bf16.gmra.mxu0 %v2269
      %v3322 = vpop.f32.mrf.mxu0
      %v3323 = vadd.f32 %v2674, %v3322
      %v3324 = vpop.f32.mrf.mxu0
      %v3325 = vadd.f32 %v2676, %v3324
      %3326 = vmatmul.bf16.gmra.mxu0 %v2272
      %v3327 = vpop.f32.mrf.mxu0
      %v3328 = vadd.f32 %v2679, %v3327
      %v3329 = vpop.f32.mrf.mxu0
      %v3330 = vadd.f32 %v2681, %v3329
      %3331 = vmatmul.bf16.gmra.mxu0 %v2275
      %v3332 = vpop.f32.mrf.mxu0
      %v3333 = vadd.f32 %v2684, %v3332
      %v3334 = vpop.f32.mrf.mxu0
      %v3335 = vadd.f32 %v2686, %v3334
      %3336 = vmatmul.bf16.gmra.mxu0 %v2278
      %v3337 = vpop.f32.mrf.mxu0
      %v3338 = vadd.f32 %v2689, %v3337
      %v3339 = vpop.f32.mrf.mxu0
      %v3340 = vadd.f32 %v2691, %v3339
      %3341 = vmatmul.bf16.gmra.mxu0 %v2281
      %v3342 = vpop.f32.mrf.mxu0
      %v3343 = vadd.f32 %v2694, %v3342
      %v3344 = vpop.f32.mrf.mxu0
      %v3345 = vadd.f32 %v2696, %v3344
      %3346 = vmatmul.bf16.gmra.mxu0 %v2284
      %v3347 = vpop.f32.mrf.mxu0
      %v3348 = vadd.f32 %v2699, %v3347
      %v3349 = vpop.f32.mrf.mxu0
      %v3350 = vadd.f32 %v2701, %v3349
      %3351 = vmatmul.bf16.gmra.mxu0 %v2287
      %v3352 = vpop.f32.mrf.mxu0
      %v3353 = vadd.f32 %v2704, %v3352
      %v3354 = vpop.f32.mrf.mxu0
      %v3355 = vadd.f32 %v2706, %v3354
      %3356 = vmatmul.bf16.gmra.mxu0 %v2290
      %v3357 = vpop.f32.mrf.mxu0
      %v3358 = vadd.f32 %v2709, %v3357
      %v3359 = vpop.f32.mrf.mxu0
      %v3360 = vadd.f32 %v2711, %v3359
      %3361 = vmatmul.bf16.gmra.mxu0 %v2293
      %v3362 = vpop.f32.mrf.mxu0
      %v3363 = vadd.f32 %v2714, %v3362
      %v3364 = vpop.f32.mrf.mxu0
      %v3365 = vadd.f32 %v2716, %v3364
      %3366 = vmatmul.bf16.gmra.mxu0 %v2296
      %v3367 = vpop.f32.mrf.mxu0
      %v3368 = vadd.f32 %v2719, %v3367
      %v3369 = vpop.f32.mrf.mxu0
      %v3370 = vadd.f32 %v2721, %v3369
      %3371 = vmatmul.bf16.gmra.mxu0 %v2299
      %v3372 = vpop.f32.mrf.mxu0
      %v3373 = vadd.f32 %v2724, %v3372
      %v3374 = vpop.f32.mrf.mxu0
      %v3375 = vadd.f32 %v2726, %v3374
      %3376 = vmatmul.bf16.gmra.mxu0 %v2302
      %v3377 = vpop.f32.mrf.mxu0
      %v3378 = vadd.f32 %v2729, %v3377
      %v3379 = vpop.f32.mrf.mxu0
      %v3380 = vadd.f32 %v2731, %v3379
      %3381 = vmatmul.bf16.gmra.mxu0 %v2305
      %v3382 = vpop.f32.mrf.mxu0
      %v3383 = vadd.f32 %v2734, %v3382
      %v3384 = vpop.f32.mrf.mxu0
      %v3385 = vadd.f32 %v2736, %v3384
      %3386 = vmatmul.bf16.gmra.mxu0 %v2308
      %v3387 = vpop.f32.mrf.mxu0
      %v3388 = vadd.f32 %v2739, %v3387
      %v3389 = vpop.f32.mrf.mxu0
      %v3390 = vadd.f32 %v2741, %v3389
      %3391 = vmatmul.bf16.gmra.mxu0 %v2311
      %v3392 = vpop.f32.mrf.mxu0
      %v3393 = vadd.f32 %v2744, %v3392
      %v3394 = vpop.f32.mrf.mxu0
      %v3395 = vadd.f32 %v2746, %v3394
      %3396 = vmatmul.bf16.gmra.mxu0 %v2314
      %v3397 = vpop.f32.mrf.mxu0
      %v3398 = vadd.f32 %v2749, %v3397
      %v3399 = vpop.f32.mrf.mxu0
      %v3400 = vadd.f32 %v2751, %v3399
      %3401 = vmatmul.bf16.gmra.mxu0 %v2317
      %v3402 = vpop.f32.mrf.mxu0
      %v3403 = vadd.f32 %v2754, %v3402
      %v3404 = vpop.f32.mrf.mxu0
      %v3405 = vadd.f32 %v2756, %v3404
      %3406 = vmatmul.bf16.gmra.mxu0 %v2320
      %v3407 = vpop.f32.mrf.mxu0
      %v3408 = vadd.f32 %v2759, %v3407
      %v3409 = vpop.f32.mrf.mxu0
      %v3410 = vadd.f32 %v2761, %v3409
      %3411 = vmatmul.bf16.gmra.mxu0 %v2323
      %v3412 = vpop.f32.mrf.mxu0
      %v3413 = vadd.f32 %v2764, %v3412
      %v3414 = vpop.f32.mrf.mxu0
      %v3415 = vadd.f32 %v2766, %v3414
      %3416 = vmatmul.bf16.gmra.mxu0 %v2326
      %v3417 = vpop.f32.mrf.mxu0
      %v3418 = vadd.f32 %v2769, %v3417
      %v3419 = vpop.f32.mrf.mxu0
      %v3420 = vadd.f32 %v2771, %v3419
      %3421 = vmatmul.bf16.gmra.mxu0 %v2329
      %v3422 = vpop.f32.mrf.mxu0
      %v3423 = vadd.f32 %v2774, %v3422
      %v3424 = vpop.f32.mrf.mxu0
      %v3425 = vadd.f32 %v2776, %v3424
      %3426 = vmatmul.bf16.gmra.mxu0 %v2332
      %v3427 = vpop.f32.mrf.mxu0
      %v3428 = vadd.f32 %v2779, %v3427
      %v3429 = vpop.f32.mrf.mxu0
      %v3430 = vadd.f32 %v2781, %v3429
      %3431 = vmatmul.bf16.gmra.mxu0 %v2335
      %v3432 = vpop.f32.mrf.mxu0
      %v3433 = vadd.f32 %v2784, %v3432
      %v3434 = vpop.f32.mrf.mxu0
      %v3435 = vadd.f32 %v2786, %v3434
      %3436 = vmatmul.bf16.gmra.mxu0 %v2338
      %v3437 = vpop.f32.mrf.mxu0
      %v3438 = vadd.f32 %v2789, %v3437
      %v3439 = vpop.f32.mrf.mxu0
      %v3440 = vadd.f32 %v2791, %v3439
      %3441 = vmatmul.bf16.gmra.mxu0 %v2341
      %v3442 = vpop.f32.mrf.mxu0
      %v3443 = vadd.f32 %v2794, %v3442
      %v3444 = vpop.f32.mrf.mxu0
      %v3445 = vadd.f32 %v2796, %v3444
      %3446 = vmatmul.bf16.gmra.mxu0 %v2344
      %v3447 = vpop.f32.mrf.mxu0
      %v3448 = vadd.f32 %v2799, %v3447
      %v3449 = vpop.f32.mrf.mxu0
      %v3450 = vadd.f32 %v2801, %v3449
      %3451 = vmatmul.bf16.gmra.mxu0 %v2347
      %v3452 = vpop.f32.mrf.mxu0
      %v3453 = vadd.f32 %v2804, %v3452
      %v3454 = vpop.f32.mrf.mxu0
      %v3455 = vadd.f32 %v2806, %v3454
      %3456 = vmatmul.bf16.gmra.mxu0 %v2350
      %v3457 = vpop.f32.mrf.mxu0
      %v3458 = vadd.f32 %v2809, %v3457
      %v3459 = vpop.f32.mrf.mxu0
      %v3460 = vadd.f32 %v2811, %v3459
      %3461 = vmatmul.bf16.gmra.mxu0 %v2353
      %v3462 = vpop.f32.mrf.mxu0
      %v3463 = vadd.f32 %v2814, %v3462
      %v3464 = vpop.f32.mrf.mxu0
      %v3465 = vadd.f32 %v2816, %v3464
      %3466 = vmatmul.bf16.gmra.mxu0 %v2356
      %v3467 = vpop.f32.mrf.mxu0
      %v3468 = vadd.f32 %v2819, %v3467
      %v3469 = vpop.f32.mrf.mxu0
      %v3470 = vadd.f32 %v2821, %v3469
      %3471 = vmatmul.bf16.gmra.mxu0 %v2359
      %v3472 = vpop.f32.mrf.mxu0
      %v3473 = vadd.f32 %v2824, %v3472
      %v3474 = vpop.f32.mrf.mxu0
      %v3475 = vadd.f32 %v2826, %v3474
      %3476 = vmatmul.bf16.gmra.mxu0 %v2362
      %v3477 = vpop.f32.mrf.mxu0
      %v3478 = vadd.f32 %v2829, %v3477
      %v3479 = vpop.f32.mrf.mxu0
      %v3480 = vadd.f32 %v2831, %v3479
      %3481 = vmatmul.bf16.gmra.mxu0 %v2365
      %v3482 = vpop.f32.mrf.mxu0
      %v3483 = vadd.f32 %v2834, %v3482
      %v3484 = vpop.f32.mrf.mxu0
      %v3485 = vadd.f32 %v2836, %v3484
      %3486 = vmatmul.bf16.gmra.mxu0 %v2368
      %v3487 = vpop.f32.mrf.mxu0
      %v3488 = vadd.f32 %v2839, %v3487
      %v3489 = vpop.f32.mrf.mxu0
      %v3490 = vadd.f32 %v2841, %v3489
      %3491 = vmatmul.bf16.gmra.mxu0 %v2371
      %v3492 = vpop.f32.mrf.mxu0
      %v3493 = vadd.f32 %v2844, %v3492
      %v3494 = vpop.f32.mrf.mxu0
      %v3495 = vadd.f32 %v2846, %v3494
      %3496 = vmatmul.bf16.gmra.mxu0 %v2374
      %v3497 = vpop.f32.mrf.mxu0
      %v3498 = vadd.f32 %v2849, %v3497
      %v3499 = vpop.f32.mrf.mxu0
      %v3500 = vadd.f32 %v2851, %v3499
      %3501 = vmatmul.bf16.gmra.mxu0 %v2377
      %v3502 = vpop.f32.mrf.mxu0
      %v3503 = vadd.f32 %v2854, %v3502
      %v3504 = vpop.f32.mrf.mxu0
      %v3505 = vadd.f32 %v2856, %v3504
      %3506 = vmatmul.bf16.gmra.mxu0 %v2380
      %v3507 = vpop.f32.mrf.mxu0
      %v3508 = vadd.f32 %v2859, %v3507
      %v3509 = vpop.f32.mrf.mxu0
      %v3510 = vadd.f32 %v2861, %v3509
      %3511 = vmatmul.bf16.gmra.mxu0 %v2383
      %v3512 = vpop.f32.mrf.mxu0
      %v3513 = vadd.f32 %v2864, %v3512
      %v3514 = vpop.f32.mrf.mxu0
      %v3515 = vadd.f32 %v2866, %v3514
      %3516 = vmatmul.bf16.gmra.mxu0 %v2386
      %v3517 = vpop.f32.mrf.mxu0
      %v3518 = vadd.f32 %v2869, %v3517
      %v3519 = vpop.f32.mrf.mxu0
      %v3520 = vadd.f32 %v2871, %v3519
      %3521 = vmatmul.bf16.gmra.mxu0 %v2389
      %v3522 = vpop.f32.mrf.mxu0
      %v3523 = vadd.f32 %v2874, %v3522
      %v3524 = vpop.f32.mrf.mxu0
      %v3525 = vadd.f32 %v2876, %v3524
      %3526 = vmatmul.bf16.gmra.mxu0 %v2392
      %v3527 = vpop.f32.mrf.mxu0
      %v3528 = vadd.f32 %v2879, %v3527
      %v3529 = vpop.f32.mrf.mxu0
      %v3530 = vadd.f32 %v2881, %v3529
      %3531 = vmatmul.bf16.gmra.mxu0 %v2395
      %v3532 = vpop.f32.mrf.mxu0
      %v3533 = vadd.f32 %v2884, %v3532
      %v3534 = vpop.f32.mrf.mxu0
      %v3535 = vadd.f32 %v2886, %v3534
      %3536 = vmatmul.bf16.gmra.mxu0 %v2398
      %v3537 = vpop.f32.mrf.mxu0
      %v3538 = vadd.f32 %v2889, %v3537
      %v3539 = vpop.f32.mrf.mxu0
      %v3540 = vadd.f32 %v2891, %v3539
      %3541 = vmatmul.bf16.gmra.mxu0 %v2401
      %v3542 = vpop.f32.mrf.mxu0
      %v3543 = vadd.f32 %v2894, %v3542
      %v3544 = vpop.f32.mrf.mxu0
      %v3545 = vadd.f32 %v2896, %v3544
      %3546 = vmatmul.bf16.gmra.mxu0 %v2404
      %v3547 = vpop.f32.mrf.mxu0
      %v3548 = vadd.f32 %v2899, %v3547
      %v3549 = vpop.f32.mrf.mxu0
      %v3550 = vadd.f32 %v2901, %v3549
      %3551 = vmatmul.bf16.gmra.mxu0 %v2407
      %v3552 = vpop.f32.mrf.mxu0
      %v3553 = vadd.f32 %v2904, %v3552
      %v3554 = vpop.f32.mrf.mxu0
      %v3555 = vadd.f32 %v2906, %v3554
      %3556 = vmatmul.bf16.gmra.mxu0 %v2410
      %v3557 = vpop.f32.mrf.mxu0
      %v3558 = vadd.f32 %v2909, %v3557
      %v3559 = vpop.f32.mrf.mxu0
      %v3560 = vadd.f32 %v2911, %v3559
      %3561 = vmatmul.bf16.gmra.mxu0 %v2413
      %v3562 = vpop.f32.mrf.mxu0
      %v3563 = vadd.f32 %v2914, %v3562
      %v3564 = vpop.f32.mrf.mxu0
      %v3565 = vadd.f32 %v2916, %v3564
      %3566 = vmatmul.bf16.gmra.mxu0 %v2416
      %v3567 = vpop.f32.mrf.mxu0
      %v3568 = vadd.f32 %v2919, %v3567
      %v3569 = vpop.f32.mrf.mxu0
      %v3570 = vadd.f32 %v2921, %v3569
      %3571 = vmatmul.bf16.gmra.mxu0 %v2419
      %v3572 = vpop.f32.mrf.mxu0
      %v3573 = vadd.f32 %v2924, %v3572
      %v3574 = vpop.f32.mrf.mxu0
      %v3575 = vadd.f32 %v2926, %v3574
      %3576 = vmatmul.bf16.gmra.mxu0 %v2422
      %v3577 = vpop.f32.mrf.mxu0
      %v3578 = vadd.f32 %v2929, %v3577
      %v3579 = vpop.f32.mrf.mxu0
      %v3580 = vadd.f32 %v2931, %v3579
      %3581 = vmatmul.bf16.gmra.mxu0 %v2425
      %v3582 = vpop.f32.mrf.mxu0
      %v3583 = vadd.f32 %v2934, %v3582
      %v3584 = vpop.f32.mrf.mxu0
      %v3585 = vadd.f32 %v2936, %v3584
      %3586 = vmatmul.bf16.gmra.mxu0 %v2428
      %v3587 = vpop.f32.mrf.mxu0
      %v3588 = vadd.f32 %v2939, %v3587
      %v3589 = vpop.f32.mrf.mxu0
      %v3590 = vadd.f32 %v2941, %v3589
      %3591 = vmatmul.bf16.gmra.mxu0 %v2431
      %v3592 = vpop.f32.mrf.mxu0
      %v3593 = vadd.f32 %v2944, %v3592
      %v3594 = vpop.f32.mrf.mxu0
      %v3595 = vadd.f32 %v2946, %v3594
      %3596 = vmatmul.bf16.gmra.mxu0 %v2434
      %v3597 = vpop.f32.mrf.mxu0
      %v3598 = vadd.f32 %v2949, %v3597
      %v3599 = vpop.f32.mrf.mxu0
      %v3600 = vadd.f32 %v2951, %v3599
      %3601 = vmatmul.bf16.gmra.mxu0 %v2437
      %v3602 = vpop.f32.mrf.mxu0
      %v3603 = vadd.f32 %v2954, %v3602
      %v3604 = vpop.f32.mrf.mxu0
      %v3605 = vadd.f32 %v2956, %v3604
      %3606 = vmatmul.bf16.gmra.mxu0 %v2440
      %v3607 = vpop.f32.mrf.mxu0
      %v3608 = vadd.f32 %v2959, %v3607
      %v3609 = vpop.f32.mrf.mxu0
      %v3610 = vadd.f32 %v2961, %v3609
      %3611 = vmatmul.bf16.gmra.mxu0 %v2443
      %v3612 = vpop.f32.mrf.mxu0
      %v3613 = vadd.f32 %v2964, %v3612
      %v3614 = vpop.f32.mrf.mxu0
      %v3615 = vadd.f32 %v2966, %v3614
      %3616 = vmatmul.bf16.gmra.mxu0 %v2446
      %v3617 = vpop.f32.mrf.mxu0
      %v3618 = vadd.f32 %v2969, %v3617
      %v3619 = vpop.f32.mrf.mxu0
      %v3620 = vadd.f32 %v2971, %v3619
      %3621 = vmatmul.bf16.gmra.mxu0 %v2449
      %v3622 = vpop.f32.mrf.mxu0
      %v3623 = vadd.f32 %v2974, %v3622
      %v3624 = vpop.f32.mrf.mxu0
      %v3625 = vadd.f32 %v2976, %v3624
      %3626 = vmatmul.bf16.gmra.mxu0 %v2452
      %v3627 = vpop.f32.mrf.mxu0
      %v3628 = vadd.f32 %v2979, %v3627
      %v3629 = vpop.f32.mrf.mxu0
      %v3630 = vadd.f32 %v2981, %v3629
      %3631 = vmatmul.bf16.gmra.mxu0 %v2455
      %v3632 = vpop.f32.mrf.mxu0
      %v3633 = vadd.f32 %v2984, %v3632
      %v3634 = vpop.f32.mrf.mxu0
      %v3635 = vadd.f32 %v2986, %v3634
      %3636 = vmatmul.bf16.gmra.mxu0 %v2458
      %v3637 = vpop.f32.mrf.mxu0
      %v3638 = vadd.f32 %v2989, %v3637
      %v3639 = vpop.f32.mrf.mxu0
      %v3640 = vadd.f32 %v2991, %v3639
      %3641 = vmatmul.bf16.gmra.mxu0 %v2461
      %v3642 = vpop.f32.mrf.mxu0
      %v3643 = vadd.f32 %v2994, %v3642
      %v3644 = vpop.f32.mrf.mxu0
      %v3645 = vadd.f32 %v2996, %v3644
      %3646 = vmatmul.bf16.gmra.mxu0 %v2464
      %v3647 = vpop.f32.mrf.mxu0
      %v3648 = vadd.f32 %v2999, %v3647
      %v3649 = vpop.f32.mrf.mxu0
      %v3650 = vadd.f32 %v3001, %v3649
      %3651 = vmatmul.bf16.gmra.mxu0 %v2467
      %v3652 = vpop.f32.mrf.mxu0
      %v3653 = vadd.f32 %v3004, %v3652
      %v3654 = vpop.f32.mrf.mxu0
      %v3655 = vadd.f32 %v3006, %v3654
      %3656 = vmatmul.bf16.gmra.mxu0 %v2470
      %v3657 = vpop.f32.mrf.mxu0
      %v3658 = vadd.f32 %v3009, %v3657
      %v3659 = vpop.f32.mrf.mxu0
      %v3660 = vadd.f32 %v3011, %v3659
      %3661 = vmatmul.bf16.gmra.mxu0 %v2473
      %v3662 = vpop.f32.mrf.mxu0
      %v3663 = vadd.f32 %v3014, %v3662
      %v3664 = vpop.f32.mrf.mxu0
      %v3665 = vadd.f32 %v3016, %v3664
      %3666 = vmatmul.bf16.gmra.mxu0 %v2476
      %v3667 = vpop.f32.mrf.mxu0
      %v3668 = vadd.f32 %v3019, %v3667
      %v3669 = vpop.f32.mrf.mxu0
      %v3670 = vadd.f32 %v3021, %v3669
      %3671 = vmatmul.bf16.gmra.mxu0 %v2479
      %v3672 = vpop.f32.mrf.mxu0
      %v3673 = vadd.f32 %v3024, %v3672
      %v3674 = vpop.f32.mrf.mxu0
      %v3675 = vadd.f32 %v3026, %v3674
      %3676 = vmatmul.bf16.gmra.mxu0 %v2482
      %v3677 = vpop.f32.mrf.mxu0
      %v3678 = vadd.f32 %v3029, %v3677
      %v3679 = vpop.f32.mrf.mxu0
      %v3680 = vadd.f32 %v3031, %v3679
      %3681 = vmatmul.bf16.gmra.mxu0 %v2485
      %v3682 = vpop.f32.mrf.mxu0
      %v3683 = vadd.f32 %v3034, %v3682
      %v3684 = vpop.f32.mrf.mxu0
      %v3685 = vadd.f32 %v3036, %v3684
      %3686 = vmatmul.bf16.gmra.mxu0 %v2488
      %v3687 = vpop.f32.mrf.mxu0
      %v3688 = vadd.f32 %v3039, %v3687
      %v3689 = vpop.f32.mrf.mxu0
      %v3690 = vadd.f32 %v3041, %v3689
      %3691 = vmatmul.bf16.gmra.mxu0 %v2491
      %v3692 = vpop.f32.mrf.mxu0
      %v3693 = vadd.f32 %v3044, %v3692
      %v3694 = vpop.f32.mrf.mxu0
      %v3695 = vadd.f32 %v3046, %v3694
      %3696 = vmatmul.bf16.gmra.mxu0 %v2494
      %v3697 = vpop.f32.mrf.mxu0
      %v3698 = vadd.f32 %v3049, %v3697
      %v3699 = vpop.f32.mrf.mxu0
      %v3700 = vadd.f32 %v3051, %v3699
      %3701 = vmatmul.bf16.gmra.mxu0 %v2497
      %v3702 = vpop.f32.mrf.mxu0
      %v3703 = vadd.f32 %v3054, %v3702
      %v3704 = vpop.f32.mrf.mxu0
      %v3705 = vadd.f32 %v3056, %v3704
      %3706 = vmatmul.bf16.gmra.mxu0 %v2500
      %v3707 = vpop.f32.mrf.mxu0
      %v3708 = vadd.f32 %v3059, %v3707
      %v3709 = vpop.f32.mrf.mxu0
      %v3710 = vadd.f32 %v3061, %v3709
      %3711 = vmatmul.bf16.gmra.mxu0 %v2503
      %v3712 = vpop.f32.mrf.mxu0
      %v3713 = vadd.f32 %v3064, %v3712
      %v3714 = vpop.f32.mrf.mxu0
      %v3715 = vadd.f32 %v3066, %v3714
      %3716 = vmatmul.bf16.gmra.mxu0 %v2506
      %v3717 = vpop.f32.mrf.mxu0
      %v3718 = vadd.f32 %v3069, %v3717
      %v3719 = vpop.f32.mrf.mxu0
      %v3720 = vadd.f32 %v3071, %v3719
      %3721 = vmatmul.bf16.gmra.mxu0 %v2509
      %v3722 = vpop.f32.mrf.mxu0
      %v3723 = vadd.f32 %v3074, %v3722
      %v3724 = vpop.f32.mrf.mxu0
      %v3725 = vadd.f32 %v3076, %v3724
      %3726 = vmatmul.bf16.gmra.mxu0 %v2512
      %v3727 = vpop.f32.mrf.mxu0
      %v3728 = vadd.f32 %v3079, %v3727
      %v3729 = vpop.f32.mrf.mxu0
      %v3730 = vadd.f32 %v3081, %v3729
      %3731 = vmatmul.bf16.gmra.mxu0 %v2515
      %v3732 = vpop.f32.mrf.mxu0
      %v3733 = vadd.f32 %v3084, %v3732
      %v3734 = vpop.f32.mrf.mxu0
      %v3735 = vadd.f32 %v3086, %v3734
      %3736 = vmatmul.bf16.gmra.mxu0 %v2518
      %v3737 = vpop.f32.mrf.mxu0
      %v3738 = vadd.f32 %v3089, %v3737
      %v3739 = vpop.f32.mrf.mxu0
      %v3740 = vadd.f32 %v3091, %v3739
      %3741 = vmatmul.bf16.gmra.mxu0 %v2521
      %v3742 = vpop.f32.mrf.mxu0
      %v3743 = vadd.f32 %v3094, %v3742
      %v3744 = vpop.f32.mrf.mxu0
      %v3745 = vadd.f32 %v3096, %v3744
      %3746 = vmatmul.bf16.gmra.mxu0 %v2524
      %v3747 = vpop.f32.mrf.mxu0
      %v3748 = vadd.f32 %v3099, %v3747
      %v3749 = vpop.f32.mrf.mxu0
      %v3750 = vadd.f32 %v3101, %v3749
      %3751 = vmatmul.bf16.gmra.mxu0 %v2527
      %v3752 = vpop.f32.mrf.mxu0
      %v3753 = vadd.f32 %v3104, %v3752
      %v3754 = vpop.f32.mrf.mxu0
      %v3755 = vadd.f32 %v3106, %v3754
      %3756 = vmatmul.bf16.gmra.mxu0 %v2530
      %v3757 = vpop.f32.mrf.mxu0
      %v3758 = vadd.f32 %v3109, %v3757
      %v3759 = vpop.f32.mrf.mxu0
      %v3760 = vadd.f32 %v3111, %v3759
      %3761 = vmatmul.bf16.gmra.mxu0 %v2533
      %v3762 = vpop.f32.mrf.mxu0
      %v3763 = vadd.f32 %v3114, %v3762
      %v3764 = vpop.f32.mrf.mxu0
      %v3765 = vadd.f32 %v3116, %v3764
      %3766 = vmatmul.bf16.gmra.mxu0 %v2536
      %v3767 = vpop.f32.mrf.mxu0
      %v3768 = vadd.f32 %v3119, %v3767
      %v3769 = vpop.f32.mrf.mxu0
      %v3770 = vadd.f32 %v3121, %v3769
      %3771 = vmatmul.bf16.gmra.mxu0 %v2539
      %v3772 = vpop.f32.mrf.mxu0
      %v3773 = vadd.f32 %v3124, %v3772
      %v3774 = vpop.f32.mrf.mxu0
      %v3775 = vadd.f32 %v3126, %v3774
      %3776 = vmatmul.bf16.gmra.mxu0 %v2542
      %v3777 = vpop.f32.mrf.mxu0
      %v3778 = vadd.f32 %v3129, %v3777
      %v3779 = vpop.f32.mrf.mxu0
      %v3780 = vadd.f32 %v3131, %v3779
      %3781 = vmatmul.bf16.gmra.mxu0 %v2545
      %v3782 = vpop.f32.mrf.mxu0
      %v3783 = vadd.f32 %v3134, %v3782
      %v3784 = vpop.f32.mrf.mxu0
      %v3785 = vadd.f32 %v3136, %v3784
      %3786 = vmatmul.bf16.gmra.mxu0 %v2548
      %v3787 = vpop.f32.mrf.mxu0
      %v3788 = vadd.f32 %v3139, %v3787
      %v3789 = vpop.f32.mrf.mxu0
      %v3790 = vadd.f32 %v3141, %v3789
      %3791 = vmatmul.bf16.gmra.mxu0 %v2551
      %v3792 = vpop.f32.mrf.mxu0
      %v3793 = vadd.f32 %v3144, %v3792
      %v3794 = vpop.f32.mrf.mxu0
      %v3795 = vadd.f32 %v3146, %v3794
      %3796 = vmatmul.bf16.gmra.mxu0 %v2554
      %v3797 = vpop.f32.mrf.mxu0
      %v3798 = vadd.f32 %v3149, %v3797
      %v3799 = vpop.f32.mrf.mxu0
      %v3800 = vadd.f32 %v3151, %v3799
      %3801 = vmatmul.bf16.gmra.mxu0 %v2557
      %v3802 = vpop.f32.mrf.mxu0
      %v3803 = vadd.f32 %v3154, %v3802
      %v3804 = vpop.f32.mrf.mxu0
      %v3805 = vadd.f32 %v3156, %v3804
      %3806 = vmatmul.bf16.gmra.mxu0 %v2560
      %v3807 = vpop.f32.mrf.mxu0
      %v3808 = vadd.f32 %v3159, %v3807
      %v3809 = vpop.f32.mrf.mxu0
      %v3810 = vadd.f32 %v3161, %v3809
      %3811 = vmatmul.bf16.gmra.mxu0 %v2563
      %v3812 = vpop.f32.mrf.mxu0
      %v3813 = vadd.f32 %v3164, %v3812
      %v3814 = vpop.f32.mrf.mxu0
      %v3815 = vadd.f32 %v3166, %v3814
      %3816 = vmatmul.bf16.gmra.mxu0 %v2566
      %v3817 = vpop.f32.mrf.mxu0
      %v3818 = vadd.f32 %v3169, %v3817
      %v3819 = vpop.f32.mrf.mxu0
      %v3820 = vadd.f32 %v3171, %v3819
      %3821 = vmatmul.bf16.gmra.mxu0 %v2569
      %v3822 = vpop.f32.mrf.mxu0
      %v3823 = vadd.f32 %v3174, %v3822
      %v3824 = vpop.f32.mrf.mxu0
      %v3825 = vadd.f32 %v3176, %v3824
      %3826 = vmatmul.bf16.gmra.mxu0 %v2572
      %v3827 = vpop.f32.mrf.mxu0
      %v3828 = vadd.f32 %v3179, %v3827
      %v3829 = vpop.f32.mrf.mxu0
      %v3830 = vadd.f32 %v3181, %v3829
      %3831 = vmatmul.bf16.gmra.mxu0 %v2575
      %v3832 = vpop.f32.mrf.mxu0
      %v3833 = vadd.f32 %v3184, %v3832
      %v3834 = vpop.f32.mrf.mxu0
      %v3835 = vadd.f32 %v3186, %v3834
      %3836 = vmatmul.bf16.gmra.mxu0 %v2578
      %v3837 = vpop.f32.mrf.mxu0
      %v3838 = vadd.f32 %v3189, %v3837
      %v3839 = vpop.f32.mrf.mxu0
      %v3840 = vadd.f32 %v3191, %v3839
      %3841 = vmatmul.bf16.gmra.mxu0 %v2581
      %v3842 = vpop.f32.mrf.mxu0
      %v3843 = vadd.f32 %v3194, %v3842
      %v3844 = vpop.f32.mrf.mxu0
      %v3845 = vadd.f32 %v3196, %v3844
      %3846 = vmatmul.bf16.gmra.mxu0 %v2584
      %v3847 = vpop.f32.mrf.mxu0
      %v3848 = vadd.f32 %v3199, %v3847
      %v3849 = vpop.f32.mrf.mxu0
      %v3850 = vadd.f32 %v3201, %v3849
      %3851 = vmatmul.bf16.gmra.mxu0 %v2587
      %v3852 = vpop.f32.mrf.mxu0
      %v3853 = vadd.f32 %v3204, %v3852
      %v3854 = vpop.f32.mrf.mxu0
      %v3855 = vadd.f32 %v3206, %v3854
      %3856 = vmatmul.bf16.gmra.mxu0 %v2590
      %v3857 = vpop.f32.mrf.mxu0
      %v3858 = vadd.f32 %v3209, %v3857
      %v3859 = vpop.f32.mrf.mxu0
      %v3860 = vadd.f32 %v3211, %v3859
      %3861 = vmatmul.bf16.gmra.mxu0 %v2593
      %v3862 = vpop.f32.mrf.mxu0
      %v3863 = vadd.f32 %v3214, %v3862
      %v3864 = vpop.f32.mrf.mxu0
      %v3865 = vadd.f32 %v3216, %v3864
      %3866 = vmatmul.bf16.gmra.mxu0 %v2596
      %v3867 = vpop.f32.mrf.mxu0
      %v3868 = vadd.f32 %v3219, %v3867
      %v3869 = vpop.f32.mrf.mxu0
      %v3870 = vadd.f32 %v3221, %v3869
      %3871 = vmatmul.bf16.gmra.mxu0 %v2599
      %v3872 = vpop.f32.mrf.mxu0
      %v3873 = vadd.f32 %v3224, %v3872
      %v3874 = vpop.f32.mrf.mxu0
      %v3875 = vadd.f32 %v3226, %v3874
      %3876 = vmatmul.bf16.gmra.mxu0 %v2602
      %v3877 = vpop.f32.mrf.mxu0
      %v3878 = vadd.f32 %v3229, %v3877
      %v3879 = vpop.f32.mrf.mxu0
      %v3880 = vadd.f32 %v3231, %v3879
      %3881 = vmatmul.bf16.gmra.mxu0 %v2605
      %v3882 = vpop.f32.mrf.mxu0
      %v3883 = vadd.f32 %v3234, %v3882
      %v3884 = vpop.f32.mrf.mxu0
      %v3885 = vadd.f32 %v3236, %v3884
      %3886 = vmatmul.bf16.gmra.mxu0 %v2608
      %v3887 = vpop.f32.mrf.mxu0
      %v3888 = vadd.f32 %v3239, %v3887
      %v3889 = vpop.f32.mrf.mxu0
      %v3890 = vadd.f32 %v3241, %v3889
      %3891 = vmatmul.bf16.gmra.mxu0 %v2611
      %v3892 = vpop.f32.mrf.mxu0
      %v3893 = vadd.f32 %v3244, %v3892
      %v3894 = vpop.f32.mrf.mxu0
      %v3895 = vadd.f32 %v3246, %v3894
      %3896 = vmatmul.bf16.gmra.mxu0 %v2614
      %v3897 = vpop.f32.mrf.mxu0
      %v3898 = vadd.f32 %v3249, %v3897
      %v3899 = vpop.f32.mrf.mxu0
      %v3900 = vadd.f32 %v3251, %v3899
      %3901 = vmatmul.bf16.gmra.mxu0 %v2617
      %v3902 = vpop.f32.mrf.mxu0
      %v3903 = vadd.f32 %v3254, %v3902
      %v3904 = vpop.f32.mrf.mxu0
      %v3905 = vadd.f32 %v3256, %v3904
      %3906 = vmatmul.bf16.gmra.mxu0 %v2620
      %v3907 = vpop.f32.mrf.mxu0
      %v3908 = vadd.f32 %v3259, %v3907
      %v3909 = vpop.f32.mrf.mxu0
      %v3910 = vadd.f32 %v3261, %v3909
      %3911 = vmatmul.bf16.gmra.mxu0 %v2623
      %v3912 = vpop.f32.mrf.mxu0
      %v3913 = vadd.f32 %v3264, %v3912
      %v3914 = vpop.f32.mrf.mxu0
      %v3915 = vadd.f32 %v3266, %v3914
      %3916 = vmatmul.bf16.gmra.mxu0 %v2626
      %v3917 = vpop.f32.mrf.mxu0
      %v3918 = vadd.f32 %v3269, %v3917
      %v3919 = vpop.f32.mrf.mxu0
      %v3920 = vadd.f32 %v3271, %v3919
      %3921 = vmatmul.bf16.gmra.mxu0 %v2629
      %v3922 = vpop.f32.mrf.mxu0
      %v3923 = vadd.f32 %v3274, %v3922
      %v3924 = vpop.f32.mrf.mxu0
      %v3925 = vadd.f32 %v3276, %v3924
      %3926 = vmatmul.bf16.gmra.mxu0 %v2632
      %v3927 = vpop.f32.mrf.mxu0
      %v3928 = vadd.f32 %v3279, %v3927
      %v3929 = vpop.f32.mrf.mxu0
      %v3930 = vadd.f32 %v3281, %v3929
      %3931 = vdwg.mxu0
      %v3932 = vadd.f32 %v745, %v3293
      %v3933 = vadd.f32 %v746, %v3295
      %v3934 = vadd.f32 %v747, %v3298
      %v3935 = vadd.f32 %v748, %v3300
      %v3936 = vadd.f32 %v749, %v3303
      %v3937 = vadd.f32 %v750, %v3305
      %v3938 = vadd.f32 %v751, %v3308
      %v3939 = vadd.f32 %v752, %v3310
      %v3940 = vadd.f32 %v753, %v3313
      %v3941 = vadd.f32 %v754, %v3315
      %v3942 = vadd.f32 %v755, %v3318
      %v3943 = vadd.f32 %v756, %v3320
      %v3944 = vadd.f32 %v757, %v3323
      %v3945 = vadd.f32 %v758, %v3325
      %v3946 = vadd.f32 %v759, %v3328
      %v3947 = vadd.f32 %v760, %v3330
      %v3948 = vadd.f32 %v761, %v3333
      %v3949 = vadd.f32 %v762, %v3335
      %v3950 = vadd.f32 %v763, %v3338
      %v3951 = vadd.f32 %v764, %v3340
      %v3952 = vadd.f32 %v765, %v3343
      %v3953 = vadd.f32 %v766, %v3345
      %v3954 = vadd.f32 %v767, %v3348
      %v3955 = vadd.f32 %v768, %v3350
      %v3956 = vadd.f32 %v769, %v3353
      %v3957 = vadd.f32 %v770, %v3355
      %v3958 = vadd.f32 %v771, %v3358
      %v3959 = vadd.f32 %v772, %v3360
      %v3960 = vadd.f32 %v773, %v3363
      %v3961 = vadd.f32 %v774, %v3365
      %v3962 = vadd.f32 %v775, %v3368
      %v3963 = vadd.f32 %v776, %v3370
      %v3964 = vadd.f32 %v777, %v3373
      %v3965 = vadd.f32 %v778, %v3375
      %v3966 = vadd.f32 %v779, %v3378
      %v3967 = vadd.f32 %v780, %v3380
      %v3968 = vadd.f32 %v781, %v3383
      %v3969 = vadd.f32 %v782, %v3385
      %v3970 = vadd.f32 %v783, %v3388
      %v3971 = vadd.f32 %v784, %v3390
      %v3972 = vadd.f32 %v785, %v3393
      %v3973 = vadd.f32 %v786, %v3395
      %v3974 = vadd.f32 %v787, %v3398
      %v3975 = vadd.f32 %v788, %v3400
      %v3976 = vadd.f32 %v789, %v3403
      %v3977 = vadd.f32 %v790, %v3405
      %v3978 = vadd.f32 %v791, %v3408
      %v3979 = vadd.f32 %v792, %v3410
      %v3980 = vadd.f32 %v793, %v3413
      %v3981 = vadd.f32 %v794, %v3415
      %v3982 = vadd.f32 %v795, %v3418
      %v3983 = vadd.f32 %v796, %v3420
      %v3984 = vadd.f32 %v797, %v3423
      %v3985 = vadd.f32 %v798, %v3425
      %v3986 = vadd.f32 %v799, %v3428
      %v3987 = vadd.f32 %v800, %v3430
      %v3988 = vadd.f32 %v801, %v3433
      %v3989 = vadd.f32 %v802, %v3435
      %v3990 = vadd.f32 %v803, %v3438
      %v3991 = vadd.f32 %v804, %v3440
      %v3992 = vadd.f32 %v805, %v3443
      %v3993 = vadd.f32 %v806, %v3445
      %v3994 = vadd.f32 %v807, %v3448
      %v3995 = vadd.f32 %v808, %v3450
      %v3996 = vadd.f32 %v809, %v3453
      %v3997 = vadd.f32 %v810, %v3455
      %v3998 = vadd.f32 %v811, %v3458
      %v3999 = vadd.f32 %v812, %v3460
      %v4000 = vadd.f32 %v813, %v3463
      %v4001 = vadd.f32 %v814, %v3465
      %v4002 = vadd.f32 %v815, %v3468
      %v4003 = vadd.f32 %v816, %v3470
      %v4004 = vadd.f32 %v817, %v3473
      %v4005 = vadd.f32 %v818, %v3475
      %v4006 = vadd.f32 %v819, %v3478
      %v4007 = vadd.f32 %v820, %v3480
      %v4008 = vadd.f32 %v821, %v3483
      %v4009 = vadd.f32 %v822, %v3485
      %v4010 = vadd.f32 %v823, %v3488
      %v4011 = vadd.f32 %v824, %v3490
      %v4012 = vadd.f32 %v825, %v3493
      %v4013 = vadd.f32 %v826, %v3495
      %v4014 = vadd.f32 %v827, %v3498
      %v4015 = vadd.f32 %v828, %v3500
      %v4016 = vadd.f32 %v829, %v3503
      %v4017 = vadd.f32 %v830, %v3505
      %v4018 = vadd.f32 %v831, %v3508
      %v4019 = vadd.f32 %v832, %v3510
      %v4020 = vadd.f32 %v833, %v3513
      %v4021 = vadd.f32 %v834, %v3515
      %v4022 = vadd.f32 %v835, %v3518
      %v4023 = vadd.f32 %v836, %v3520
      %v4024 = vadd.f32 %v837, %v3523
      %v4025 = vadd.f32 %v838, %v3525
      %v4026 = vadd.f32 %v839, %v3528
      %v4027 = vadd.f32 %v840, %v3530
      %v4028 = vadd.f32 %v841, %v3533
      %v4029 = vadd.f32 %v842, %v3535
      %v4030 = vadd.f32 %v843, %v3538
      %v4031 = vadd.f32 %v844, %v3540
      %v4032 = vadd.f32 %v845, %v3543
      %v4033 = vadd.f32 %v846, %v3545
      %v4034 = vadd.f32 %v847, %v3548
      %v4035 = vadd.f32 %v848, %v3550
      %v4036 = vadd.f32 %v849, %v3553
      %v4037 = vadd.f32 %v850, %v3555
      %v4038 = vadd.f32 %v851, %v3558
      %v4039 = vadd.f32 %v852, %v3560
      %v4040 = vadd.f32 %v853, %v3563
      %v4041 = vadd.f32 %v854, %v3565
      %v4042 = vadd.f32 %v855, %v3568
      %v4043 = vadd.f32 %v856, %v3570
      %v4044 = vadd.f32 %v857, %v3573
      %v4045 = vadd.f32 %v858, %v3575
      %v4046 = vadd.f32 %v859, %v3578
      %v4047 = vadd.f32 %v860, %v3580
      %v4048 = vadd.f32 %v861, %v3583
      %v4049 = vadd.f32 %v862, %v3585
      %v4050 = vadd.f32 %v863, %v3588
      %v4051 = vadd.f32 %v864, %v3590
      %v4052 = vadd.f32 %v865, %v3593
      %v4053 = vadd.f32 %v866, %v3595
      %v4054 = vadd.f32 %v867, %v3598
      %v4055 = vadd.f32 %v868, %v3600
      %v4056 = vadd.f32 %v869, %v3603
      %v4057 = vadd.f32 %v870, %v3605
      %v4058 = vadd.f32 %v871, %v3608
      %v4059 = vadd.f32 %v872, %v3610
      %v4060 = vadd.f32 %v873, %v3613
      %v4061 = vadd.f32 %v874, %v3615
      %v4062 = vadd.f32 %v875, %v3618
      %v4063 = vadd.f32 %v876, %v3620
      %v4064 = vadd.f32 %v877, %v3623
      %v4065 = vadd.f32 %v878, %v3625
      %v4066 = vadd.f32 %v879, %v3628
      %v4067 = vadd.f32 %v880, %v3630
      %v4068 = vadd.f32 %v881, %v3633
      %v4069 = vadd.f32 %v882, %v3635
      %v4070 = vadd.f32 %v883, %v3638
      %v4071 = vadd.f32 %v884, %v3640
      %v4072 = vadd.f32 %v885, %v3643
      %v4073 = vadd.f32 %v886, %v3645
      %v4074 = vadd.f32 %v887, %v3648
      %v4075 = vadd.f32 %v888, %v3650
      %v4076 = vadd.f32 %v889, %v3653
      %v4077 = vadd.f32 %v890, %v3655
      %v4078 = vadd.f32 %v891, %v3658
      %v4079 = vadd.f32 %v892, %v3660
      %v4080 = vadd.f32 %v893, %v3663
      %v4081 = vadd.f32 %v894, %v3665
      %v4082 = vadd.f32 %v895, %v3668
      %v4083 = vadd.f32 %v896, %v3670
      %v4084 = vadd.f32 %v897, %v3673
      %v4085 = vadd.f32 %v898, %v3675
      %v4086 = vadd.f32 %v899, %v3678
      %v4087 = vadd.f32 %v900, %v3680
      %v4088 = vadd.f32 %v901, %v3683
      %v4089 = vadd.f32 %v902, %v3685
      %v4090 = vadd.f32 %v903, %v3688
      %v4091 = vadd.f32 %v904, %v3690
      %v4092 = vadd.f32 %v905, %v3693
      %v4093 = vadd.f32 %v906, %v3695
      %v4094 = vadd.f32 %v907, %v3698
      %v4095 = vadd.f32 %v908, %v3700
      %v4096 = vadd.f32 %v909, %v3703
      %v4097 = vadd.f32 %v910, %v3705
      %v4098 = vadd.f32 %v911, %v3708
      %v4099 = vadd.f32 %v912, %v3710
      %v4100 = vadd.f32 %v913, %v3713
      %v4101 = vadd.f32 %v914, %v3715
      %v4102 = vadd.f32 %v915, %v3718
      %v4103 = vadd.f32 %v916, %v3720
      %v4104 = vadd.f32 %v917, %v3723
      %v4105 = vadd.f32 %v918, %v3725
      %v4106 = vadd.f32 %v919, %v3728
      %v4107 = vadd.f32 %v920, %v3730
      %v4108 = vadd.f32 %v921, %v3733
      %v4109 = vadd.f32 %v922, %v3735
      %v4110 = vadd.f32 %v923, %v3738
      %v4111 = vadd.f32 %v924, %v3740
      %v4112 = vadd.f32 %v925, %v3743
      %v4113 = vadd.f32 %v926, %v3745
      %v4114 = vadd.f32 %v927, %v3748
      %v4115 = vadd.f32 %v928, %v3750
      %v4116 = vadd.f32 %v929, %v3753
      %v4117 = vadd.f32 %v930, %v3755
      %v4118 = vadd.f32 %v931, %v3758
      %v4119 = vadd.f32 %v932, %v3760
      %v4120 = vadd.f32 %v933, %v3763
      %v4121 = vadd.f32 %v934, %v3765
      %v4122 = vadd.f32 %v935, %v3768
      %v4123 = vadd.f32 %v936, %v3770
      %v4124 = vadd.f32 %v937, %v3773
      %v4125 = vadd.f32 %v938, %v3775
      %v4126 = vadd.f32 %v939, %v3778
      %v4127 = vadd.f32 %v940, %v3780
      %v4128 = vadd.f32 %v941, %v3783
      %v4129 = vadd.f32 %v942, %v3785
      %v4130 = vadd.f32 %v943, %v3788
      %v4131 = vadd.f32 %v944, %v3790
      %v4132 = vadd.f32 %v945, %v3793
      %v4133 = vadd.f32 %v946, %v3795
      %v4134 = vadd.f32 %v947, %v3798
      %v4135 = vadd.f32 %v948, %v3800
      %v4136 = vadd.f32 %v949, %v3803
      %v4137 = vadd.f32 %v950, %v3805
      %v4138 = vadd.f32 %v951, %v3808
      %v4139 = vadd.f32 %v952, %v3810
      %v4140 = vadd.f32 %v953, %v3813
      %v4141 = vadd.f32 %v954, %v3815
      %v4142 = vadd.f32 %v955, %v3818
      %v4143 = vadd.f32 %v956, %v3820
      %v4144 = vadd.f32 %v957, %v3823
      %v4145 = vadd.f32 %v958, %v3825
      %v4146 = vadd.f32 %v959, %v3828
      %v4147 = vadd.f32 %v960, %v3830
      %v4148 = vadd.f32 %v961, %v3833
      %v4149 = vadd.f32 %v962, %v3835
      %v4150 = vadd.f32 %v963, %v3838
      %v4151 = vadd.f32 %v964, %v3840
      %v4152 = vadd.f32 %v965, %v3843
      %v4153 = vadd.f32 %v966, %v3845
      %v4154 = vadd.f32 %v967, %v3848
      %v4155 = vadd.f32 %v968, %v3850
      %v4156 = vadd.f32 %v969, %v3853
      %v4157 = vadd.f32 %v970, %v3855
      %v4158 = vadd.f32 %v971, %v3858
      %v4159 = vadd.f32 %v972, %v3860
      %v4160 = vadd.f32 %v973, %v3863
      %v4161 = vadd.f32 %v974, %v3865
      %v4162 = vadd.f32 %v975, %v3868
      %v4163 = vadd.f32 %v976, %v3870
      %v4164 = vadd.f32 %v977, %v3873
      %v4165 = vadd.f32 %v978, %v3875
      %v4166 = vadd.f32 %v979, %v3878
      %v4167 = vadd.f32 %v980, %v3880
      %v4168 = vadd.f32 %v981, %v3883
      %v4169 = vadd.f32 %v982, %v3885
      %v4170 = vadd.f32 %v983, %v3888
      %v4171 = vadd.f32 %v984, %v3890
      %v4172 = vadd.f32 %v985, %v3893
      %v4173 = vadd.f32 %v986, %v3895
      %v4174 = vadd.f32 %v987, %v3898
      %v4175 = vadd.f32 %v988, %v3900
      %v4176 = vadd.f32 %v989, %v3903
      %v4177 = vadd.f32 %v990, %v3905
      %v4178 = vadd.f32 %v991, %v3908
      %v4179 = vadd.f32 %v992, %v3910
      %v4180 = vadd.f32 %v993, %v3913
      %v4181 = vadd.f32 %v994, %v3915
      %v4182 = vadd.f32 %v995, %v3918
      %v4183 = vadd.f32 %v996, %v3920
      %v4184 = vadd.f32 %v997, %v3923
      %v4185 = vadd.f32 %v998, %v3925
      %v4186 = vadd.f32 %v999, %v3928
      %v4187 = vadd.f32 %v1000, %v3930
      %4188 = vst.msk [vmem:[#allocation2] sm:$0xff] %vm232, %v3932
      %4189 = vst.msk [vmem:[#allocation2 + $0x8] sm:$0xff] %vm232, %v3933
      %4190 = vst.msk [vmem:[#allocation2 + $0x10] sm:$0xff] %vm232, %v3934
      %4191 = vst.msk [vmem:[#allocation2 + $0x18] sm:$0xff] %vm232, %v3935
      %4192 = vst.msk [vmem:[#allocation2 + $0x20] sm:$0xff] %vm232, %v3936
      %4193 = vst.msk [vmem:[#allocation2 + $0x28] sm:$0xff] %vm232, %v3937
      %4194 = vst.msk [vmem:[#allocation2 + $0x30] sm:$0xff] %vm232, %v3938
      %4195 = vst.msk [vmem:[#allocation2 + $0x38] sm:$0xff] %vm232, %v3939
      %4196 = vst.msk [vmem:[#allocation2 + $0x40] sm:$0xff] %vm232, %v3940
      %4197 = vst.msk [vmem:[#allocation2 + $0x48] sm:$0xff] %vm232, %v3941
      %4198 = vst.msk [vmem:[#allocation2 + $0x50] sm:$0xff] %vm232, %v3942
      %4199 = vst.msk [vmem:[#allocation2 + $0x58] sm:$0xff] %vm232, %v3943
      %4200 = vst.msk [vmem:[#allocation2 + $0x60] sm:$0xff] %vm232, %v3944
      %4201 = vst.msk [vmem:[#allocation2 + $0x68] sm:$0xff] %vm232, %v3945
      %4202 = vst.msk [vmem:[#allocation2 + $0x70] sm:$0xff] %vm232, %v3946
      %4203 = vst.msk [vmem:[#allocation2 + $0x78] sm:$0xff] %vm232, %v3947
      %4204 = vst.msk [vmem:[#allocation2 + $0x80] sm:$0xff] %vm232, %v3948
      %4205 = vst.msk [vmem:[#allocation2 + $0x88] sm:$0xff] %vm232, %v3949
      %4206 = vst.msk [vmem:[#allocation2 + $0x90] sm:$0xff] %vm232, %v3950
      %4207 = vst.msk [vmem:[#allocation2 + $0x98] sm:$0xff] %vm232, %v3951
      %4208 = vst.msk [vmem:[#allocation2 + $0xa0] sm:$0xff] %vm232, %v3952
      %4209 = vst.msk [vmem:[#allocation2 + $0xa8] sm:$0xff] %vm232, %v3953
      %4210 = vst.msk [vmem:[#allocation2 + $0xb0] sm:$0xff] %vm232, %v3954
      %4211 = vst.msk [vmem:[#allocation2 + $0xb8] sm:$0xff] %vm232, %v3955
      %4212 = vst.msk [vmem:[#allocation2 + $0xc0] sm:$0xff] %vm232, %v3956
      %4213 = vst.msk [vmem:[#allocation2 + $0xc8] sm:$0xff] %vm232, %v3957
      %4214 = vst.msk [vmem:[#allocation2 + $0xd0] sm:$0xff] %vm232, %v3958
      %4215 = vst.msk [vmem:[#allocation2 + $0xd8] sm:$0xff] %vm232, %v3959
      %4216 = vst.msk [vmem:[#allocation2 + $0xe0] sm:$0xff] %vm232, %v3960
      %4217 = vst.msk [vmem:[#allocation2 + $0xe8] sm:$0xff] %vm232, %v3961
      %4218 = vst.msk [vmem:[#allocation2 + $0xf0] sm:$0xff] %vm232, %v3962
      %4219 = vst.msk [vmem:[#allocation2 + $0xf8] sm:$0xff] %vm232, %v3963
      %4220 = vst.msk [vmem:[#allocation2 + $0x100] sm:$0xff] %vm232, %v3964
      %4221 = vst.msk [vmem:[#allocation2 + $0x108] sm:$0xff] %vm232, %v3965
      %4222 = vst.msk [vmem:[#allocation2 + $0x110] sm:$0xff] %vm232, %v3966
      %4223 = vst.msk [vmem:[#allocation2 + $0x118] sm:$0xff] %vm232, %v3967
      %4224 = vst.msk [vmem:[#allocation2 + $0x120] sm:$0xff] %vm232, %v3968
      %4225 = vst.msk [vmem:[#allocation2 + $0x128] sm:$0xff] %vm232, %v3969
      %4226 = vst.msk [vmem:[#allocation2 + $0x130] sm:$0xff] %vm232, %v3970
      %4227 = vst.msk [vmem:[#allocation2 + $0x138] sm:$0xff] %vm232, %v3971
      %4228 = vst.msk [vmem:[#allocation2 + $0x140] sm:$0xff] %vm232, %v3972
      %4229 = vst.msk [vmem:[#allocation2 + $0x148] sm:$0xff] %vm232, %v3973
      %4230 = vst.msk [vmem:[#allocation2 + $0x150] sm:$0xff] %vm232, %v3974
      %4231 = vst.msk [vmem:[#allocation2 + $0x158] sm:$0xff] %vm232, %v3975
      %4232 = vst.msk [vmem:[#allocation2 + $0x160] sm:$0xff] %vm232, %v3976
      %4233 = vst.msk [vmem:[#allocation2 + $0x168] sm:$0xff] %vm232, %v3977
      %4234 = vst.msk [vmem:[#allocation2 + $0x170] sm:$0xff] %vm232, %v3978
      %4235 = vst.msk [vmem:[#allocation2 + $0x178] sm:$0xff] %vm232, %v3979
      %4236 = vst.msk [vmem:[#allocation2 + $0x180] sm:$0xff] %vm232, %v3980
      %4237 = vst.msk [vmem:[#allocation2 + $0x188] sm:$0xff] %vm232, %v3981
      %4238 = vst.msk [vmem:[#allocation2 + $0x190] sm:$0xff] %vm232, %v3982
      %4239 = vst.msk [vmem:[#allocation2 + $0x198] sm:$0xff] %vm232, %v3983
      %4240 = vst.msk [vmem:[#allocation2 + $0x1a0] sm:$0xff] %vm232, %v3984
      %4241 = vst.msk [vmem:[#allocation2 + $0x1a8] sm:$0xff] %vm232, %v3985
      %4242 = vst.msk [vmem:[#allocation2 + $0x1b0] sm:$0xff] %vm232, %v3986
      %4243 = vst.msk [vmem:[#allocation2 + $0x1b8] sm:$0xff] %vm232, %v3987
      %4244 = vst.msk [vmem:[#allocation2 + $0x1c0] sm:$0xff] %vm232, %v3988
      %4245 = vst.msk [vmem:[#allocation2 + $0x1c8] sm:$0xff] %vm232, %v3989
      %4246 = vst.msk [vmem:[#allocation2 + $0x1d0] sm:$0xff] %vm232, %v3990
      %4247 = vst.msk [vmem:[#allocation2 + $0x1d8] sm:$0xff] %vm232, %v3991
      %4248 = vst.msk [vmem:[#allocation2 + $0x1e0] sm:$0xff] %vm232, %v3992
      %4249 = vst.msk [vmem:[#allocation2 + $0x1e8] sm:$0xff] %vm232, %v3993
      %4250 = vst.msk [vmem:[#allocation2 + $0x1f0] sm:$0xff] %vm232, %v3994
      %4251 = vst.msk [vmem:[#allocation2 + $0x1f8] sm:$0xff] %vm232, %v3995
      %4252 = vst.msk [vmem:[#allocation2 + $0x200] sm:$0xff] %vm232, %v3996
      %4253 = vst.msk [vmem:[#allocation2 + $0x208] sm:$0xff] %vm232, %v3997
      %4254 = vst.msk [vmem:[#allocation2 + $0x210] sm:$0xff] %vm232, %v3998
      %4255 = vst.msk [vmem:[#allocation2 + $0x218] sm:$0xff] %vm232, %v3999
      %4256 = vst.msk [vmem:[#allocation2 + $0x220] sm:$0xff] %vm232, %v4000
      %4257 = vst.msk [vmem:[#allocation2 + $0x228] sm:$0xff] %vm232, %v4001
      %4258 = vst.msk [vmem:[#allocation2 + $0x230] sm:$0xff] %vm232, %v4002
      %4259 = vst.msk [vmem:[#allocation2 + $0x238] sm:$0xff] %vm232, %v4003
      %4260 = vst.msk [vmem:[#allocation2 + $0x240] sm:$0xff] %vm232, %v4004
      %4261 = vst.msk [vmem:[#allocation2 + $0x248] sm:$0xff] %vm232, %v4005
      %4262 = vst.msk [vmem:[#allocation2 + $0x250] sm:$0xff] %vm232, %v4006
      %4263 = vst.msk [vmem:[#allocation2 + $0x258] sm:$0xff] %vm232, %v4007
      %4264 = vst.msk [vmem:[#allocation2 + $0x260] sm:$0xff] %vm232, %v4008
      %4265 = vst.msk [vmem:[#allocation2 + $0x268] sm:$0xff] %vm232, %v4009
      %4266 = vst.msk [vmem:[#allocation2 + $0x270] sm:$0xff] %vm232, %v4010
      %4267 = vst.msk [vmem:[#allocation2 + $0x278] sm:$0xff] %vm232, %v4011
      %4268 = vst.msk [vmem:[#allocation2 + $0x280] sm:$0xff] %vm232, %v4012
      %4269 = vst.msk [vmem:[#allocation2 + $0x288] sm:$0xff] %vm232, %v4013
      %4270 = vst.msk [vmem:[#allocation2 + $0x290] sm:$0xff] %vm232, %v4014
      %4271 = vst.msk [vmem:[#allocation2 + $0x298] sm:$0xff] %vm232, %v4015
      %4272 = vst.msk [vmem:[#allocation2 + $0x2a0] sm:$0xff] %vm232, %v4016
      %4273 = vst.msk [vmem:[#allocation2 + $0x2a8] sm:$0xff] %vm232, %v4017
      %4274 = vst.msk [vmem:[#allocation2 + $0x2b0] sm:$0xff] %vm232, %v4018
      %4275 = vst.msk [vmem:[#allocation2 + $0x2b8] sm:$0xff] %vm232, %v4019
      %4276 = vst.msk [vmem:[#allocation2 + $0x2c0] sm:$0xff] %vm232, %v4020
      %4277 = vst.msk [vmem:[#allocation2 + $0x2c8] sm:$0xff] %vm232, %v4021
      %4278 = vst.msk [vmem:[#allocation2 + $0x2d0] sm:$0xff] %vm232, %v4022
      %4279 = vst.msk [vmem:[#allocation2 + $0x2d8] sm:$0xff] %vm232, %v4023
      %4280 = vst.msk [vmem:[#allocation2 + $0x2e0] sm:$0xff] %vm232, %v4024
      %4281 = vst.msk [vmem:[#allocation2 + $0x2e8] sm:$0xff] %vm232, %v4025
      %4282 = vst.msk [vmem:[#allocation2 + $0x2f0] sm:$0xff] %vm232, %v4026
      %4283 = vst.msk [vmem:[#allocation2 + $0x2f8] sm:$0xff] %vm232, %v4027
      %4284 = vst.msk [vmem:[#allocation2 + $0x300] sm:$0xff] %vm232, %v4028
      %4285 = vst.msk [vmem:[#allocation2 + $0x308] sm:$0xff] %vm232, %v4029
      %4286 = vst.msk [vmem:[#allocation2 + $0x310] sm:$0xff] %vm232, %v4030
      %4287 = vst.msk [vmem:[#allocation2 + $0x318] sm:$0xff] %vm232, %v4031
      %4288 = vst.msk [vmem:[#allocation2 + $0x320] sm:$0xff] %vm232, %v4032
      %4289 = vst.msk [vmem:[#allocation2 + $0x328] sm:$0xff] %vm232, %v4033
      %4290 = vst.msk [vmem:[#allocation2 + $0x330] sm:$0xff] %vm232, %v4034
      %4291 = vst.msk [vmem:[#allocation2 + $0x338] sm:$0xff] %vm232, %v4035
      %4292 = vst.msk [vmem:[#allocation2 + $0x340] sm:$0xff] %vm232, %v4036
      %4293 = vst.msk [vmem:[#allocation2 + $0x348] sm:$0xff] %vm232, %v4037
      %4294 = vst.msk [vmem:[#allocation2 + $0x350] sm:$0xff] %vm232, %v4038
      %4295 = vst.msk [vmem:[#allocation2 + $0x358] sm:$0xff] %vm232, %v4039
      %4296 = vst.msk [vmem:[#allocation2 + $0x360] sm:$0xff] %vm232, %v4040
      %4297 = vst.msk [vmem:[#allocation2 + $0x368] sm:$0xff] %vm232, %v4041
      %4298 = vst.msk [vmem:[#allocation2 + $0x370] sm:$0xff] %vm232, %v4042
      %4299 = vst.msk [vmem:[#allocation2 + $0x378] sm:$0xff] %vm232, %v4043
      %4300 = vst.msk [vmem:[#allocation2 + $0x380] sm:$0xff] %vm232, %v4044
      %4301 = vst.msk [vmem:[#allocation2 + $0x388] sm:$0xff] %vm232, %v4045
      %4302 = vst.msk [vmem:[#allocation2 + $0x390] sm:$0xff] %vm232, %v4046
      %4303 = vst.msk [vmem:[#allocation2 + $0x398] sm:$0xff] %vm232, %v4047
      %4304 = vst.msk [vmem:[#allocation2 + $0x3a0] sm:$0xff] %vm232, %v4048
      %4305 = vst.msk [vmem:[#allocation2 + $0x3a8] sm:$0xff] %vm232, %v4049
      %4306 = vst.msk [vmem:[#allocation2 + $0x3b0] sm:$0xff] %vm232, %v4050
      %4307 = vst.msk [vmem:[#allocation2 + $0x3b8] sm:$0xff] %vm232, %v4051
      %4308 = vst.msk [vmem:[#allocation2 + $0x3c0] sm:$0xff] %vm232, %v4052
      %4309 = vst.msk [vmem:[#allocation2 + $0x3c8] sm:$0xff] %vm232, %v4053
      %4310 = vst.msk [vmem:[#allocation2 + $0x3d0] sm:$0xff] %vm232, %v4054
      %4311 = vst.msk [vmem:[#allocation2 + $0x3d8] sm:$0xff] %vm232, %v4055
      %4312 = vst.msk [vmem:[#allocation2 + $0x3e0] sm:$0xff] %vm232, %v4056
      %4313 = vst.msk [vmem:[#allocation2 + $0x3e8] sm:$0xff] %vm232, %v4057
      %4314 = vst.msk [vmem:[#allocation2 + $0x3f0] sm:$0xff] %vm232, %v4058
      %4315 = vst.msk [vmem:[#allocation2 + $0x3f8] sm:$0xff] %vm232, %v4059
      %4316 = vst.msk [vmem:[#allocation2 + $0x400] sm:$0xff] %vm232, %v4060
      %4317 = vst.msk [vmem:[#allocation2 + $0x408] sm:$0xff] %vm232, %v4061
      %4318 = vst.msk [vmem:[#allocation2 + $0x410] sm:$0xff] %vm232, %v4062
      %4319 = vst.msk [vmem:[#allocation2 + $0x418] sm:$0xff] %vm232, %v4063
      %4320 = vst.msk [vmem:[#allocation2 + $0x420] sm:$0xff] %vm232, %v4064
      %4321 = vst.msk [vmem:[#allocation2 + $0x428] sm:$0xff] %vm232, %v4065
      %4322 = vst.msk [vmem:[#allocation2 + $0x430] sm:$0xff] %vm232, %v4066
      %4323 = vst.msk [vmem:[#allocation2 + $0x438] sm:$0xff] %vm232, %v4067
      %4324 = vst.msk [vmem:[#allocation2 + $0x440] sm:$0xff] %vm232, %v4068
      %4325 = vst.msk [vmem:[#allocation2 + $0x448] sm:$0xff] %vm232, %v4069
      %4326 = vst.msk [vmem:[#allocation2 + $0x450] sm:$0xff] %vm232, %v4070
      %4327 = vst.msk [vmem:[#allocation2 + $0x458] sm:$0xff] %vm232, %v4071
      %4328 = vst.msk [vmem:[#allocation2 + $0x460] sm:$0xff] %vm232, %v4072
      %4329 = vst.msk [vmem:[#allocation2 + $0x468] sm:$0xff] %vm232, %v4073
      %4330 = vst.msk [vmem:[#allocation2 + $0x470] sm:$0xff] %vm232, %v4074
      %4331 = vst.msk [vmem:[#allocation2 + $0x478] sm:$0xff] %vm232, %v4075
      %4332 = vst.msk [vmem:[#allocation2 + $0x480] sm:$0xff] %vm232, %v4076
      %4333 = vst.msk [vmem:[#allocation2 + $0x488] sm:$0xff] %vm232, %v4077
      %4334 = vst.msk [vmem:[#allocation2 + $0x490] sm:$0xff] %vm232, %v4078
      %4335 = vst.msk [vmem:[#allocation2 + $0x498] sm:$0xff] %vm232, %v4079
      %4336 = vst.msk [vmem:[#allocation2 + $0x4a0] sm:$0xff] %vm232, %v4080
      %4337 = vst.msk [vmem:[#allocation2 + $0x4a8] sm:$0xff] %vm232, %v4081
      %4338 = vst.msk [vmem:[#allocation2 + $0x4b0] sm:$0xff] %vm232, %v4082
      %4339 = vst.msk [vmem:[#allocation2 + $0x4b8] sm:$0xff] %vm232, %v4083
      %4340 = vst.msk [vmem:[#allocation2 + $0x4c0] sm:$0xff] %vm232, %v4084
      %4341 = vst.msk [vmem:[#allocation2 + $0x4c8] sm:$0xff] %vm232, %v4085
      %4342 = vst.msk [vmem:[#allocation2 + $0x4d0] sm:$0xff] %vm232, %v4086
      %4343 = vst.msk [vmem:[#allocation2 + $0x4d8] sm:$0xff] %vm232, %v4087
      %4344 = vst.msk [vmem:[#allocation2 + $0x4e0] sm:$0xff] %vm232, %v4088
      %4345 = vst.msk [vmem:[#allocation2 + $0x4e8] sm:$0xff] %vm232, %v4089
      %4346 = vst.msk [vmem:[#allocation2 + $0x4f0] sm:$0xff] %vm232, %v4090
      %4347 = vst.msk [vmem:[#allocation2 + $0x4f8] sm:$0xff] %vm232, %v4091
      %4348 = vst.msk [vmem:[#allocation2 + $0x500] sm:$0xff] %vm232, %v4092
      %4349 = vst.msk [vmem:[#allocation2 + $0x508] sm:$0xff] %vm232, %v4093
      %4350 = vst.msk [vmem:[#allocation2 + $0x510] sm:$0xff] %vm232, %v4094
      %4351 = vst.msk [vmem:[#allocation2 + $0x518] sm:$0xff] %vm232, %v4095
      %4352 = vst.msk [vmem:[#allocation2 + $0x520] sm:$0xff] %vm232, %v4096
      %4353 = vst.msk [vmem:[#allocation2 + $0x528] sm:$0xff] %vm232, %v4097
      %4354 = vst.msk [vmem:[#allocation2 + $0x530] sm:$0xff] %vm232, %v4098
      %4355 = vst.msk [vmem:[#allocation2 + $0x538] sm:$0xff] %vm232, %v4099
      %4356 = vst.msk [vmem:[#allocation2 + $0x540] sm:$0xff] %vm232, %v4100
      %4357 = vst.msk [vmem:[#allocation2 + $0x548] sm:$0xff] %vm232, %v4101
      %4358 = vst.msk [vmem:[#allocation2 + $0x550] sm:$0xff] %vm232, %v4102
      %4359 = vst.msk [vmem:[#allocation2 + $0x558] sm:$0xff] %vm232, %v4103
      %4360 = vst.msk [vmem:[#allocation2 + $0x560] sm:$0xff] %vm232, %v4104
      %4361 = vst.msk [vmem:[#allocation2 + $0x568] sm:$0xff] %vm232, %v4105
      %4362 = vst.msk [vmem:[#allocation2 + $0x570] sm:$0xff] %vm232, %v4106
      %4363 = vst.msk [vmem:[#allocation2 + $0x578] sm:$0xff] %vm232, %v4107
      %4364 = vst.msk [vmem:[#allocation2 + $0x580] sm:$0xff] %vm232, %v4108
      %4365 = vst.msk [vmem:[#allocation2 + $0x588] sm:$0xff] %vm232, %v4109
      %4366 = vst.msk [vmem:[#allocation2 + $0x590] sm:$0xff] %vm232, %v4110
      %4367 = vst.msk [vmem:[#allocation2 + $0x598] sm:$0xff] %vm232, %v4111
      %4368 = vst.msk [vmem:[#allocation2 + $0x5a0] sm:$0xff] %vm232, %v4112
      %4369 = vst.msk [vmem:[#allocation2 + $0x5a8] sm:$0xff] %vm232, %v4113
      %4370 = vst.msk [vmem:[#allocation2 + $0x5b0] sm:$0xff] %vm232, %v4114
      %4371 = vst.msk [vmem:[#allocation2 + $0x5b8] sm:$0xff] %vm232, %v4115
      %4372 = vst.msk [vmem:[#allocation2 + $0x5c0] sm:$0xff] %vm232, %v4116
      %4373 = vst.msk [vmem:[#allocation2 + $0x5c8] sm:$0xff] %vm232, %v4117
      %4374 = vst.msk [vmem:[#allocation2 + $0x5d0] sm:$0xff] %vm232, %v4118
      %4375 = vst.msk [vmem:[#allocation2 + $0x5d8] sm:$0xff] %vm232, %v4119
      %4376 = vst.msk [vmem:[#allocation2 + $0x5e0] sm:$0xff] %vm232, %v4120
      %4377 = vst.msk [vmem:[#allocation2 + $0x5e8] sm:$0xff] %vm232, %v4121
      %4378 = vst.msk [vmem:[#allocation2 + $0x5f0] sm:$0xff] %vm232, %v4122
      %4379 = vst.msk [vmem:[#allocation2 + $0x5f8] sm:$0xff] %vm232, %v4123
      %4380 = vst.msk [vmem:[#allocation2 + $0x600] sm:$0xff] %vm232, %v4124
      %4381 = vst.msk [vmem:[#allocation2 + $0x608] sm:$0xff] %vm232, %v4125
      %4382 = vst.msk [vmem:[#allocation2 + $0x610] sm:$0xff] %vm232, %v4126
      %4383 = vst.msk [vmem:[#allocation2 + $0x618] sm:$0xff] %vm232, %v4127
      %4384 = vst.msk [vmem:[#allocation2 + $0x620] sm:$0xff] %vm232, %v4128
      %4385 = vst.msk [vmem:[#allocation2 + $0x628] sm:$0xff] %vm232, %v4129
      %4386 = vst.msk [vmem:[#allocation2 + $0x630] sm:$0xff] %vm232, %v4130
      %4387 = vst.msk [vmem:[#allocation2 + $0x638] sm:$0xff] %vm232, %v4131
      %4388 = vst.msk [vmem:[#allocation2 + $0x640] sm:$0xff] %vm232, %v4132
      %4389 = vst.msk [vmem:[#allocation2 + $0x648] sm:$0xff] %vm232, %v4133
      %4390 = vst.msk [vmem:[#allocation2 + $0x650] sm:$0xff] %vm232, %v4134
      %4391 = vst.msk [vmem:[#allocation2 + $0x658] sm:$0xff] %vm232, %v4135
      %4392 = vst.msk [vmem:[#allocation2 + $0x660] sm:$0xff] %vm232, %v4136
      %4393 = vst.msk [vmem:[#allocation2 + $0x668] sm:$0xff] %vm232, %v4137
      %4394 = vst.msk [vmem:[#allocation2 + $0x670] sm:$0xff] %vm232, %v4138
      %4395 = vst.msk [vmem:[#allocation2 + $0x678] sm:$0xff] %vm232, %v4139
      %4396 = vst.msk [vmem:[#allocation2 + $0x680] sm:$0xff] %vm232, %v4140
      %4397 = vst.msk [vmem:[#allocation2 + $0x688] sm:$0xff] %vm232, %v4141
      %4398 = vst.msk [vmem:[#allocation2 + $0x690] sm:$0xff] %vm232, %v4142
      %4399 = vst.msk [vmem:[#allocation2 + $0x698] sm:$0xff] %vm232, %v4143
      %4400 = vst.msk [vmem:[#allocation2 + $0x6a0] sm:$0xff] %vm232, %v4144
      %4401 = vst.msk [vmem:[#allocation2 + $0x6a8] sm:$0xff] %vm232, %v4145
      %4402 = vst.msk [vmem:[#allocation2 + $0x6b0] sm:$0xff] %vm232, %v4146
      %4403 = vst.msk [vmem:[#allocation2 + $0x6b8] sm:$0xff] %vm232, %v4147
      %4404 = vst.msk [vmem:[#allocation2 + $0x6c0] sm:$0xff] %vm232, %v4148
      %4405 = vst.msk [vmem:[#allocation2 + $0x6c8] sm:$0xff] %vm232, %v4149
      %4406 = vst.msk [vmem:[#allocation2 + $0x6d0] sm:$0xff] %vm232, %v4150
      %4407 = vst.msk [vmem:[#allocation2 + $0x6d8] sm:$0xff] %vm232, %v4151
      %4408 = vst.msk [vmem:[#allocation2 + $0x6e0] sm:$0xff] %vm232, %v4152
      %4409 = vst.msk [vmem:[#allocation2 + $0x6e8] sm:$0xff] %vm232, %v4153
      %4410 = vst.msk [vmem:[#allocation2 + $0x6f0] sm:$0xff] %vm232, %v4154
      %4411 = vst.msk [vmem:[#allocation2 + $0x6f8] sm:$0xff] %vm232, %v4155
      %4412 = vst.msk [vmem:[#allocation2 + $0x700] sm:$0xff] %vm232, %v4156
      %4413 = vst.msk [vmem:[#allocation2 + $0x708] sm:$0xff] %vm232, %v4157
      %4414 = vst.msk [vmem:[#allocation2 + $0x710] sm:$0xff] %vm232, %v4158
      %4415 = vst.msk [vmem:[#allocation2 + $0x718] sm:$0xff] %vm232, %v4159
      %4416 = vst.msk [vmem:[#allocation2 + $0x720] sm:$0xff] %vm232, %v4160
      %4417 = vst.msk [vmem:[#allocation2 + $0x728] sm:$0xff] %vm232, %v4161
      %4418 = vst.msk [vmem:[#allocation2 + $0x730] sm:$0xff] %vm232, %v4162
      %4419 = vst.msk [vmem:[#allocation2 + $0x738] sm:$0xff] %vm232, %v4163
      %4420 = vst.msk [vmem:[#allocation2 + $0x740] sm:$0xff] %vm232, %v4164
      %4421 = vst.msk [vmem:[#allocation2 + $0x748] sm:$0xff] %vm232, %v4165
      %4422 = vst.msk [vmem:[#allocation2 + $0x750] sm:$0xff] %vm232, %v4166
      %4423 = vst.msk [vmem:[#allocation2 + $0x758] sm:$0xff] %vm232, %v4167
      %4424 = vst.msk [vmem:[#allocation2 + $0x760] sm:$0xff] %vm232, %v4168
      %4425 = vst.msk [vmem:[#allocation2 + $0x768] sm:$0xff] %vm232, %v4169
      %4426 = vst.msk [vmem:[#allocation2 + $0x770] sm:$0xff] %vm232, %v4170
      %4427 = vst.msk [vmem:[#allocation2 + $0x778] sm:$0xff] %vm232, %v4171
      %4428 = vst.msk [vmem:[#allocation2 + $0x780] sm:$0xff] %vm232, %v4172
      %4429 = vst.msk [vmem:[#allocation2 + $0x788] sm:$0xff] %vm232, %v4173
      %4430 = vst.msk [vmem:[#allocation2 + $0x790] sm:$0xff] %vm232, %v4174
      %4431 = vst.msk [vmem:[#allocation2 + $0x798] sm:$0xff] %vm232, %v4175
      %4432 = vst.msk [vmem:[#allocation2 + $0x7a0] sm:$0xff] %vm232, %v4176
      %4433 = vst.msk [vmem:[#allocation2 + $0x7a8] sm:$0xff] %vm232, %v4177
      %4434 = vst.msk [vmem:[#allocation2 + $0x7b0] sm:$0xff] %vm232, %v4178
      %4435 = vst.msk [vmem:[#allocation2 + $0x7b8] sm:$0xff] %vm232, %v4179
      %4436 = vst.msk [vmem:[#allocation2 + $0x7c0] sm:$0xff] %vm232, %v4180
      %4437 = vst.msk [vmem:[#allocation2 + $0x7c8] sm:$0xff] %vm232, %v4181
      %4438 = vst.msk [vmem:[#allocation2 + $0x7d0] sm:$0xff] %vm232, %v4182
      %4439 = vst.msk [vmem:[#allocation2 + $0x7d8] sm:$0xff] %vm232, %v4183
      %4440 = vst.msk [vmem:[#allocation2 + $0x7e0] sm:$0xff] %vm232, %v4184
      %4441 = vst.msk [vmem:[#allocation2 + $0x7e8] sm:$0xff] %vm232, %v4185
      %4442 = vst.msk [vmem:[#allocation2 + $0x7f0] sm:$0xff] %vm232, %v4186
      %4443 = vst.msk [vmem:[#allocation2 + $0x7f8] sm:$0xff] %vm232, %v4187
      %v4444 = vld [vmem:[#allocation2] sm:$0xff]
      %v4445 = vld [vmem:[#allocation2 + $0x8] sm:$0xff]
      %v4446 = vld [vmem:[#allocation2 + $0x10] sm:$0xff]
      %v4447 = vld [vmem:[#allocation2 + $0x18] sm:$0xff]
      %v4448 = vld [vmem:[#allocation2 + $0x20] sm:$0xff]
      %v4449 = vld [vmem:[#allocation2 + $0x28] sm:$0xff]
      %v4450 = vld [vmem:[#allocation2 + $0x30] sm:$0xff]
      %v4451 = vld [vmem:[#allocation2 + $0x38] sm:$0xff]
      %v4452 = vld [vmem:[#allocation2 + $0x40] sm:$0xff]
      %v4453 = vld [vmem:[#allocation2 + $0x48] sm:$0xff]
      %v4454 = vld [vmem:[#allocation2 + $0x50] sm:$0xff]
      %v4455 = vld [vmem:[#allocation2 + $0x58] sm:$0xff]
      %v4456 = vld [vmem:[#allocation2 + $0x60] sm:$0xff]
      %v4457 = vld [vmem:[#allocation2 + $0x68] sm:$0xff]
      %v4458 = vld [vmem:[#allocation2 + $0x70] sm:$0xff]
      %v4459 = vld [vmem:[#allocation2 + $0x78] sm:$0xff]
      %v4460 = vld [vmem:[#allocation2 + $0x80] sm:$0xff]
      %v4461 = vld [vmem:[#allocation2 + $0x88] sm:$0xff]
      %v4462 = vld [vmem:[#allocation2 + $0x90] sm:$0xff]
      %v4463 = vld [vmem:[#allocation2 + $0x98] sm:$0xff]
      %v4464 = vld [vmem:[#allocation2 + $0xa0] sm:$0xff]
      %v4465 = vld [vmem:[#allocation2 + $0xa8] sm:$0xff]
      %v4466 = vld [vmem:[#allocation2 + $0xb0] sm:$0xff]
      %v4467 = vld [vmem:[#allocation2 + $0xb8] sm:$0xff]
      %v4468 = vld [vmem:[#allocation2 + $0xc0] sm:$0xff]
      %v4469 = vld [vmem:[#allocation2 + $0xc8] sm:$0xff]
      %v4470 = vld [vmem:[#allocation2 + $0xd0] sm:$0xff]
      %v4471 = vld [vmem:[#allocation2 + $0xd8] sm:$0xff]
      %v4472 = vld [vmem:[#allocation2 + $0xe0] sm:$0xff]
      %v4473 = vld [vmem:[#allocation2 + $0xe8] sm:$0xff]
      %v4474 = vld [vmem:[#allocation2 + $0xf0] sm:$0xff]
      %v4475 = vld [vmem:[#allocation2 + $0xf8] sm:$0xff]
      %v4476 = vld [vmem:[#allocation2 + $0x100] sm:$0xff]
      %v4477 = vld [vmem:[#allocation2 + $0x108] sm:$0xff]
      %v4478 = vld [vmem:[#allocation2 + $0x110] sm:$0xff]
      %v4479 = vld [vmem:[#allocation2 + $0x118] sm:$0xff]
      %v4480 = vld [vmem:[#allocation2 + $0x120] sm:$0xff]
      %v4481 = vld [vmem:[#allocation2 + $0x128] sm:$0xff]
      %v4482 = vld [vmem:[#allocation2 + $0x130] sm:$0xff]
      %v4483 = vld [vmem:[#allocation2 + $0x138] sm:$0xff]
      %v4484 = vld [vmem:[#allocation2 + $0x140] sm:$0xff]
      %v4485 = vld [vmem:[#allocation2 + $0x148] sm:$0xff]
      %v4486 = vld [vmem:[#allocation2 + $0x150] sm:$0xff]
      %v4487 = vld [vmem:[#allocation2 + $0x158] sm:$0xff]
      %v4488 = vld [vmem:[#allocation2 + $0x160] sm:$0xff]
      %v4489 = vld [vmem:[#allocation2 + $0x168] sm:$0xff]
      %v4490 = vld [vmem:[#allocation2 + $0x170] sm:$0xff]
      %v4491 = vld [vmem:[#allocation2 + $0x178] sm:$0xff]
      %v4492 = vld [vmem:[#allocation2 + $0x180] sm:$0xff]
      %v4493 = vld [vmem:[#allocation2 + $0x188] sm:$0xff]
      %v4494 = vld [vmem:[#allocation2 + $0x190] sm:$0xff]
      %v4495 = vld [vmem:[#allocation2 + $0x198] sm:$0xff]
      %v4496 = vld [vmem:[#allocation2 + $0x1a0] sm:$0xff]
      %v4497 = vld [vmem:[#allocation2 + $0x1a8] sm:$0xff]
      %v4498 = vld [vmem:[#allocation2 + $0x1b0] sm:$0xff]
      %v4499 = vld [vmem:[#allocation2 + $0x1b8] sm:$0xff]
      %v4500 = vld [vmem:[#allocation2 + $0x1c0] sm:$0xff]
      %v4501 = vld [vmem:[#allocation2 + $0x1c8] sm:$0xff]
      %v4502 = vld [vmem:[#allocation2 + $0x1d0] sm:$0xff]
      %v4503 = vld [vmem:[#allocation2 + $0x1d8] sm:$0xff]
      %v4504 = vld [vmem:[#allocation2 + $0x1e0] sm:$0xff]
      %v4505 = vld [vmem:[#allocation2 + $0x1e8] sm:$0xff]
      %v4506 = vld [vmem:[#allocation2 + $0x1f0] sm:$0xff]
      %v4507 = vld [vmem:[#allocation2 + $0x1f8] sm:$0xff]
      %v4508 = vld [vmem:[#allocation2 + $0x200] sm:$0xff]
      %v4509 = vld [vmem:[#allocation2 + $0x208] sm:$0xff]
      %v4510 = vld [vmem:[#allocation2 + $0x210] sm:$0xff]
      %v4511 = vld [vmem:[#allocation2 + $0x218] sm:$0xff]
      %v4512 = vld [vmem:[#allocation2 + $0x220] sm:$0xff]
      %v4513 = vld [vmem:[#allocation2 + $0x228] sm:$0xff]
      %v4514 = vld [vmem:[#allocation2 + $0x230] sm:$0xff]
      %v4515 = vld [vmem:[#allocation2 + $0x238] sm:$0xff]
      %v4516 = vld [vmem:[#allocation2 + $0x240] sm:$0xff]
      %v4517 = vld [vmem:[#allocation2 + $0x248] sm:$0xff]
      %v4518 = vld [vmem:[#allocation2 + $0x250] sm:$0xff]
      %v4519 = vld [vmem:[#allocation2 + $0x258] sm:$0xff]
      %v4520 = vld [vmem:[#allocation2 + $0x260] sm:$0xff]
      %v4521 = vld [vmem:[#allocation2 + $0x268] sm:$0xff]
      %v4522 = vld [vmem:[#allocation2 + $0x270] sm:$0xff]
      %v4523 = vld [vmem:[#allocation2 + $0x278] sm:$0xff]
      %v4524 = vld [vmem:[#allocation2 + $0x280] sm:$0xff]
      %v4525 = vld [vmem:[#allocation2 + $0x288] sm:$0xff]
      %v4526 = vld [vmem:[#allocation2 + $0x290] sm:$0xff]
      %v4527 = vld [vmem:[#allocation2 + $0x298] sm:$0xff]
      %v4528 = vld [vmem:[#allocation2 + $0x2a0] sm:$0xff]
      %v4529 = vld [vmem:[#allocation2 + $0x2a8] sm:$0xff]
      %v4530 = vld [vmem:[#allocation2 + $0x2b0] sm:$0xff]
      %v4531 = vld [vmem:[#allocation2 + $0x2b8] sm:$0xff]
      %v4532 = vld [vmem:[#allocation2 + $0x2c0] sm:$0xff]
      %v4533 = vld [vmem:[#allocation2 + $0x2c8] sm:$0xff]
      %v4534 = vld [vmem:[#allocation2 + $0x2d0] sm:$0xff]
      %v4535 = vld [vmem:[#allocation2 + $0x2d8] sm:$0xff]
      %v4536 = vld [vmem:[#allocation2 + $0x2e0] sm:$0xff]
      %v4537 = vld [vmem:[#allocation2 + $0x2e8] sm:$0xff]
      %v4538 = vld [vmem:[#allocation2 + $0x2f0] sm:$0xff]
      %v4539 = vld [vmem:[#allocation2 + $0x2f8] sm:$0xff]
      %v4540 = vld [vmem:[#allocation2 + $0x300] sm:$0xff]
      %v4541 = vld [vmem:[#allocation2 + $0x308] sm:$0xff]
      %v4542 = vld [vmem:[#allocation2 + $0x310] sm:$0xff]
      %v4543 = vld [vmem:[#allocation2 + $0x318] sm:$0xff]
      %v4544 = vld [vmem:[#allocation2 + $0x320] sm:$0xff]
      %v4545 = vld [vmem:[#allocation2 + $0x328] sm:$0xff]
      %v4546 = vld [vmem:[#allocation2 + $0x330] sm:$0xff]
      %v4547 = vld [vmem:[#allocation2 + $0x338] sm:$0xff]
      %v4548 = vld [vmem:[#allocation2 + $0x340] sm:$0xff]
      %v4549 = vld [vmem:[#allocation2 + $0x348] sm:$0xff]
      %v4550 = vld [vmem:[#allocation2 + $0x350] sm:$0xff]
      %v4551 = vld [vmem:[#allocation2 + $0x358] sm:$0xff]
      %v4552 = vld [vmem:[#allocation2 + $0x360] sm:$0xff]
      %v4553 = vld [vmem:[#allocation2 + $0x368] sm:$0xff]
      %v4554 = vld [vmem:[#allocation2 + $0x370] sm:$0xff]
      %v4555 = vld [vmem:[#allocation2 + $0x378] sm:$0xff]
      %v4556 = vld [vmem:[#allocation2 + $0x380] sm:$0xff]
      %v4557 = vld [vmem:[#allocation2 + $0x388] sm:$0xff]
      %v4558 = vld [vmem:[#allocation2 + $0x390] sm:$0xff]
      %v4559 = vld [vmem:[#allocation2 + $0x398] sm:$0xff]
      %v4560 = vld [vmem:[#allocation2 + $0x3a0] sm:$0xff]
      %v4561 = vld [vmem:[#allocation2 + $0x3a8] sm:$0xff]
      %v4562 = vld [vmem:[#allocation2 + $0x3b0] sm:$0xff]
      %v4563 = vld [vmem:[#allocation2 + $0x3b8] sm:$0xff]
      %v4564 = vld [vmem:[#allocation2 + $0x3c0] sm:$0xff]
      %v4565 = vld [vmem:[#allocation2 + $0x3c8] sm:$0xff]
      %v4566 = vld [vmem:[#allocation2 + $0x3d0] sm:$0xff]
      %v4567 = vld [vmem:[#allocation2 + $0x3d8] sm:$0xff]
      %v4568 = vld [vmem:[#allocation2 + $0x3e0] sm:$0xff]
      %v4569 = vld [vmem:[#allocation2 + $0x3e8] sm:$0xff]
      %v4570 = vld [vmem:[#allocation2 + $0x3f0] sm:$0xff]
      %v4571 = vld [vmem:[#allocation2 + $0x3f8] sm:$0xff]
      %v4572 = vld [vmem:[#allocation2 + $0x400] sm:$0xff]
      %v4573 = vld [vmem:[#allocation2 + $0x408] sm:$0xff]
      %v4574 = vld [vmem:[#allocation2 + $0x410] sm:$0xff]
      %v4575 = vld [vmem:[#allocation2 + $0x418] sm:$0xff]
      %v4576 = vld [vmem:[#allocation2 + $0x420] sm:$0xff]
      %v4577 = vld [vmem:[#allocation2 + $0x428] sm:$0xff]
      %v4578 = vld [vmem:[#allocation2 + $0x430] sm:$0xff]
      %v4579 = vld [vmem:[#allocation2 + $0x438] sm:$0xff]
      %v4580 = vld [vmem:[#allocation2 + $0x440] sm:$0xff]
      %v4581 = vld [vmem:[#allocation2 + $0x448] sm:$0xff]
      %v4582 = vld [vmem:[#allocation2 + $0x450] sm:$0xff]
      %v4583 = vld [vmem:[#allocation2 + $0x458] sm:$0xff]
      %v4584 = vld [vmem:[#allocation2 + $0x460] sm:$0xff]
      %v4585 = vld [vmem:[#allocation2 + $0x468] sm:$0xff]
      %v4586 = vld [vmem:[#allocation2 + $0x470] sm:$0xff]
      %v4587 = vld [vmem:[#allocation2 + $0x478] sm:$0xff]
      %v4588 = vld [vmem:[#allocation2 + $0x480] sm:$0xff]
      %v4589 = vld [vmem:[#allocation2 + $0x488] sm:$0xff]
      %v4590 = vld [vmem:[#allocation2 + $0x490] sm:$0xff]
      %v4591 = vld [vmem:[#allocation2 + $0x498] sm:$0xff]
      %v4592 = vld [vmem:[#allocation2 + $0x4a0] sm:$0xff]
      %v4593 = vld [vmem:[#allocation2 + $0x4a8] sm:$0xff]
      %v4594 = vld [vmem:[#allocation2 + $0x4b0] sm:$0xff]
      %v4595 = vld [vmem:[#allocation2 + $0x4b8] sm:$0xff]
      %v4596 = vld [vmem:[#allocation2 + $0x4c0] sm:$0xff]
      %v4597 = vld [vmem:[#allocation2 + $0x4c8] sm:$0xff]
      %v4598 = vld [vmem:[#allocation2 + $0x4d0] sm:$0xff]
      %v4599 = vld [vmem:[#allocation2 + $0x4d8] sm:$0xff]
      %v4600 = vld [vmem:[#allocation2 + $0x4e0] sm:$0xff]
      %v4601 = vld [vmem:[#allocation2 + $0x4e8] sm:$0xff]
      %v4602 = vld [vmem:[#allocation2 + $0x4f0] sm:$0xff]
      %v4603 = vld [vmem:[#allocation2 + $0x4f8] sm:$0xff]
      %v4604 = vld [vmem:[#allocation2 + $0x500] sm:$0xff]
      %v4605 = vld [vmem:[#allocation2 + $0x508] sm:$0xff]
      %v4606 = vld [vmem:[#allocation2 + $0x510] sm:$0xff]
      %v4607 = vld [vmem:[#allocation2 + $0x518] sm:$0xff]
      %v4608 = vld [vmem:[#allocation2 + $0x520] sm:$0xff]
      %v4609 = vld [vmem:[#allocation2 + $0x528] sm:$0xff]
      %v4610 = vld [vmem:[#allocation2 + $0x530] sm:$0xff]
      %v4611 = vld [vmem:[#allocation2 + $0x538] sm:$0xff]
      %v4612 = vld [vmem:[#allocation2 + $0x540] sm:$0xff]
      %v4613 = vld [vmem:[#allocation2 + $0x548] sm:$0xff]
      %v4614 = vld [vmem:[#allocation2 + $0x550] sm:$0xff]
      %v4615 = vld [vmem:[#allocation2 + $0x558] sm:$0xff]
      %v4616 = vld [vmem:[#allocation2 + $0x560] sm:$0xff]
      %v4617 = vld [vmem:[#allocation2 + $0x568] sm:$0xff]
      %v4618 = vld [vmem:[#allocation2 + $0x570] sm:$0xff]
      %v4619 = vld [vmem:[#allocation2 + $0x578] sm:$0xff]
      %v4620 = vld [vmem:[#allocation2 + $0x580] sm:$0xff]
      %v4621 = vld [vmem:[#allocation2 + $0x588] sm:$0xff]
      %v4622 = vld [vmem:[#allocation2 + $0x590] sm:$0xff]
      %v4623 = vld [vmem:[#allocation2 + $0x598] sm:$0xff]
      %v4624 = vld [vmem:[#allocation2 + $0x5a0] sm:$0xff]
      %v4625 = vld [vmem:[#allocation2 + $0x5a8] sm:$0xff]
      %v4626 = vld [vmem:[#allocation2 + $0x5b0] sm:$0xff]
      %v4627 = vld [vmem:[#allocation2 + $0x5b8] sm:$0xff]
      %v4628 = vld [vmem:[#allocation2 + $0x5c0] sm:$0xff]
      %v4629 = vld [vmem:[#allocation2 + $0x5c8] sm:$0xff]
      %v4630 = vld [vmem:[#allocation2 + $0x5d0] sm:$0xff]
      %v4631 = vld [vmem:[#allocation2 + $0x5d8] sm:$0xff]
      %v4632 = vld [vmem:[#allocation2 + $0x5e0] sm:$0xff]
      %v4633 = vld [vmem:[#allocation2 + $0x5e8] sm:$0xff]
      %v4634 = vld [vmem:[#allocation2 + $0x5f0] sm:$0xff]
      %v4635 = vld [vmem:[#allocation2 + $0x5f8] sm:$0xff]
      %v4636 = vld [vmem:[#allocation2 + $0x600] sm:$0xff]
      %v4637 = vld [vmem:[#allocation2 + $0x608] sm:$0xff]
      %v4638 = vld [vmem:[#allocation2 + $0x610] sm:$0xff]
      %v4639 = vld [vmem:[#allocation2 + $0x618] sm:$0xff]
      %v4640 = vld [vmem:[#allocation2 + $0x620] sm:$0xff]
      %v4641 = vld [vmem:[#allocation2 + $0x628] sm:$0xff]
      %v4642 = vld [vmem:[#allocation2 + $0x630] sm:$0xff]
      %v4643 = vld [vmem:[#allocation2 + $0x638] sm:$0xff]
      %v4644 = vld [vmem:[#allocation2 + $0x640] sm:$0xff]
      %v4645 = vld [vmem:[#allocation2 + $0x648] sm:$0xff]
      %v4646 = vld [vmem:[#allocation2 + $0x650] sm:$0xff]
      %v4647 = vld [vmem:[#allocation2 + $0x658] sm:$0xff]
      %v4648 = vld [vmem:[#allocation2 + $0x660] sm:$0xff]
      %v4649 = vld [vmem:[#allocation2 + $0x668] sm:$0xff]
      %v4650 = vld [vmem:[#allocation2 + $0x670] sm:$0xff]
      %v4651 = vld [vmem:[#allocation2 + $0x678] sm:$0xff]
      %v4652 = vld [vmem:[#allocation2 + $0x680] sm:$0xff]
      %v4653 = vld [vmem:[#allocation2 + $0x688] sm:$0xff]
      %v4654 = vld [vmem:[#allocation2 + $0x690] sm:$0xff]
      %v4655 = vld [vmem:[#allocation2 + $0x698] sm:$0xff]
      %v4656 = vld [vmem:[#allocation2 + $0x6a0] sm:$0xff]
      %v4657 = vld [vmem:[#allocation2 + $0x6a8] sm:$0xff]
      %v4658 = vld [vmem:[#allocation2 + $0x6b0] sm:$0xff]
      %v4659 = vld [vmem:[#allocation2 + $0x6b8] sm:$0xff]
      %v4660 = vld [vmem:[#allocation2 + $0x6c0] sm:$0xff]
      %v4661 = vld [vmem:[#allocation2 + $0x6c8] sm:$0xff]
      %v4662 = vld [vmem:[#allocation2 + $0x6d0] sm:$0xff]
      %v4663 = vld [vmem:[#allocation2 + $0x6d8] sm:$0xff]
      %v4664 = vld [vmem:[#allocation2 + $0x6e0] sm:$0xff]
      %v4665 = vld [vmem:[#allocation2 + $0x6e8] sm:$0xff]
      %v4666 = vld [vmem:[#allocation2 + $0x6f0] sm:$0xff]
      %v4667 = vld [vmem:[#allocation2 + $0x6f8] sm:$0xff]
      %v4668 = vld [vmem:[#allocation2 + $0x700] sm:$0xff]
      %v4669 = vld [vmem:[#allocation2 + $0x708] sm:$0xff]
      %v4670 = vld [vmem:[#allocation2 + $0x710] sm:$0xff]
      %v4671 = vld [vmem:[#allocation2 + $0x718] sm:$0xff]
      %v4672 = vld [vmem:[#allocation2 + $0x720] sm:$0xff]
      %v4673 = vld [vmem:[#allocation2 + $0x728] sm:$0xff]
      %v4674 = vld [vmem:[#allocation2 + $0x730] sm:$0xff]
      %v4675 = vld [vmem:[#allocation2 + $0x738] sm:$0xff]
      %v4676 = vld [vmem:[#allocation2 + $0x740] sm:$0xff]
      %v4677 = vld [vmem:[#allocation2 + $0x748] sm:$0xff]
      %v4678 = vld [vmem:[#allocation2 + $0x750] sm:$0xff]
      %v4679 = vld [vmem:[#allocation2 + $0x758] sm:$0xff]
      %v4680 = vld [vmem:[#allocation2 + $0x760] sm:$0xff]
      %v4681 = vld [vmem:[#allocation2 + $0x768] sm:$0xff]
      %v4682 = vld [vmem:[#allocation2 + $0x770] sm:$0xff]
      %v4683 = vld [vmem:[#allocation2 + $0x778] sm:$0xff]
      %v4684 = vld [vmem:[#allocation2 + $0x780] sm:$0xff]
      %v4685 = vld [vmem:[#allocation2 + $0x788] sm:$0xff]
      %v4686 = vld [vmem:[#allocation2 + $0x790] sm:$0xff]
      %v4687 = vld [vmem:[#allocation2 + $0x798] sm:$0xff]
      %v4688 = vld [vmem:[#allocation2 + $0x7a0] sm:$0xff]
      %v4689 = vld [vmem:[#allocation2 + $0x7a8] sm:$0xff]
      %v4690 = vld [vmem:[#allocation2 + $0x7b0] sm:$0xff]
      %v4691 = vld [vmem:[#allocation2 + $0x7b8] sm:$0xff]
      %v4692 = vld [vmem:[#allocation2 + $0x7c0] sm:$0xff]
      %v4693 = vld [vmem:[#allocation2 + $0x7c8] sm:$0xff]
      %v4694 = vld [vmem:[#allocation2 + $0x7d0] sm:$0xff]
      %v4695 = vld [vmem:[#allocation2 + $0x7d8] sm:$0xff]
      %v4696 = vld [vmem:[#allocation2 + $0x7e0] sm:$0xff]
      %v4697 = vld [vmem:[#allocation2 + $0x7e8] sm:$0xff]
      %v4698 = vld [vmem:[#allocation2 + $0x7f0] sm:$0xff]
      %v4699 = vld [vmem:[#allocation2 + $0x7f8] sm:$0xff]
      %v4700 = vld [vmem:[%s2] sm:$0x1]
      %v4702 = vperm.slane %v4700, 0
      %v4704 = vadd.f32 %v4444, %v4702
      %v4705 = vadd.f32 %v4445, %v4702
      %v4706 = vadd.f32 %v4446, %v4702
      %v4707 = vadd.f32 %v4447, %v4702
      %v4708 = vadd.f32 %v4448, %v4702
      %v4709 = vadd.f32 %v4449, %v4702
      %v4710 = vadd.f32 %v4450, %v4702
      %v4711 = vadd.f32 %v4451, %v4702
      %v4712 = vadd.f32 %v4452, %v4702
      %v4713 = vadd.f32 %v4453, %v4702
      %v4714 = vadd.f32 %v4454, %v4702
      %v4715 = vadd.f32 %v4455, %v4702
      %v4716 = vadd.f32 %v4456, %v4702
      %v4717 = vadd.f32 %v4457, %v4702
      %v4718 = vadd.f32 %v4458, %v4702
      %v4719 = vadd.f32 %v4459, %v4702
      %v4720 = vadd.f32 %v4460, %v4702
      %v4721 = vadd.f32 %v4461, %v4702
      %v4722 = vadd.f32 %v4462, %v4702
      %v4723 = vadd.f32 %v4463, %v4702
      %v4724 = vadd.f32 %v4464, %v4702
      %v4725 = vadd.f32 %v4465, %v4702
      %v4726 = vadd.f32 %v4466, %v4702
      %v4727 = vadd.f32 %v4467, %v4702
      %v4728 = vadd.f32 %v4468, %v4702
      %v4729 = vadd.f32 %v4469, %v4702
      %v4730 = vadd.f32 %v4470, %v4702
      %v4731 = vadd.f32 %v4471, %v4702
      %v4732 = vadd.f32 %v4472, %v4702
      %v4733 = vadd.f32 %v4473, %v4702
      %v4734 = vadd.f32 %v4474, %v4702
      %v4735 = vadd.f32 %v4475, %v4702
      %v4736 = vadd.f32 %v4476, %v4702
      %v4737 = vadd.f32 %v4477, %v4702
      %v4738 = vadd.f32 %v4478, %v4702
      %v4739 = vadd.f32 %v4479, %v4702
      %v4740 = vadd.f32 %v4480, %v4702
      %v4741 = vadd.f32 %v4481, %v4702
      %v4742 = vadd.f32 %v4482, %v4702
      %v4743 = vadd.f32 %v4483, %v4702
      %v4744 = vadd.f32 %v4484, %v4702
      %v4745 = vadd.f32 %v4485, %v4702
      %v4746 = vadd.f32 %v4486, %v4702
      %v4747 = vadd.f32 %v4487, %v4702
      %v4748 = vadd.f32 %v4488, %v4702
      %v4749 = vadd.f32 %v4489, %v4702
      %v4750 = vadd.f32 %v4490, %v4702
      %v4751 = vadd.f32 %v4491, %v4702
      %v4752 = vadd.f32 %v4492, %v4702
      %v4753 = vadd.f32 %v4493, %v4702
      %v4754 = vadd.f32 %v4494, %v4702
      %v4755 = vadd.f32 %v4495, %v4702
      %v4756 = vadd.f32 %v4496, %v4702
      %v4757 = vadd.f32 %v4497, %v4702
      %v4758 = vadd.f32 %v4498, %v4702
      %v4759 = vadd.f32 %v4499, %v4702
      %v4760 = vadd.f32 %v4500, %v4702
      %v4761 = vadd.f32 %v4501, %v4702
      %v4762 = vadd.f32 %v4502, %v4702
      %v4763 = vadd.f32 %v4503, %v4702
      %v4764 = vadd.f32 %v4504, %v4702
      %v4765 = vadd.f32 %v4505, %v4702
      %v4766 = vadd.f32 %v4506, %v4702
      %v4767 = vadd.f32 %v4507, %v4702
      %v4768 = vadd.f32 %v4508, %v4702
      %v4769 = vadd.f32 %v4509, %v4702
      %v4770 = vadd.f32 %v4510, %v4702
      %v4771 = vadd.f32 %v4511, %v4702
      %v4772 = vadd.f32 %v4512, %v4702
      %v4773 = vadd.f32 %v4513, %v4702
      %v4774 = vadd.f32 %v4514, %v4702
      %v4775 = vadd.f32 %v4515, %v4702
      %v4776 = vadd.f32 %v4516, %v4702
      %v4777 = vadd.f32 %v4517, %v4702
      %v4778 = vadd.f32 %v4518, %v4702
      %v4779 = vadd.f32 %v4519, %v4702
      %v4780 = vadd.f32 %v4520, %v4702
      %v4781 = vadd.f32 %v4521, %v4702
      %v4782 = vadd.f32 %v4522, %v4702
      %v4783 = vadd.f32 %v4523, %v4702
      %v4784 = vadd.f32 %v4524, %v4702
      %v4785 = vadd.f32 %v4525, %v4702
      %v4786 = vadd.f32 %v4526, %v4702
      %v4787 = vadd.f32 %v4527, %v4702
      %v4788 = vadd.f32 %v4528, %v4702
      %v4789 = vadd.f32 %v4529, %v4702
      %v4790 = vadd.f32 %v4530, %v4702
      %v4791 = vadd.f32 %v4531, %v4702
      %v4792 = vadd.f32 %v4532, %v4702
      %v4793 = vadd.f32 %v4533, %v4702
      %v4794 = vadd.f32 %v4534, %v4702
      %v4795 = vadd.f32 %v4535, %v4702
      %v4796 = vadd.f32 %v4536, %v4702
      %v4797 = vadd.f32 %v4537, %v4702
      %v4798 = vadd.f32 %v4538, %v4702
      %v4799 = vadd.f32 %v4539, %v4702
      %v4800 = vadd.f32 %v4540, %v4702
      %v4801 = vadd.f32 %v4541, %v4702
      %v4802 = vadd.f32 %v4542, %v4702
      %v4803 = vadd.f32 %v4543, %v4702
      %v4804 = vadd.f32 %v4544, %v4702
      %v4805 = vadd.f32 %v4545, %v4702
      %v4806 = vadd.f32 %v4546, %v4702
      %v4807 = vadd.f32 %v4547, %v4702
      %v4808 = vadd.f32 %v4548, %v4702
      %v4809 = vadd.f32 %v4549, %v4702
      %v4810 = vadd.f32 %v4550, %v4702
      %v4811 = vadd.f32 %v4551, %v4702
      %v4812 = vadd.f32 %v4552, %v4702
      %v4813 = vadd.f32 %v4553, %v4702
      %v4814 = vadd.f32 %v4554, %v4702
      %v4815 = vadd.f32 %v4555, %v4702
      %v4816 = vadd.f32 %v4556, %v4702
      %v4817 = vadd.f32 %v4557, %v4702
      %v4818 = vadd.f32 %v4558, %v4702
      %v4819 = vadd.f32 %v4559, %v4702
      %v4820 = vadd.f32 %v4560, %v4702
      %v4821 = vadd.f32 %v4561, %v4702
      %v4822 = vadd.f32 %v4562, %v4702
      %v4823 = vadd.f32 %v4563, %v4702
      %v4824 = vadd.f32 %v4564, %v4702
      %v4825 = vadd.f32 %v4565, %v4702
      %v4826 = vadd.f32 %v4566, %v4702
      %v4827 = vadd.f32 %v4567, %v4702
      %v4828 = vadd.f32 %v4568, %v4702
      %v4829 = vadd.f32 %v4569, %v4702
      %v4830 = vadd.f32 %v4570, %v4702
      %v4831 = vadd.f32 %v4571, %v4702
      %v4832 = vadd.f32 %v4572, %v4702
      %v4833 = vadd.f32 %v4573, %v4702
      %v4834 = vadd.f32 %v4574, %v4702
      %v4835 = vadd.f32 %v4575, %v4702
      %v4836 = vadd.f32 %v4576, %v4702
      %v4837 = vadd.f32 %v4577, %v4702
      %v4838 = vadd.f32 %v4578, %v4702
      %v4839 = vadd.f32 %v4579, %v4702
      %v4840 = vadd.f32 %v4580, %v4702
      %v4841 = vadd.f32 %v4581, %v4702
      %v4842 = vadd.f32 %v4582, %v4702
      %v4843 = vadd.f32 %v4583, %v4702
      %v4844 = vadd.f32 %v4584, %v4702
      %v4845 = vadd.f32 %v4585, %v4702
      %v4846 = vadd.f32 %v4586, %v4702
      %v4847 = vadd.f32 %v4587, %v4702
      %v4848 = vadd.f32 %v4588, %v4702
      %v4849 = vadd.f32 %v4589, %v4702
      %v4850 = vadd.f32 %v4590, %v4702
      %v4851 = vadd.f32 %v4591, %v4702
      %v4852 = vadd.f32 %v4592, %v4702
      %v4853 = vadd.f32 %v4593, %v4702
      %v4854 = vadd.f32 %v4594, %v4702
      %v4855 = vadd.f32 %v4595, %v4702
      %v4856 = vadd.f32 %v4596, %v4702
      %v4857 = vadd.f32 %v4597, %v4702
      %v4858 = vadd.f32 %v4598, %v4702
      %v4859 = vadd.f32 %v4599, %v4702
      %v4860 = vadd.f32 %v4600, %v4702
      %v4861 = vadd.f32 %v4601, %v4702
      %v4862 = vadd.f32 %v4602, %v4702
      %v4863 = vadd.f32 %v4603, %v4702
      %v4864 = vadd.f32 %v4604, %v4702
      %v4865 = vadd.f32 %v4605, %v4702
      %v4866 = vadd.f32 %v4606, %v4702
      %v4867 = vadd.f32 %v4607, %v4702
      %v4868 = vadd.f32 %v4608, %v4702
      %v4869 = vadd.f32 %v4609, %v4702
      %v4870 = vadd.f32 %v4610, %v4702
      %v4871 = vadd.f32 %v4611, %v4702
      %v4872 = vadd.f32 %v4612, %v4702
      %v4873 = vadd.f32 %v4613, %v4702
      %v4874 = vadd.f32 %v4614, %v4702
      %v4875 = vadd.f32 %v4615, %v4702
      %v4876 = vadd.f32 %v4616, %v4702
      %v4877 = vadd.f32 %v4617, %v4702
      %v4878 = vadd.f32 %v4618, %v4702
      %v4879 = vadd.f32 %v4619, %v4702
      %v4880 = vadd.f32 %v4620, %v4702
      %v4881 = vadd.f32 %v4621, %v4702
      %v4882 = vadd.f32 %v4622, %v4702
      %v4883 = vadd.f32 %v4623, %v4702
      %v4884 = vadd.f32 %v4624, %v4702
      %v4885 = vadd.f32 %v4625, %v4702
      %v4886 = vadd.f32 %v4626, %v4702
      %v4887 = vadd.f32 %v4627, %v4702
      %v4888 = vadd.f32 %v4628, %v4702
      %v4889 = vadd.f32 %v4629, %v4702
      %v4890 = vadd.f32 %v4630, %v4702
      %v4891 = vadd.f32 %v4631, %v4702
      %v4892 = vadd.f32 %v4632, %v4702
      %v4893 = vadd.f32 %v4633, %v4702
      %v4894 = vadd.f32 %v4634, %v4702
      %v4895 = vadd.f32 %v4635, %v4702
      %v4896 = vadd.f32 %v4636, %v4702
      %v4897 = vadd.f32 %v4637, %v4702
      %v4898 = vadd.f32 %v4638, %v4702
      %v4899 = vadd.f32 %v4639, %v4702
      %v4900 = vadd.f32 %v4640, %v4702
      %v4901 = vadd.f32 %v4641, %v4702
      %v4902 = vadd.f32 %v4642, %v4702
      %v4903 = vadd.f32 %v4643, %v4702
      %v4904 = vadd.f32 %v4644, %v4702
      %v4905 = vadd.f32 %v4645, %v4702
      %v4906 = vadd.f32 %v4646, %v4702
      %v4907 = vadd.f32 %v4647, %v4702
      %v4908 = vadd.f32 %v4648, %v4702
      %v4909 = vadd.f32 %v4649, %v4702
      %v4910 = vadd.f32 %v4650, %v4702
      %v4911 = vadd.f32 %v4651, %v4702
      %v4912 = vadd.f32 %v4652, %v4702
      %v4913 = vadd.f32 %v4653, %v4702
      %v4914 = vadd.f32 %v4654, %v4702
      %v4915 = vadd.f32 %v4655, %v4702
      %v4916 = vadd.f32 %v4656, %v4702
      %v4917 = vadd.f32 %v4657, %v4702
      %v4918 = vadd.f32 %v4658, %v4702
      %v4919 = vadd.f32 %v4659, %v4702
      %v4920 = vadd.f32 %v4660, %v4702
      %v4921 = vadd.f32 %v4661, %v4702
      %v4922 = vadd.f32 %v4662, %v4702
      %v4923 = vadd.f32 %v4663, %v4702
      %v4924 = vadd.f32 %v4664, %v4702
      %v4925 = vadd.f32 %v4665, %v4702
      %v4926 = vadd.f32 %v4666, %v4702
      %v4927 = vadd.f32 %v4667, %v4702
      %v4928 = vadd.f32 %v4668, %v4702
      %v4929 = vadd.f32 %v4669, %v4702
      %v4930 = vadd.f32 %v4670, %v4702
      %v4931 = vadd.f32 %v4671, %v4702
      %v4932 = vadd.f32 %v4672, %v4702
      %v4933 = vadd.f32 %v4673, %v4702
      %v4934 = vadd.f32 %v4674, %v4702
      %v4935 = vadd.f32 %v4675, %v4702
      %v4936 = vadd.f32 %v4676, %v4702
      %v4937 = vadd.f32 %v4677, %v4702
      %v4938 = vadd.f32 %v4678, %v4702
      %v4939 = vadd.f32 %v4679, %v4702
      %v4940 = vadd.f32 %v4680, %v4702
      %v4941 = vadd.f32 %v4681, %v4702
      %v4942 = vadd.f32 %v4682, %v4702
      %v4943 = vadd.f32 %v4683, %v4702
      %v4944 = vadd.f32 %v4684, %v4702
      %v4945 = vadd.f32 %v4685, %v4702
      %v4946 = vadd.f32 %v4686, %v4702
      %v4947 = vadd.f32 %v4687, %v4702
      %v4948 = vadd.f32 %v4688, %v4702
      %v4949 = vadd.f32 %v4689, %v4702
      %v4950 = vadd.f32 %v4690, %v4702
      %v4951 = vadd.f32 %v4691, %v4702
      %v4952 = vadd.f32 %v4692, %v4702
      %v4953 = vadd.f32 %v4693, %v4702
      %v4954 = vadd.f32 %v4694, %v4702
      %v4955 = vadd.f32 %v4695, %v4702
      %v4956 = vadd.f32 %v4696, %v4702
      %v4957 = vadd.f32 %v4697, %v4702
      %v4958 = vadd.f32 %v4698, %v4702
      %v4959 = vadd.f32 %v4699, %v4702
      %v4960 = vld [vmem:[%s3] sm:$0x1]
      %v4962 = vperm.slane %v4960, 0
      %v4964 = vmul.f32 %v4704, %v4962
      %v4965 = vmul.f32 %v4705, %v4962
      %v4966 = vmul.f32 %v4706, %v4962
      %v4967 = vmul.f32 %v4707, %v4962
      %v4968 = vmul.f32 %v4708, %v4962
      %v4969 = vmul.f32 %v4709, %v4962
      %v4970 = vmul.f32 %v4710, %v4962
      %v4971 = vmul.f32 %v4711, %v4962
      %v4972 = vmul.f32 %v4712, %v4962
      %v4973 = vmul.f32 %v4713, %v4962
      %v4974 = vmul.f32 %v4714, %v4962
      %v4975 = vmul.f32 %v4715, %v4962
      %v4976 = vmul.f32 %v4716, %v4962
      %v4977 = vmul.f32 %v4717, %v4962
      %v4978 = vmul.f32 %v4718, %v4962
      %v4979 = vmul.f32 %v4719, %v4962
      %v4980 = vmul.f32 %v4720, %v4962
      %v4981 = vmul.f32 %v4721, %v4962
      %v4982 = vmul.f32 %v4722, %v4962
      %v4983 = vmul.f32 %v4723, %v4962
      %v4984 = vmul.f32 %v4724, %v4962
      %v4985 = vmul.f32 %v4725, %v4962
      %v4986 = vmul.f32 %v4726, %v4962
      %v4987 = vmul.f32 %v4727, %v4962
      %v4988 = vmul.f32 %v4728, %v4962
      %v4989 = vmul.f32 %v4729, %v4962
      %v4990 = vmul.f32 %v4730, %v4962
      %v4991 = vmul.f32 %v4731, %v4962
      %v4992 = vmul.f32 %v4732, %v4962
      %v4993 = vmul.f32 %v4733, %v4962
      %v4994 = vmul.f32 %v4734, %v4962
      %v4995 = vmul.f32 %v4735, %v4962
      %v4996 = vmul.f32 %v4736, %v4962
      %v4997 = vmul.f32 %v4737, %v4962
      %v4998 = vmul.f32 %v4738, %v4962
      %v4999 = vmul.f32 %v4739, %v4962
      %v5000 = vmul.f32 %v4740, %v4962
      %v5001 = vmul.f32 %v4741, %v4962
      %v5002 = vmul.f32 %v4742, %v4962
      %v5003 = vmul.f32 %v4743, %v4962
      %v5004 = vmul.f32 %v4744, %v4962
      %v5005 = vmul.f32 %v4745, %v4962
      %v5006 = vmul.f32 %v4746, %v4962
      %v5007 = vmul.f32 %v4747, %v4962
      %v5008 = vmul.f32 %v4748, %v4962
      %v5009 = vmul.f32 %v4749, %v4962
      %v5010 = vmul.f32 %v4750, %v4962
      %v5011 = vmul.f32 %v4751, %v4962
      %v5012 = vmul.f32 %v4752, %v4962
      %v5013 = vmul.f32 %v4753, %v4962
      %v5014 = vmul.f32 %v4754, %v4962
      %v5015 = vmul.f32 %v4755, %v4962
      %v5016 = vmul.f32 %v4756, %v4962
      %v5017 = vmul.f32 %v4757, %v4962
      %v5018 = vmul.f32 %v4758, %v4962
      %v5019 = vmul.f32 %v4759, %v4962
      %v5020 = vmul.f32 %v4760, %v4962
      %v5021 = vmul.f32 %v4761, %v4962
      %v5022 = vmul.f32 %v4762, %v4962
      %v5023 = vmul.f32 %v4763, %v4962
      %v5024 = vmul.f32 %v4764, %v4962
      %v5025 = vmul.f32 %v4765, %v4962
      %v5026 = vmul.f32 %v4766, %v4962
      %v5027 = vmul.f32 %v4767, %v4962
      %v5028 = vmul.f32 %v4768, %v4962
      %v5029 = vmul.f32 %v4769, %v4962
      %v5030 = vmul.f32 %v4770, %v4962
      %v5031 = vmul.f32 %v4771, %v4962
      %v5032 = vmul.f32 %v4772, %v4962
      %v5033 = vmul.f32 %v4773, %v4962
      %v5034 = vmul.f32 %v4774, %v4962
      %v5035 = vmul.f32 %v4775, %v4962
      %v5036 = vmul.f32 %v4776, %v4962
      %v5037 = vmul.f32 %v4777, %v4962
      %v5038 = vmul.f32 %v4778, %v4962
      %v5039 = vmul.f32 %v4779, %v4962
      %v5040 = vmul.f32 %v4780, %v4962
      %v5041 = vmul.f32 %v4781, %v4962
      %v5042 = vmul.f32 %v4782, %v4962
      %v5043 = vmul.f32 %v4783, %v4962
      %v5044 = vmul.f32 %v4784, %v4962
      %v5045 = vmul.f32 %v4785, %v4962
      %v5046 = vmul.f32 %v4786, %v4962
      %v5047 = vmul.f32 %v4787, %v4962
      %v5048 = vmul.f32 %v4788, %v4962
      %v5049 = vmul.f32 %v4789, %v4962
      %v5050 = vmul.f32 %v4790, %v4962
      %v5051 = vmul.f32 %v4791, %v4962
      %v5052 = vmul.f32 %v4792, %v4962
      %v5053 = vmul.f32 %v4793, %v4962
      %v5054 = vmul.f32 %v4794, %v4962
      %v5055 = vmul.f32 %v4795, %v4962
      %v5056 = vmul.f32 %v4796, %v4962
      %v5057 = vmul.f32 %v4797, %v4962
      %v5058 = vmul.f32 %v4798, %v4962
      %v5059 = vmul.f32 %v4799, %v4962
      %v5060 = vmul.f32 %v4800, %v4962
      %v5061 = vmul.f32 %v4801, %v4962
      %v5062 = vmul.f32 %v4802, %v4962
      %v5063 = vmul.f32 %v4803, %v4962
      %v5064 = vmul.f32 %v4804, %v4962
      %v5065 = vmul.f32 %v4805, %v4962
      %v5066 = vmul.f32 %v4806, %v4962
      %v5067 = vmul.f32 %v4807, %v4962
      %v5068 = vmul.f32 %v4808, %v4962
      %v5069 = vmul.f32 %v4809, %v4962
      %v5070 = vmul.f32 %v4810, %v4962
      %v5071 = vmul.f32 %v4811, %v4962
      %v5072 = vmul.f32 %v4812, %v4962
      %v5073 = vmul.f32 %v4813, %v4962
      %v5074 = vmul.f32 %v4814, %v4962
      %v5075 = vmul.f32 %v4815, %v4962
      %v5076 = vmul.f32 %v4816, %v4962
      %v5077 = vmul.f32 %v4817, %v4962
      %v5078 = vmul.f32 %v4818, %v4962
      %v5079 = vmul.f32 %v4819, %v4962
      %v5080 = vmul.f32 %v4820, %v4962
      %v5081 = vmul.f32 %v4821, %v4962
      %v5082 = vmul.f32 %v4822, %v4962
      %v5083 = vmul.f32 %v4823, %v4962
      %v5084 = vmul.f32 %v4824, %v4962
      %v5085 = vmul.f32 %v4825, %v4962
      %v5086 = vmul.f32 %v4826, %v4962
      %v5087 = vmul.f32 %v4827, %v4962
      %v5088 = vmul.f32 %v4828, %v4962
      %v5089 = vmul.f32 %v4829, %v4962
      %v5090 = vmul.f32 %v4830, %v4962
      %v5091 = vmul.f32 %v4831, %v4962
      %v5092 = vmul.f32 %v4832, %v4962
      %v5093 = vmul.f32 %v4833, %v4962
      %v5094 = vmul.f32 %v4834, %v4962
      %v5095 = vmul.f32 %v4835, %v4962
      %v5096 = vmul.f32 %v4836, %v4962
      %v5097 = vmul.f32 %v4837, %v4962
      %v5098 = vmul.f32 %v4838, %v4962
      %v5099 = vmul.f32 %v4839, %v4962
      %v5100 = vmul.f32 %v4840, %v4962
      %v5101 = vmul.f32 %v4841, %v4962
      %v5102 = vmul.f32 %v4842, %v4962
      %v5103 = vmul.f32 %v4843, %v4962
      %v5104 = vmul.f32 %v4844, %v4962
      %v5105 = vmul.f32 %v4845, %v4962
      %v5106 = vmul.f32 %v4846, %v4962
      %v5107 = vmul.f32 %v4847, %v4962
      %v5108 = vmul.f32 %v4848, %v4962
      %v5109 = vmul.f32 %v4849, %v4962
      %v5110 = vmul.f32 %v4850, %v4962
      %v5111 = vmul.f32 %v4851, %v4962
      %v5112 = vmul.f32 %v4852, %v4962
      %v5113 = vmul.f32 %v4853, %v4962
      %v5114 = vmul.f32 %v4854, %v4962
      %v5115 = vmul.f32 %v4855, %v4962
      %v5116 = vmul.f32 %v4856, %v4962
      %v5117 = vmul.f32 %v4857, %v4962
      %v5118 = vmul.f32 %v4858, %v4962
      %v5119 = vmul.f32 %v4859, %v4962
      %v5120 = vmul.f32 %v4860, %v4962
      %v5121 = vmul.f32 %v4861, %v4962
      %v5122 = vmul.f32 %v4862, %v4962
      %v5123 = vmul.f32 %v4863, %v4962
      %v5124 = vmul.f32 %v4864, %v4962
      %v5125 = vmul.f32 %v4865, %v4962
      %v5126 = vmul.f32 %v4866, %v4962
      %v5127 = vmul.f32 %v4867, %v4962
      %v5128 = vmul.f32 %v4868, %v4962
      %v5129 = vmul.f32 %v4869, %v4962
      %v5130 = vmul.f32 %v4870, %v4962
      %v5131 = vmul.f32 %v4871, %v4962
      %v5132 = vmul.f32 %v4872, %v4962
      %v5133 = vmul.f32 %v4873, %v4962
      %v5134 = vmul.f32 %v4874, %v4962
      %v5135 = vmul.f32 %v4875, %v4962
      %v5136 = vmul.f32 %v4876, %v4962
      %v5137 = vmul.f32 %v4877, %v4962
      %v5138 = vmul.f32 %v4878, %v4962
      %v5139 = vmul.f32 %v4879, %v4962
      %v5140 = vmul.f32 %v4880, %v4962
      %v5141 = vmul.f32 %v4881, %v4962
      %v5142 = vmul.f32 %v4882, %v4962
      %v5143 = vmul.f32 %v4883, %v4962
      %v5144 = vmul.f32 %v4884, %v4962
      %v5145 = vmul.f32 %v4885, %v4962
      %v5146 = vmul.f32 %v4886, %v4962
      %v5147 = vmul.f32 %v4887, %v4962
      %v5148 = vmul.f32 %v4888, %v4962
      %v5149 = vmul.f32 %v4889, %v4962
      %v5150 = vmul.f32 %v4890, %v4962
      %v5151 = vmul.f32 %v4891, %v4962
      %v5152 = vmul.f32 %v4892, %v4962
      %v5153 = vmul.f32 %v4893, %v4962
      %v5154 = vmul.f32 %v4894, %v4962
      %v5155 = vmul.f32 %v4895, %v4962
      %v5156 = vmul.f32 %v4896, %v4962
      %v5157 = vmul.f32 %v4897, %v4962
      %v5158 = vmul.f32 %v4898, %v4962
      %v5159 = vmul.f32 %v4899, %v4962
      %v5160 = vmul.f32 %v4900, %v4962
      %v5161 = vmul.f32 %v4901, %v4962
      %v5162 = vmul.f32 %v4902, %v4962
      %v5163 = vmul.f32 %v4903, %v4962
      %v5164 = vmul.f32 %v4904, %v4962
      %v5165 = vmul.f32 %v4905, %v4962
      %v5166 = vmul.f32 %v4906, %v4962
      %v5167 = vmul.f32 %v4907, %v4962
      %v5168 = vmul.f32 %v4908, %v4962
      %v5169 = vmul.f32 %v4909, %v4962
      %v5170 = vmul.f32 %v4910, %v4962
      %v5171 = vmul.f32 %v4911, %v4962
      %v5172 = vmul.f32 %v4912, %v4962
      %v5173 = vmul.f32 %v4913, %v4962
      %v5174 = vmul.f32 %v4914, %v4962
      %v5175 = vmul.f32 %v4915, %v4962
      %v5176 = vmul.f32 %v4916, %v4962
      %v5177 = vmul.f32 %v4917, %v4962
      %v5178 = vmul.f32 %v4918, %v4962
      %v5179 = vmul.f32 %v4919, %v4962
      %v5180 = vmul.f32 %v4920, %v4962
      %v5181 = vmul.f32 %v4921, %v4962
      %v5182 = vmul.f32 %v4922, %v4962
      %v5183 = vmul.f32 %v4923, %v4962
      %v5184 = vmul.f32 %v4924, %v4962
      %v5185 = vmul.f32 %v4925, %v4962
      %v5186 = vmul.f32 %v4926, %v4962
      %v5187 = vmul.f32 %v4927, %v4962
      %v5188 = vmul.f32 %v4928, %v4962
      %v5189 = vmul.f32 %v4929, %v4962
      %v5190 = vmul.f32 %v4930, %v4962
      %v5191 = vmul.f32 %v4931, %v4962
      %v5192 = vmul.f32 %v4932, %v4962
      %v5193 = vmul.f32 %v4933, %v4962
      %v5194 = vmul.f32 %v4934, %v4962
      %v5195 = vmul.f32 %v4935, %v4962
      %v5196 = vmul.f32 %v4936, %v4962
      %v5197 = vmul.f32 %v4937, %v4962
      %v5198 = vmul.f32 %v4938, %v4962
      %v5199 = vmul.f32 %v4939, %v4962
      %v5200 = vmul.f32 %v4940, %v4962
      %v5201 = vmul.f32 %v4941, %v4962
      %v5202 = vmul.f32 %v4942, %v4962
      %v5203 = vmul.f32 %v4943, %v4962
      %v5204 = vmul.f32 %v4944, %v4962
      %v5205 = vmul.f32 %v4945, %v4962
      %v5206 = vmul.f32 %v4946, %v4962
      %v5207 = vmul.f32 %v4947, %v4962
      %v5208 = vmul.f32 %v4948, %v4962
      %v5209 = vmul.f32 %v4949, %v4962
      %v5210 = vmul.f32 %v4950, %v4962
      %v5211 = vmul.f32 %v4951, %v4962
      %v5212 = vmul.f32 %v4952, %v4962
      %v5213 = vmul.f32 %v4953, %v4962
      %v5214 = vmul.f32 %v4954, %v4962
      %v5215 = vmul.f32 %v4955, %v4962
      %v5216 = vmul.f32 %v4956, %v4962
      %v5217 = vmul.f32 %v4957, %v4962
      %v5218 = vmul.f32 %v4958, %v4962
      %v5219 = vmul.f32 %v4959, %v4962
      %v5220 = vld [vmem:[%s4] sm:$0x1]
      %v5222 = vperm.slane %v5220, 0
      %v5224 = vadd.f32 %v4964, %v5222
      %v5225 = vadd.f32 %v4965, %v5222
      %v5226 = vadd.f32 %v4966, %v5222
      %v5227 = vadd.f32 %v4967, %v5222
      %v5228 = vadd.f32 %v4968, %v5222
      %v5229 = vadd.f32 %v4969, %v5222
      %v5230 = vadd.f32 %v4970, %v5222
      %v5231 = vadd.f32 %v4971, %v5222
      %v5232 = vadd.f32 %v4972, %v5222
      %v5233 = vadd.f32 %v4973, %v5222
      %v5234 = vadd.f32 %v4974, %v5222
      %v5235 = vadd.f32 %v4975, %v5222
      %v5236 = vadd.f32 %v4976, %v5222
      %v5237 = vadd.f32 %v4977, %v5222
      %v5238 = vadd.f32 %v4978, %v5222
      %v5239 = vadd.f32 %v4979, %v5222
      %v5240 = vadd.f32 %v4980, %v5222
      %v5241 = vadd.f32 %v4981, %v5222
      %v5242 = vadd.f32 %v4982, %v5222
      %v5243 = vadd.f32 %v4983, %v5222
      %v5244 = vadd.f32 %v4984, %v5222
      %v5245 = vadd.f32 %v4985, %v5222
      %v5246 = vadd.f32 %v4986, %v5222
      %v5247 = vadd.f32 %v4987, %v5222
      %v5248 = vadd.f32 %v4988, %v5222
      %v5249 = vadd.f32 %v4989, %v5222
      %v5250 = vadd.f32 %v4990, %v5222
      %v5251 = vadd.f32 %v4991, %v5222
      %v5252 = vadd.f32 %v4992, %v5222
      %v5253 = vadd.f32 %v4993, %v5222
      %v5254 = vadd.f32 %v4994, %v5222
      %v5255 = vadd.f32 %v4995, %v5222
      %v5256 = vadd.f32 %v4996, %v5222
      %v5257 = vadd.f32 %v4997, %v5222
      %v5258 = vadd.f32 %v4998, %v5222
      %v5259 = vadd.f32 %v4999, %v5222
      %v5260 = vadd.f32 %v5000, %v5222
      %v5261 = vadd.f32 %v5001, %v5222
      %v5262 = vadd.f32 %v5002, %v5222
      %v5263 = vadd.f32 %v5003, %v5222
      %v5264 = vadd.f32 %v5004, %v5222
      %v5265 = vadd.f32 %v5005, %v5222
      %v5266 = vadd.f32 %v5006, %v5222
      %v5267 = vadd.f32 %v5007, %v5222
      %v5268 = vadd.f32 %v5008, %v5222
      %v5269 = vadd.f32 %v5009, %v5222
      %v5270 = vadd.f32 %v5010, %v5222
      %v5271 = vadd.f32 %v5011, %v5222
      %v5272 = vadd.f32 %v5012, %v5222
      %v5273 = vadd.f32 %v5013, %v5222
      %v5274 = vadd.f32 %v5014, %v5222
      %v5275 = vadd.f32 %v5015, %v5222
      %v5276 = vadd.f32 %v5016, %v5222
      %v5277 = vadd.f32 %v5017, %v5222
      %v5278 = vadd.f32 %v5018, %v5222
      %v5279 = vadd.f32 %v5019, %v5222
      %v5280 = vadd.f32 %v5020, %v5222
      %v5281 = vadd.f32 %v5021, %v5222
      %v5282 = vadd.f32 %v5022, %v5222
      %v5283 = vadd.f32 %v5023, %v5222
      %v5284 = vadd.f32 %v5024, %v5222
      %v5285 = vadd.f32 %v5025, %v5222
      %v5286 = vadd.f32 %v5026, %v5222
      %v5287 = vadd.f32 %v5027, %v5222
      %v5288 = vadd.f32 %v5028, %v5222
      %v5289 = vadd.f32 %v5029, %v5222
      %v5290 = vadd.f32 %v5030, %v5222
      %v5291 = vadd.f32 %v5031, %v5222
      %v5292 = vadd.f32 %v5032, %v5222
      %v5293 = vadd.f32 %v5033, %v5222
      %v5294 = vadd.f32 %v5034, %v5222
      %v5295 = vadd.f32 %v5035, %v5222
      %v5296 = vadd.f32 %v5036, %v5222
      %v5297 = vadd.f32 %v5037, %v5222
      %v5298 = vadd.f32 %v5038, %v5222
      %v5299 = vadd.f32 %v5039, %v5222
      %v5300 = vadd.f32 %v5040, %v5222
      %v5301 = vadd.f32 %v5041, %v5222
      %v5302 = vadd.f32 %v5042, %v5222
      %v5303 = vadd.f32 %v5043, %v5222
      %v5304 = vadd.f32 %v5044, %v5222
      %v5305 = vadd.f32 %v5045, %v5222
      %v5306 = vadd.f32 %v5046, %v5222
      %v5307 = vadd.f32 %v5047, %v5222
      %v5308 = vadd.f32 %v5048, %v5222
      %v5309 = vadd.f32 %v5049, %v5222
      %v5310 = vadd.f32 %v5050, %v5222
      %v5311 = vadd.f32 %v5051, %v5222
      %v5312 = vadd.f32 %v5052, %v5222
      %v5313 = vadd.f32 %v5053, %v5222
      %v5314 = vadd.f32 %v5054, %v5222
      %v5315 = vadd.f32 %v5055, %v5222
      %v5316 = vadd.f32 %v5056, %v5222
      %v5317 = vadd.f32 %v5057, %v5222
      %v5318 = vadd.f32 %v5058, %v5222
      %v5319 = vadd.f32 %v5059, %v5222
      %v5320 = vadd.f32 %v5060, %v5222
      %v5321 = vadd.f32 %v5061, %v5222
      %v5322 = vadd.f32 %v5062, %v5222
      %v5323 = vadd.f32 %v5063, %v5222
      %v5324 = vadd.f32 %v5064, %v5222
      %v5325 = vadd.f32 %v5065, %v5222
      %v5326 = vadd.f32 %v5066, %v5222
      %v5327 = vadd.f32 %v5067, %v5222
      %v5328 = vadd.f32 %v5068, %v5222
      %v5329 = vadd.f32 %v5069, %v5222
      %v5330 = vadd.f32 %v5070, %v5222
      %v5331 = vadd.f32 %v5071, %v5222
      %v5332 = vadd.f32 %v5072, %v5222
      %v5333 = vadd.f32 %v5073, %v5222
      %v5334 = vadd.f32 %v5074, %v5222
      %v5335 = vadd.f32 %v5075, %v5222
      %v5336 = vadd.f32 %v5076, %v5222
      %v5337 = vadd.f32 %v5077, %v5222
      %v5338 = vadd.f32 %v5078, %v5222
      %v5339 = vadd.f32 %v5079, %v5222
      %v5340 = vadd.f32 %v5080, %v5222
      %v5341 = vadd.f32 %v5081, %v5222
      %v5342 = vadd.f32 %v5082, %v5222
      %v5343 = vadd.f32 %v5083, %v5222
      %v5344 = vadd.f32 %v5084, %v5222
      %v5345 = vadd.f32 %v5085, %v5222
      %v5346 = vadd.f32 %v5086, %v5222
      %v5347 = vadd.f32 %v5087, %v5222
      %v5348 = vadd.f32 %v5088, %v5222
      %v5349 = vadd.f32 %v5089, %v5222
      %v5350 = vadd.f32 %v5090, %v5222
      %v5351 = vadd.f32 %v5091, %v5222
      %v5352 = vadd.f32 %v5092, %v5222
      %v5353 = vadd.f32 %v5093, %v5222
      %v5354 = vadd.f32 %v5094, %v5222
      %v5355 = vadd.f32 %v5095, %v5222
      %v5356 = vadd.f32 %v5096, %v5222
      %v5357 = vadd.f32 %v5097, %v5222
      %v5358 = vadd.f32 %v5098, %v5222
      %v5359 = vadd.f32 %v5099, %v5222
      %v5360 = vadd.f32 %v5100, %v5222
      %v5361 = vadd.f32 %v5101, %v5222
      %v5362 = vadd.f32 %v5102, %v5222
      %v5363 = vadd.f32 %v5103, %v5222
      %v5364 = vadd.f32 %v5104, %v5222
      %v5365 = vadd.f32 %v5105, %v5222
      %v5366 = vadd.f32 %v5106, %v5222
      %v5367 = vadd.f32 %v5107, %v5222
      %v5368 = vadd.f32 %v5108, %v5222
      %v5369 = vadd.f32 %v5109, %v5222
      %v5370 = vadd.f32 %v5110, %v5222
      %v5371 = vadd.f32 %v5111, %v5222
      %v5372 = vadd.f32 %v5112, %v5222
      %v5373 = vadd.f32 %v5113, %v5222
      %v5374 = vadd.f32 %v5114, %v5222
      %v5375 = vadd.f32 %v5115, %v5222
      %v5376 = vadd.f32 %v5116, %v5222
      %v5377 = vadd.f32 %v5117, %v5222
      %v5378 = vadd.f32 %v5118, %v5222
      %v5379 = vadd.f32 %v5119, %v5222
      %v5380 = vadd.f32 %v5120, %v5222
      %v5381 = vadd.f32 %v5121, %v5222
      %v5382 = vadd.f32 %v5122, %v5222
      %v5383 = vadd.f32 %v5123, %v5222
      %v5384 = vadd.f32 %v5124, %v5222
      %v5385 = vadd.f32 %v5125, %v5222
      %v5386 = vadd.f32 %v5126, %v5222
      %v5387 = vadd.f32 %v5127, %v5222
      %v5388 = vadd.f32 %v5128, %v5222
      %v5389 = vadd.f32 %v5129, %v5222
      %v5390 = vadd.f32 %v5130, %v5222
      %v5391 = vadd.f32 %v5131, %v5222
      %v5392 = vadd.f32 %v5132, %v5222
      %v5393 = vadd.f32 %v5133, %v5222
      %v5394 = vadd.f32 %v5134, %v5222
      %v5395 = vadd.f32 %v5135, %v5222
      %v5396 = vadd.f32 %v5136, %v5222
      %v5397 = vadd.f32 %v5137, %v5222
      %v5398 = vadd.f32 %v5138, %v5222
      %v5399 = vadd.f32 %v5139, %v5222
      %v5400 = vadd.f32 %v5140, %v5222
      %v5401 = vadd.f32 %v5141, %v5222
      %v5402 = vadd.f32 %v5142, %v5222
      %v5403 = vadd.f32 %v5143, %v5222
      %v5404 = vadd.f32 %v5144, %v5222
      %v5405 = vadd.f32 %v5145, %v5222
      %v5406 = vadd.f32 %v5146, %v5222
      %v5407 = vadd.f32 %v5147, %v5222
      %v5408 = vadd.f32 %v5148, %v5222
      %v5409 = vadd.f32 %v5149, %v5222
      %v5410 = vadd.f32 %v5150, %v5222
      %v5411 = vadd.f32 %v5151, %v5222
      %v5412 = vadd.f32 %v5152, %v5222
      %v5413 = vadd.f32 %v5153, %v5222
      %v5414 = vadd.f32 %v5154, %v5222
      %v5415 = vadd.f32 %v5155, %v5222
      %v5416 = vadd.f32 %v5156, %v5222
      %v5417 = vadd.f32 %v5157, %v5222
      %v5418 = vadd.f32 %v5158, %v5222
      %v5419 = vadd.f32 %v5159, %v5222
      %v5420 = vadd.f32 %v5160, %v5222
      %v5421 = vadd.f32 %v5161, %v5222
      %v5422 = vadd.f32 %v5162, %v5222
      %v5423 = vadd.f32 %v5163, %v5222
      %v5424 = vadd.f32 %v5164, %v5222
      %v5425 = vadd.f32 %v5165, %v5222
      %v5426 = vadd.f32 %v5166, %v5222
      %v5427 = vadd.f32 %v5167, %v5222
      %v5428 = vadd.f32 %v5168, %v5222
      %v5429 = vadd.f32 %v5169, %v5222
      %v5430 = vadd.f32 %v5170, %v5222
      %v5431 = vadd.f32 %v5171, %v5222
      %v5432 = vadd.f32 %v5172, %v5222
      %v5433 = vadd.f32 %v5173, %v5222
      %v5434 = vadd.f32 %v5174, %v5222
      %v5435 = vadd.f32 %v5175, %v5222
      %v5436 = vadd.f32 %v5176, %v5222
      %v5437 = vadd.f32 %v5177, %v5222
      %v5438 = vadd.f32 %v5178, %v5222
      %v5439 = vadd.f32 %v5179, %v5222
      %v5440 = vadd.f32 %v5180, %v5222
      %v5441 = vadd.f32 %v5181, %v5222
      %v5442 = vadd.f32 %v5182, %v5222
      %v5443 = vadd.f32 %v5183, %v5222
      %v5444 = vadd.f32 %v5184, %v5222
      %v5445 = vadd.f32 %v5185, %v5222
      %v5446 = vadd.f32 %v5186, %v5222
      %v5447 = vadd.f32 %v5187, %v5222
      %v5448 = vadd.f32 %v5188, %v5222
      %v5449 = vadd.f32 %v5189, %v5222
      %v5450 = vadd.f32 %v5190, %v5222
      %v5451 = vadd.f32 %v5191, %v5222
      %v5452 = vadd.f32 %v5192, %v5222
      %v5453 = vadd.f32 %v5193, %v5222
      %v5454 = vadd.f32 %v5194, %v5222
      %v5455 = vadd.f32 %v5195, %v5222
      %v5456 = vadd.f32 %v5196, %v5222
      %v5457 = vadd.f32 %v5197, %v5222
      %v5458 = vadd.f32 %v5198, %v5222
      %v5459 = vadd.f32 %v5199, %v5222
      %v5460 = vadd.f32 %v5200, %v5222
      %v5461 = vadd.f32 %v5201, %v5222
      %v5462 = vadd.f32 %v5202, %v5222
      %v5463 = vadd.f32 %v5203, %v5222
      %v5464 = vadd.f32 %v5204, %v5222
      %v5465 = vadd.f32 %v5205, %v5222
      %v5466 = vadd.f32 %v5206, %v5222
      %v5467 = vadd.f32 %v5207, %v5222
      %v5468 = vadd.f32 %v5208, %v5222
      %v5469 = vadd.f32 %v5209, %v5222
      %v5470 = vadd.f32 %v5210, %v5222
      %v5471 = vadd.f32 %v5211, %v5222
      %v5472 = vadd.f32 %v5212, %v5222
      %v5473 = vadd.f32 %v5213, %v5222
      %v5474 = vadd.f32 %v5214, %v5222
      %v5475 = vadd.f32 %v5215, %v5222
      %v5476 = vadd.f32 %v5216, %v5222
      %v5477 = vadd.f32 %v5217, %v5222
      %v5478 = vadd.f32 %v5218, %v5222
      %v5479 = vadd.f32 %v5219, %v5222
      %vm5480 = vcmp.gt.f32.partialorder %v5224, 0.0
      %vm5481 = vcmp.gt.f32.partialorder %v5225, 0.0
      %vm5482 = vcmp.gt.f32.partialorder %v5226, 0.0
      %vm5483 = vcmp.gt.f32.partialorder %v5227, 0.0
      %vm5484 = vcmp.gt.f32.partialorder %v5228, 0.0
      %vm5485 = vcmp.gt.f32.partialorder %v5229, 0.0
      %vm5486 = vcmp.gt.f32.partialorder %v5230, 0.0
      %vm5487 = vcmp.gt.f32.partialorder %v5231, 0.0
      %vm5488 = vcmp.gt.f32.partialorder %v5232, 0.0
      %vm5489 = vcmp.gt.f32.partialorder %v5233, 0.0
      %vm5490 = vcmp.gt.f32.partialorder %v5234, 0.0
      %vm5491 = vcmp.gt.f32.partialorder %v5235, 0.0
      %vm5492 = vcmp.gt.f32.partialorder %v5236, 0.0
      %vm5493 = vcmp.gt.f32.partialorder %v5237, 0.0
      %vm5494 = vcmp.gt.f32.partialorder %v5238, 0.0
      %vm5495 = vcmp.gt.f32.partialorder %v5239, 0.0
      %vm5496 = vcmp.gt.f32.partialorder %v5240, 0.0
      %vm5497 = vcmp.gt.f32.partialorder %v5241, 0.0
      %vm5498 = vcmp.gt.f32.partialorder %v5242, 0.0
      %vm5499 = vcmp.gt.f32.partialorder %v5243, 0.0
      %vm5500 = vcmp.gt.f32.partialorder %v5244, 0.0
      %vm5501 = vcmp.gt.f32.partialorder %v5245, 0.0
      %vm5502 = vcmp.gt.f32.partialorder %v5246, 0.0
      %vm5503 = vcmp.gt.f32.partialorder %v5247, 0.0
      %vm5504 = vcmp.gt.f32.partialorder %v5248, 0.0
      %vm5505 = vcmp.gt.f32.partialorder %v5249, 0.0
      %vm5506 = vcmp.gt.f32.partialorder %v5250, 0.0
      %vm5507 = vcmp.gt.f32.partialorder %v5251, 0.0
      %vm5508 = vcmp.gt.f32.partialorder %v5252, 0.0
      %vm5509 = vcmp.gt.f32.partialorder %v5253, 0.0
      %vm5510 = vcmp.gt.f32.partialorder %v5254, 0.0
      %vm5511 = vcmp.gt.f32.partialorder %v5255, 0.0
      %vm5512 = vcmp.gt.f32.partialorder %v5256, 0.0
      %vm5513 = vcmp.gt.f32.partialorder %v5257, 0.0
      %vm5514 = vcmp.gt.f32.partialorder %v5258, 0.0
      %vm5515 = vcmp.gt.f32.partialorder %v5259, 0.0
      %vm5516 = vcmp.gt.f32.partialorder %v5260, 0.0
      %vm5517 = vcmp.gt.f32.partialorder %v5261, 0.0
      %vm5518 = vcmp.gt.f32.partialorder %v5262, 0.0
      %vm5519 = vcmp.gt.f32.partialorder %v5263, 0.0
      %vm5520 = vcmp.gt.f32.partialorder %v5264, 0.0
      %vm5521 = vcmp.gt.f32.partialorder %v5265, 0.0
      %vm5522 = vcmp.gt.f32.partialorder %v5266, 0.0
      %vm5523 = vcmp.gt.f32.partialorder %v5267, 0.0
      %vm5524 = vcmp.gt.f32.partialorder %v5268, 0.0
      %vm5525 = vcmp.gt.f32.partialorder %v5269, 0.0
      %vm5526 = vcmp.gt.f32.partialorder %v5270, 0.0
      %vm5527 = vcmp.gt.f32.partialorder %v5271, 0.0
      %vm5528 = vcmp.gt.f32.partialorder %v5272, 0.0
      %vm5529 = vcmp.gt.f32.partialorder %v5273, 0.0
      %vm5530 = vcmp.gt.f32.partialorder %v5274, 0.0
      %vm5531 = vcmp.gt.f32.partialorder %v5275, 0.0
      %vm5532 = vcmp.gt.f32.partialorder %v5276, 0.0
      %vm5533 = vcmp.gt.f32.partialorder %v5277, 0.0
      %vm5534 = vcmp.gt.f32.partialorder %v5278, 0.0
      %vm5535 = vcmp.gt.f32.partialorder %v5279, 0.0
      %vm5536 = vcmp.gt.f32.partialorder %v5280, 0.0
      %vm5537 = vcmp.gt.f32.partialorder %v5281, 0.0
      %vm5538 = vcmp.gt.f32.partialorder %v5282, 0.0
      %vm5539 = vcmp.gt.f32.partialorder %v5283, 0.0
      %vm5540 = vcmp.gt.f32.partialorder %v5284, 0.0
      %vm5541 = vcmp.gt.f32.partialorder %v5285, 0.0
      %vm5542 = vcmp.gt.f32.partialorder %v5286, 0.0
      %vm5543 = vcmp.gt.f32.partialorder %v5287, 0.0
      %vm5544 = vcmp.gt.f32.partialorder %v5288, 0.0
      %vm5545 = vcmp.gt.f32.partialorder %v5289, 0.0
      %vm5546 = vcmp.gt.f32.partialorder %v5290, 0.0
      %vm5547 = vcmp.gt.f32.partialorder %v5291, 0.0
      %vm5548 = vcmp.gt.f32.partialorder %v5292, 0.0
      %vm5549 = vcmp.gt.f32.partialorder %v5293, 0.0
      %vm5550 = vcmp.gt.f32.partialorder %v5294, 0.0
      %vm5551 = vcmp.gt.f32.partialorder %v5295, 0.0
      %vm5552 = vcmp.gt.f32.partialorder %v5296, 0.0
      %vm5553 = vcmp.gt.f32.partialorder %v5297, 0.0
      %vm5554 = vcmp.gt.f32.partialorder %v5298, 0.0
      %vm5555 = vcmp.gt.f32.partialorder %v5299, 0.0
      %vm5556 = vcmp.gt.f32.partialorder %v5300, 0.0
      %vm5557 = vcmp.gt.f32.partialorder %v5301, 0.0
      %vm5558 = vcmp.gt.f32.partialorder %v5302, 0.0
      %vm5559 = vcmp.gt.f32.partialorder %v5303, 0.0
      %vm5560 = vcmp.gt.f32.partialorder %v5304, 0.0
      %vm5561 = vcmp.gt.f32.partialorder %v5305, 0.0
      %vm5562 = vcmp.gt.f32.partialorder %v5306, 0.0
      %vm5563 = vcmp.gt.f32.partialorder %v5307, 0.0
      %vm5564 = vcmp.gt.f32.partialorder %v5308, 0.0
      %vm5565 = vcmp.gt.f32.partialorder %v5309, 0.0
      %vm5566 = vcmp.gt.f32.partialorder %v5310, 0.0
      %vm5567 = vcmp.gt.f32.partialorder %v5311, 0.0
      %vm5568 = vcmp.gt.f32.partialorder %v5312, 0.0
      %vm5569 = vcmp.gt.f32.partialorder %v5313, 0.0
      %vm5570 = vcmp.gt.f32.partialorder %v5314, 0.0
      %vm5571 = vcmp.gt.f32.partialorder %v5315, 0.0
      %vm5572 = vcmp.gt.f32.partialorder %v5316, 0.0
      %vm5573 = vcmp.gt.f32.partialorder %v5317, 0.0
      %vm5574 = vcmp.gt.f32.partialorder %v5318, 0.0
      %vm5575 = vcmp.gt.f32.partialorder %v5319, 0.0
      %vm5576 = vcmp.gt.f32.partialorder %v5320, 0.0
      %vm5577 = vcmp.gt.f32.partialorder %v5321, 0.0
      %vm5578 = vcmp.gt.f32.partialorder %v5322, 0.0
      %vm5579 = vcmp.gt.f32.partialorder %v5323, 0.0
      %vm5580 = vcmp.gt.f32.partialorder %v5324, 0.0
      %vm5581 = vcmp.gt.f32.partialorder %v5325, 0.0
      %vm5582 = vcmp.gt.f32.partialorder %v5326, 0.0
      %vm5583 = vcmp.gt.f32.partialorder %v5327, 0.0
      %vm5584 = vcmp.gt.f32.partialorder %v5328, 0.0
      %vm5585 = vcmp.gt.f32.partialorder %v5329, 0.0
      %vm5586 = vcmp.gt.f32.partialorder %v5330, 0.0
      %vm5587 = vcmp.gt.f32.partialorder %v5331, 0.0
      %vm5588 = vcmp.gt.f32.partialorder %v5332, 0.0
      %vm5589 = vcmp.gt.f32.partialorder %v5333, 0.0
      %vm5590 = vcmp.gt.f32.partialorder %v5334, 0.0
      %vm5591 = vcmp.gt.f32.partialorder %v5335, 0.0
      %vm5592 = vcmp.gt.f32.partialorder %v5336, 0.0
      %vm5593 = vcmp.gt.f32.partialorder %v5337, 0.0
      %vm5594 = vcmp.gt.f32.partialorder %v5338, 0.0
      %vm5595 = vcmp.gt.f32.partialorder %v5339, 0.0
      %vm5596 = vcmp.gt.f32.partialorder %v5340, 0.0
      %vm5597 = vcmp.gt.f32.partialorder %v5341, 0.0
      %vm5598 = vcmp.gt.f32.partialorder %v5342, 0.0
      %vm5599 = vcmp.gt.f32.partialorder %v5343, 0.0
      %vm5600 = vcmp.gt.f32.partialorder %v5344, 0.0
      %vm5601 = vcmp.gt.f32.partialorder %v5345, 0.0
      %vm5602 = vcmp.gt.f32.partialorder %v5346, 0.0
      %vm5603 = vcmp.gt.f32.partialorder %v5347, 0.0
      %vm5604 = vcmp.gt.f32.partialorder %v5348, 0.0
      %vm5605 = vcmp.gt.f32.partialorder %v5349, 0.0
      %vm5606 = vcmp.gt.f32.partialorder %v5350, 0.0
      %vm5607 = vcmp.gt.f32.partialorder %v5351, 0.0
      %vm5608 = vcmp.gt.f32.partialorder %v5352, 0.0
      %vm5609 = vcmp.gt.f32.partialorder %v5353, 0.0
      %vm5610 = vcmp.gt.f32.partialorder %v5354, 0.0
      %vm5611 = vcmp.gt.f32.partialorder %v5355, 0.0
      %vm5612 = vcmp.gt.f32.partialorder %v5356, 0.0
      %vm5613 = vcmp.gt.f32.partialorder %v5357, 0.0
      %vm5614 = vcmp.gt.f32.partialorder %v5358, 0.0
      %vm5615 = vcmp.gt.f32.partialorder %v5359, 0.0
      %vm5616 = vcmp.gt.f32.partialorder %v5360, 0.0
      %vm5617 = vcmp.gt.f32.partialorder %v5361, 0.0
      %vm5618 = vcmp.gt.f32.partialorder %v5362, 0.0
      %vm5619 = vcmp.gt.f32.partialorder %v5363, 0.0
      %vm5620 = vcmp.gt.f32.partialorder %v5364, 0.0
      %vm5621 = vcmp.gt.f32.partialorder %v5365, 0.0
      %vm5622 = vcmp.gt.f32.partialorder %v5366, 0.0
      %vm5623 = vcmp.gt.f32.partialorder %v5367, 0.0
      %vm5624 = vcmp.gt.f32.partialorder %v5368, 0.0
      %vm5625 = vcmp.gt.f32.partialorder %v5369, 0.0
      %vm5626 = vcmp.gt.f32.partialorder %v5370, 0.0
      %vm5627 = vcmp.gt.f32.partialorder %v5371, 0.0
      %vm5628 = vcmp.gt.f32.partialorder %v5372, 0.0
      %vm5629 = vcmp.gt.f32.partialorder %v5373, 0.0
      %vm5630 = vcmp.gt.f32.partialorder %v5374, 0.0
      %vm5631 = vcmp.gt.f32.partialorder %v5375, 0.0
      %vm5632 = vcmp.gt.f32.partialorder %v5376, 0.0
      %vm5633 = vcmp.gt.f32.partialorder %v5377, 0.0
      %vm5634 = vcmp.gt.f32.partialorder %v5378, 0.0
      %vm5635 = vcmp.gt.f32.partialorder %v5379, 0.0
      %vm5636 = vcmp.gt.f32.partialorder %v5380, 0.0
      %vm5637 = vcmp.gt.f32.partialorder %v5381, 0.0
      %vm5638 = vcmp.gt.f32.partialorder %v5382, 0.0
      %vm5639 = vcmp.gt.f32.partialorder %v5383, 0.0
      %vm5640 = vcmp.gt.f32.partialorder %v5384, 0.0
      %vm5641 = vcmp.gt.f32.partialorder %v5385, 0.0
      %vm5642 = vcmp.gt.f32.partialorder %v5386, 0.0
      %vm5643 = vcmp.gt.f32.partialorder %v5387, 0.0
      %vm5644 = vcmp.gt.f32.partialorder %v5388, 0.0
      %vm5645 = vcmp.gt.f32.partialorder %v5389, 0.0
      %vm5646 = vcmp.gt.f32.partialorder %v5390, 0.0
      %vm5647 = vcmp.gt.f32.partialorder %v5391, 0.0
      %vm5648 = vcmp.gt.f32.partialorder %v5392, 0.0
      %vm5649 = vcmp.gt.f32.partialorder %v5393, 0.0
      %vm5650 = vcmp.gt.f32.partialorder %v5394, 0.0
      %vm5651 = vcmp.gt.f32.partialorder %v5395, 0.0
      %vm5652 = vcmp.gt.f32.partialorder %v5396, 0.0
      %vm5653 = vcmp.gt.f32.partialorder %v5397, 0.0
      %vm5654 = vcmp.gt.f32.partialorder %v5398, 0.0
      %vm5655 = vcmp.gt.f32.partialorder %v5399, 0.0
      %vm5656 = vcmp.gt.f32.partialorder %v5400, 0.0
      %vm5657 = vcmp.gt.f32.partialorder %v5401, 0.0
      %vm5658 = vcmp.gt.f32.partialorder %v5402, 0.0
      %vm5659 = vcmp.gt.f32.partialorder %v5403, 0.0
      %vm5660 = vcmp.gt.f32.partialorder %v5404, 0.0
      %vm5661 = vcmp.gt.f32.partialorder %v5405, 0.0
      %vm5662 = vcmp.gt.f32.partialorder %v5406, 0.0
      %vm5663 = vcmp.gt.f32.partialorder %v5407, 0.0
      %vm5664 = vcmp.gt.f32.partialorder %v5408, 0.0
      %vm5665 = vcmp.gt.f32.partialorder %v5409, 0.0
      %vm5666 = vcmp.gt.f32.partialorder %v5410, 0.0
      %vm5667 = vcmp.gt.f32.partialorder %v5411, 0.0
      %vm5668 = vcmp.gt.f32.partialorder %v5412, 0.0
      %vm5669 = vcmp.gt.f32.partialorder %v5413, 0.0
      %vm5670 = vcmp.gt.f32.partialorder %v5414, 0.0
      %vm5671 = vcmp.gt.f32.partialorder %v5415, 0.0
      %vm5672 = vcmp.gt.f32.partialorder %v5416, 0.0
      %vm5673 = vcmp.gt.f32.partialorder %v5417, 0.0
      %vm5674 = vcmp.gt.f32.partialorder %v5418, 0.0
      %vm5675 = vcmp.gt.f32.partialorder %v5419, 0.0
      %vm5676 = vcmp.gt.f32.partialorder %v5420, 0.0
      %vm5677 = vcmp.gt.f32.partialorder %v5421, 0.0
      %vm5678 = vcmp.gt.f32.partialorder %v5422, 0.0
      %vm5679 = vcmp.gt.f32.partialorder %v5423, 0.0
      %vm5680 = vcmp.gt.f32.partialorder %v5424, 0.0
      %vm5681 = vcmp.gt.f32.partialorder %v5425, 0.0
      %vm5682 = vcmp.gt.f32.partialorder %v5426, 0.0
      %vm5683 = vcmp.gt.f32.partialorder %v5427, 0.0
      %vm5684 = vcmp.gt.f32.partialorder %v5428, 0.0
      %vm5685 = vcmp.gt.f32.partialorder %v5429, 0.0
      %vm5686 = vcmp.gt.f32.partialorder %v5430, 0.0
      %vm5687 = vcmp.gt.f32.partialorder %v5431, 0.0
      %vm5688 = vcmp.gt.f32.partialorder %v5432, 0.0
      %vm5689 = vcmp.gt.f32.partialorder %v5433, 0.0
      %vm5690 = vcmp.gt.f32.partialorder %v5434, 0.0
      %vm5691 = vcmp.gt.f32.partialorder %v5435, 0.0
      %vm5692 = vcmp.gt.f32.partialorder %v5436, 0.0
      %vm5693 = vcmp.gt.f32.partialorder %v5437, 0.0
      %vm5694 = vcmp.gt.f32.partialorder %v5438, 0.0
      %vm5695 = vcmp.gt.f32.partialorder %v5439, 0.0
      %vm5696 = vcmp.gt.f32.partialorder %v5440, 0.0
      %vm5697 = vcmp.gt.f32.partialorder %v5441, 0.0
      %vm5698 = vcmp.gt.f32.partialorder %v5442, 0.0
      %vm5699 = vcmp.gt.f32.partialorder %v5443, 0.0
      %vm5700 = vcmp.gt.f32.partialorder %v5444, 0.0
      %vm5701 = vcmp.gt.f32.partialorder %v5445, 0.0
      %vm5702 = vcmp.gt.f32.partialorder %v5446, 0.0
      %vm5703 = vcmp.gt.f32.partialorder %v5447, 0.0
      %vm5704 = vcmp.gt.f32.partialorder %v5448, 0.0
      %vm5705 = vcmp.gt.f32.partialorder %v5449, 0.0
      %vm5706 = vcmp.gt.f32.partialorder %v5450, 0.0
      %vm5707 = vcmp.gt.f32.partialorder %v5451, 0.0
      %vm5708 = vcmp.gt.f32.partialorder %v5452, 0.0
      %vm5709 = vcmp.gt.f32.partialorder %v5453, 0.0
      %vm5710 = vcmp.gt.f32.partialorder %v5454, 0.0
      %vm5711 = vcmp.gt.f32.partialorder %v5455, 0.0
      %vm5712 = vcmp.gt.f32.partialorder %v5456, 0.0
      %vm5713 = vcmp.gt.f32.partialorder %v5457, 0.0
      %vm5714 = vcmp.gt.f32.partialorder %v5458, 0.0
      %vm5715 = vcmp.gt.f32.partialorder %v5459, 0.0
      %vm5716 = vcmp.gt.f32.partialorder %v5460, 0.0
      %vm5717 = vcmp.gt.f32.partialorder %v5461, 0.0
      %vm5718 = vcmp.gt.f32.partialorder %v5462, 0.0
      %vm5719 = vcmp.gt.f32.partialorder %v5463, 0.0
      %vm5720 = vcmp.gt.f32.partialorder %v5464, 0.0
      %vm5721 = vcmp.gt.f32.partialorder %v5465, 0.0
      %vm5722 = vcmp.gt.f32.partialorder %v5466, 0.0
      %vm5723 = vcmp.gt.f32.partialorder %v5467, 0.0
      %vm5724 = vcmp.gt.f32.partialorder %v5468, 0.0
      %vm5725 = vcmp.gt.f32.partialorder %v5469, 0.0
      %vm5726 = vcmp.gt.f32.partialorder %v5470, 0.0
      %vm5727 = vcmp.gt.f32.partialorder %v5471, 0.0
      %vm5728 = vcmp.gt.f32.partialorder %v5472, 0.0
      %vm5729 = vcmp.gt.f32.partialorder %v5473, 0.0
      %vm5730 = vcmp.gt.f32.partialorder %v5474, 0.0
      %vm5731 = vcmp.gt.f32.partialorder %v5475, 0.0
      %vm5732 = vcmp.gt.f32.partialorder %v5476, 0.0
      %vm5733 = vcmp.gt.f32.partialorder %v5477, 0.0
      %vm5734 = vcmp.gt.f32.partialorder %v5478, 0.0
      %vm5735 = vcmp.gt.f32.partialorder %v5479, 0.0
      %v5736 = vmul.f32 %v5224, 0.01
      %v5737 = vmul.f32 %v5225, 0.01
      %v5738 = vmul.f32 %v5226, 0.01
      %v5739 = vmul.f32 %v5227, 0.01
      %v5740 = vmul.f32 %v5228, 0.01
      %v5741 = vmul.f32 %v5229, 0.01
      %v5742 = vmul.f32 %v5230, 0.01
      %v5743 = vmul.f32 %v5231, 0.01
      %v5744 = vmul.f32 %v5232, 0.01
      %v5745 = vmul.f32 %v5233, 0.01
      %v5746 = vmul.f32 %v5234, 0.01
      %v5747 = vmul.f32 %v5235, 0.01
      %v5748 = vmul.f32 %v5236, 0.01
      %v5749 = vmul.f32 %v5237, 0.01
      %v5750 = vmul.f32 %v5238, 0.01
      %v5751 = vmul.f32 %v5239, 0.01
      %v5752 = vmul.f32 %v5240, 0.01
      %v5753 = vmul.f32 %v5241, 0.01
      %v5754 = vmul.f32 %v5242, 0.01
      %v5755 = vmul.f32 %v5243, 0.01
      %v5756 = vmul.f32 %v5244, 0.01
      %v5757 = vmul.f32 %v5245, 0.01
      %v5758 = vmul.f32 %v5246, 0.01
      %v5759 = vmul.f32 %v5247, 0.01
      %v5760 = vmul.f32 %v5248, 0.01
      %v5761 = vmul.f32 %v5249, 0.01
      %v5762 = vmul.f32 %v5250, 0.01
      %v5763 = vmul.f32 %v5251, 0.01
      %v5764 = vmul.f32 %v5252, 0.01
      %v5765 = vmul.f32 %v5253, 0.01
      %v5766 = vmul.f32 %v5254, 0.01
      %v5767 = vmul.f32 %v5255, 0.01
      %v5768 = vmul.f32 %v5256, 0.01
      %v5769 = vmul.f32 %v5257, 0.01
      %v5770 = vmul.f32 %v5258, 0.01
      %v5771 = vmul.f32 %v5259, 0.01
      %v5772 = vmul.f32 %v5260, 0.01
      %v5773 = vmul.f32 %v5261, 0.01
      %v5774 = vmul.f32 %v5262, 0.01
      %v5775 = vmul.f32 %v5263, 0.01
      %v5776 = vmul.f32 %v5264, 0.01
      %v5777 = vmul.f32 %v5265, 0.01
      %v5778 = vmul.f32 %v5266, 0.01
      %v5779 = vmul.f32 %v5267, 0.01
      %v5780 = vmul.f32 %v5268, 0.01
      %v5781 = vmul.f32 %v5269, 0.01
      %v5782 = vmul.f32 %v5270, 0.01
      %v5783 = vmul.f32 %v5271, 0.01
      %v5784 = vmul.f32 %v5272, 0.01
      %v5785 = vmul.f32 %v5273, 0.01
      %v5786 = vmul.f32 %v5274, 0.01
      %v5787 = vmul.f32 %v5275, 0.01
      %v5788 = vmul.f32 %v5276, 0.01
      %v5789 = vmul.f32 %v5277, 0.01
      %v5790 = vmul.f32 %v5278, 0.01
      %v5791 = vmul.f32 %v5279, 0.01
      %v5792 = vmul.f32 %v5280, 0.01
      %v5793 = vmul.f32 %v5281, 0.01
      %v5794 = vmul.f32 %v5282, 0.01
      %v5795 = vmul.f32 %v5283, 0.01
      %v5796 = vmul.f32 %v5284, 0.01
      %v5797 = vmul.f32 %v5285, 0.01
      %v5798 = vmul.f32 %v5286, 0.01
      %v5799 = vmul.f32 %v5287, 0.01
      %v5800 = vmul.f32 %v5288, 0.01
      %v5801 = vmul.f32 %v5289, 0.01
      %v5802 = vmul.f32 %v5290, 0.01
      %v5803 = vmul.f32 %v5291, 0.01
      %v5804 = vmul.f32 %v5292, 0.01
      %v5805 = vmul.f32 %v5293, 0.01
      %v5806 = vmul.f32 %v5294, 0.01
      %v5807 = vmul.f32 %v5295, 0.01
      %v5808 = vmul.f32 %v5296, 0.01
      %v5809 = vmul.f32 %v5297, 0.01
      %v5810 = vmul.f32 %v5298, 0.01
      %v5811 = vmul.f32 %v5299, 0.01
      %v5812 = vmul.f32 %v5300, 0.01
      %v5813 = vmul.f32 %v5301, 0.01
      %v5814 = vmul.f32 %v5302, 0.01
      %v5815 = vmul.f32 %v5303, 0.01
      %v5816 = vmul.f32 %v5304, 0.01
      %v5817 = vmul.f32 %v5305, 0.01
      %v5818 = vmul.f32 %v5306, 0.01
      %v5819 = vmul.f32 %v5307, 0.01
      %v5820 = vmul.f32 %v5308, 0.01
      %v5821 = vmul.f32 %v5309, 0.01
      %v5822 = vmul.f32 %v5310, 0.01
      %v5823 = vmul.f32 %v5311, 0.01
      %v5824 = vmul.f32 %v5312, 0.01
      %v5825 = vmul.f32 %v5313, 0.01
      %v5826 = vmul.f32 %v5314, 0.01
      %v5827 = vmul.f32 %v5315, 0.01
      %v5828 = vmul.f32 %v5316, 0.01
      %v5829 = vmul.f32 %v5317, 0.01
      %v5830 = vmul.f32 %v5318, 0.01
      %v5831 = vmul.f32 %v5319, 0.01
      %v5832 = vmul.f32 %v5320, 0.01
      %v5833 = vmul.f32 %v5321, 0.01
      %v5834 = vmul.f32 %v5322, 0.01
      %v5835 = vmul.f32 %v5323, 0.01
      %v5836 = vmul.f32 %v5324, 0.01
      %v5837 = vmul.f32 %v5325, 0.01
      %v5838 = vmul.f32 %v5326, 0.01
      %v5839 = vmul.f32 %v5327, 0.01
      %v5840 = vmul.f32 %v5328, 0.01
      %v5841 = vmul.f32 %v5329, 0.01
      %v5842 = vmul.f32 %v5330, 0.01
      %v5843 = vmul.f32 %v5331, 0.01
      %v5844 = vmul.f32 %v5332, 0.01
      %v5845 = vmul.f32 %v5333, 0.01
      %v5846 = vmul.f32 %v5334, 0.01
      %v5847 = vmul.f32 %v5335, 0.01
      %v5848 = vmul.f32 %v5336, 0.01
      %v5849 = vmul.f32 %v5337, 0.01
      %v5850 = vmul.f32 %v5338, 0.01
      %v5851 = vmul.f32 %v5339, 0.01
      %v5852 = vmul.f32 %v5340, 0.01
      %v5853 = vmul.f32 %v5341, 0.01
      %v5854 = vmul.f32 %v5342, 0.01
      %v5855 = vmul.f32 %v5343, 0.01
      %v5856 = vmul.f32 %v5344, 0.01
      %v5857 = vmul.f32 %v5345, 0.01
      %v5858 = vmul.f32 %v5346, 0.01
      %v5859 = vmul.f32 %v5347, 0.01
      %v5860 = vmul.f32 %v5348, 0.01
      %v5861 = vmul.f32 %v5349, 0.01
      %v5862 = vmul.f32 %v5350, 0.01
      %v5863 = vmul.f32 %v5351, 0.01
      %v5864 = vmul.f32 %v5352, 0.01
      %v5865 = vmul.f32 %v5353, 0.01
      %v5866 = vmul.f32 %v5354, 0.01
      %v5867 = vmul.f32 %v5355, 0.01
      %v5868 = vmul.f32 %v5356, 0.01
      %v5869 = vmul.f32 %v5357, 0.01
      %v5870 = vmul.f32 %v5358, 0.01
      %v5871 = vmul.f32 %v5359, 0.01
      %v5872 = vmul.f32 %v5360, 0.01
      %v5873 = vmul.f32 %v5361, 0.01
      %v5874 = vmul.f32 %v5362, 0.01
      %v5875 = vmul.f32 %v5363, 0.01
      %v5876 = vmul.f32 %v5364, 0.01
      %v5877 = vmul.f32 %v5365, 0.01
      %v5878 = vmul.f32 %v5366, 0.01
      %v5879 = vmul.f32 %v5367, 0.01
      %v5880 = vmul.f32 %v5368, 0.01
      %v5881 = vmul.f32 %v5369, 0.01
      %v5882 = vmul.f32 %v5370, 0.01
      %v5883 = vmul.f32 %v5371, 0.01
      %v5884 = vmul.f32 %v5372, 0.01
      %v5885 = vmul.f32 %v5373, 0.01
      %v5886 = vmul.f32 %v5374, 0.01
      %v5887 = vmul.f32 %v5375, 0.01
      %v5888 = vmul.f32 %v5376, 0.01
      %v5889 = vmul.f32 %v5377, 0.01
      %v5890 = vmul.f32 %v5378, 0.01
      %v5891 = vmul.f32 %v5379, 0.01
      %v5892 = vmul.f32 %v5380, 0.01
      %v5893 = vmul.f32 %v5381, 0.01
      %v5894 = vmul.f32 %v5382, 0.01
      %v5895 = vmul.f32 %v5383, 0.01
      %v5896 = vmul.f32 %v5384, 0.01
      %v5897 = vmul.f32 %v5385, 0.01
      %v5898 = vmul.f32 %v5386, 0.01
      %v5899 = vmul.f32 %v5387, 0.01
      %v5900 = vmul.f32 %v5388, 0.01
      %v5901 = vmul.f32 %v5389, 0.01
      %v5902 = vmul.f32 %v5390, 0.01
      %v5903 = vmul.f32 %v5391, 0.01
      %v5904 = vmul.f32 %v5392, 0.01
      %v5905 = vmul.f32 %v5393, 0.01
      %v5906 = vmul.f32 %v5394, 0.01
      %v5907 = vmul.f32 %v5395, 0.01
      %v5908 = vmul.f32 %v5396, 0.01
      %v5909 = vmul.f32 %v5397, 0.01
      %v5910 = vmul.f32 %v5398, 0.01
      %v5911 = vmul.f32 %v5399, 0.01
      %v5912 = vmul.f32 %v5400, 0.01
      %v5913 = vmul.f32 %v5401, 0.01
      %v5914 = vmul.f32 %v5402, 0.01
      %v5915 = vmul.f32 %v5403, 0.01
      %v5916 = vmul.f32 %v5404, 0.01
      %v5917 = vmul.f32 %v5405, 0.01
      %v5918 = vmul.f32 %v5406, 0.01
      %v5919 = vmul.f32 %v5407, 0.01
      %v5920 = vmul.f32 %v5408, 0.01
      %v5921 = vmul.f32 %v5409, 0.01
      %v5922 = vmul.f32 %v5410, 0.01
      %v5923 = vmul.f32 %v5411, 0.01
      %v5924 = vmul.f32 %v5412, 0.01
      %v5925 = vmul.f32 %v5413, 0.01
      %v5926 = vmul.f32 %v5414, 0.01
      %v5927 = vmul.f32 %v5415, 0.01
      %v5928 = vmul.f32 %v5416, 0.01
      %v5929 = vmul.f32 %v5417, 0.01
      %v5930 = vmul.f32 %v5418, 0.01
      %v5931 = vmul.f32 %v5419, 0.01
      %v5932 = vmul.f32 %v5420, 0.01
      %v5933 = vmul.f32 %v5421, 0.01
      %v5934 = vmul.f32 %v5422, 0.01
      %v5935 = vmul.f32 %v5423, 0.01
      %v5936 = vmul.f32 %v5424, 0.01
      %v5937 = vmul.f32 %v5425, 0.01
      %v5938 = vmul.f32 %v5426, 0.01
      %v5939 = vmul.f32 %v5427, 0.01
      %v5940 = vmul.f32 %v5428, 0.01
      %v5941 = vmul.f32 %v5429, 0.01
      %v5942 = vmul.f32 %v5430, 0.01
      %v5943 = vmul.f32 %v5431, 0.01
      %v5944 = vmul.f32 %v5432, 0.01
      %v5945 = vmul.f32 %v5433, 0.01
      %v5946 = vmul.f32 %v5434, 0.01
      %v5947 = vmul.f32 %v5435, 0.01
      %v5948 = vmul.f32 %v5436, 0.01
      %v5949 = vmul.f32 %v5437, 0.01
      %v5950 = vmul.f32 %v5438, 0.01
      %v5951 = vmul.f32 %v5439, 0.01
      %v5952 = vmul.f32 %v5440, 0.01
      %v5953 = vmul.f32 %v5441, 0.01
      %v5954 = vmul.f32 %v5442, 0.01
      %v5955 = vmul.f32 %v5443, 0.01
      %v5956 = vmul.f32 %v5444, 0.01
      %v5957 = vmul.f32 %v5445, 0.01
      %v5958 = vmul.f32 %v5446, 0.01
      %v5959 = vmul.f32 %v5447, 0.01
      %v5960 = vmul.f32 %v5448, 0.01
      %v5961 = vmul.f32 %v5449, 0.01
      %v5962 = vmul.f32 %v5450, 0.01
      %v5963 = vmul.f32 %v5451, 0.01
      %v5964 = vmul.f32 %v5452, 0.01
      %v5965 = vmul.f32 %v5453, 0.01
      %v5966 = vmul.f32 %v5454, 0.01
      %v5967 = vmul.f32 %v5455, 0.01
      %v5968 = vmul.f32 %v5456, 0.01
      %v5969 = vmul.f32 %v5457, 0.01
      %v5970 = vmul.f32 %v5458, 0.01
      %v5971 = vmul.f32 %v5459, 0.01
      %v5972 = vmul.f32 %v5460, 0.01
      %v5973 = vmul.f32 %v5461, 0.01
      %v5974 = vmul.f32 %v5462, 0.01
      %v5975 = vmul.f32 %v5463, 0.01
      %v5976 = vmul.f32 %v5464, 0.01
      %v5977 = vmul.f32 %v5465, 0.01
      %v5978 = vmul.f32 %v5466, 0.01
      %v5979 = vmul.f32 %v5467, 0.01
      %v5980 = vmul.f32 %v5468, 0.01
      %v5981 = vmul.f32 %v5469, 0.01
      %v5982 = vmul.f32 %v5470, 0.01
      %v5983 = vmul.f32 %v5471, 0.01
      %v5984 = vmul.f32 %v5472, 0.01
      %v5985 = vmul.f32 %v5473, 0.01
      %v5986 = vmul.f32 %v5474, 0.01
      %v5987 = vmul.f32 %v5475, 0.01
      %v5988 = vmul.f32 %v5476, 0.01
      %v5989 = vmul.f32 %v5477, 0.01
      %v5990 = vmul.f32 %v5478, 0.01
      %v5991 = vmul.f32 %v5479, 0.01
      %v5992 = vsel %vm5480, %v5224, %v5736
      %v5993 = vsel %vm5481, %v5225, %v5737
      %v5994 = vsel %vm5482, %v5226, %v5738
      %v5995 = vsel %vm5483, %v5227, %v5739
      %v5996 = vsel %vm5484, %v5228, %v5740
      %v5997 = vsel %vm5485, %v5229, %v5741
      %v5998 = vsel %vm5486, %v5230, %v5742
      %v5999 = vsel %vm5487, %v5231, %v5743
      %v6000 = vsel %vm5488, %v5232, %v5744
      %v6001 = vsel %vm5489, %v5233, %v5745
      %v6002 = vsel %vm5490, %v5234, %v5746
      %v6003 = vsel %vm5491, %v5235, %v5747
      %v6004 = vsel %vm5492, %v5236, %v5748
      %v6005 = vsel %vm5493, %v5237, %v5749
      %v6006 = vsel %vm5494, %v5238, %v5750
      %v6007 = vsel %vm5495, %v5239, %v5751
      %v6008 = vsel %vm5496, %v5240, %v5752
      %v6009 = vsel %vm5497, %v5241, %v5753
      %v6010 = vsel %vm5498, %v5242, %v5754
      %v6011 = vsel %vm5499, %v5243, %v5755
      %v6012 = vsel %vm5500, %v5244, %v5756
      %v6013 = vsel %vm5501, %v5245, %v5757
      %v6014 = vsel %vm5502, %v5246, %v5758
      %v6015 = vsel %vm5503, %v5247, %v5759
      %v6016 = vsel %vm5504, %v5248, %v5760
      %v6017 = vsel %vm5505, %v5249, %v5761
      %v6018 = vsel %vm5506, %v5250, %v5762
      %v6019 = vsel %vm5507, %v5251, %v5763
      %v6020 = vsel %vm5508, %v5252, %v5764
      %v6021 = vsel %vm5509, %v5253, %v5765
      %v6022 = vsel %vm5510, %v5254, %v5766
      %v6023 = vsel %vm5511, %v5255, %v5767
      %v6024 = vsel %vm5512, %v5256, %v5768
      %v6025 = vsel %vm5513, %v5257, %v5769
      %v6026 = vsel %vm5514, %v5258, %v5770
      %v6027 = vsel %vm5515, %v5259, %v5771
      %v6028 = vsel %vm5516, %v5260, %v5772
      %v6029 = vsel %vm5517, %v5261, %v5773
      %v6030 = vsel %vm5518, %v5262, %v5774
      %v6031 = vsel %vm5519, %v5263, %v5775
      %v6032 = vsel %vm5520, %v5264, %v5776
      %v6033 = vsel %vm5521, %v5265, %v5777
      %v6034 = vsel %vm5522, %v5266, %v5778
      %v6035 = vsel %vm5523, %v5267, %v5779
      %v6036 = vsel %vm5524, %v5268, %v5780
      %v6037 = vsel %vm5525, %v5269, %v5781
      %v6038 = vsel %vm5526, %v5270, %v5782
      %v6039 = vsel %vm5527, %v5271, %v5783
      %v6040 = vsel %vm5528, %v5272, %v5784
      %v6041 = vsel %vm5529, %v5273, %v5785
      %v6042 = vsel %vm5530, %v5274, %v5786
      %v6043 = vsel %vm5531, %v5275, %v5787
      %v6044 = vsel %vm5532, %v5276, %v5788
      %v6045 = vsel %vm5533, %v5277, %v5789
      %v6046 = vsel %vm5534, %v5278, %v5790
      %v6047 = vsel %vm5535, %v5279, %v5791
      %v6048 = vsel %vm5536, %v5280, %v5792
      %v6049 = vsel %vm5537, %v5281, %v5793
      %v6050 = vsel %vm5538, %v5282, %v5794
      %v6051 = vsel %vm5539, %v5283, %v5795
      %v6052 = vsel %vm5540, %v5284, %v5796
      %v6053 = vsel %vm5541, %v5285, %v5797
      %v6054 = vsel %vm5542, %v5286, %v5798
      %v6055 = vsel %vm5543, %v5287, %v5799
      %v6056 = vsel %vm5544, %v5288, %v5800
      %v6057 = vsel %vm5545, %v5289, %v5801
      %v6058 = vsel %vm5546, %v5290, %v5802
      %v6059 = vsel %vm5547, %v5291, %v5803
      %v6060 = vsel %vm5548, %v5292, %v5804
      %v6061 = vsel %vm5549, %v5293, %v5805
      %v6062 = vsel %vm5550, %v5294, %v5806
      %v6063 = vsel %vm5551, %v5295, %v5807
      %v6064 = vsel %vm5552, %v5296, %v5808
      %v6065 = vsel %vm5553, %v5297, %v5809
      %v6066 = vsel %vm5554, %v5298, %v5810
      %v6067 = vsel %vm5555, %v5299, %v5811
      %v6068 = vsel %vm5556, %v5300, %v5812
      %v6069 = vsel %vm5557, %v5301, %v5813
      %v6070 = vsel %vm5558, %v5302, %v5814
      %v6071 = vsel %vm5559, %v5303, %v5815
      %v6072 = vsel %vm5560, %v5304, %v5816
      %v6073 = vsel %vm5561, %v5305, %v5817
      %v6074 = vsel %vm5562, %v5306, %v5818
      %v6075 = vsel %vm5563, %v5307, %v5819
      %v6076 = vsel %vm5564, %v5308, %v5820
      %v6077 = vsel %vm5565, %v5309, %v5821
      %v6078 = vsel %vm5566, %v5310, %v5822
      %v6079 = vsel %vm5567, %v5311, %v5823
      %v6080 = vsel %vm5568, %v5312, %v5824
      %v6081 = vsel %vm5569, %v5313, %v5825
      %v6082 = vsel %vm5570, %v5314, %v5826
      %v6083 = vsel %vm5571, %v5315, %v5827
      %v6084 = vsel %vm5572, %v5316, %v5828
      %v6085 = vsel %vm5573, %v5317, %v5829
      %v6086 = vsel %vm5574, %v5318, %v5830
      %v6087 = vsel %vm5575, %v5319, %v5831
      %v6088 = vsel %vm5576, %v5320, %v5832
      %v6089 = vsel %vm5577, %v5321, %v5833
      %v6090 = vsel %vm5578, %v5322, %v5834
      %v6091 = vsel %vm5579, %v5323, %v5835
      %v6092 = vsel %vm5580, %v5324, %v5836
      %v6093 = vsel %vm5581, %v5325, %v5837
      %v6094 = vsel %vm5582, %v5326, %v5838
      %v6095 = vsel %vm5583, %v5327, %v5839
      %v6096 = vsel %vm5584, %v5328, %v5840
      %v6097 = vsel %vm5585, %v5329, %v5841
      %v6098 = vsel %vm5586, %v5330, %v5842
      %v6099 = vsel %vm5587, %v5331, %v5843
      %v6100 = vsel %vm5588, %v5332, %v5844
      %v6101 = vsel %vm5589, %v5333, %v5845
      %v6102 = vsel %vm5590, %v5334, %v5846
      %v6103 = vsel %vm5591, %v5335, %v5847
      %v6104 = vsel %vm5592, %v5336, %v5848
      %v6105 = vsel %vm5593, %v5337, %v5849
      %v6106 = vsel %vm5594, %v5338, %v5850
      %v6107 = vsel %vm5595, %v5339, %v5851
      %v6108 = vsel %vm5596, %v5340, %v5852
      %v6109 = vsel %vm5597, %v5341, %v5853
      %v6110 = vsel %vm5598, %v5342, %v5854
      %v6111 = vsel %vm5599, %v5343, %v5855
      %v6112 = vsel %vm5600, %v5344, %v5856
      %v6113 = vsel %vm5601, %v5345, %v5857
      %v6114 = vsel %vm5602, %v5346, %v5858
      %v6115 = vsel %vm5603, %v5347, %v5859
      %v6116 = vsel %vm5604, %v5348, %v5860
      %v6117 = vsel %vm5605, %v5349, %v5861
      %v6118 = vsel %vm5606, %v5350, %v5862
      %v6119 = vsel %vm5607, %v5351, %v5863
      %v6120 = vsel %vm5608, %v5352, %v5864
      %v6121 = vsel %vm5609, %v5353, %v5865
      %v6122 = vsel %vm5610, %v5354, %v5866
      %v6123 = vsel %vm5611, %v5355, %v5867
      %v6124 = vsel %vm5612, %v5356, %v5868
      %v6125 = vsel %vm5613, %v5357, %v5869
      %v6126 = vsel %vm5614, %v5358, %v5870
      %v6127 = vsel %vm5615, %v5359, %v5871
      %v6128 = vsel %vm5616, %v5360, %v5872
      %v6129 = vsel %vm5617, %v5361, %v5873
      %v6130 = vsel %vm5618, %v5362, %v5874
      %v6131 = vsel %vm5619, %v5363, %v5875
      %v6132 = vsel %vm5620, %v5364, %v5876
      %v6133 = vsel %vm5621, %v5365, %v5877
      %v6134 = vsel %vm5622, %v5366, %v5878
      %v6135 = vsel %vm5623, %v5367, %v5879
      %v6136 = vsel %vm5624, %v5368, %v5880
      %v6137 = vsel %vm5625, %v5369, %v5881
      %v6138 = vsel %vm5626, %v5370, %v5882
      %v6139 = vsel %vm5627, %v5371, %v5883
      %v6140 = vsel %vm5628, %v5372, %v5884
      %v6141 = vsel %vm5629, %v5373, %v5885
      %v6142 = vsel %vm5630, %v5374, %v5886
      %v6143 = vsel %vm5631, %v5375, %v5887
      %v6144 = vsel %vm5632, %v5376, %v5888
      %v6145 = vsel %vm5633, %v5377, %v5889
      %v6146 = vsel %vm5634, %v5378, %v5890
      %v6147 = vsel %vm5635, %v5379, %v5891
      %v6148 = vsel %vm5636, %v5380, %v5892
      %v6149 = vsel %vm5637, %v5381, %v5893
      %v6150 = vsel %vm5638, %v5382, %v5894
      %v6151 = vsel %vm5639, %v5383, %v5895
      %v6152 = vsel %vm5640, %v5384, %v5896
      %v6153 = vsel %vm5641, %v5385, %v5897
      %v6154 = vsel %vm5642, %v5386, %v5898
      %v6155 = vsel %vm5643, %v5387, %v5899
      %v6156 = vsel %vm5644, %v5388, %v5900
      %v6157 = vsel %vm5645, %v5389, %v5901
      %v6158 = vsel %vm5646, %v5390, %v5902
      %v6159 = vsel %vm5647, %v5391, %v5903
      %v6160 = vsel %vm5648, %v5392, %v5904
      %v6161 = vsel %vm5649, %v5393, %v5905
      %v6162 = vsel %vm5650, %v5394, %v5906
      %v6163 = vsel %vm5651, %v5395, %v5907
      %v6164 = vsel %vm5652, %v5396, %v5908
      %v6165 = vsel %vm5653, %v5397, %v5909
      %v6166 = vsel %vm5654, %v5398, %v5910
      %v6167 = vsel %vm5655, %v5399, %v5911
      %v6168 = vsel %vm5656, %v5400, %v5912
      %v6169 = vsel %vm5657, %v5401, %v5913
      %v6170 = vsel %vm5658, %v5402, %v5914
      %v6171 = vsel %vm5659, %v5403, %v5915
      %v6172 = vsel %vm5660, %v5404, %v5916
      %v6173 = vsel %vm5661, %v5405, %v5917
      %v6174 = vsel %vm5662, %v5406, %v5918
      %v6175 = vsel %vm5663, %v5407, %v5919
      %v6176 = vsel %vm5664, %v5408, %v5920
      %v6177 = vsel %vm5665, %v5409, %v5921
      %v6178 = vsel %vm5666, %v5410, %v5922
      %v6179 = vsel %vm5667, %v5411, %v5923
      %v6180 = vsel %vm5668, %v5412, %v5924
      %v6181 = vsel %vm5669, %v5413, %v5925
      %v6182 = vsel %vm5670, %v5414, %v5926
      %v6183 = vsel %vm5671, %v5415, %v5927
      %v6184 = vsel %vm5672, %v5416, %v5928
      %v6185 = vsel %vm5673, %v5417, %v5929
      %v6186 = vsel %vm5674, %v5418, %v5930
      %v6187 = vsel %vm5675, %v5419, %v5931
      %v6188 = vsel %vm5676, %v5420, %v5932
      %v6189 = vsel %vm5677, %v5421, %v5933
      %v6190 = vsel %vm5678, %v5422, %v5934
      %v6191 = vsel %vm5679, %v5423, %v5935
      %v6192 = vsel %vm5680, %v5424, %v5936
      %v6193 = vsel %vm5681, %v5425, %v5937
      %v6194 = vsel %vm5682, %v5426, %v5938
      %v6195 = vsel %vm5683, %v5427, %v5939
      %v6196 = vsel %vm5684, %v5428, %v5940
      %v6197 = vsel %vm5685, %v5429, %v5941
      %v6198 = vsel %vm5686, %v5430, %v5942
      %v6199 = vsel %vm5687, %v5431, %v5943
      %v6200 = vsel %vm5688, %v5432, %v5944
      %v6201 = vsel %vm5689, %v5433, %v5945
      %v6202 = vsel %vm5690, %v5434, %v5946
      %v6203 = vsel %vm5691, %v5435, %v5947
      %v6204 = vsel %vm5692, %v5436, %v5948
      %v6205 = vsel %vm5693, %v5437, %v5949
      %v6206 = vsel %vm5694, %v5438, %v5950
      %v6207 = vsel %vm5695, %v5439, %v5951
      %v6208 = vsel %vm5696, %v5440, %v5952
      %v6209 = vsel %vm5697, %v5441, %v5953
      %v6210 = vsel %vm5698, %v5442, %v5954
      %v6211 = vsel %vm5699, %v5443, %v5955
      %v6212 = vsel %vm5700, %v5444, %v5956
      %v6213 = vsel %vm5701, %v5445, %v5957
      %v6214 = vsel %vm5702, %v5446, %v5958
      %v6215 = vsel %vm5703, %v5447, %v5959
      %v6216 = vsel %vm5704, %v5448, %v5960
      %v6217 = vsel %vm5705, %v5449, %v5961
      %v6218 = vsel %vm5706, %v5450, %v5962
      %v6219 = vsel %vm5707, %v5451, %v5963
      %v6220 = vsel %vm5708, %v5452, %v5964
      %v6221 = vsel %vm5709, %v5453, %v5965
      %v6222 = vsel %vm5710, %v5454, %v5966
      %v6223 = vsel %vm5711, %v5455, %v5967
      %v6224 = vsel %vm5712, %v5456, %v5968
      %v6225 = vsel %vm5713, %v5457, %v5969
      %v6226 = vsel %vm5714, %v5458, %v5970
      %v6227 = vsel %vm5715, %v5459, %v5971
      %v6228 = vsel %vm5716, %v5460, %v5972
      %v6229 = vsel %vm5717, %v5461, %v5973
      %v6230 = vsel %vm5718, %v5462, %v5974
      %v6231 = vsel %vm5719, %v5463, %v5975
      %v6232 = vsel %vm5720, %v5464, %v5976
      %v6233 = vsel %vm5721, %v5465, %v5977
      %v6234 = vsel %vm5722, %v5466, %v5978
      %v6235 = vsel %vm5723, %v5467, %v5979
      %v6236 = vsel %vm5724, %v5468, %v5980
      %v6237 = vsel %vm5725, %v5469, %v5981
      %v6238 = vsel %vm5726, %v5470, %v5982
      %v6239 = vsel %vm5727, %v5471, %v5983
      %v6240 = vsel %vm5728, %v5472, %v5984
      %v6241 = vsel %vm5729, %v5473, %v5985
      %v6242 = vsel %vm5730, %v5474, %v5986
      %v6243 = vsel %vm5731, %v5475, %v5987
      %v6244 = vsel %vm5732, %v5476, %v5988
      %v6245 = vsel %vm5733, %v5477, %v5989
      %v6246 = vsel %vm5734, %v5478, %v5990
      %v6247 = vsel %vm5735, %v5479, %v5991
      %v6248 = vpack.c.bf16 %v5992, %v5992
      %v6249 = vpack.c.bf16 %v5993, %v5993
      %v6250 = vpack.c.bf16 %v5994, %v5994
      %v6251 = vpack.c.bf16 %v5995, %v5995
      %v6252 = vpack.c.bf16 %v5996, %v5996
      %v6253 = vpack.c.bf16 %v5997, %v5997
      %v6254 = vpack.c.bf16 %v5998, %v5998
      %v6255 = vpack.c.bf16 %v5999, %v5999
      %v6256 = vpack.c.bf16 %v6000, %v6000
      %v6257 = vpack.c.bf16 %v6001, %v6001
      %v6258 = vpack.c.bf16 %v6002, %v6002
      %v6259 = vpack.c.bf16 %v6003, %v6003
      %v6260 = vpack.c.bf16 %v6004, %v6004
      %v6261 = vpack.c.bf16 %v6005, %v6005
      %v6262 = vpack.c.bf16 %v6006, %v6006
      %v6263 = vpack.c.bf16 %v6007, %v6007
      %v6264 = vpack.c.bf16 %v6008, %v6008
      %v6265 = vpack.c.bf16 %v6009, %v6009
      %v6266 = vpack.c.bf16 %v6010, %v6010
      %v6267 = vpack.c.bf16 %v6011, %v6011
      %v6268 = vpack.c.bf16 %v6012, %v6012
      %v6269 = vpack.c.bf16 %v6013, %v6013
      %v6270 = vpack.c.bf16 %v6014, %v6014
      %v6271 = vpack.c.bf16 %v6015, %v6015
      %v6272 = vpack.c.bf16 %v6016, %v6016
      %v6273 = vpack.c.bf16 %v6017, %v6017
      %v6274 = vpack.c.bf16 %v6018, %v6018
      %v6275 = vpack.c.bf16 %v6019, %v6019
      %v6276 = vpack.c.bf16 %v6020, %v6020
      %v6277 = vpack.c.bf16 %v6021, %v6021
      %v6278 = vpack.c.bf16 %v6022, %v6022
      %v6279 = vpack.c.bf16 %v6023, %v6023
      %v6280 = vpack.c.bf16 %v6024, %v6024
      %v6281 = vpack.c.bf16 %v6025, %v6025
      %v6282 = vpack.c.bf16 %v6026, %v6026
      %v6283 = vpack.c.bf16 %v6027, %v6027
      %v6284 = vpack.c.bf16 %v6028, %v6028
      %v6285 = vpack.c.bf16 %v6029, %v6029
      %v6286 = vpack.c.bf16 %v6030, %v6030
      %v6287 = vpack.c.bf16 %v6031, %v6031
      %v6288 = vpack.c.bf16 %v6032, %v6032
      %v6289 = vpack.c.bf16 %v6033, %v6033
      %v6290 = vpack.c.bf16 %v6034, %v6034
      %v6291 = vpack.c.bf16 %v6035, %v6035
      %v6292 = vpack.c.bf16 %v6036, %v6036
      %v6293 = vpack.c.bf16 %v6037, %v6037
      %v6294 = vpack.c.bf16 %v6038, %v6038
      %v6295 = vpack.c.bf16 %v6039, %v6039
      %v6296 = vpack.c.bf16 %v6040, %v6040
      %v6297 = vpack.c.bf16 %v6041, %v6041
      %v6298 = vpack.c.bf16 %v6042, %v6042
      %v6299 = vpack.c.bf16 %v6043, %v6043
      %v6300 = vpack.c.bf16 %v6044, %v6044
      %v6301 = vpack.c.bf16 %v6045, %v6045
      %v6302 = vpack.c.bf16 %v6046, %v6046
      %v6303 = vpack.c.bf16 %v6047, %v6047
      %v6304 = vpack.c.bf16 %v6048, %v6048
      %v6305 = vpack.c.bf16 %v6049, %v6049
      %v6306 = vpack.c.bf16 %v6050, %v6050
      %v6307 = vpack.c.bf16 %v6051, %v6051
      %v6308 = vpack.c.bf16 %v6052, %v6052
      %v6309 = vpack.c.bf16 %v6053, %v6053
      %v6310 = vpack.c.bf16 %v6054, %v6054
      %v6311 = vpack.c.bf16 %v6055, %v6055
      %v6312 = vpack.c.bf16 %v6056, %v6056
      %v6313 = vpack.c.bf16 %v6057, %v6057
      %v6314 = vpack.c.bf16 %v6058, %v6058
      %v6315 = vpack.c.bf16 %v6059, %v6059
      %v6316 = vpack.c.bf16 %v6060, %v6060
      %v6317 = vpack.c.bf16 %v6061, %v6061
      %v6318 = vpack.c.bf16 %v6062, %v6062
      %v6319 = vpack.c.bf16 %v6063, %v6063
      %v6320 = vpack.c.bf16 %v6064, %v6064
      %v6321 = vpack.c.bf16 %v6065, %v6065
      %v6322 = vpack.c.bf16 %v6066, %v6066
      %v6323 = vpack.c.bf16 %v6067, %v6067
      %v6324 = vpack.c.bf16 %v6068, %v6068
      %v6325 = vpack.c.bf16 %v6069, %v6069
      %v6326 = vpack.c.bf16 %v6070, %v6070
      %v6327 = vpack.c.bf16 %v6071, %v6071
      %v6328 = vpack.c.bf16 %v6072, %v6072
      %v6329 = vpack.c.bf16 %v6073, %v6073
      %v6330 = vpack.c.bf16 %v6074, %v6074
      %v6331 = vpack.c.bf16 %v6075, %v6075
      %v6332 = vpack.c.bf16 %v6076, %v6076
      %v6333 = vpack.c.bf16 %v6077, %v6077
      %v6334 = vpack.c.bf16 %v6078, %v6078
      %v6335 = vpack.c.bf16 %v6079, %v6079
      %v6336 = vpack.c.bf16 %v6080, %v6080
      %v6337 = vpack.c.bf16 %v6081, %v6081
      %v6338 = vpack.c.bf16 %v6082, %v6082
      %v6339 = vpack.c.bf16 %v6083, %v6083
      %v6340 = vpack.c.bf16 %v6084, %v6084
      %v6341 = vpack.c.bf16 %v6085, %v6085
      %v6342 = vpack.c.bf16 %v6086, %v6086
      %v6343 = vpack.c.bf16 %v6087, %v6087
      %v6344 = vpack.c.bf16 %v6088, %v6088
      %v6345 = vpack.c.bf16 %v6089, %v6089
      %v6346 = vpack.c.bf16 %v6090, %v6090
      %v6347 = vpack.c.bf16 %v6091, %v6091
      %v6348 = vpack.c.bf16 %v6092, %v6092
      %v6349 = vpack.c.bf16 %v6093, %v6093
      %v6350 = vpack.c.bf16 %v6094, %v6094
      %v6351 = vpack.c.bf16 %v6095, %v6095
      %v6352 = vpack.c.bf16 %v6096, %v6096
      %v6353 = vpack.c.bf16 %v6097, %v6097
      %v6354 = vpack.c.bf16 %v6098, %v6098
      %v6355 = vpack.c.bf16 %v6099, %v6099
      %v6356 = vpack.c.bf16 %v6100, %v6100
      %v6357 = vpack.c.bf16 %v6101, %v6101
      %v6358 = vpack.c.bf16 %v6102, %v6102
      %v6359 = vpack.c.bf16 %v6103, %v6103
      %v6360 = vpack.c.bf16 %v6104, %v6104
      %v6361 = vpack.c.bf16 %v6105, %v6105
      %v6362 = vpack.c.bf16 %v6106, %v6106
      %v6363 = vpack.c.bf16 %v6107, %v6107
      %v6364 = vpack.c.bf16 %v6108, %v6108
      %v6365 = vpack.c.bf16 %v6109, %v6109
      %v6366 = vpack.c.bf16 %v6110, %v6110
      %v6367 = vpack.c.bf16 %v6111, %v6111
      %v6368 = vpack.c.bf16 %v6112, %v6112
      %v6369 = vpack.c.bf16 %v6113, %v6113
      %v6370 = vpack.c.bf16 %v6114, %v6114
      %v6371 = vpack.c.bf16 %v6115, %v6115
      %v6372 = vpack.c.bf16 %v6116, %v6116
      %v6373 = vpack.c.bf16 %v6117, %v6117
      %v6374 = vpack.c.bf16 %v6118, %v6118
      %v6375 = vpack.c.bf16 %v6119, %v6119
      %v6376 = vpack.c.bf16 %v6120, %v6120
      %v6377 = vpack.c.bf16 %v6121, %v6121
      %v6378 = vpack.c.bf16 %v6122, %v6122
      %v6379 = vpack.c.bf16 %v6123, %v6123
      %v6380 = vpack.c.bf16 %v6124, %v6124
      %v6381 = vpack.c.bf16 %v6125, %v6125
      %v6382 = vpack.c.bf16 %v6126, %v6126
      %v6383 = vpack.c.bf16 %v6127, %v6127
      %v6384 = vpack.c.bf16 %v6128, %v6128
      %v6385 = vpack.c.bf16 %v6129, %v6129
      %v6386 = vpack.c.bf16 %v6130, %v6130
      %v6387 = vpack.c.bf16 %v6131, %v6131
      %v6388 = vpack.c.bf16 %v6132, %v6132
      %v6389 = vpack.c.bf16 %v6133, %v6133
      %v6390 = vpack.c.bf16 %v6134, %v6134
      %v6391 = vpack.c.bf16 %v6135, %v6135
      %v6392 = vpack.c.bf16 %v6136, %v6136
      %v6393 = vpack.c.bf16 %v6137, %v6137
      %v6394 = vpack.c.bf16 %v6138, %v6138
      %v6395 = vpack.c.bf16 %v6139, %v6139
      %v6396 = vpack.c.bf16 %v6140, %v6140
      %v6397 = vpack.c.bf16 %v6141, %v6141
      %v6398 = vpack.c.bf16 %v6142, %v6142
      %v6399 = vpack.c.bf16 %v6143, %v6143
      %v6400 = vpack.c.bf16 %v6144, %v6144
      %v6401 = vpack.c.bf16 %v6145, %v6145
      %v6402 = vpack.c.bf16 %v6146, %v6146
      %v6403 = vpack.c.bf16 %v6147, %v6147
      %v6404 = vpack.c.bf16 %v6148, %v6148
      %v6405 = vpack.c.bf16 %v6149, %v6149
      %v6406 = vpack.c.bf16 %v6150, %v6150
      %v6407 = vpack.c.bf16 %v6151, %v6151
      %v6408 = vpack.c.bf16 %v6152, %v6152
      %v6409 = vpack.c.bf16 %v6153, %v6153
      %v6410 = vpack.c.bf16 %v6154, %v6154
      %v6411 = vpack.c.bf16 %v6155, %v6155
      %v6412 = vpack.c.bf16 %v6156, %v6156
      %v6413 = vpack.c.bf16 %v6157, %v6157
      %v6414 = vpack.c.bf16 %v6158, %v6158
      %v6415 = vpack.c.bf16 %v6159, %v6159
      %v6416 = vpack.c.bf16 %v6160, %v6160
      %v6417 = vpack.c.bf16 %v6161, %v6161
      %v6418 = vpack.c.bf16 %v6162, %v6162
      %v6419 = vpack.c.bf16 %v6163, %v6163
      %v6420 = vpack.c.bf16 %v6164, %v6164
      %v6421 = vpack.c.bf16 %v6165, %v6165
      %v6422 = vpack.c.bf16 %v6166, %v6166
      %v6423 = vpack.c.bf16 %v6167, %v6167
      %v6424 = vpack.c.bf16 %v6168, %v6168
      %v6425 = vpack.c.bf16 %v6169, %v6169
      %v6426 = vpack.c.bf16 %v6170, %v6170
      %v6427 = vpack.c.bf16 %v6171, %v6171
      %v6428 = vpack.c.bf16 %v6172, %v6172
      %v6429 = vpack.c.bf16 %v6173, %v6173
      %v6430 = vpack.c.bf16 %v6174, %v6174
      %v6431 = vpack.c.bf16 %v6175, %v6175
      %v6432 = vpack.c.bf16 %v6176, %v6176
      %v6433 = vpack.c.bf16 %v6177, %v6177
      %v6434 = vpack.c.bf16 %v6178, %v6178
      %v6435 = vpack.c.bf16 %v6179, %v6179
      %v6436 = vpack.c.bf16 %v6180, %v6180
      %v6437 = vpack.c.bf16 %v6181, %v6181
      %v6438 = vpack.c.bf16 %v6182, %v6182
      %v6439 = vpack.c.bf16 %v6183, %v6183
      %v6440 = vpack.c.bf16 %v6184, %v6184
      %v6441 = vpack.c.bf16 %v6185, %v6185
      %v6442 = vpack.c.bf16 %v6186, %v6186
      %v6443 = vpack.c.bf16 %v6187, %v6187
      %v6444 = vpack.c.bf16 %v6188, %v6188
      %v6445 = vpack.c.bf16 %v6189, %v6189
      %v6446 = vpack.c.bf16 %v6190, %v6190
      %v6447 = vpack.c.bf16 %v6191, %v6191
      %v6448 = vpack.c.bf16 %v6192, %v6192
      %v6449 = vpack.c.bf16 %v6193, %v6193
      %v6450 = vpack.c.bf16 %v6194, %v6194
      %v6451 = vpack.c.bf16 %v6195, %v6195
      %v6452 = vpack.c.bf16 %v6196, %v6196
      %v6453 = vpack.c.bf16 %v6197, %v6197
      %v6454 = vpack.c.bf16 %v6198, %v6198
      %v6455 = vpack.c.bf16 %v6199, %v6199
      %v6456 = vpack.c.bf16 %v6200, %v6200
      %v6457 = vpack.c.bf16 %v6201, %v6201
      %v6458 = vpack.c.bf16 %v6202, %v6202
      %v6459 = vpack.c.bf16 %v6203, %v6203
      %v6460 = vpack.c.bf16 %v6204, %v6204
      %v6461 = vpack.c.bf16 %v6205, %v6205
      %v6462 = vpack.c.bf16 %v6206, %v6206
      %v6463 = vpack.c.bf16 %v6207, %v6207
      %v6464 = vpack.c.bf16 %v6208, %v6208
      %v6465 = vpack.c.bf16 %v6209, %v6209
      %v6466 = vpack.c.bf16 %v6210, %v6210
      %v6467 = vpack.c.bf16 %v6211, %v6211
      %v6468 = vpack.c.bf16 %v6212, %v6212
      %v6469 = vpack.c.bf16 %v6213, %v6213
      %v6470 = vpack.c.bf16 %v6214, %v6214
      %v6471 = vpack.c.bf16 %v6215, %v6215
      %v6472 = vpack.c.bf16 %v6216, %v6216
      %v6473 = vpack.c.bf16 %v6217, %v6217
      %v6474 = vpack.c.bf16 %v6218, %v6218
      %v6475 = vpack.c.bf16 %v6219, %v6219
      %v6476 = vpack.c.bf16 %v6220, %v6220
      %v6477 = vpack.c.bf16 %v6221, %v6221
      %v6478 = vpack.c.bf16 %v6222, %v6222
      %v6479 = vpack.c.bf16 %v6223, %v6223
      %v6480 = vpack.c.bf16 %v6224, %v6224
      %v6481 = vpack.c.bf16 %v6225, %v6225
      %v6482 = vpack.c.bf16 %v6226, %v6226
      %v6483 = vpack.c.bf16 %v6227, %v6227
      %v6484 = vpack.c.bf16 %v6228, %v6228
      %v6485 = vpack.c.bf16 %v6229, %v6229
      %v6486 = vpack.c.bf16 %v6230, %v6230
      %v6487 = vpack.c.bf16 %v6231, %v6231
      %v6488 = vpack.c.bf16 %v6232, %v6232
      %v6489 = vpack.c.bf16 %v6233, %v6233
      %v6490 = vpack.c.bf16 %v6234, %v6234
      %v6491 = vpack.c.bf16 %v6235, %v6235
      %v6492 = vpack.c.bf16 %v6236, %v6236
      %v6493 = vpack.c.bf16 %v6237, %v6237
      %v6494 = vpack.c.bf16 %v6238, %v6238
      %v6495 = vpack.c.bf16 %v6239, %v6239
      %v6496 = vpack.c.bf16 %v6240, %v6240
      %v6497 = vpack.c.bf16 %v6241, %v6241
      %v6498 = vpack.c.bf16 %v6242, %v6242
      %v6499 = vpack.c.bf16 %v6243, %v6243
      %v6500 = vpack.c.bf16 %v6244, %v6244
      %v6501 = vpack.c.bf16 %v6245, %v6245
      %v6502 = vpack.c.bf16 %v6246, %v6246
      %v6503 = vpack.c.bf16 %v6247, %v6247
      %vm6504 = vcmask 486400
      %6505 = vst.msk [vmem:[%s229] sm:$0xf] %vm6504, %v6248
      %6506 = vst.msk [vmem:[%s229 + $0x4] sm:$0xf] %vm6504, %v6249
      %6507 = vst.msk [vmem:[%s229 + $0x8] sm:$0xf] %vm6504, %v6250
      %6508 = vst.msk [vmem:[%s229 + $0xc] sm:$0xf] %vm6504, %v6251
      %6509 = vst.msk [vmem:[%s229 + $0x10] sm:$0xf] %vm6504, %v6252
      %6510 = vst.msk [vmem:[%s229 + $0x14] sm:$0xf] %vm6504, %v6253
      %6511 = vst.msk [vmem:[%s229 + $0x18] sm:$0xf] %vm6504, %v6254
      %6512 = vst.msk [vmem:[%s229 + $0x1c] sm:$0xf] %vm6504, %v6255
      %6513 = vst.msk [vmem:[%s229 + $0x20] sm:$0xf] %vm6504, %v6256
      %6514 = vst.msk [vmem:[%s229 + $0x24] sm:$0xf] %vm6504, %v6257
      %6515 = vst.msk [vmem:[%s229 + $0x28] sm:$0xf] %vm6504, %v6258
      %6516 = vst.msk [vmem:[%s229 + $0x2c] sm:$0xf] %vm6504, %v6259
      %6517 = vst.msk [vmem:[%s229 + $0x30] sm:$0xf] %vm6504, %v6260
      %6518 = vst.msk [vmem:[%s229 + $0x34] sm:$0xf] %vm6504, %v6261
      %6519 = vst.msk [vmem:[%s229 + $0x38] sm:$0xf] %vm6504, %v6262
      %6520 = vst.msk [vmem:[%s229 + $0x3c] sm:$0xf] %vm6504, %v6263
      %6521 = vst.msk [vmem:[%s229 + $0x40] sm:$0xf] %vm6504, %v6264
      %6522 = vst.msk [vmem:[%s229 + $0x44] sm:$0xf] %vm6504, %v6265
      %6523 = vst.msk [vmem:[%s229 + $0x48] sm:$0xf] %vm6504, %v6266
      %6524 = vst.msk [vmem:[%s229 + $0x4c] sm:$0xf] %vm6504, %v6267
      %6525 = vst.msk [vmem:[%s229 + $0x50] sm:$0xf] %vm6504, %v6268
      %6526 = vst.msk [vmem:[%s229 + $0x54] sm:$0xf] %vm6504, %v6269
      %6527 = vst.msk [vmem:[%s229 + $0x58] sm:$0xf] %vm6504, %v6270
      %6528 = vst.msk [vmem:[%s229 + $0x5c] sm:$0xf] %vm6504, %v6271
      %6529 = vst.msk [vmem:[%s229 + $0x60] sm:$0xf] %vm6504, %v6272
      %6530 = vst.msk [vmem:[%s229 + $0x64] sm:$0xf] %vm6504, %v6273
      %6531 = vst.msk [vmem:[%s229 + $0x68] sm:$0xf] %vm6504, %v6274
      %6532 = vst.msk [vmem:[%s229 + $0x6c] sm:$0xf] %vm6504, %v6275
      %6533 = vst.msk [vmem:[%s229 + $0x70] sm:$0xf] %vm6504, %v6276
      %6534 = vst.msk [vmem:[%s229 + $0x74] sm:$0xf] %vm6504, %v6277
      %6535 = vst.msk [vmem:[%s229 + $0x78] sm:$0xf] %vm6504, %v6278
      %6536 = vst.msk [vmem:[%s229 + $0x7c] sm:$0xf] %vm6504, %v6279
      %6537 = vst.msk [vmem:[%s229 + $0x80] sm:$0xf] %vm6504, %v6280
      %6538 = vst.msk [vmem:[%s229 + $0x84] sm:$0xf] %vm6504, %v6281
      %6539 = vst.msk [vmem:[%s229 + $0x88] sm:$0xf] %vm6504, %v6282
      %6540 = vst.msk [vmem:[%s229 + $0x8c] sm:$0xf] %vm6504, %v6283
      %6541 = vst.msk [vmem:[%s229 + $0x90] sm:$0xf] %vm6504, %v6284
      %6542 = vst.msk [vmem:[%s229 + $0x94] sm:$0xf] %vm6504, %v6285
      %6543 = vst.msk [vmem:[%s229 + $0x98] sm:$0xf] %vm6504, %v6286
      %6544 = vst.msk [vmem:[%s229 + $0x9c] sm:$0xf] %vm6504, %v6287
      %6545 = vst.msk [vmem:[%s229 + $0xa0] sm:$0xf] %vm6504, %v6288
      %6546 = vst.msk [vmem:[%s229 + $0xa4] sm:$0xf] %vm6504, %v6289
      %6547 = vst.msk [vmem:[%s229 + $0xa8] sm:$0xf] %vm6504, %v6290
      %6548 = vst.msk [vmem:[%s229 + $0xac] sm:$0xf] %vm6504, %v6291
      %6549 = vst.msk [vmem:[%s229 + $0xb0] sm:$0xf] %vm6504, %v6292
      %6550 = vst.msk [vmem:[%s229 + $0xb4] sm:$0xf] %vm6504, %v6293
      %6551 = vst.msk [vmem:[%s229 + $0xb8] sm:$0xf] %vm6504, %v6294
      %6552 = vst.msk [vmem:[%s229 + $0xbc] sm:$0xf] %vm6504, %v6295
      %6553 = vst.msk [vmem:[%s229 + $0xc0] sm:$0xf] %vm6504, %v6296
      %6554 = vst.msk [vmem:[%s229 + $0xc4] sm:$0xf] %vm6504, %v6297
      %6555 = vst.msk [vmem:[%s229 + $0xc8] sm:$0xf] %vm6504, %v6298
      %6556 = vst.msk [vmem:[%s229 + $0xcc] sm:$0xf] %vm6504, %v6299
      %6557 = vst.msk [vmem:[%s229 + $0xd0] sm:$0xf] %vm6504, %v6300
      %6558 = vst.msk [vmem:[%s229 + $0xd4] sm:$0xf] %vm6504, %v6301
      %6559 = vst.msk [vmem:[%s229 + $0xd8] sm:$0xf] %vm6504, %v6302
      %6560 = vst.msk [vmem:[%s229 + $0xdc] sm:$0xf] %vm6504, %v6303
      %6561 = vst.msk [vmem:[%s229 + $0xe0] sm:$0xf] %vm6504, %v6304
      %6562 = vst.msk [vmem:[%s229 + $0xe4] sm:$0xf] %vm6504, %v6305
      %6563 = vst.msk [vmem:[%s229 + $0xe8] sm:$0xf] %vm6504, %v6306
      %6564 = vst.msk [vmem:[%s229 + $0xec] sm:$0xf] %vm6504, %v6307
      %6565 = vst.msk [vmem:[%s229 + $0xf0] sm:$0xf] %vm6504, %v6308
      %6566 = vst.msk [vmem:[%s229 + $0xf4] sm:$0xf] %vm6504, %v6309
      %6567 = vst.msk [vmem:[%s229 + $0xf8] sm:$0xf] %vm6504, %v6310
      %6568 = vst.msk [vmem:[%s229 + $0xfc] sm:$0xf] %vm6504, %v6311
      %6569 = vst.msk [vmem:[%s229 + $0x100] sm:$0xf] %vm6504, %v6312
      %6570 = vst.msk [vmem:[%s229 + $0x104] sm:$0xf] %vm6504, %v6313
      %6571 = vst.msk [vmem:[%s229 + $0x108] sm:$0xf] %vm6504, %v6314
      %6572 = vst.msk [vmem:[%s229 + $0x10c] sm:$0xf] %vm6504, %v6315
      %6573 = vst.msk [vmem:[%s229 + $0x110] sm:$0xf] %vm6504, %v6316
      %6574 = vst.msk [vmem:[%s229 + $0x114] sm:$0xf] %vm6504, %v6317
      %6575 = vst.msk [vmem:[%s229 + $0x118] sm:$0xf] %vm6504, %v6318
      %6576 = vst.msk [vmem:[%s229 + $0x11c] sm:$0xf] %vm6504, %v6319
      %6577 = vst.msk [vmem:[%s229 + $0x120] sm:$0xf] %vm6504, %v6320
      %6578 = vst.msk [vmem:[%s229 + $0x124] sm:$0xf] %vm6504, %v6321
      %6579 = vst.msk [vmem:[%s229 + $0x128] sm:$0xf] %vm6504, %v6322
      %6580 = vst.msk [vmem:[%s229 + $0x12c] sm:$0xf] %vm6504, %v6323
      %6581 = vst.msk [vmem:[%s229 + $0x130] sm:$0xf] %vm6504, %v6324
      %6582 = vst.msk [vmem:[%s229 + $0x134] sm:$0xf] %vm6504, %v6325
      %6583 = vst.msk [vmem:[%s229 + $0x138] sm:$0xf] %vm6504, %v6326
      %6584 = vst.msk [vmem:[%s229 + $0x13c] sm:$0xf] %vm6504, %v6327
      %6585 = vst.msk [vmem:[%s229 + $0x140] sm:$0xf] %vm6504, %v6328
      %6586 = vst.msk [vmem:[%s229 + $0x144] sm:$0xf] %vm6504, %v6329
      %6587 = vst.msk [vmem:[%s229 + $0x148] sm:$0xf] %vm6504, %v6330
      %6588 = vst.msk [vmem:[%s229 + $0x14c] sm:$0xf] %vm6504, %v6331
      %6589 = vst.msk [vmem:[%s229 + $0x150] sm:$0xf] %vm6504, %v6332
      %6590 = vst.msk [vmem:[%s229 + $0x154] sm:$0xf] %vm6504, %v6333
      %6591 = vst.msk [vmem:[%s229 + $0x158] sm:$0xf] %vm6504, %v6334
      %6592 = vst.msk [vmem:[%s229 + $0x15c] sm:$0xf] %vm6504, %v6335
      %6593 = vst.msk [vmem:[%s229 + $0x160] sm:$0xf] %vm6504, %v6336
      %6594 = vst.msk [vmem:[%s229 + $0x164] sm:$0xf] %vm6504, %v6337
      %6595 = vst.msk [vmem:[%s229 + $0x168] sm:$0xf] %vm6504, %v6338
      %6596 = vst.msk [vmem:[%s229 + $0x16c] sm:$0xf] %vm6504, %v6339
      %6597 = vst.msk [vmem:[%s229 + $0x170] sm:$0xf] %vm6504, %v6340
      %6598 = vst.msk [vmem:[%s229 + $0x174] sm:$0xf] %vm6504, %v6341
      %6599 = vst.msk [vmem:[%s229 + $0x178] sm:$0xf] %vm6504, %v6342
      %6600 = vst.msk [vmem:[%s229 + $0x17c] sm:$0xf] %vm6504, %v6343
      %6601 = vst.msk [vmem:[%s229 + $0x180] sm:$0xf] %vm6504, %v6344
      %6602 = vst.msk [vmem:[%s229 + $0x184] sm:$0xf] %vm6504, %v6345
      %6603 = vst.msk [vmem:[%s229 + $0x188] sm:$0xf] %vm6504, %v6346
      %6604 = vst.msk [vmem:[%s229 + $0x18c] sm:$0xf] %vm6504, %v6347
      %6605 = vst.msk [vmem:[%s229 + $0x190] sm:$0xf] %vm6504, %v6348
      %6606 = vst.msk [vmem:[%s229 + $0x194] sm:$0xf] %vm6504, %v6349
      %6607 = vst.msk [vmem:[%s229 + $0x198] sm:$0xf] %vm6504, %v6350
      %6608 = vst.msk [vmem:[%s229 + $0x19c] sm:$0xf] %vm6504, %v6351
      %6609 = vst.msk [vmem:[%s229 + $0x1a0] sm:$0xf] %vm6504, %v6352
      %6610 = vst.msk [vmem:[%s229 + $0x1a4] sm:$0xf] %vm6504, %v6353
      %6611 = vst.msk [vmem:[%s229 + $0x1a8] sm:$0xf] %vm6504, %v6354
      %6612 = vst.msk [vmem:[%s229 + $0x1ac] sm:$0xf] %vm6504, %v6355
      %6613 = vst.msk [vmem:[%s229 + $0x1b0] sm:$0xf] %vm6504, %v6356
      %6614 = vst.msk [vmem:[%s229 + $0x1b4] sm:$0xf] %vm6504, %v6357
      %6615 = vst.msk [vmem:[%s229 + $0x1b8] sm:$0xf] %vm6504, %v6358
      %6616 = vst.msk [vmem:[%s229 + $0x1bc] sm:$0xf] %vm6504, %v6359
      %6617 = vst.msk [vmem:[%s229 + $0x1c0] sm:$0xf] %vm6504, %v6360
      %6618 = vst.msk [vmem:[%s229 + $0x1c4] sm:$0xf] %vm6504, %v6361
      %6619 = vst.msk [vmem:[%s229 + $0x1c8] sm:$0xf] %vm6504, %v6362
      %6620 = vst.msk [vmem:[%s229 + $0x1cc] sm:$0xf] %vm6504, %v6363
      %6621 = vst.msk [vmem:[%s229 + $0x1d0] sm:$0xf] %vm6504, %v6364
      %6622 = vst.msk [vmem:[%s229 + $0x1d4] sm:$0xf] %vm6504, %v6365
      %6623 = vst.msk [vmem:[%s229 + $0x1d8] sm:$0xf] %vm6504, %v6366
      %6624 = vst.msk [vmem:[%s229 + $0x1dc] sm:$0xf] %vm6504, %v6367
      %6625 = vst.msk [vmem:[%s229 + $0x1e0] sm:$0xf] %vm6504, %v6368
      %6626 = vst.msk [vmem:[%s229 + $0x1e4] sm:$0xf] %vm6504, %v6369
      %6627 = vst.msk [vmem:[%s229 + $0x1e8] sm:$0xf] %vm6504, %v6370
      %6628 = vst.msk [vmem:[%s229 + $0x1ec] sm:$0xf] %vm6504, %v6371
      %6629 = vst.msk [vmem:[%s229 + $0x1f0] sm:$0xf] %vm6504, %v6372
      %6630 = vst.msk [vmem:[%s229 + $0x1f4] sm:$0xf] %vm6504, %v6373
      %6631 = vst.msk [vmem:[%s229 + $0x1f8] sm:$0xf] %vm6504, %v6374
      %6632 = vst.msk [vmem:[%s229 + $0x1fc] sm:$0xf] %vm6504, %v6375
      %6633 = vst.msk [vmem:[%s229 + $0x200] sm:$0xf] %vm6504, %v6376
      %6634 = vst.msk [vmem:[%s229 + $0x204] sm:$0xf] %vm6504, %v6377
      %6635 = vst.msk [vmem:[%s229 + $0x208] sm:$0xf] %vm6504, %v6378
      %6636 = vst.msk [vmem:[%s229 + $0x20c] sm:$0xf] %vm6504, %v6379
      %6637 = vst.msk [vmem:[%s229 + $0x210] sm:$0xf] %vm6504, %v6380
      %6638 = vst.msk [vmem:[%s229 + $0x214] sm:$0xf] %vm6504, %v6381
      %6639 = vst.msk [vmem:[%s229 + $0x218] sm:$0xf] %vm6504, %v6382
      %6640 = vst.msk [vmem:[%s229 + $0x21c] sm:$0xf] %vm6504, %v6383
      %6641 = vst.msk [vmem:[%s229 + $0x220] sm:$0xf] %vm6504, %v6384
      %6642 = vst.msk [vmem:[%s229 + $0x224] sm:$0xf] %vm6504, %v6385
      %6643 = vst.msk [vmem:[%s229 + $0x228] sm:$0xf] %vm6504, %v6386
      %6644 = vst.msk [vmem:[%s229 + $0x22c] sm:$0xf] %vm6504, %v6387
      %6645 = vst.msk [vmem:[%s229 + $0x230] sm:$0xf] %vm6504, %v6388
      %6646 = vst.msk [vmem:[%s229 + $0x234] sm:$0xf] %vm6504, %v6389
      %6647 = vst.msk [vmem:[%s229 + $0x238] sm:$0xf] %vm6504, %v6390
      %6648 = vst.msk [vmem:[%s229 + $0x23c] sm:$0xf] %vm6504, %v6391
      %6649 = vst.msk [vmem:[%s229 + $0x240] sm:$0xf] %vm6504, %v6392
      %6650 = vst.msk [vmem:[%s229 + $0x244] sm:$0xf] %vm6504, %v6393
      %6651 = vst.msk [vmem:[%s229 + $0x248] sm:$0xf] %vm6504, %v6394
      %6652 = vst.msk [vmem:[%s229 + $0x24c] sm:$0xf] %vm6504, %v6395
      %6653 = vst.msk [vmem:[%s229 + $0x250] sm:$0xf] %vm6504, %v6396
      %6654 = vst.msk [vmem:[%s229 + $0x254] sm:$0xf] %vm6504, %v6397
      %6655 = vst.msk [vmem:[%s229 + $0x258] sm:$0xf] %vm6504, %v6398
      %6656 = vst.msk [vmem:[%s229 + $0x25c] sm:$0xf] %vm6504, %v6399
      %6657 = vst.msk [vmem:[%s229 + $0x260] sm:$0xf] %vm6504, %v6400
      %6658 = vst.msk [vmem:[%s229 + $0x264] sm:$0xf] %vm6504, %v6401
      %6659 = vst.msk [vmem:[%s229 + $0x268] sm:$0xf] %vm6504, %v6402
      %6660 = vst.msk [vmem:[%s229 + $0x26c] sm:$0xf] %vm6504, %v6403
      %6661 = vst.msk [vmem:[%s229 + $0x270] sm:$0xf] %vm6504, %v6404
      %6662 = vst.msk [vmem:[%s229 + $0x274] sm:$0xf] %vm6504, %v6405
      %6663 = vst.msk [vmem:[%s229 + $0x278] sm:$0xf] %vm6504, %v6406
      %6664 = vst.msk [vmem:[%s229 + $0x27c] sm:$0xf] %vm6504, %v6407
      %6665 = vst.msk [vmem:[%s229 + $0x280] sm:$0xf] %vm6504, %v6408
      %6666 = vst.msk [vmem:[%s229 + $0x284] sm:$0xf] %vm6504, %v6409
      %6667 = vst.msk [vmem:[%s229 + $0x288] sm:$0xf] %vm6504, %v6410
      %6668 = vst.msk [vmem:[%s229 + $0x28c] sm:$0xf] %vm6504, %v6411
      %6669 = vst.msk [vmem:[%s229 + $0x290] sm:$0xf] %vm6504, %v6412
      %6670 = vst.msk [vmem:[%s229 + $0x294] sm:$0xf] %vm6504, %v6413
      %6671 = vst.msk [vmem:[%s229 + $0x298] sm:$0xf] %vm6504, %v6414
      %6672 = vst.msk [vmem:[%s229 + $0x29c] sm:$0xf] %vm6504, %v6415
      %6673 = vst.msk [vmem:[%s229 + $0x2a0] sm:$0xf] %vm6504, %v6416
      %6674 = vst.msk [vmem:[%s229 + $0x2a4] sm:$0xf] %vm6504, %v6417
      %6675 = vst.msk [vmem:[%s229 + $0x2a8] sm:$0xf] %vm6504, %v6418
      %6676 = vst.msk [vmem:[%s229 + $0x2ac] sm:$0xf] %vm6504, %v6419
      %6677 = vst.msk [vmem:[%s229 + $0x2b0] sm:$0xf] %vm6504, %v6420
      %6678 = vst.msk [vmem:[%s229 + $0x2b4] sm:$0xf] %vm6504, %v6421
      %6679 = vst.msk [vmem:[%s229 + $0x2b8] sm:$0xf] %vm6504, %v6422
      %6680 = vst.msk [vmem:[%s229 + $0x2bc] sm:$0xf] %vm6504, %v6423
      %6681 = vst.msk [vmem:[%s229 + $0x2c0] sm:$0xf] %vm6504, %v6424
      %6682 = vst.msk [vmem:[%s229 + $0x2c4] sm:$0xf] %vm6504, %v6425
      %6683 = vst.msk [vmem:[%s229 + $0x2c8] sm:$0xf] %vm6504, %v6426
      %6684 = vst.msk [vmem:[%s229 + $0x2cc] sm:$0xf] %vm6504, %v6427
      %6685 = vst.msk [vmem:[%s229 + $0x2d0] sm:$0xf] %vm6504, %v6428
      %6686 = vst.msk [vmem:[%s229 + $0x2d4] sm:$0xf] %vm6504, %v6429
      %6687 = vst.msk [vmem:[%s229 + $0x2d8] sm:$0xf] %vm6504, %v6430
      %6688 = vst.msk [vmem:[%s229 + $0x2dc] sm:$0xf] %vm6504, %v6431
      %6689 = vst.msk [vmem:[%s229 + $0x2e0] sm:$0xf] %vm6504, %v6432
      %6690 = vst.msk [vmem:[%s229 + $0x2e4] sm:$0xf] %vm6504, %v6433
      %6691 = vst.msk [vmem:[%s229 + $0x2e8] sm:$0xf] %vm6504, %v6434
      %6692 = vst.msk [vmem:[%s229 + $0x2ec] sm:$0xf] %vm6504, %v6435
      %6693 = vst.msk [vmem:[%s229 + $0x2f0] sm:$0xf] %vm6504, %v6436
      %6694 = vst.msk [vmem:[%s229 + $0x2f4] sm:$0xf] %vm6504, %v6437
      %6695 = vst.msk [vmem:[%s229 + $0x2f8] sm:$0xf] %vm6504, %v6438
      %6696 = vst.msk [vmem:[%s229 + $0x2fc] sm:$0xf] %vm6504, %v6439
      %6697 = vst.msk [vmem:[%s229 + $0x300] sm:$0xf] %vm6504, %v6440
      %6698 = vst.msk [vmem:[%s229 + $0x304] sm:$0xf] %vm6504, %v6441
      %6699 = vst.msk [vmem:[%s229 + $0x308] sm:$0xf] %vm6504, %v6442
      %6700 = vst.msk [vmem:[%s229 + $0x30c] sm:$0xf] %vm6504, %v6443
      %6701 = vst.msk [vmem:[%s229 + $0x310] sm:$0xf] %vm6504, %v6444
      %6702 = vst.msk [vmem:[%s229 + $0x314] sm:$0xf] %vm6504, %v6445
      %6703 = vst.msk [vmem:[%s229 + $0x318] sm:$0xf] %vm6504, %v6446
      %6704 = vst.msk [vmem:[%s229 + $0x31c] sm:$0xf] %vm6504, %v6447
      %6705 = vst.msk [vmem:[%s229 + $0x320] sm:$0xf] %vm6504, %v6448
      %6706 = vst.msk [vmem:[%s229 + $0x324] sm:$0xf] %vm6504, %v6449
      %6707 = vst.msk [vmem:[%s229 + $0x328] sm:$0xf] %vm6504, %v6450
      %6708 = vst.msk [vmem:[%s229 + $0x32c] sm:$0xf] %vm6504, %v6451
      %6709 = vst.msk [vmem:[%s229 + $0x330] sm:$0xf] %vm6504, %v6452
      %6710 = vst.msk [vmem:[%s229 + $0x334] sm:$0xf] %vm6504, %v6453
      %6711 = vst.msk [vmem:[%s229 + $0x338] sm:$0xf] %vm6504, %v6454
      %6712 = vst.msk [vmem:[%s229 + $0x33c] sm:$0xf] %vm6504, %v6455
      %6713 = vst.msk [vmem:[%s229 + $0x340] sm:$0xf] %vm6504, %v6456
      %6714 = vst.msk [vmem:[%s229 + $0x344] sm:$0xf] %vm6504, %v6457
      %6715 = vst.msk [vmem:[%s229 + $0x348] sm:$0xf] %vm6504, %v6458
      %6716 = vst.msk [vmem:[%s229 + $0x34c] sm:$0xf] %vm6504, %v6459
      %6717 = vst.msk [vmem:[%s229 + $0x350] sm:$0xf] %vm6504, %v6460
      %6718 = vst.msk [vmem:[%s229 + $0x354] sm:$0xf] %vm6504, %v6461
      %6719 = vst.msk [vmem:[%s229 + $0x358] sm:$0xf] %vm6504, %v6462
      %6720 = vst.msk [vmem:[%s229 + $0x35c] sm:$0xf] %vm6504, %v6463
      %6721 = vst.msk [vmem:[%s229 + $0x360] sm:$0xf] %vm6504, %v6464
      %6722 = vst.msk [vmem:[%s229 + $0x364] sm:$0xf] %vm6504, %v6465
      %6723 = vst.msk [vmem:[%s229 + $0x368] sm:$0xf] %vm6504, %v6466
      %6724 = vst.msk [vmem:[%s229 + $0x36c] sm:$0xf] %vm6504, %v6467
      %6725 = vst.msk [vmem:[%s229 + $0x370] sm:$0xf] %vm6504, %v6468
      %6726 = vst.msk [vmem:[%s229 + $0x374] sm:$0xf] %vm6504, %v6469
      %6727 = vst.msk [vmem:[%s229 + $0x378] sm:$0xf] %vm6504, %v6470
      %6728 = vst.msk [vmem:[%s229 + $0x37c] sm:$0xf] %vm6504, %v6471
      %6729 = vst.msk [vmem:[%s229 + $0x380] sm:$0xf] %vm6504, %v6472
      %6730 = vst.msk [vmem:[%s229 + $0x384] sm:$0xf] %vm6504, %v6473
      %6731 = vst.msk [vmem:[%s229 + $0x388] sm:$0xf] %vm6504, %v6474
      %6732 = vst.msk [vmem:[%s229 + $0x38c] sm:$0xf] %vm6504, %v6475
      %6733 = vst.msk [vmem:[%s229 + $0x390] sm:$0xf] %vm6504, %v6476
      %6734 = vst.msk [vmem:[%s229 + $0x394] sm:$0xf] %vm6504, %v6477
      %6735 = vst.msk [vmem:[%s229 + $0x398] sm:$0xf] %vm6504, %v6478
      %6736 = vst.msk [vmem:[%s229 + $0x39c] sm:$0xf] %vm6504, %v6479
      %6737 = vst.msk [vmem:[%s229 + $0x3a0] sm:$0xf] %vm6504, %v6480
      %6738 = vst.msk [vmem:[%s229 + $0x3a4] sm:$0xf] %vm6504, %v6481
      %6739 = vst.msk [vmem:[%s229 + $0x3a8] sm:$0xf] %vm6504, %v6482
      %6740 = vst.msk [vmem:[%s229 + $0x3ac] sm:$0xf] %vm6504, %v6483
      %6741 = vst.msk [vmem:[%s229 + $0x3b0] sm:$0xf] %vm6504, %v6484
      %6742 = vst.msk [vmem:[%s229 + $0x3b4] sm:$0xf] %vm6504, %v6485
      %6743 = vst.msk [vmem:[%s229 + $0x3b8] sm:$0xf] %vm6504, %v6486
      %6744 = vst.msk [vmem:[%s229 + $0x3bc] sm:$0xf] %vm6504, %v6487
      %6745 = vst.msk [vmem:[%s229 + $0x3c0] sm:$0xf] %vm6504, %v6488
      %6746 = vst.msk [vmem:[%s229 + $0x3c4] sm:$0xf] %vm6504, %v6489
      %6747 = vst.msk [vmem:[%s229 + $0x3c8] sm:$0xf] %vm6504, %v6490
      %6748 = vst.msk [vmem:[%s229 + $0x3cc] sm:$0xf] %vm6504, %v6491
      %6749 = vst.msk [vmem:[%s229 + $0x3d0] sm:$0xf] %vm6504, %v6492
      %6750 = vst.msk [vmem:[%s229 + $0x3d4] sm:$0xf] %vm6504, %v6493
      %6751 = vst.msk [vmem:[%s229 + $0x3d8] sm:$0xf] %vm6504, %v6494
      %6752 = vst.msk [vmem:[%s229 + $0x3dc] sm:$0xf] %vm6504, %v6495
      %6753 = vst.msk [vmem:[%s229 + $0x3e0] sm:$0xf] %vm6504, %v6496
      %6754 = vst.msk [vmem:[%s229 + $0x3e4] sm:$0xf] %vm6504, %v6497
      %6755 = vst.msk [vmem:[%s229 + $0x3e8] sm:$0xf] %vm6504, %v6498
      %6756 = vst.msk [vmem:[%s229 + $0x3ec] sm:$0xf] %vm6504, %v6499
      %6757 = vst.msk [vmem:[%s229 + $0x3f0] sm:$0xf] %vm6504, %v6500
      %6758 = vst.msk [vmem:[%s229 + $0x3f4] sm:$0xf] %vm6504, %v6501
      %6759 = vst.msk [vmem:[%s229 + $0x3f8] sm:$0xf] %vm6504, %v6502
      %6760 = vst.msk [vmem:[%s229 + $0x3fc] sm:$0xf] %vm6504, %v6503
      %s6761 = smul.u32 256, %s16
      %p6762 = scmp.lt.s32.totalorder %s6761, 4095
      %s6763 = scalar_select %p6762, %s6761, 4095
      %s6764 = smul.addr %s6763, 4
      %s6765 = scalar_lea.vmem %s5, %s6764
      // Predicated region
      $region41: #{tpu_custom_call.1} parent=39 // pred_check
        %p6766 = pneg %p144
      $region42: #{tpu_custom_call.1} parent=39 // pred_check_branch
        %6768 = sbr.rel (%p6766) target = $region44
      $region43: #{tpu_custom_call.1} parent=39 // pred_region
        %s6769 = smul.u32 256, %s16
      $region44: #{tpu_custom_call.1} parent=39 // pred_fallthru
        _
    $region40: #{tpu_custom_call.1} parent=5 // pred_fallthru
      _
    %p6770 = scmp.le.s32.totalorder 2, %s11
    // Predicated region
    $region45: #{tpu_custom_call.1} parent=5 // pred_check
      %p6771 = pneg %p6770
    $region46: #{tpu_custom_call.1} parent=5 // pred_check_branch
      %6773 = sbr.rel (%p6771) target = $region48
    $region47: #{tpu_custom_call.1} parent=5 // pred_region
      %s6774 = ssub.s32 %s11, 2
      // Predicated region
      $region49: #{tpu_custom_call.1} parent=47 // pred_check
        %p6775 = pneg %p150
      $region50: #{tpu_custom_call.1} parent=47 // pred_check_branch
        %6777 = sbr.rel (%p6775) target = $region52
      $region51: #{tpu_custom_call.1} parent=47 // pred_region
        %s6778 = smul.u32 256, %s17
        %p6779 = scmp.lt.s32.totalorder %s6778, 4095
        %s6780 = scalar_select %p6779, %s6778, 4095
        %s6781 = smul.addr %s6780, 4
        %s6782 = scalar_lea.vmem %s5, %s6781
      $region52: #{tpu_custom_call.1} parent=47 // pred_fallthru
        _
    $region48: #{tpu_custom_call.1} parent=5 // pred_fallthru
      _
  $region6: #{tpu_custom_call.1} parent=0 // loop_footer
    %s15 = sadd.s32 1, %s11
  $region7: #{tpu_custom_call.1} parent=0 // loop_footer_branch
    %10 = sbr.rel target = $region3
  $region8: #{tpu_custom_call.1} parent=0 // loop_exit
    _

</llo_original>
